<compile_context>
chip_gen: v7x
topology: tpu7x:2x2x1
jax: 0.10.0
libtpu: 0.0.40
codegen_flags: <defaults>
</compile_context>

<pallas_src>
import functools

import jax
import jax.numpy as jnp
from jax import lax
from jax.experimental import pallas as pl
from jax.experimental.pallas import tpu as pltpu


_INV_SQRT2 = 0.7071067811865476

# MXU operand dtype (matmul weights are passed in this dtype; activations are cast at
# the MXU input). Accumulation is always f32 via preferred_element_type.
MXU_IN_DTYPE = jnp.bfloat16

# Mark the (single) grid axis "parallel": megacore sharding on v7x, no-op on v5e/v6e.
_PARALLEL_1D = pltpu.CompilerParams(dimension_semantics=("parallel",))


def _dot(a, b):
    return jnp.dot(a.astype(MXU_IN_DTYPE), b.astype(MXU_IN_DTYPE),
                   preferred_element_type=jnp.float32)


def _ln_lastdim(x, gamma, beta, eps):
    mu = jnp.mean(x, axis=-1, keepdims=True)
    d = x - mu
    var = jnp.mean(d * d, axis=-1, keepdims=True)
    return d * lax.rsqrt(var + eps) * gamma + beta


# ----------------------------- Pallas kernels ------------------------------

def _stem_kernel(p_ref, w_ref, b_ref, g_ref, be_ref, o_ref, *, eps):
    """Stem: 4x4/s4 conv (patch-row matmul on the MXU) + channels_first LayerNorm."""
    acc = _dot(p_ref[...], w_ref[...]) + b_ref[...]
    o_ref[...] = _ln_lastdim(acc, g_ref[...], be_ref[...], eps).astype(o_ref.dtype)


def _ln_downsample_kernel(p_ref, g_ref, be_ref, w_ref, b_ref, o_ref, *, eps):
    """Downsample: channels_first LayerNorm per 2x2-patch pixel, then ONE conv matmul
    with K = 4*C (single MXU contraction instead of 4 small per-segment matmuls)."""
    p = p_ref[...].astype(jnp.float32)                 # (tm, 4*C)
    g = g_ref[...]
    be = be_ref[...]
    C = g.shape[-1]
    nseg = p.shape[-1] // C
    pn = jnp.concatenate(
        [_ln_lastdim(p[:, s * C:(s + 1) * C], g, be, eps) for s in range(nseg)],
        axis=-1)                                       # (tm, 4*C), normalized per pixel
    out = _dot(pn, w_ref[...]) + b_ref[...]
    o_ref[...] = out.astype(o_ref.dtype)


def _incdw_kernel(x_ref, tw_ref, tb_ref, o_ref, xp_ref, *, taps, pad):
    """InceptionDWConv2d: identity passthrough + {3x3, 1x11, 11x1} depthwise branches.
    The 3*gc branch channels are zero-padded into a VMEM scratch in-kernel and all three
    branches are accumulated in one 3*gc-wide tap loop (per-tap weights zero-padded for
    the non-participating branches)."""
    _, H, W, C = x_ref.shape
    g3 = xp_ref.shape[-1]
    cid = C - g3

    x = x_ref[...].astype(jnp.float32)                 # (1, H, W, C)
    # In-kernel zero padding (replaces the per-block XLA jnp.pad + HBM round trip).
    xp_ref[...] = jnp.zeros_like(xp_ref)
    xp_ref[:, pad:pad + H, pad:pad + W, :] = x[..., cid:]

    tw = tw_ref[...].astype(jnp.float32)               # (n_taps, 3*gc) combined weights
    acc = tb_ref[...].astype(jnp.float32)              # (1, 3*gc) bias seeds the acc
    for t, (dy, dx) in enumerate(taps):
        acc = acc + xp_ref[:, dy:dy + H, dx:dx + W, :] * tw[t:t + 1, :]

    # Identity channels pass straight through; single full-block store.
    o_ref[...] = jnp.concatenate([x[..., :cid], acc], axis=-1).astype(o_ref.dtype)


def _mlp_kernel(y_ref, x_ref, g_ref, be_ref, w1_ref, b1_ref, w2_ref, b2_ref, o_ref,
                *, eps):
    """LayerNorm -> pwconv1 -> GELU(exact) -> pwconv2 -> + residual over one row tile of
    the flattened (B*H*W, C) activations, so the MXU sees M = row-tile."""
    yn = _ln_lastdim(y_ref[...].astype(jnp.float32), g_ref[...], be_ref[...], eps)
    h = _dot(yn, w1_ref[...]) + b1_ref[...]
    h = 0.5 * h * (1.0 + lax.erf(h * _INV_SQRT2))      # exact GELU (matches nn.GELU)
    out = _dot(h, w2_ref[...]) + b2_ref[...]
    o_ref[...] = (x_ref[...].astype(jnp.float32) + out).astype(o_ref.dtype)


# ------------------------------ wrappers ------------------------------------

def _row_tile(n, bytes_per_row, budget=4 << 20):
    """Largest pipeline-friendly row tile that divides n and fits a VMEM budget;
    falls back to a single full-size block for tiny / non-divisible n."""
    best = n
    for t in (8, 16, 32, 64, 128, 256, 512, 1024, 2048):
        if n % t == 0 and t * bytes_per_row <= budget:
            best = t
    return best


def _extract_patches(x, k):
    """Non-overlapping kxk patch rows, flattened in (kh, kw, Cin) order."""
    B, H, W, Cin = x.shape
    assert H % k == 0 and W % k == 0, (x.shape, k)
    Ho, Wo = H // k, W // k
    p = (x.reshape(B, Ho, k, Wo, k, Cin)
          .transpose(0, 1, 3, 2, 4, 5)
          .reshape(B * Ho * Wo, k * k * Cin))
    return p, (B, Ho, Wo)


def stem_forward(x, params):
    patches, (B, Ho, Wo) = _extract_patches(x, 4)
    N, K = patches.shape
    Cout = params['stem_w'].shape[1]
    tm = _row_tile(N, 4 * (K + 2 * Cout))
    out = pl.pallas_call(
        functools.partial(_stem_kernel, eps=1e-6),
        out_shape=jax.ShapeDtypeStruct((N, Cout), x.dtype),
        grid=(N // tm,),
        in_specs=[pl.BlockSpec((tm, K), lambda i: (i, 0)),
                  pl.BlockSpec((K, Cout), lambda i: (0, 0)),
                  pl.BlockSpec((1, Cout), lambda i: (0, 0)),
                  pl.BlockSpec((1, Cout), lambda i: (0, 0)),
                  pl.BlockSpec((1, Cout), lambda i: (0, 0))],
        out_specs=pl.BlockSpec((tm, Cout), lambda i: (i, 0)),
        compiler_params=_PARALLEL_1D,
    )(patches, params['stem_w'].astype(MXU_IN_DTYPE),
      params['stem_b'].reshape(1, Cout),
      params['stem_ln_g'].reshape(1, Cout), params['stem_ln_b'].reshape(1, Cout))
    return out.reshape(B, Ho, Wo, Cout)


def downsample_forward(x, p):
    C = x.shape[-1]
    patches, (B, Ho, Wo) = _extract_patches(x, 2)
    N, K = patches.shape
    Cout = p['w'].shape[1]
    tm = _row_tile(N, 4 * (2 * K + 2 * Cout))
    out = pl.pallas_call(
        functools.partial(_ln_downsample_kernel, eps=1e-6),
        out_shape=jax.ShapeDtypeStruct((N, Cout), x.dtype),
        grid=(N // tm,),
        in_specs=[pl.BlockSpec((tm, K), lambda i: (i, 0)),
                  pl.BlockSpec((1, C), lambda i: (0, 0)),
                  pl.BlockSpec((1, C), lambda i: (0, 0)),
                  pl.BlockSpec((K, Cout), lambda i: (0, 0)),
                  pl.BlockSpec((1, Cout), lambda i: (0, 0))],
        out_specs=pl.BlockSpec((tm, Cout), lambda i: (i, 0)),
        compiler_params=_PARALLEL_1D,
    )(patches, p['ln_g'].reshape(1, C), p['ln_b'].reshape(1, C),
      p['w'].astype(MXU_IN_DTYPE), p['b'].reshape(1, Cout))
    return out.reshape(B, Ho, Wo, Cout)


def _tap_offsets(square_k, band_k):
    """Unique (dy, dx) offsets (in the band_k//2-padded frame) needed by the union of
    the 3x3 square, 1xK W-band and Kx1 H-band depthwise convs (25 for 3/11)."""
    pad = band_k // 2
    sq = pad - square_k // 2
    offs = []
    for dy in range(square_k):
        for dx in range(square_k):
            offs.append((sq + dy, sq + dx))
    for dx in range(band_k):
        if (pad, dx) not in offs:
            offs.append((pad, dx))
    for dy in range(band_k):
        if (dy, pad) not in offs:
            offs.append((dy, pad))
    return tuple(offs)


def _tap_params(dw, offs, square_k, band_k):
    """Combined per-tap weights over the 3*gc branch-channel slab (zero where a branch
    has no tap at that offset) + combined bias. Tiny XLA ops, once per block call."""
    pad = band_k // 2
    sq = pad - square_k // 2
    gc = dw['w_hw'].shape[-1]
    zero = jnp.zeros((gc,), jnp.float32)
    rows = []
    for dy, dx in offs:
        in_sq = 0 <= dy - sq < square_k and 0 <= dx - sq < square_k
        w_sq = dw['w_hw'][dy - sq, dx - sq] if in_sq else zero
        w_w = dw['w_w'][dx] if dy == pad else zero
        w_h = dw['w_h'][dy] if dx == pad else zero
        rows.append(jnp.concatenate([w_sq, w_w, w_h]))
    tw = jnp.stack(rows)                                        # (n_taps, 3*gc)
    tb = jnp.concatenate([dw['b_hw'], dw['b_w'], dw['b_h']])    # (3*gc,)
    return tw, tb


def block_forward(x, p, *, square_k=3, band_k=11):
    """One InceptionNeXt Block on NHWC x: dwconv kernel + row-tiled MLP kernel."""
    B, H, W, C = x.shape
    gc = p['dw']['w_hw'].shape[-1]
    g3 = 3 * gc
    Ch = p['w1'].shape[1]
    pad = band_k // 2
    offs = _tap_offsets(square_k, band_k)
    tw, tb = _tap_params(p['dw'], offs, square_k, band_k)
    n_taps = len(offs)

    # 1) InceptionDWConv2d (identity passthrough + 3 fused depthwise branches).
    y = pl.pallas_call(
        functools.partial(_incdw_kernel, taps=offs, pad=pad),
        out_shape=jax.ShapeDtypeStruct((B, H, W, C), x.dtype),
        grid=(B,),
        in_specs=[pl.BlockSpec((1, H, W, C), lambda b: (b, 0, 0, 0)),
                  pl.BlockSpec((n_taps, g3), lambda b: (0, 0)),
                  pl.BlockSpec((1, g3), lambda b: (0, 0))],
        out_specs=pl.BlockSpec((1, H, W, C), lambda b: (b, 0, 0, 0)),
        scratch_shapes=[pltpu.VMEM((1, H + 2 * pad, W + 2 * pad, g3), jnp.float32)],
        compiler_params=_PARALLEL_1D,
    )(x, tw, tb.reshape(1, g3))

    # 2) LN -> pwconv1 -> GELU -> pwconv2 -> + residual over flattened B*H*W rows.
    N = B * H * W
    y2 = y.reshape(N, C)
    x2 = x.reshape(N, C)
    tm = _row_tile(N, 4 * (4 * C + 2 * Ch))
    out = pl.pallas_call(
        functools.partial(_mlp_kernel, eps=1e-6),
        out_shape=jax.ShapeDtypeStruct((N, C), x.dtype),
        grid=(N // tm,),
        in_specs=[pl.BlockSpec((tm, C), lambda i: (i, 0)),
                  pl.BlockSpec((tm, C), lambda i: (i, 0)),
                  pl.BlockSpec((1, C), lambda i: (0, 0)),     # LN gamma
                  pl.BlockSpec((1, C), lambda i: (0, 0)),     # LN beta
                  pl.BlockSpec((C, Ch), lambda i: (0, 0)),    # pwconv1 W (bf16)
                  pl.BlockSpec((1, Ch), lambda i: (0, 0)),    # pwconv1 b
                  pl.BlockSpec((Ch, C), lambda i: (0, 0)),    # pwconv2 W (bf16)
                  pl.BlockSpec((1, C), lambda i: (0, 0))],    # pwconv2 b
        out_specs=pl.BlockSpec((tm, C), lambda i: (i, 0)),
        input_output_aliases={0: 0},   # dwconv output is dead after this kernel
        compiler_params=_PARALLEL_1D,
    )(y2, x2, p['ln_g'].reshape(1, C), p['ln_b'].reshape(1, C),
      p['w1'].astype(MXU_IN_DTYPE), p['b1'].reshape(1, Ch),
      p['w2'].astype(MXU_IN_DTYPE), p['b2'].reshape(1, C))
    return out.reshape(B, H, W, C)


# ------------------------------ parameters ----------------------------------

def _trunc_normal(key, shape, std=0.02):
    # TODO(synk): timm trunc_normal_ truncates at absolute +/-2; this truncates at +/-2 sigma.
    return std * jax.random.truncated_normal(key, -2.0, 2.0, shape, dtype=jnp.float32)


def init_params(key, in_chans=3, depths=(2, 2, 2, 2), dims=(16, 32, 64, 128)):
    keys = iter(jax.random.split(key, 256))
    params = {}
    # stem: Conv2d(in_chans, dims[0], 4, stride=4) + LayerNorm(channels_first)
    params['stem_w'] = _trunc_normal(next(keys), (4 * 4 * in_chans, dims[0]))
    params['stem_b'] = jnp.zeros((dims[0],), jnp.float32)
    params['stem_ln_g'] = jnp.ones((dims[0],), jnp.float32)
    params['stem_ln_b'] = jnp.zeros((dims[0],), jnp.float32)
    # downsample layers 1..3: LayerNorm(channels_first) + Conv2d(k=2, s=2)
    downs = []
    for i in range(3):
        downs.append({
            'ln_g': jnp.ones((dims[i],), jnp.float32),
            'ln_b': jnp.zeros((dims[i],), jnp.float32),
            'w': _trunc_normal(next(keys), (2 * 2 * dims[i], dims[i + 1])),
            'b': jnp.zeros((dims[i + 1],), jnp.float32),
        })
    params['downs'] = downs
    # stages of Blocks
    stages = []
    for i in range(4):
        dim = dims[i]
        gc = int(dim * 0.125)   # dims are multiples of 8 in all InceptionNeXt configs
        blocks = []
        for _ in range(depths[i]):
            blocks.append({
                'dw': {
                    'w_hw': _trunc_normal(next(keys), (3, 3, gc)),
                    'b_hw': jnp.zeros((gc,), jnp.float32),
                    'w_w': _trunc_normal(next(keys), (11, gc)),
                    'b_w': jnp.zeros((gc,), jnp.float32),
                    'w_h': _trunc_normal(next(keys), (11, gc)),
                    'b_h': jnp.zeros((gc,), jnp.float32),
                },
                'ln_g': jnp.ones((dim,), jnp.float32),
                'ln_b': jnp.zeros((dim,), jnp.float32),
                'w1': _trunc_normal(next(keys), (dim, 4 * dim)),
                'b1': jnp.zeros((4 * dim,), jnp.float32),
                'w2': _trunc_normal(next(keys), (4 * dim, dim)),
                'b2': jnp.zeros((dim,), jnp.float32),
            })
        stages.append(blocks)
    params['stages'] = stages
    return params


# ------------------------------ forward --------------------------------------

def forward(params, x_nchw, out_indices=(0, 1, 2, 3)):
    x = jnp.transpose(x_nchw, (0, 2, 3, 1))  # NCHW -> NHWC (once, at the boundary)
    outs = []
    for i in range(4):
        if i == 0:
            x = stem_forward(x, params)
        else:
            x = downsample_forward(x, params['downs'][i - 1])
        for blk in params['stages'][i]:
            x = block_forward(x, blk)
        if i in out_indices:
            outs.append(jnp.transpose(x, (0, 3, 1, 2)))  # NHWC -> NCHW (match torch)
    return tuple(outs)


# -------------------------------- main ----------------------------------------

if __name__ == "__main__":
    key = jax.random.PRNGKey(0)
    kp, kx = jax.random.split(key)

    depths = (2, 2, 2, 2)
    dims = (16, 32, 64, 128)
    params = init_params(kp, in_chans=3, depths=depths, dims=dims)

    x = jax.random.normal(kx, (2, 3, 32, 32), dtype=jnp.float32)

    fwd = jax.jit(forward)
    outs = jax.block_until_ready(fwd(params, x))

    expected = [(2, 16, 8, 8), (2, 32, 4, 4), (2, 64, 2, 2), (2, 128, 1, 1)]
    assert tuple(o.shape for o in outs) == tuple(expected), [o.shape for o in outs]
    assert all(bool(jnp.all(jnp.isfinite(o))) for o in outs)
    print("KERNEL_OK")
</pallas_src>

<mosaic_0001>
module attributes {stable_mosaic.version = 11 : i64} {
  func.func @_stem_kernel(%arg0: i32, %arg1: memref<128x48xf32, #tpu.memory_space<vmem>>, %arg2: memref<48x16xbf16, #tpu.memory_space<vmem>>, %arg3: memref<1x16xf32, #tpu.memory_space<vmem>>, %arg4: memref<1x16xf32, #tpu.memory_space<vmem>>, %arg5: memref<1x16xf32, #tpu.memory_space<vmem>>, %arg6: memref<128x16xf32, #tpu.memory_space<vmem>>) attributes {dimension_semantics = [#tpu.dimension_semantics<parallel>], iteration_bounds = array<i64: 1>, scalar_prefetch = 0 : i64, scratch_operands = 0 : i64, tpu.core_type = #tpu.core_type<tc>, window_params = [{transform_indices = @transform_0, window_bounds = array<i64: 128, 48>}, {pipeline_mode = #tpu.pipeline_mode<synchronous>, transform_indices = @transform_1, window_bounds = array<i64: 48, 16>}, {pipeline_mode = #tpu.pipeline_mode<synchronous>, transform_indices = @transform_2, window_bounds = array<i64: 1, 16>}, {pipeline_mode = #tpu.pipeline_mode<synchronous>, transform_indices = @transform_3, window_bounds = array<i64: 1, 16>}, {pipeline_mode = #tpu.pipeline_mode<synchronous>, transform_indices = @transform_4, window_bounds = array<i64: 1, 16>}, {transform_indices = @transform_5, window_bounds = array<i64: 128, 16>}]} {
    %c0 = arith.constant 0 : index
    %c0_0 = arith.constant 0 : index
    %0 = vector.load %arg1[%c0, %c0_0] : memref<128x48xf32, #tpu.memory_space<vmem>>, vector<128x48xf32>
    %c0_1 = arith.constant 0 : index
    %c0_2 = arith.constant 0 : index
    %1 = vector.load %arg2[%c0_1, %c0_2] : memref<48x16xbf16, #tpu.memory_space<vmem>>, vector<48x16xbf16>
    %2 = arith.truncf %0 : vector<128x48xf32> to vector<128x48xbf16>
    %cst = arith.constant dense<0.000000e+00> : vector<128x16xf32>
    %3 = tpu.matmul %2, %1, %cst {dimension_numbers = #tpu.dot_dimension_numbers<[1], [0], [0], [1], [0, 0, 1, 1], [], []>} : vector<128x48xbf16>, vector<48x16xbf16>, vector<128x16xf32> -> vector<128x16xf32>
    %c0_3 = arith.constant 0 : index
    %c0_4 = arith.constant 0 : index
    %4 = vector.load %arg3[%c0_3, %c0_4] : memref<1x16xf32, #tpu.memory_space<vmem>>, vector<1x16xf32>
    %5 = vector.broadcast %4 : vector<1x16xf32> to vector<128x16xf32>
    %6 = arith.addf %3, %5 : vector<128x16xf32>
    %c0_5 = arith.constant 0 : index
    %c0_6 = arith.constant 0 : index
    %7 = vector.load %arg4[%c0_5, %c0_6] : memref<1x16xf32, #tpu.memory_space<vmem>>, vector<1x16xf32>
    %c0_7 = arith.constant 0 : index
    %c0_8 = arith.constant 0 : index
    %8 = vector.load %arg5[%c0_7, %c0_8] : memref<1x16xf32, #tpu.memory_space<vmem>>, vector<1x16xf32>
    %cst_9 = arith.constant dense<0.000000e+00> : vector<128xf32>
    %9 = vector.multi_reduction <add>, %6, %cst_9 [1] : vector<128x16xf32> to vector<128xf32>
    %10 = vector.shape_cast %9 : vector<128xf32> to vector<128x1xf32>
    %cst_10 = arith.constant 1.600000e+01 : f32
    %11 = vector.broadcast %cst_10 : f32 to vector<128x1xf32>
    %12 = arith.divf %10, %11 : vector<128x1xf32>
    %13 = vector.broadcast %12 : vector<128x1xf32> to vector<128x16xf32>
    %14 = arith.subf %6, %13 : vector<128x16xf32>
    %15 = arith.mulf %14, %14 : vector<128x16xf32>
    %cst_11 = arith.constant dense<0.000000e+00> : vector<128xf32>
    %16 = vector.multi_reduction <add>, %15, %cst_11 [1] : vector<128x16xf32> to vector<128xf32>
    %17 = vector.shape_cast %16 : vector<128xf32> to vector<128x1xf32>
    %cst_12 = arith.constant 1.600000e+01 : f32
    %18 = vector.broadcast %cst_12 : f32 to vector<128x1xf32>
    %19 = arith.divf %17, %18 : vector<128x1xf32>
    %cst_13 = arith.constant 9.99999997E-7 : f32
    %20 = vector.broadcast %cst_13 : f32 to vector<128x1xf32>
    %21 = arith.addf %19, %20 : vector<128x1xf32>
    %22 = math.rsqrt %21 : vector<128x1xf32>
    %23 = vector.broadcast %22 : vector<128x1xf32> to vector<128x16xf32>
    %24 = arith.mulf %14, %23 : vector<128x16xf32>
    %25 = vector.broadcast %7 : vector<1x16xf32> to vector<128x16xf32>
    %26 = arith.mulf %24, %25 : vector<128x16xf32>
    %27 = vector.broadcast %8 : vector<1x16xf32> to vector<128x16xf32>
    %28 = arith.addf %26, %27 : vector<128x16xf32>
    %c0_14 = arith.constant 0 : index
    %c0_15 = arith.constant 0 : index
    %29 = vector.load %arg6[%c0_14, %c0_15] : memref<128x16xf32, #tpu.memory_space<vmem>>, vector<128x16xf32>
    tpu.vector_store %arg6[%c0_14, %c0_15], %28 {strides = array<i32>} : memref<128x16xf32, #tpu.memory_space<vmem>>, vector<128x16xf32>,
    return
  }
  func.func @transform_0(%arg0: i32) -> (i32, i32) {
    %c0_i32 = arith.constant 0 : i32
    %c0_i32_0 = arith.constant 0 : i32
    return %arg0, %c0_i32 : i32, i32
  }
  func.func @transform_1(%arg0: i32) -> (i32, i32) {
    %c0_i32 = arith.constant 0 : i32
    %c0_i32_0 = arith.constant 0 : i32
    %c0_i32_1 = arith.constant 0 : i32
    return %c0_i32, %c0_i32_0 : i32, i32
  }
  func.func @transform_2(%arg0: i32) -> (i32, i32) {
    %c0_i32 = arith.constant 0 : i32
    %c0_i32_0 = arith.constant 0 : i32
    %c0_i32_1 = arith.constant 0 : i32
    return %c0_i32, %c0_i32_0 : i32, i32
  }
  func.func @transform_3(%arg0: i32) -> (i32, i32) {
    %c0_i32 = arith.constant 0 : i32
    %c0_i32_0 = arith.constant 0 : i32
    %c0_i32_1 = arith.constant 0 : i32
    return %c0_i32, %c0_i32_0 : i32, i32
  }
  func.func @transform_4(%arg0: i32) -> (i32, i32) {
    %c0_i32 = arith.constant 0 : i32
    %c0_i32_0 = arith.constant 0 : i32
    %c0_i32_1 = arith.constant 0 : i32
    return %c0_i32, %c0_i32_0 : i32, i32
  }
  func.func @transform_5(%arg0: i32) -> (i32, i32) {
    %c0_i32 = arith.constant 0 : i32
    %c0_i32_0 = arith.constant 0 : i32
    return %arg0, %c0_i32 : i32, i32
  }
}

module attributes {stable_mosaic.version = 11 : i64} {
  func.func @_mlp_kernel(%arg0: i32, %arg1: memref<128x16xf32, #tpu.memory_space<vmem>>, %arg2: memref<128x16xf32, #tpu.memory_space<vmem>>, %arg3: memref<1x16xf32, #tpu.memory_space<vmem>>, %arg4: memref<1x16xf32, #tpu.memory_space<vmem>>, %arg5: memref<16x64xbf16, #tpu.memory_space<vmem>>, %arg6: memref<1x64xf32, #tpu.memory_space<vmem>>, %arg7: memref<64x16xbf16, #tpu.memory_space<vmem>>, %arg8: memref<1x16xf32, #tpu.memory_space<vmem>>, %arg9: memref<128x16xf32, #tpu.memory_space<vmem>>) attributes {dimension_semantics = [#tpu.dimension_semantics<parallel>], iteration_bounds = array<i64: 1>, scalar_prefetch = 0 : i64, scratch_operands = 0 : i64, tpu.core_type = #tpu.core_type<tc>, window_params = [{transform_indices = @transform_0, window_bounds = array<i64: 128, 16>}, {transform_indices = @transform_1, window_bounds = array<i64: 128, 16>}, {pipeline_mode = #tpu.pipeline_mode<synchronous>, transform_indices = @transform_2, window_bounds = array<i64: 1, 16>}, {pipeline_mode = #tpu.pipeline_mode<synchronous>, transform_indices = @transform_3, window_bounds = array<i64: 1, 16>}, {pipeline_mode = #tpu.pipeline_mode<synchronous>, transform_indices = @transform_4, window_bounds = array<i64: 16, 64>}, {pipeline_mode = #tpu.pipeline_mode<synchronous>, transform_indices = @transform_5, window_bounds = array<i64: 1, 64>}, {pipeline_mode = #tpu.pipeline_mode<synchronous>, transform_indices = @transform_6, window_bounds = array<i64: 64, 16>}, {pipeline_mode = #tpu.pipeline_mode<synchronous>, transform_indices = @transform_7, window_bounds = array<i64: 1, 16>}, {transform_indices = @transform_8, window_bounds = array<i64: 128, 16>}]} {
    %c0 = arith.constant 0 : index
    %c0_0 = arith.constant 0 : index
    %0 = vector.load %arg1[%c0, %c0_0] : memref<128x16xf32, #tpu.memory_space<vmem>>, vector<128x16xf32>
    %c0_1 = arith.constant 0 : index
    %c0_2 = arith.constant 0 : index
    %1 = vector.load %arg3[%c0_1, %c0_2] : memref<1x16xf32, #tpu.memory_space<vmem>>, vector<1x16xf32>
    %c0_3 = arith.constant 0 : index
    %c0_4 = arith.constant 0 : index
    %2 = vector.load %arg4[%c0_3, %c0_4] : memref<1x16xf32, #tpu.memory_space<vmem>>, vector<1x16xf32>
    %cst = arith.constant dense<0.000000e+00> : vector<128xf32>
    %3 = vector.multi_reduction <add>, %0, %cst [1] : vector<128x16xf32> to vector<128xf32>
    %4 = vector.shape_cast %3 : vector<128xf32> to vector<128x1xf32>
    %cst_5 = arith.constant 1.600000e+01 : f32
    %5 = vector.broadcast %cst_5 : f32 to vector<128x1xf32>
    %6 = arith.divf %4, %5 : vector<128x1xf32>
    %7 = vector.broadcast %6 : vector<128x1xf32> to vector<128x16xf32>
    %8 = arith.subf %0, %7 : vector<128x16xf32>
    %9 = arith.mulf %8, %8 : vector<128x16xf32>
    %cst_6 = arith.constant dense<0.000000e+00> : vector<128xf32>
    %10 = vector.multi_reduction <add>, %9, %cst_6 [1] : vector<128x16xf32> to vector<128xf32>
    %11 = vector.shape_cast %10 : vector<128xf32> to vector<128x1xf32>
    %cst_7 = arith.constant 1.600000e+01 : f32
    %12 = vector.broadcast %cst_7 : f32 to vector<128x1xf32>
    %13 = arith.divf %11, %12 : vector<128x1xf32>
    %cst_8 = arith.constant 9.99999997E-7 : f32
    %14 = vector.broadcast %cst_8 : f32 to vector<128x1xf32>
    %15 = arith.addf %13, %14 : vector<128x1xf32>
    %16 = math.rsqrt %15 : vector<128x1xf32>
    %17 = vector.broadcast %16 : vector<128x1xf32> to vector<128x16xf32>
    %18 = arith.mulf %8, %17 : vector<128x16xf32>
    %19 = vector.broadcast %1 : vector<1x16xf32> to vector<128x16xf32>
    %20 = arith.mulf %18, %19 : vector<128x16xf32>
    %21 = vector.broadcast %2 : vector<1x16xf32> to vector<128x16xf32>
    %22 = arith.addf %20, %21 : vector<128x16xf32>
    %c0_9 = arith.constant 0 : index
    %c0_10 = arith.constant 0 : index
    %23 = vector.load %arg5[%c0_9, %c0_10] : memref<16x64xbf16, #tpu.memory_space<vmem>>, vector<16x64xbf16>
    %24 = arith.truncf %22 : vector<128x16xf32> to vector<128x16xbf16>
    %cst_11 = arith.constant dense<0.000000e+00> : vector<128x64xf32>
    %25 = tpu.matmul %24, %23, %cst_11 {dimension_numbers = #tpu.dot_dimension_numbers<[1], [0], [0], [1], [0, 0, 1, 1], [], []>} : vector<128x16xbf16>, vector<16x64xbf16>, vector<128x64xf32> -> vector<128x64xf32>
    %c0_12 = arith.constant 0 : index
    %c0_13 = arith.constant 0 : index
    %26 = vector.load %arg6[%c0_12, %c0_13] : memref<1x64xf32, #tpu.memory_space<vmem>>, vector<1x64xf32>
    %27 = vector.broadcast %26 : vector<1x64xf32> to vector<128x64xf32>
    %28 = arith.addf %25, %27 : vector<128x64xf32>
    %cst_14 = arith.constant 5.000000e-01 : f32
    %29 = vector.broadcast %cst_14 : f32 to vector<128x64xf32>
    %30 = arith.mulf %29, %28 : vector<128x64xf32>
    %cst_15 = arith.constant 0.707106769 : f32
    %31 = vector.broadcast %cst_15 : f32 to vector<128x64xf32>
    %32 = arith.mulf %28, %31 : vector<128x64xf32>
    %33 = math.erf %32 : vector<128x64xf32>
    %cst_16 = arith.constant 1.000000e+00 : f32
    %34 = vector.broadcast %cst_16 : f32 to vector<128x64xf32>
    %35 = arith.addf %34, %33 : vector<128x64xf32>
    %36 = arith.mulf %30, %35 : vector<128x64xf32>
    %c0_17 = arith.constant 0 : index
    %c0_18 = arith.constant 0 : index
    %37 = vector.load %arg7[%c0_17, %c0_18] : memref<64x16xbf16, #tpu.memory_space<vmem>>, vector<64x16xbf16>
    %38 = arith.truncf %36 : vector<128x64xf32> to vector<128x64xbf16>
    %cst_19 = arith.constant dense<0.000000e+00> : vector<128x16xf32>
    %39 = tpu.matmul %38, %37, %cst_19 {dimension_numbers = #tpu.dot_dimension_numbers<[1], [0], [0], [1], [0, 0, 1, 1], [], []>} : vector<128x64xbf16>, vector<64x16xbf16>, vector<128x16xf32> -> vector<128x16xf32>
    %c0_20 = arith.constant 0 : index
    %c0_21 = arith.constant 0 : index
    %40 = vector.load %arg8[%c0_20, %c0_21] : memref<1x16xf32, #tpu.memory_space<vmem>>, vector<1x16xf32>
    %41 = vector.broadcast %40 : vector<1x16xf32> to vector<128x16xf32>
    %42 = arith.addf %39, %41 : vector<128x16xf32>
    %c0_22 = arith.constant 0 : index
    %c0_23 = arith.constant 0 : index
    %43 = vector.load %arg2[%c0_22, %c0_23] : memref<128x16xf32, #tpu.memory_space<vmem>>, vector<128x16xf32>
    %44 = arith.addf %43, %42 : vector<128x16xf32>
    %c0_24 = arith.constant 0 : index
    %c0_25 = arith.constant 0 : index
    %45 = vector.load %arg9[%c0_24, %c0_25] : memref<128x16xf32, #tpu.memory_space<vmem>>, vector<128x16xf32>
    tpu.vector_store %arg9[%c0_24, %c0_25], %44 {strides = array<i32>} : memref<128x16xf32, #tpu.memory_space<vmem>>, vector<128x16xf32>,
    return
  }
  func.func @transform_0(%arg0: i32) -> (i32, i32) {
    %c0_i32 = arith.constant 0 : i32
    %c0_i32_0 = arith.constant 0 : i32
    return %arg0, %c0_i32 : i32, i32
  }
  func.func @transform_1(%arg0: i32) -> (i32, i32) {
    %c0_i32 = arith.constant 0 : i32
    %c0_i32_0 = arith.constant 0 : i32
    return %arg0, %c0_i32 : i32, i32
  }
  func.func @transform_2(%arg0: i32) -> (i32, i32) {
    %c0_i32 = arith.constant 0 : i32
    %c0_i32_0 = arith.constant 0 : i32
    %c0_i32_1 = arith.constant 0 : i32
    return %c0_i32, %c0_i32_0 : i32, i32
  }
  func.func @transform_3(%arg0: i32) -> (i32, i32) {
    %c0_i32 = arith.constant 0 : i32
    %c0_i32_0 = arith.constant 0 : i32
    %c0_i32_1 = arith.constant 0 : i32
    return %c0_i32, %c0_i32_0 : i32, i32
  }
  func.func @transform_4(%arg0: i32) -> (i32, i32) {
    %c0_i32 = arith.constant 0 : i32
    %c0_i32_0 = arith.constant 0 : i32
    %c0_i32_1 = arith.constant 0 : i32
    return %c0_i32, %c0_i32_0 : i32, i32
  }
  func.func @transform_5(%arg0: i32) -> (i32, i32) {
    %c0_i32 = arith.constant 0 : i32
    %c0_i32_0 = arith.constant 0 : i32
    %c0_i32_1 = arith.constant 0 : i32
    return %c0_i32, %c0_i32_0 : i32, i32
  }
  func.func @transform_6(%arg0: i32) -> (i32, i32) {
    %c0_i32 = arith.constant 0 : i32
    %c0_i32_0 = arith.constant 0 : i32
    %c0_i32_1 = arith.constant 0 : i32
    return %c0_i32, %c0_i32_0 : i32, i32
  }
  func.func @transform_7(%arg0: i32) -> (i32, i32) {
    %c0_i32 = arith.constant 0 : i32
    %c0_i32_0 = arith.constant 0 : i32
    %c0_i32_1 = arith.constant 0 : i32
    return %c0_i32, %c0_i32_0 : i32, i32
  }
  func.func @transform_8(%arg0: i32) -> (i32, i32) {
    %c0_i32 = arith.constant 0 : i32
    %c0_i32_0 = arith.constant 0 : i32
    return %arg0, %c0_i32 : i32, i32
  }
}

module attributes {stable_mosaic.version = 11 : i64} {
  func.func @_incdw_kernel(%arg0: i32, %arg1: memref<1x8x8x16xf32, #tpu.memory_space<vmem>>, %arg2: memref<25x6xf32, #tpu.memory_space<vmem>>, %arg3: memref<1x6xf32, #tpu.memory_space<vmem>>, %arg4: memref<1x8x8x16xf32, #tpu.memory_space<vmem>>, %arg5: memref<1x18x18x6xf32, #tpu.memory_space<vmem>>) attributes {dimension_semantics = [#tpu.dimension_semantics<parallel>], iteration_bounds = array<i64: 2>, scalar_prefetch = 0 : i64, scratch_operands = 1 : i64, tpu.core_type = #tpu.core_type<tc>, window_params = [{transform_indices = @transform_0, window_bounds = array<i64: 1, 8, 8, 16>}, {pipeline_mode = #tpu.pipeline_mode<synchronous>, transform_indices = @transform_1, window_bounds = array<i64: 25, 6>}, {pipeline_mode = #tpu.pipeline_mode<synchronous>, transform_indices = @transform_2, window_bounds = array<i64: 1, 6>}, {transform_indices = @transform_3, window_bounds = array<i64: 1, 8, 8, 16>}]} {
    %c0 = arith.constant 0 : index
    %c0_0 = arith.constant 0 : index
    %c0_1 = arith.constant 0 : index
    %c0_2 = arith.constant 0 : index
    %0 = vector.load %arg1[%c0, %c0_0, %c0_1, %c0_2] : memref<1x8x8x16xf32, #tpu.memory_space<vmem>>, vector<1x8x8x16xf32>
    %cst = arith.constant 0.000000e+00 : f32
    %1 = vector.broadcast %cst : f32 to vector<1x18x18x6xf32>
    %c0_3 = arith.constant 0 : index
    %c0_4 = arith.constant 0 : index
    %c0_5 = arith.constant 0 : index
    %c0_6 = arith.constant 0 : index
    %2 = vector.load %arg5[%c0_3, %c0_4, %c0_5, %c0_6] : memref<1x18x18x6xf32, #tpu.memory_space<vmem>>, vector<1x18x18x6xf32>
    tpu.vector_store %arg5[%c0_3, %c0_4, %c0_5, %c0_6], %1 {strides = array<i32>} : memref<1x18x18x6xf32, #tpu.memory_space<vmem>>, vector<1x18x18x6xf32>,
    %3 = vector.extract_strided_slice %0 {offsets = [0, 0, 0, 10], sizes = [1, 8, 8, 6], strides = [1, 1, 1, 1]} : vector<1x8x8x16xf32> to vector<1x8x8x6xf32>
    %c0_7 = arith.constant 0 : index
    %c5 = arith.constant 5 : index
    %c5_8 = arith.constant 5 : index
    %c0_9 = arith.constant 0 : index
    %4 = vector.load %arg5[%c0_7, %c5, %c5_8, %c0_9] : memref<1x18x18x6xf32, #tpu.memory_space<vmem>>, vector<1x8x8x6xf32>
    tpu.vector_store %arg5[%c0_7, %c5, %c5_8, %c0_9], %3 {strides = array<i32>} : memref<1x18x18x6xf32, #tpu.memory_space<vmem>>, vector<1x8x8x6xf32>,
    %c0_10 = arith.constant 0 : index
    %c0_11 = arith.constant 0 : index
    %5 = vector.load %arg2[%c0_10, %c0_11] : memref<25x6xf32, #tpu.memory_space<vmem>>, vector<25x6xf32>
    %c0_12 = arith.constant 0 : index
    %c0_13 = arith.constant 0 : index
    %6 = vector.load %arg3[%c0_12, %c0_13] : memref<1x6xf32, #tpu.memory_space<vmem>>, vector<1x6xf32>
    %c0_14 = arith.constant 0 : index
    %c4 = arith.constant 4 : index
    %c4_15 = arith.constant 4 : index
    %c0_16 = arith.constant 0 : index
    %7 = vector.load %arg5[%c0_14, %c4, %c4_15, %c0_16] : memref<1x18x18x6xf32, #tpu.memory_space<vmem>>, vector<1x8x8x6xf32>
    %8 = vector.extract_strided_slice %5 {offsets = [0, 0], sizes = [1, 6], strides = [1, 1]} : vector<25x6xf32> to vector<1x6xf32>
    %9 = vector.shape_cast %8 : vector<1x6xf32> to vector<1x1x1x6xf32>
    %10 = vector.broadcast %9 : vector<1x1x1x6xf32> to vector<1x8x8x6xf32>
    %11 = arith.mulf %7, %10 : vector<1x8x8x6xf32>
    %12 = vector.shape_cast %6 : vector<1x6xf32> to vector<1x1x1x6xf32>
    %13 = vector.broadcast %12 : vector<1x1x1x6xf32> to vector<1x8x8x6xf32>
    %14 = arith.addf %13, %11 : vector<1x8x8x6xf32>
    %c0_17 = arith.constant 0 : index
    %c4_18 = arith.constant 4 : index
    %c5_19 = arith.constant 5 : index
    %c0_20 = arith.constant 0 : index
    %15 = vector.load %arg5[%c0_17, %c4_18, %c5_19, %c0_20] : memref<1x18x18x6xf32, #tpu.memory_space<vmem>>, vector<1x8x8x6xf32>
    %16 = vector.extract_strided_slice %5 {offsets = [1, 0], sizes = [1, 6], strides = [1, 1]} : vector<25x6xf32> to vector<1x6xf32>
    %17 = vector.shape_cast %16 : vector<1x6xf32> to vector<1x1x1x6xf32>
    %18 = vector.broadcast %17 : vector<1x1x1x6xf32> to vector<1x8x8x6xf32>
    %19 = arith.mulf %15, %18 : vector<1x8x8x6xf32>
    %20 = arith.addf %14, %19 : vector<1x8x8x6xf32>
    %c0_21 = arith.constant 0 : index
    %c4_22 = arith.constant 4 : index
    %c6 = arith.constant 6 : index
    %c0_23 = arith.constant 0 : index
    %21 = vector.load %arg5[%c0_21, %c4_22, %c6, %c0_23] : memref<1x18x18x6xf32, #tpu.memory_space<vmem>>, vector<1x8x8x6xf32>
    %22 = vector.extract_strided_slice %5 {offsets = [2, 0], sizes = [1, 6], strides = [1, 1]} : vector<25x6xf32> to vector<1x6xf32>
    %23 = vector.shape_cast %22 : vector<1x6xf32> to vector<1x1x1x6xf32>
    %24 = vector.broadcast %23 : vector<1x1x1x6xf32> to vector<1x8x8x6xf32>
    %25 = arith.mulf %21, %24 : vector<1x8x8x6xf32>
    %26 = arith.addf %20, %25 : vector<1x8x8x6xf32>
    %c0_24 = arith.constant 0 : index
    %c5_25 = arith.constant 5 : index
    %c4_26 = arith.constant 4 : index
    %c0_27 = arith.constant 0 : index
    %27 = vector.load %arg5[%c0_24, %c5_25, %c4_26, %c0_27] : memref<1x18x18x6xf32, #tpu.memory_space<vmem>>, vector<1x8x8x6xf32>
    %28 = vector.extract_strided_slice %5 {offsets = [3, 0], sizes = [1, 6], strides = [1, 1]} : vector<25x6xf32> to vector<1x6xf32>
    %29 = vector.shape_cast %28 : vector<1x6xf32> to vector<1x1x1x6xf32>
    %30 = vector.broadcast %29 : vector<1x1x1x6xf32> to vector<1x8x8x6xf32>
    %31 = arith.mulf %27, %30 : vector<1x8x8x6xf32>
    %32 = arith.addf %26, %31 : vector<1x8x8x6xf32>
    %c0_28 = arith.constant 0 : index
    %c5_29 = arith.constant 5 : index
    %c5_30 = arith.constant 5 : index
    %c0_31 = arith.constant 0 : index
    %33 = vector.load %arg5[%c0_28, %c5_29, %c5_30, %c0_31] : memref<1x18x18x6xf32, #tpu.memory_space<vmem>>, vector<1x8x8x6xf32>
    %34 = vector.extract_strided_slice %5 {offsets = [4, 0], sizes = [1, 6], strides = [1, 1]} : vector<25x6xf32> to vector<1x6xf32>
    %35 = vector.shape_cast %34 : vector<1x6xf32> to vector<1x1x1x6xf32>
    %36 = vector.broadcast %35 : vector<1x1x1x6xf32> to vector<1x8x8x6xf32>
    %37 = arith.mulf %33, %36 : vector<1x8x8x6xf32>
    %38 = arith.addf %32, %37 : vector<1x8x8x6xf32>
    %c0_32 = arith.constant 0 : index
    %c5_33 = arith.constant 5 : index
    %c6_34 = arith.constant 6 : index
    %c0_35 = arith.constant 0 : index
    %39 = vector.load %arg5[%c0_32, %c5_33, %c6_34, %c0_35] : memref<1x18x18x6xf32, #tpu.memory_space<vmem>>, vector<1x8x8x6xf32>
    %40 = vector.extract_strided_slice %5 {offsets = [5, 0], sizes = [1, 6], strides = [1, 1]} : vector<25x6xf32> to vector<1x6xf32>
    %41 = vector.shape_cast %40 : vector<1x6xf32> to vector<1x1x1x6xf32>
    %42 = vector.broadcast %41 : vector<1x1x1x6xf32> to vector<1x8x8x6xf32>
    %43 = arith.mulf %39, %42 : vector<1x8x8x6xf32>
    %44 = arith.addf %38, %43 : vector<1x8x8x6xf32>
    %c0_36 = arith.constant 0 : index
    %c6_37 = arith.constant 6 : index
    %c4_38 = arith.constant 4 : index
    %c0_39 = arith.constant 0 : index
    %45 = vector.load %arg5[%c0_36, %c6_37, %c4_38, %c0_39] : memref<1x18x18x6xf32, #tpu.memory_space<vmem>>, vector<1x8x8x6xf32>
    %46 = vector.extract_strided_slice %5 {offsets = [6, 0], sizes = [1, 6], strides = [1, 1]} : vector<25x6xf32> to vector<1x6xf32>
    %47 = vector.shape_cast %46 : vector<1x6xf32> to vector<1x1x1x6xf32>
    %48 = vector.broadcast %47 : vector<1x1x1x6xf32> to vector<1x8x8x6xf32>
    %49 = arith.mulf %45, %48 : vector<1x8x8x6xf32>
    %50 = arith.addf %44, %49 : vector<1x8x8x6xf32>
    %c0_40 = arith.constant 0 : index
    %c6_41 = arith.constant 6 : index
    %c5_42 = arith.constant 5 : index
    %c0_43 = arith.constant 0 : index
    %51 = vector.load %arg5[%c0_40, %c6_41, %c5_42, %c0_43] : memref<1x18x18x6xf32, #tpu.memory_space<vmem>>, vector<1x8x8x6xf32>
    %52 = vector.extract_strided_slice %5 {offsets = [7, 0], sizes = [1, 6], strides = [1, 1]} : vector<25x6xf32> to vector<1x6xf32>
    %53 = vector.shape_cast %52 : vector<1x6xf32> to vector<1x1x1x6xf32>
    %54 = vector.broadcast %53 : vector<1x1x1x6xf32> to vector<1x8x8x6xf32>
    %55 = arith.mulf %51, %54 : vector<1x8x8x6xf32>
    %56 = arith.addf %50, %55 : vector<1x8x8x6xf32>
    %c0_44 = arith.constant 0 : index
    %c6_45 = arith.constant 6 : index
    %c6_46 = arith.constant 6 : index
    %c0_47 = arith.constant 0 : index
    %57 = vector.load %arg5[%c0_44, %c6_45, %c6_46, %c0_47] : memref<1x18x18x6xf32, #tpu.memory_space<vmem>>, vector<1x8x8x6xf32>
    %58 = vector.extract_strided_slice %5 {offsets = [8, 0], sizes = [1, 6], strides = [1, 1]} : vector<25x6xf32> to vector<1x6xf32>
    %59 = vector.shape_cast %58 : vector<1x6xf32> to vector<1x1x1x6xf32>
    %60 = vector.broadcast %59 : vector<1x1x1x6xf32> to vector<1x8x8x6xf32>
    %61 = arith.mulf %57, %60 : vector<1x8x8x6xf32>
    %62 = arith.addf %56, %61 : vector<1x8x8x6xf32>
    %c0_48 = arith.constant 0 : index
    %c5_49 = arith.constant 5 : index
    %c0_50 = arith.constant 0 : index
    %c0_51 = arith.constant 0 : index
    %63 = vector.load %arg5[%c0_48, %c5_49, %c0_50, %c0_51] : memref<1x18x18x6xf32, #tpu.memory_space<vmem>>, vector<1x8x8x6xf32>
    %64 = vector.extract_strided_slice %5 {offsets = [9, 0], sizes = [1, 6], strides = [1, 1]} : vector<25x6xf32> to vector<1x6xf32>
    %65 = vector.shape_cast %64 : vector<1x6xf32> to vector<1x1x1x6xf32>
    %66 = vector.broadcast %65 : vector<1x1x1x6xf32> to vector<1x8x8x6xf32>
    %67 = arith.mulf %63, %66 : vector<1x8x8x6xf32>
    %68 = arith.addf %62, %67 : vector<1x8x8x6xf32>
    %c0_52 = arith.constant 0 : index
    %c5_53 = arith.constant 5 : index
    %c1 = arith.constant 1 : index
    %c0_54 = arith.constant 0 : index
    %69 = vector.load %arg5[%c0_52, %c5_53, %c1, %c0_54] : memref<1x18x18x6xf32, #tpu.memory_space<vmem>>, vector<1x8x8x6xf32>
    %70 = vector.extract_strided_slice %5 {offsets = [10, 0], sizes = [1, 6], strides = [1, 1]} : vector<25x6xf32> to vector<1x6xf32>
    %71 = vector.shape_cast %70 : vector<1x6xf32> to vector<1x1x1x6xf32>
    %72 = vector.broadcast %71 : vector<1x1x1x6xf32> to vector<1x8x8x6xf32>
    %73 = arith.mulf %69, %72 : vector<1x8x8x6xf32>
    %74 = arith.addf %68, %73 : vector<1x8x8x6xf32>
    %c0_55 = arith.constant 0 : index
    %c5_56 = arith.constant 5 : index
    %c2 = arith.constant 2 : index
    %c0_57 = arith.constant 0 : index
    %75 = vector.load %arg5[%c0_55, %c5_56, %c2, %c0_57] : memref<1x18x18x6xf32, #tpu.memory_space<vmem>>, vector<1x8x8x6xf32>
    %76 = vector.extract_strided_slice %5 {offsets = [11, 0], sizes = [1, 6], strides = [1, 1]} : vector<25x6xf32> to vector<1x6xf32>
    %77 = vector.shape_cast %76 : vector<1x6xf32> to vector<1x1x1x6xf32>
    %78 = vector.broadcast %77 : vector<1x1x1x6xf32> to vector<1x8x8x6xf32>
    %79 = arith.mulf %75, %78 : vector<1x8x8x6xf32>
    %80 = arith.addf %74, %79 : vector<1x8x8x6xf32>
    %c0_58 = arith.constant 0 : index
    %c5_59 = arith.constant 5 : index
    %c3 = arith.constant 3 : index
    %c0_60 = arith.constant 0 : index
    %81 = vector.load %arg5[%c0_58, %c5_59, %c3, %c0_60] : memref<1x18x18x6xf32, #tpu.memory_space<vmem>>, vector<1x8x8x6xf32>
    %82 = vector.extract_strided_slice %5 {offsets = [12, 0], sizes = [1, 6], strides = [1, 1]} : vector<25x6xf32> to vector<1x6xf32>
    %83 = vector.shape_cast %82 : vector<1x6xf32> to vector<1x1x1x6xf32>
    %84 = vector.broadcast %83 : vector<1x1x1x6xf32> to vector<1x8x8x6xf32>
    %85 = arith.mulf %81, %84 : vector<1x8x8x6xf32>
    %86 = arith.addf %80, %85 : vector<1x8x8x6xf32>
    %c0_61 = arith.constant 0 : index
    %c5_62 = arith.constant 5 : index
    %c7 = arith.constant 7 : index
    %c0_63 = arith.constant 0 : index
    %87 = vector.load %arg5[%c0_61, %c5_62, %c7, %c0_63] : memref<1x18x18x6xf32, #tpu.memory_space<vmem>>, vector<1x8x8x6xf32>
    %88 = vector.extract_strided_slice %5 {offsets = [13, 0], sizes = [1, 6], strides = [1, 1]} : vector<25x6xf32> to vector<1x6xf32>
    %89 = vector.shape_cast %88 : vector<1x6xf32> to vector<1x1x1x6xf32>
    %90 = vector.broadcast %89 : vector<1x1x1x6xf32> to vector<1x8x8x6xf32>
    %91 = arith.mulf %87, %90 : vector<1x8x8x6xf32>
    %92 = arith.addf %86, %91 : vector<1x8x8x6xf32>
    %c0_64 = arith.constant 0 : index
    %c5_65 = arith.constant 5 : index
    %c8 = arith.constant 8 : index
    %c0_66 = arith.constant 0 : index
    %93 = vector.load %arg5[%c0_64, %c5_65, %c8, %c0_66] : memref<1x18x18x6xf32, #tpu.memory_space<vmem>>, vector<1x8x8x6xf32>
    %94 = vector.extract_strided_slice %5 {offsets = [14, 0], sizes = [1, 6], strides = [1, 1]} : vector<25x6xf32> to vector<1x6xf32>
    %95 = vector.shape_cast %94 : vector<1x6xf32> to vector<1x1x1x6xf32>
    %96 = vector.broadcast %95 : vector<1x1x1x6xf32> to vector<1x8x8x6xf32>
    %97 = arith.mulf %93, %96 : vector<1x8x8x6xf32>
    %98 = arith.addf %92, %97 : vector<1x8x8x6xf32>
    %c0_67 = arith.constant 0 : index
    %c5_68 = arith.constant 5 : index
    %c9 = arith.constant 9 : index
    %c0_69 = arith.constant 0 : index
    %99 = vector.load %arg5[%c0_67, %c5_68, %c9, %c0_69] : memref<1x18x18x6xf32, #tpu.memory_space<vmem>>, vector<1x8x8x6xf32>
    %100 = vector.extract_strided_slice %5 {offsets = [15, 0], sizes = [1, 6], strides = [1, 1]} : vector<25x6xf32> to vector<1x6xf32>
    %101 = vector.shape_cast %100 : vector<1x6xf32> to vector<1x1x1x6xf32>
    %102 = vector.broadcast %101 : vector<1x1x1x6xf32> to vector<1x8x8x6xf32>
    %103 = arith.mulf %99, %102 : vector<1x8x8x6xf32>
    %104 = arith.addf %98, %103 : vector<1x8x8x6xf32>
    %c0_70 = arith.constant 0 : index
    %c5_71 = arith.constant 5 : index
    %c10 = arith.constant 10 : index
    %c0_72 = arith.constant 0 : index
    %105 = vector.load %arg5[%c0_70, %c5_71, %c10, %c0_72] : memref<1x18x18x6xf32, #tpu.memory_space<vmem>>, vector<1x8x8x6xf32>
    %106 = vector.extract_strided_slice %5 {offsets = [16, 0], sizes = [1, 6], strides = [1, 1]} : vector<25x6xf32> to vector<1x6xf32>
    %107 = vector.shape_cast %106 : vector<1x6xf32> to vector<1x1x1x6xf32>
    %108 = vector.broadcast %107 : vector<1x1x1x6xf32> to vector<1x8x8x6xf32>
    %109 = arith.mulf %105, %108 : vector<1x8x8x6xf32>
    %110 = arith.addf %104, %109 : vector<1x8x8x6xf32>
    %c0_73 = arith.constant 0 : index
    %c0_74 = arith.constant 0 : index
    %c5_75 = arith.constant 5 : index
    %c0_76 = arith.constant 0 : index
    %111 = vector.load %arg5[%c0_73, %c0_74, %c5_75, %c0_76] : memref<1x18x18x6xf32, #tpu.memory_space<vmem>>, vector<1x8x8x6xf32>
    %112 = vector.extract_strided_slice %5 {offsets = [17, 0], sizes = [1, 6], strides = [1, 1]} : vector<25x6xf32> to vector<1x6xf32>
    %113 = vector.shape_cast %112 : vector<1x6xf32> to vector<1x1x1x6xf32>
    %114 = vector.broadcast %113 : vector<1x1x1x6xf32> to vector<1x8x8x6xf32>
    %115 = arith.mulf %111, %114 : vector<1x8x8x6xf32>
    %116 = arith.addf %110, %115 : vector<1x8x8x6xf32>
    %c0_77 = arith.constant 0 : index
    %c1_78 = arith.constant 1 : index
    %c5_79 = arith.constant 5 : index
    %c0_80 = arith.constant 0 : index
    %117 = vector.load %arg5[%c0_77, %c1_78, %c5_79, %c0_80] : memref<1x18x18x6xf32, #tpu.memory_space<vmem>>, vector<1x8x8x6xf32>
    %118 = vector.extract_strided_slice %5 {offsets = [18, 0], sizes = [1, 6], strides = [1, 1]} : vector<25x6xf32> to vector<1x6xf32>
    %119 = vector.shape_cast %118 : vector<1x6xf32> to vector<1x1x1x6xf32>
    %120 = vector.broadcast %119 : vector<1x1x1x6xf32> to vector<1x8x8x6xf32>
    %121 = arith.mulf %117, %120 : vector<1x8x8x6xf32>
    %122 = arith.addf %116, %121 : vector<1x8x8x6xf32>
    %c0_81 = arith.constant 0 : index
    %c2_82 = arith.constant 2 : index
    %c5_83 = arith.constant 5 : index
    %c0_84 = arith.constant 0 : index
    %123 = vector.load %arg5[%c0_81, %c2_82, %c5_83, %c0_84] : memref<1x18x18x6xf32, #tpu.memory_space<vmem>>, vector<1x8x8x6xf32>
    %124 = vector.extract_strided_slice %5 {offsets = [19, 0], sizes = [1, 6], strides = [1, 1]} : vector<25x6xf32> to vector<1x6xf32>
    %125 = vector.shape_cast %124 : vector<1x6xf32> to vector<1x1x1x6xf32>
    %126 = vector.broadcast %125 : vector<1x1x1x6xf32> to vector<1x8x8x6xf32>
    %127 = arith.mulf %123, %126 : vector<1x8x8x6xf32>
    %128 = arith.addf %122, %127 : vector<1x8x8x6xf32>
    %c0_85 = arith.constant 0 : index
    %c3_86 = arith.constant 3 : index
    %c5_87 = arith.constant 5 : index
    %c0_88 = arith.constant 0 : index
    %129 = vector.load %arg5[%c0_85, %c3_86, %c5_87, %c0_88] : memref<1x18x18x6xf32, #tpu.memory_space<vmem>>, vector<1x8x8x6xf32>
    %130 = vector.extract_strided_slice %5 {offsets = [20, 0], sizes = [1, 6], strides = [1, 1]} : vector<25x6xf32> to vector<1x6xf32>
    %131 = vector.shape_cast %130 : vector<1x6xf32> to vector<1x1x1x6xf32>
    %132 = vector.broadcast %131 : vector<1x1x1x6xf32> to vector<1x8x8x6xf32>
    %133 = arith.mulf %129, %132 : vector<1x8x8x6xf32>
    %134 = arith.addf %128, %133 : vector<1x8x8x6xf32>
    %c0_89 = arith.constant 0 : index
    %c7_90 = arith.constant 7 : index
    %c5_91 = arith.constant 5 : index
    %c0_92 = arith.constant 0 : index
    %135 = vector.load %arg5[%c0_89, %c7_90, %c5_91, %c0_92] : memref<1x18x18x6xf32, #tpu.memory_space<vmem>>, vector<1x8x8x6xf32>
    %136 = vector.extract_strided_slice %5 {offsets = [21, 0], sizes = [1, 6], strides = [1, 1]} : vector<25x6xf32> to vector<1x6xf32>
    %137 = vector.shape_cast %136 : vector<1x6xf32> to vector<1x1x1x6xf32>
    %138 = vector.broadcast %137 : vector<1x1x1x6xf32> to vector<1x8x8x6xf32>
    %139 = arith.mulf %135, %138 : vector<1x8x8x6xf32>
    %140 = arith.addf %134, %139 : vector<1x8x8x6xf32>
    %c0_93 = arith.constant 0 : index
    %c8_94 = arith.constant 8 : index
    %c5_95 = arith.constant 5 : index
    %c0_96 = arith.constant 0 : index
    %141 = vector.load %arg5[%c0_93, %c8_94, %c5_95, %c0_96] : memref<1x18x18x6xf32, #tpu.memory_space<vmem>>, vector<1x8x8x6xf32>
    %142 = vector.extract_strided_slice %5 {offsets = [22, 0], sizes = [1, 6], strides = [1, 1]} : vector<25x6xf32> to vector<1x6xf32>
    %143 = vector.shape_cast %142 : vector<1x6xf32> to vector<1x1x1x6xf32>
    %144 = vector.broadcast %143 : vector<1x1x1x6xf32> to vector<1x8x8x6xf32>
    %145 = arith.mulf %141, %144 : vector<1x8x8x6xf32>
    %146 = arith.addf %140, %145 : vector<1x8x8x6xf32>
    %c0_97 = arith.constant 0 : index
    %c9_98 = arith.constant 9 : index
    %c5_99 = arith.constant 5 : index
    %c0_100 = arith.constant 0 : index
    %147 = vector.load %arg5[%c0_97, %c9_98, %c5_99, %c0_100] : memref<1x18x18x6xf32, #tpu.memory_space<vmem>>, vector<1x8x8x6xf32>
    %148 = vector.extract_strided_slice %5 {offsets = [23, 0], sizes = [1, 6], strides = [1, 1]} : vector<25x6xf32> to vector<1x6xf32>
    %149 = vector.shape_cast %148 : vector<1x6xf32> to vector<1x1x1x6xf32>
    %150 = vector.broadcast %149 : vector<1x1x1x6xf32> to vector<1x8x8x6xf32>
    %151 = arith.mulf %147, %150 : vector<1x8x8x6xf32>
    %152 = arith.addf %146, %151 : vector<1x8x8x6xf32>
    %c0_101 = arith.constant 0 : index
    %c10_102 = arith.constant 10 : index
    %c5_103 = arith.constant 5 : index
    %c0_104 = arith.constant 0 : index
    %153 = vector.load %arg5[%c0_101, %c10_102, %c5_103, %c0_104] : memref<1x18x18x6xf32, #tpu.memory_space<vmem>>, vector<1x8x8x6xf32>
    %154 = vector.extract_strided_slice %5 {offsets = [24, 0], sizes = [1, 6], strides = [1, 1]} : vector<25x6xf32> to vector<1x6xf32>
    %155 = vector.shape_cast %154 : vector<1x6xf32> to vector<1x1x1x6xf32>
    %156 = vector.broadcast %155 : vector<1x1x1x6xf32> to vector<1x8x8x6xf32>
    %157 = arith.mulf %153, %156 : vector<1x8x8x6xf32>
    %158 = arith.addf %152, %157 : vector<1x8x8x6xf32>
    %159 = vector.extract_strided_slice %0 {offsets = [0, 0, 0, 0], sizes = [1, 8, 8, 10], strides = [1, 1, 1, 1]} : vector<1x8x8x16xf32> to vector<1x8x8x10xf32>
    %160 = tpu.concatenate %159, %158 in 3 : vector<1x8x8x10xf32>, vector<1x8x8x6xf32> -> vector<1x8x8x16xf32>
    %c0_105 = arith.constant 0 : index
    %c0_106 = arith.constant 0 : index
    %c0_107 = arith.constant 0 : index
    %c0_108 = arith.constant 0 : index
    %161 = vector.load %arg4[%c0_105, %c0_106, %c0_107, %c0_108] : memref<1x8x8x16xf32, #tpu.memory_space<vmem>>, vector<1x8x8x16xf32>
    tpu.vector_store %arg4[%c0_105, %c0_106, %c0_107, %c0_108], %160 {strides = array<i32>} : memref<1x8x8x16xf32, #tpu.memory_space<vmem>>, vector<1x8x8x16xf32>,
    return
  }
  func.func @transform_0(%arg0: i32) -> (i32, i32, i32, i32) {
    %c0_i32 = arith.constant 0 : i32
    %c0_i32_0 = arith.constant 0 : i32
    %c0_i32_1 = arith.constant 0 : i32
    %c0_i32_2 = arith.constant 0 : i32
    return %arg0, %c0_i32, %c0_i32_0, %c0_i32_1 : i32, i32, i32, i32
  }
  func.func @transform_1(%arg0: i32) -> (i32, i32) {
    %c0_i32 = arith.constant 0 : i32
    %c0_i32_0 = arith.constant 0 : i32
    %c0_i32_1 = arith.constant 0 : i32
    return %c0_i32, %c0_i32_0 : i32, i32
  }
  func.func @transform_2(%arg0: i32) -> (i32, i32) {
    %c0_i32 = arith.constant 0 : i32
    %c0_i32_0 = arith.constant 0 : i32
    %c0_i32_1 = arith.constant 0 : i32
    return %c0_i32, %c0_i32_0 : i32, i32
  }
  func.func @transform_3(%arg0: i32) -> (i32, i32, i32, i32) {
    %c0_i32 = arith.constant 0 : i32
    %c0_i32_0 = arith.constant 0 : i32
    %c0_i32_1 = arith.constant 0 : i32
    %c0_i32_2 = arith.constant 0 : i32
    return %arg0, %c0_i32, %c0_i32_0, %c0_i32_1 : i32, i32, i32, i32
  }
}

module attributes {stable_mosaic.version = 11 : i64} {
  func.func @_ln_downsample_kernel(%arg0: i32, %arg1: memref<32x64xf32, #tpu.memory_space<vmem>>, %arg2: memref<1x16xf32, #tpu.memory_space<vmem>>, %arg3: memref<1x16xf32, #tpu.memory_space<vmem>>, %arg4: memref<64x32xbf16, #tpu.memory_space<vmem>>, %arg5: memref<1x32xf32, #tpu.memory_space<vmem>>, %arg6: memref<32x32xf32, #tpu.memory_space<vmem>>) attributes {dimension_semantics = [#tpu.dimension_semantics<parallel>], iteration_bounds = array<i64: 1>, scalar_prefetch = 0 : i64, scratch_operands = 0 : i64, tpu.core_type = #tpu.core_type<tc>, window_params = [{transform_indices = @transform_0, window_bounds = array<i64: 32, 64>}, {pipeline_mode = #tpu.pipeline_mode<synchronous>, transform_indices = @transform_1, window_bounds = array<i64: 1, 16>}, {pipeline_mode = #tpu.pipeline_mode<synchronous>, transform_indices = @transform_2, window_bounds = array<i64: 1, 16>}, {pipeline_mode = #tpu.pipeline_mode<synchronous>, transform_indices = @transform_3, window_bounds = array<i64: 64, 32>}, {pipeline_mode = #tpu.pipeline_mode<synchronous>, transform_indices = @transform_4, window_bounds = array<i64: 1, 32>}, {transform_indices = @transform_5, window_bounds = array<i64: 32, 32>}]} {
    %c0 = arith.constant 0 : index
    %c0_0 = arith.constant 0 : index
    %0 = vector.load %arg1[%c0, %c0_0] : memref<32x64xf32, #tpu.memory_space<vmem>>, vector<32x64xf32>
    %c0_1 = arith.constant 0 : index
    %c0_2 = arith.constant 0 : index
    %1 = vector.load %arg2[%c0_1, %c0_2] : memref<1x16xf32, #tpu.memory_space<vmem>>, vector<1x16xf32>
    %c0_3 = arith.constant 0 : index
    %c0_4 = arith.constant 0 : index
    %2 = vector.load %arg3[%c0_3, %c0_4] : memref<1x16xf32, #tpu.memory_space<vmem>>, vector<1x16xf32>
    %3 = vector.extract_strided_slice %0 {offsets = [0, 0], sizes = [32, 16], strides = [1, 1]} : vector<32x64xf32> to vector<32x16xf32>
    %cst = arith.constant dense<0.000000e+00> : vector<32xf32>
    %4 = vector.multi_reduction <add>, %3, %cst [1] : vector<32x16xf32> to vector<32xf32>
    %5 = vector.shape_cast %4 : vector<32xf32> to vector<32x1xf32>
    %cst_5 = arith.constant 1.600000e+01 : f32
    %6 = vector.broadcast %cst_5 : f32 to vector<32x1xf32>
    %7 = arith.divf %5, %6 : vector<32x1xf32>
    %8 = vector.broadcast %7 : vector<32x1xf32> to vector<32x16xf32>
    %9 = arith.subf %3, %8 : vector<32x16xf32>
    %10 = arith.mulf %9, %9 : vector<32x16xf32>
    %cst_6 = arith.constant dense<0.000000e+00> : vector<32xf32>
    %11 = vector.multi_reduction <add>, %10, %cst_6 [1] : vector<32x16xf32> to vector<32xf32>
    %12 = vector.shape_cast %11 : vector<32xf32> to vector<32x1xf32>
    %cst_7 = arith.constant 1.600000e+01 : f32
    %13 = vector.broadcast %cst_7 : f32 to vector<32x1xf32>
    %14 = arith.divf %12, %13 : vector<32x1xf32>
    %cst_8 = arith.constant 9.99999997E-7 : f32
    %15 = vector.broadcast %cst_8 : f32 to vector<32x1xf32>
    %16 = arith.addf %14, %15 : vector<32x1xf32>
    %17 = math.rsqrt %16 : vector<32x1xf32>
    %18 = vector.broadcast %17 : vector<32x1xf32> to vector<32x16xf32>
    %19 = arith.mulf %9, %18 : vector<32x16xf32>
    %20 = vector.broadcast %1 : vector<1x16xf32> to vector<32x16xf32>
    %21 = arith.mulf %19, %20 : vector<32x16xf32>
    %22 = vector.broadcast %2 : vector<1x16xf32> to vector<32x16xf32>
    %23 = arith.addf %21, %22 : vector<32x16xf32>
    %24 = vector.extract_strided_slice %0 {offsets = [0, 16], sizes = [32, 16], strides = [1, 1]} : vector<32x64xf32> to vector<32x16xf32>
    %cst_9 = arith.constant dense<0.000000e+00> : vector<32xf32>
    %25 = vector.multi_reduction <add>, %24, %cst_9 [1] : vector<32x16xf32> to vector<32xf32>
    %26 = vector.shape_cast %25 : vector<32xf32> to vector<32x1xf32>
    %cst_10 = arith.constant 1.600000e+01 : f32
    %27 = vector.broadcast %cst_10 : f32 to vector<32x1xf32>
    %28 = arith.divf %26, %27 : vector<32x1xf32>
    %29 = vector.broadcast %28 : vector<32x1xf32> to vector<32x16xf32>
    %30 = arith.subf %24, %29 : vector<32x16xf32>
    %31 = arith.mulf %30, %30 : vector<32x16xf32>
    %cst_11 = arith.constant dense<0.000000e+00> : vector<32xf32>
    %32 = vector.multi_reduction <add>, %31, %cst_11 [1] : vector<32x16xf32> to vector<32xf32>
    %33 = vector.shape_cast %32 : vector<32xf32> to vector<32x1xf32>
    %cst_12 = arith.constant 1.600000e+01 : f32
    %34 = vector.broadcast %cst_12 : f32 to vector<32x1xf32>
    %35 = arith.divf %33, %34 : vector<32x1xf32>
    %cst_13 = arith.constant 9.99999997E-7 : f32
    %36 = vector.broadcast %cst_13 : f32 to vector<32x1xf32>
    %37 = arith.addf %35, %36 : vector<32x1xf32>
    %38 = math.rsqrt %37 : vector<32x1xf32>
    %39 = vector.broadcast %38 : vector<32x1xf32> to vector<32x16xf32>
    %40 = arith.mulf %30, %39 : vector<32x16xf32>
    %41 = vector.broadcast %1 : vector<1x16xf32> to vector<32x16xf32>
    %42 = arith.mulf %40, %41 : vector<32x16xf32>
    %43 = vector.broadcast %2 : vector<1x16xf32> to vector<32x16xf32>
    %44 = arith.addf %42, %43 : vector<32x16xf32>
    %45 = vector.extract_strided_slice %0 {offsets = [0, 32], sizes = [32, 16], strides = [1, 1]} : vector<32x64xf32> to vector<32x16xf32>
    %cst_14 = arith.constant dense<0.000000e+00> : vector<32xf32>
    %46 = vector.multi_reduction <add>, %45, %cst_14 [1] : vector<32x16xf32> to vector<32xf32>
    %47 = vector.shape_cast %46 : vector<32xf32> to vector<32x1xf32>
    %cst_15 = arith.constant 1.600000e+01 : f32
    %48 = vector.broadcast %cst_15 : f32 to vector<32x1xf32>
    %49 = arith.divf %47, %48 : vector<32x1xf32>
    %50 = vector.broadcast %49 : vector<32x1xf32> to vector<32x16xf32>
    %51 = arith.subf %45, %50 : vector<32x16xf32>
    %52 = arith.mulf %51, %51 : vector<32x16xf32>
    %cst_16 = arith.constant dense<0.000000e+00> : vector<32xf32>
    %53 = vector.multi_reduction <add>, %52, %cst_16 [1] : vector<32x16xf32> to vector<32xf32>
    %54 = vector.shape_cast %53 : vector<32xf32> to vector<32x1xf32>
    %cst_17 = arith.constant 1.600000e+01 : f32
    %55 = vector.broadcast %cst_17 : f32 to vector<32x1xf32>
    %56 = arith.divf %54, %55 : vector<32x1xf32>
    %cst_18 = arith.constant 9.99999997E-7 : f32
    %57 = vector.broadcast %cst_18 : f32 to vector<32x1xf32>
    %58 = arith.addf %56, %57 : vector<32x1xf32>
    %59 = math.rsqrt %58 : vector<32x1xf32>
    %60 = vector.broadcast %59 : vector<32x1xf32> to vector<32x16xf32>
    %61 = arith.mulf %51, %60 : vector<32x16xf32>
    %62 = vector.broadcast %1 : vector<1x16xf32> to vector<32x16xf32>
    %63 = arith.mulf %61, %62 : vector<32x16xf32>
    %64 = vector.broadcast %2 : vector<1x16xf32> to vector<32x16xf32>
    %65 = arith.addf %63, %64 : vector<32x16xf32>
    %66 = vector.extract_strided_slice %0 {offsets = [0, 48], sizes = [32, 16], strides = [1, 1]} : vector<32x64xf32> to vector<32x16xf32>
    %cst_19 = arith.constant dense<0.000000e+00> : vector<32xf32>
    %67 = vector.multi_reduction <add>, %66, %cst_19 [1] : vector<32x16xf32> to vector<32xf32>
    %68 = vector.shape_cast %67 : vector<32xf32> to vector<32x1xf32>
    %cst_20 = arith.constant 1.600000e+01 : f32
    %69 = vector.broadcast %cst_20 : f32 to vector<32x1xf32>
    %70 = arith.divf %68, %69 : vector<32x1xf32>
    %71 = vector.broadcast %70 : vector<32x1xf32> to vector<32x16xf32>
    %72 = arith.subf %66, %71 : vector<32x16xf32>
    %73 = arith.mulf %72, %72 : vector<32x16xf32>
    %cst_21 = arith.constant dense<0.000000e+00> : vector<32xf32>
    %74 = vector.multi_reduction <add>, %73, %cst_21 [1] : vector<32x16xf32> to vector<32xf32>
    %75 = vector.shape_cast %74 : vector<32xf32> to vector<32x1xf32>
    %cst_22 = arith.constant 1.600000e+01 : f32
    %76 = vector.broadcast %cst_22 : f32 to vector<32x1xf32>
    %77 = arith.divf %75, %76 : vector<32x1xf32>
    %cst_23 = arith.constant 9.99999997E-7 : f32
    %78 = vector.broadcast %cst_23 : f32 to vector<32x1xf32>
    %79 = arith.addf %77, %78 : vector<32x1xf32>
    %80 = math.rsqrt %79 : vector<32x1xf32>
    %81 = vector.broadcast %80 : vector<32x1xf32> to vector<32x16xf32>
    %82 = arith.mulf %72, %81 : vector<32x16xf32>
    %83 = vector.broadcast %1 : vector<1x16xf32> to vector<32x16xf32>
    %84 = arith.mulf %82, %83 : vector<32x16xf32>
    %85 = vector.broadcast %2 : vector<1x16xf32> to vector<32x16xf32>
    %86 = arith.addf %84, %85 : vector<32x16xf32>
    %87 = tpu.concatenate %23, %44, %65, %86 in 1 : vector<32x16xf32>, vector<32x16xf32>, vector<32x16xf32>, vector<32x16xf32> -> vector<32x64xf32>
    %c0_24 = arith.constant 0 : index
    %c0_25 = arith.constant 0 : index
    %88 = vector.load %arg4[%c0_24, %c0_25] : memref<64x32xbf16, #tpu.memory_space<vmem>>, vector<64x32xbf16>
    %89 = arith.truncf %87 : vector<32x64xf32> to vector<32x64xbf16>
    %cst_26 = arith.constant dense<0.000000e+00> : vector<32x32xf32>
    %90 = tpu.matmul %89, %88, %cst_26 {dimension_numbers = #tpu.dot_dimension_numbers<[1], [0], [0], [1], [0, 0, 1, 1], [], []>} : vector<32x64xbf16>, vector<64x32xbf16>, vector<32x32xf32> -> vector<32x32xf32>
    %c0_27 = arith.constant 0 : index
    %c0_28 = arith.constant 0 : index
    %91 = vector.load %arg5[%c0_27, %c0_28] : memref<1x32xf32, #tpu.memory_space<vmem>>, vector<1x32xf32>
    %92 = vector.broadcast %91 : vector<1x32xf32> to vector<32x32xf32>
    %93 = arith.addf %90, %92 : vector<32x32xf32>
    %c0_29 = arith.constant 0 : index
    %c0_30 = arith.constant 0 : index
    %94 = vector.load %arg6[%c0_29, %c0_30] : memref<32x32xf32, #tpu.memory_space<vmem>>, vector<32x32xf32>
    tpu.vector_store %arg6[%c0_29, %c0_30], %93 {strides = array<i32>} : memref<32x32xf32, #tpu.memory_space<vmem>>, vector<32x32xf32>,
    return
  }
  func.func @transform_0(%arg0: i32) -> (i32, i32) {
    %c0_i32 = arith.constant 0 : i32
    %c0_i32_0 = arith.constant 0 : i32
    return %arg0, %c0_i32 : i32, i32
  }
  func.func @transform_1(%arg0: i32) -> (i32, i32) {
    %c0_i32 = arith.constant 0 : i32
    %c0_i32_0 = arith.constant 0 : i32
    %c0_i32_1 = arith.constant 0 : i32
    return %c0_i32, %c0_i32_0 : i32, i32
  }
  func.func @transform_2(%arg0: i32) -> (i32, i32) {
    %c0_i32 = arith.constant 0 : i32
    %c0_i32_0 = arith.constant 0 : i32
    %c0_i32_1 = arith.constant 0 : i32
    return %c0_i32, %c0_i32_0 : i32, i32
  }
  func.func @transform_3(%arg0: i32) -> (i32, i32) {
    %c0_i32 = arith.constant 0 : i32
    %c0_i32_0 = arith.constant 0 : i32
    %c0_i32_1 = arith.constant 0 : i32
    return %c0_i32, %c0_i32_0 : i32, i32
  }
  func.func @transform_4(%arg0: i32) -> (i32, i32) {
    %c0_i32 = arith.constant 0 : i32
    %c0_i32_0 = arith.constant 0 : i32
    %c0_i32_1 = arith.constant 0 : i32
    return %c0_i32, %c0_i32_0 : i32, i32
  }
  func.func @transform_5(%arg0: i32) -> (i32, i32) {
    %c0_i32 = arith.constant 0 : i32
    %c0_i32_0 = arith.constant 0 : i32
    return %arg0, %c0_i32 : i32, i32
  }
}

module attributes {stable_mosaic.version = 11 : i64} {
  func.func @_incdw_kernel(%arg0: i32, %arg1: memref<1x4x4x32xf32, #tpu.memory_space<vmem>>, %arg2: memref<25x12xf32, #tpu.memory_space<vmem>>, %arg3: memref<1x12xf32, #tpu.memory_space<vmem>>, %arg4: memref<1x4x4x32xf32, #tpu.memory_space<vmem>>, %arg5: memref<1x14x14x12xf32, #tpu.memory_space<vmem>>) attributes {dimension_semantics = [#tpu.dimension_semantics<parallel>], iteration_bounds = array<i64: 2>, scalar_prefetch = 0 : i64, scratch_operands = 1 : i64, tpu.core_type = #tpu.core_type<tc>, window_params = [{transform_indices = @transform_0, window_bounds = array<i64: 1, 4, 4, 32>}, {pipeline_mode = #tpu.pipeline_mode<synchronous>, transform_indices = @transform_1, window_bounds = array<i64: 25, 12>}, {pipeline_mode = #tpu.pipeline_mode<synchronous>, transform_indices = @transform_2, window_bounds = array<i64: 1, 12>}, {transform_indices = @transform_3, window_bounds = array<i64: 1, 4, 4, 32>}]} {
    %c0 = arith.constant 0 : index
    %c0_0 = arith.constant 0 : index
    %c0_1 = arith.constant 0 : index
    %c0_2 = arith.constant 0 : index
    %0 = vector.load %arg1[%c0, %c0_0, %c0_1, %c0_2] : memref<1x4x4x32xf32, #tpu.memory_space<vmem>>, vector<1x4x4x32xf32>
    %cst = arith.constant 0.000000e+00 : f32
    %1 = vector.broadcast %cst : f32 to vector<1x14x14x12xf32>
    %c0_3 = arith.constant 0 : index
    %c0_4 = arith.constant 0 : index
    %c0_5 = arith.constant 0 : index
    %c0_6 = arith.constant 0 : index
    %2 = vector.load %arg5[%c0_3, %c0_4, %c0_5, %c0_6] : memref<1x14x14x12xf32, #tpu.memory_space<vmem>>, vector<1x14x14x12xf32>
    tpu.vector_store %arg5[%c0_3, %c0_4, %c0_5, %c0_6], %1 {strides = array<i32>} : memref<1x14x14x12xf32, #tpu.memory_space<vmem>>, vector<1x14x14x12xf32>,
    %3 = vector.extract_strided_slice %0 {offsets = [0, 0, 0, 20], sizes = [1, 4, 4, 12], strides = [1, 1, 1, 1]} : vector<1x4x4x32xf32> to vector<1x4x4x12xf32>
    %c0_7 = arith.constant 0 : index
    %c5 = arith.constant 5 : index
    %c5_8 = arith.constant 5 : index
    %c0_9 = arith.constant 0 : index
    %4 = vector.load %arg5[%c0_7, %c5, %c5_8, %c0_9] : memref<1x14x14x12xf32, #tpu.memory_space<vmem>>, vector<1x4x4x12xf32>
    tpu.vector_store %arg5[%c0_7, %c5, %c5_8, %c0_9], %3 {strides = array<i32>} : memref<1x14x14x12xf32, #tpu.memory_space<vmem>>, vector<1x4x4x12xf32>,
    %c0_10 = arith.constant 0 : index
    %c0_11 = arith.constant 0 : index
    %5 = vector.load %arg2[%c0_10, %c0_11] : memref<25x12xf32, #tpu.memory_space<vmem>>, vector<25x12xf32>
    %c0_12 = arith.constant 0 : index
    %c0_13 = arith.constant 0 : index
    %6 = vector.load %arg3[%c0_12, %c0_13] : memref<1x12xf32, #tpu.memory_space<vmem>>, vector<1x12xf32>
    %c0_14 = arith.constant 0 : index
    %c4 = arith.constant 4 : index
    %c4_15 = arith.constant 4 : index
    %c0_16 = arith.constant 0 : index
    %7 = vector.load %arg5[%c0_14, %c4, %c4_15, %c0_16] : memref<1x14x14x12xf32, #tpu.memory_space<vmem>>, vector<1x4x4x12xf32>
    %8 = vector.extract_strided_slice %5 {offsets = [0, 0], sizes = [1, 12], strides = [1, 1]} : vector<25x12xf32> to vector<1x12xf32>
    %9 = vector.shape_cast %8 : vector<1x12xf32> to vector<1x1x1x12xf32>
    %10 = vector.broadcast %9 : vector<1x1x1x12xf32> to vector<1x4x4x12xf32>
    %11 = arith.mulf %7, %10 : vector<1x4x4x12xf32>
    %12 = vector.shape_cast %6 : vector<1x12xf32> to vector<1x1x1x12xf32>
    %13 = vector.broadcast %12 : vector<1x1x1x12xf32> to vector<1x4x4x12xf32>
    %14 = arith.addf %13, %11 : vector<1x4x4x12xf32>
    %c0_17 = arith.constant 0 : index
    %c4_18 = arith.constant 4 : index
    %c5_19 = arith.constant 5 : index
    %c0_20 = arith.constant 0 : index
    %15 = vector.load %arg5[%c0_17, %c4_18, %c5_19, %c0_20] : memref<1x14x14x12xf32, #tpu.memory_space<vmem>>, vector<1x4x4x12xf32>
    %16 = vector.extract_strided_slice %5 {offsets = [1, 0], sizes = [1, 12], strides = [1, 1]} : vector<25x12xf32> to vector<1x12xf32>
    %17 = vector.shape_cast %16 : vector<1x12xf32> to vector<1x1x1x12xf32>
    %18 = vector.broadcast %17 : vector<1x1x1x12xf32> to vector<1x4x4x12xf32>
    %19 = arith.mulf %15, %18 : vector<1x4x4x12xf32>
    %20 = arith.addf %14, %19 : vector<1x4x4x12xf32>
    %c0_21 = arith.constant 0 : index
    %c4_22 = arith.constant 4 : index
    %c6 = arith.constant 6 : index
    %c0_23 = arith.constant 0 : index
    %21 = vector.load %arg5[%c0_21, %c4_22, %c6, %c0_23] : memref<1x14x14x12xf32, #tpu.memory_space<vmem>>, vector<1x4x4x12xf32>
    %22 = vector.extract_strided_slice %5 {offsets = [2, 0], sizes = [1, 12], strides = [1, 1]} : vector<25x12xf32> to vector<1x12xf32>
    %23 = vector.shape_cast %22 : vector<1x12xf32> to vector<1x1x1x12xf32>
    %24 = vector.broadcast %23 : vector<1x1x1x12xf32> to vector<1x4x4x12xf32>
    %25 = arith.mulf %21, %24 : vector<1x4x4x12xf32>
    %26 = arith.addf %20, %25 : vector<1x4x4x12xf32>
    %c0_24 = arith.constant 0 : index
    %c5_25 = arith.constant 5 : index
    %c4_26 = arith.constant 4 : index
    %c0_27 = arith.constant 0 : index
    %27 = vector.load %arg5[%c0_24, %c5_25, %c4_26, %c0_27] : memref<1x14x14x12xf32, #tpu.memory_space<vmem>>, vector<1x4x4x12xf32>
    %28 = vector.extract_strided_slice %5 {offsets = [3, 0], sizes = [1, 12], strides = [1, 1]} : vector<25x12xf32> to vector<1x12xf32>
    %29 = vector.shape_cast %28 : vector<1x12xf32> to vector<1x1x1x12xf32>
    %30 = vector.broadcast %29 : vector<1x1x1x12xf32> to vector<1x4x4x12xf32>
    %31 = arith.mulf %27, %30 : vector<1x4x4x12xf32>
    %32 = arith.addf %26, %31 : vector<1x4x4x12xf32>
    %c0_28 = arith.constant 0 : index
    %c5_29 = arith.constant 5 : index
    %c5_30 = arith.constant 5 : index
    %c0_31 = arith.constant 0 : index
    %33 = vector.load %arg5[%c0_28, %c5_29, %c5_30, %c0_31] : memref<1x14x14x12xf32, #tpu.memory_space<vmem>>, vector<1x4x4x12xf32>
    %34 = vector.extract_strided_slice %5 {offsets = [4, 0], sizes = [1, 12], strides = [1, 1]} : vector<25x12xf32> to vector<1x12xf32>
    %35 = vector.shape_cast %34 : vector<1x12xf32> to vector<1x1x1x12xf32>
    %36 = vector.broadcast %35 : vector<1x1x1x12xf32> to vector<1x4x4x12xf32>
    %37 = arith.mulf %33, %36 : vector<1x4x4x12xf32>
    %38 = arith.addf %32, %37 : vector<1x4x4x12xf32>
    %c0_32 = arith.constant 0 : index
    %c5_33 = arith.constant 5 : index
    %c6_34 = arith.constant 6 : index
    %c0_35 = arith.constant 0 : index
    %39 = vector.load %arg5[%c0_32, %c5_33, %c6_34, %c0_35] : memref<1x14x14x12xf32, #tpu.memory_space<vmem>>, vector<1x4x4x12xf32>
    %40 = vector.extract_strided_slice %5 {offsets = [5, 0], sizes = [1, 12], strides = [1, 1]} : vector<25x12xf32> to vector<1x12xf32>
    %41 = vector.shape_cast %40 : vector<1x12xf32> to vector<1x1x1x12xf32>
    %42 = vector.broadcast %41 : vector<1x1x1x12xf32> to vector<1x4x4x12xf32>
    %43 = arith.mulf %39, %42 : vector<1x4x4x12xf32>
    %44 = arith.addf %38, %43 : vector<1x4x4x12xf32>
    %c0_36 = arith.constant 0 : index
    %c6_37 = arith.constant 6 : index
    %c4_38 = arith.constant 4 : index
    %c0_39 = arith.constant 0 : index
    %45 = vector.load %arg5[%c0_36, %c6_37, %c4_38, %c0_39] : memref<1x14x14x12xf32, #tpu.memory_space<vmem>>, vector<1x4x4x12xf32>
    %46 = vector.extract_strided_slice %5 {offsets = [6, 0], sizes = [1, 12], strides = [1, 1]} : vector<25x12xf32> to vector<1x12xf32>
    %47 = vector.shape_cast %46 : vector<1x12xf32> to vector<1x1x1x12xf32>
    %48 = vector.broadcast %47 : vector<1x1x1x12xf32> to vector<1x4x4x12xf32>
    %49 = arith.mulf %45, %48 : vector<1x4x4x12xf32>
    %50 = arith.addf %44, %49 : vector<1x4x4x12xf32>
    %c0_40 = arith.constant 0 : index
    %c6_41 = arith.constant 6 : index
    %c5_42 = arith.constant 5 : index
    %c0_43 = arith.constant 0 : index
    %51 = vector.load %arg5[%c0_40, %c6_41, %c5_42, %c0_43] : memref<1x14x14x12xf32, #tpu.memory_space<vmem>>, vector<1x4x4x12xf32>
    %52 = vector.extract_strided_slice %5 {offsets = [7, 0], sizes = [1, 12], strides = [1, 1]} : vector<25x12xf32> to vector<1x12xf32>
    %53 = vector.shape_cast %52 : vector<1x12xf32> to vector<1x1x1x12xf32>
    %54 = vector.broadcast %53 : vector<1x1x1x12xf32> to vector<1x4x4x12xf32>
    %55 = arith.mulf %51, %54 : vector<1x4x4x12xf32>
    %56 = arith.addf %50, %55 : vector<1x4x4x12xf32>
    %c0_44 = arith.constant 0 : index
    %c6_45 = arith.constant 6 : index
    %c6_46 = arith.constant 6 : index
    %c0_47 = arith.constant 0 : index
    %57 = vector.load %arg5[%c0_44, %c6_45, %c6_46, %c0_47] : memref<1x14x14x12xf32, #tpu.memory_space<vmem>>, vector<1x4x4x12xf32>
    %58 = vector.extract_strided_slice %5 {offsets = [8, 0], sizes = [1, 12], strides = [1, 1]} : vector<25x12xf32> to vector<1x12xf32>
    %59 = vector.shape_cast %58 : vector<1x12xf32> to vector<1x1x1x12xf32>
    %60 = vector.broadcast %59 : vector<1x1x1x12xf32> to vector<1x4x4x12xf32>
    %61 = arith.mulf %57, %60 : vector<1x4x4x12xf32>
    %62 = arith.addf %56, %61 : vector<1x4x4x12xf32>
    %c0_48 = arith.constant 0 : index
    %c5_49 = arith.constant 5 : index
    %c0_50 = arith.constant 0 : index
    %c0_51 = arith.constant 0 : index
    %63 = vector.load %arg5[%c0_48, %c5_49, %c0_50, %c0_51] : memref<1x14x14x12xf32, #tpu.memory_space<vmem>>, vector<1x4x4x12xf32>
    %64 = vector.extract_strided_slice %5 {offsets = [9, 0], sizes = [1, 12], strides = [1, 1]} : vector<25x12xf32> to vector<1x12xf32>
    %65 = vector.shape_cast %64 : vector<1x12xf32> to vector<1x1x1x12xf32>
    %66 = vector.broadcast %65 : vector<1x1x1x12xf32> to vector<1x4x4x12xf32>
    %67 = arith.mulf %63, %66 : vector<1x4x4x12xf32>
    %68 = arith.addf %62, %67 : vector<1x4x4x12xf32>
    %c0_52 = arith.constant 0 : index
    %c5_53 = arith.constant 5 : index
    %c1 = arith.constant 1 : index
    %c0_54 = arith.constant 0 : index
    %69 = vector.load %arg5[%c0_52, %c5_53, %c1, %c0_54] : memref<1x14x14x12xf32, #tpu.memory_space<vmem>>, vector<1x4x4x12xf32>
    %70 = vector.extract_strided_slice %5 {offsets = [10, 0], sizes = [1, 12], strides = [1, 1]} : vector<25x12xf32> to vector<1x12xf32>
    %71 = vector.shape_cast %70 : vector<1x12xf32> to vector<1x1x1x12xf32>
    %72 = vector.broadcast %71 : vector<1x1x1x12xf32> to vector<1x4x4x12xf32>
    %73 = arith.mulf %69, %72 : vector<1x4x4x12xf32>
    %74 = arith.addf %68, %73 : vector<1x4x4x12xf32>
    %c0_55 = arith.constant 0 : index
    %c5_56 = arith.constant 5 : index
    %c2 = arith.constant 2 : index
    %c0_57 = arith.constant 0 : index
    %75 = vector.load %arg5[%c0_55, %c5_56, %c2, %c0_57] : memref<1x14x14x12xf32, #tpu.memory_space<vmem>>, vector<1x4x4x12xf32>
    %76 = vector.extract_strided_slice %5 {offsets = [11, 0], sizes = [1, 12], strides = [1, 1]} : vector<25x12xf32> to vector<1x12xf32>
    %77 = vector.shape_cast %76 : vector<1x12xf32> to vector<1x1x1x12xf32>
    %78 = vector.broadcast %77 : vector<1x1x1x12xf32> to vector<1x4x4x12xf32>
    %79 = arith.mulf %75, %78 : vector<1x4x4x12xf32>
    %80 = arith.addf %74, %79 : vector<1x4x4x12xf32>
    %c0_58 = arith.constant 0 : index
    %c5_59 = arith.constant 5 : index
    %c3 = arith.constant 3 : index
    %c0_60 = arith.constant 0 : index
    %81 = vector.load %arg5[%c0_58, %c5_59, %c3, %c0_60] : memref<1x14x14x12xf32, #tpu.memory_space<vmem>>, vector<1x4x4x12xf32>
    %82 = vector.extract_strided_slice %5 {offsets = [12, 0], sizes = [1, 12], strides = [1, 1]} : vector<25x12xf32> to vector<1x12xf32>
    %83 = vector.shape_cast %82 : vector<1x12xf32> to vector<1x1x1x12xf32>
    %84 = vector.broadcast %83 : vector<1x1x1x12xf32> to vector<1x4x4x12xf32>
    %85 = arith.mulf %81, %84 : vector<1x4x4x12xf32>
    %86 = arith.addf %80, %85 : vector<1x4x4x12xf32>
    %c0_61 = arith.constant 0 : index
    %c5_62 = arith.constant 5 : index
    %c7 = arith.constant 7 : index
    %c0_63 = arith.constant 0 : index
    %87 = vector.load %arg5[%c0_61, %c5_62, %c7, %c0_63] : memref<1x14x14x12xf32, #tpu.memory_space<vmem>>, vector<1x4x4x12xf32>
    %88 = vector.extract_strided_slice %5 {offsets = [13, 0], sizes = [1, 12], strides = [1, 1]} : vector<25x12xf32> to vector<1x12xf32>
    %89 = vector.shape_cast %88 : vector<1x12xf32> to vector<1x1x1x12xf32>
    %90 = vector.broadcast %89 : vector<1x1x1x12xf32> to vector<1x4x4x12xf32>
    %91 = arith.mulf %87, %90 : vector<1x4x4x12xf32>
    %92 = arith.addf %86, %91 : vector<1x4x4x12xf32>
    %c0_64 = arith.constant 0 : index
    %c5_65 = arith.constant 5 : index
    %c8 = arith.constant 8 : index
    %c0_66 = arith.constant 0 : index
    %93 = vector.load %arg5[%c0_64, %c5_65, %c8, %c0_66] : memref<1x14x14x12xf32, #tpu.memory_space<vmem>>, vector<1x4x4x12xf32>
    %94 = vector.extract_strided_slice %5 {offsets = [14, 0], sizes = [1, 12], strides = [1, 1]} : vector<25x12xf32> to vector<1x12xf32>
    %95 = vector.shape_cast %94 : vector<1x12xf32> to vector<1x1x1x12xf32>
    %96 = vector.broadcast %95 : vector<1x1x1x12xf32> to vector<1x4x4x12xf32>
    %97 = arith.mulf %93, %96 : vector<1x4x4x12xf32>
    %98 = arith.addf %92, %97 : vector<1x4x4x12xf32>
    %c0_67 = arith.constant 0 : index
    %c5_68 = arith.constant 5 : index
    %c9 = arith.constant 9 : index
    %c0_69 = arith.constant 0 : index
    %99 = vector.load %arg5[%c0_67, %c5_68, %c9, %c0_69] : memref<1x14x14x12xf32, #tpu.memory_space<vmem>>, vector<1x4x4x12xf32>
    %100 = vector.extract_strided_slice %5 {offsets = [15, 0], sizes = [1, 12], strides = [1, 1]} : vector<25x12xf32> to vector<1x12xf32>
    %101 = vector.shape_cast %100 : vector<1x12xf32> to vector<1x1x1x12xf32>
    %102 = vector.broadcast %101 : vector<1x1x1x12xf32> to vector<1x4x4x12xf32>
    %103 = arith.mulf %99, %102 : vector<1x4x4x12xf32>
    %104 = arith.addf %98, %103 : vector<1x4x4x12xf32>
    %c0_70 = arith.constant 0 : index
    %c5_71 = arith.constant 5 : index
    %c10 = arith.constant 10 : index
    %c0_72 = arith.constant 0 : index
    %105 = vector.load %arg5[%c0_70, %c5_71, %c10, %c0_72] : memref<1x14x14x12xf32, #tpu.memory_space<vmem>>, vector<1x4x4x12xf32>
    %106 = vector.extract_strided_slice %5 {offsets = [16, 0], sizes = [1, 12], strides = [1, 1]} : vector<25x12xf32> to vector<1x12xf32>
    %107 = vector.shape_cast %106 : vector<1x12xf32> to vector<1x1x1x12xf32>
    %108 = vector.broadcast %107 : vector<1x1x1x12xf32> to vector<1x4x4x12xf32>
    %109 = arith.mulf %105, %108 : vector<1x4x4x12xf32>
    %110 = arith.addf %104, %109 : vector<1x4x4x12xf32>
    %c0_73 = arith.constant 0 : index
    %c0_74 = arith.constant 0 : index
    %c5_75 = arith.constant 5 : index
    %c0_76 = arith.constant 0 : index
    %111 = vector.load %arg5[%c0_73, %c0_74, %c5_75, %c0_76] : memref<1x14x14x12xf32, #tpu.memory_space<vmem>>, vector<1x4x4x12xf32>
    %112 = vector.extract_strided_slice %5 {offsets = [17, 0], sizes = [1, 12], strides = [1, 1]} : vector<25x12xf32> to vector<1x12xf32>
    %113 = vector.shape_cast %112 : vector<1x12xf32> to vector<1x1x1x12xf32>
    %114 = vector.broadcast %113 : vector<1x1x1x12xf32> to vector<1x4x4x12xf32>
    %115 = arith.mulf %111, %114 : vector<1x4x4x12xf32>
    %116 = arith.addf %110, %115 : vector<1x4x4x12xf32>
    %c0_77 = arith.constant 0 : index
    %c1_78 = arith.constant 1 : index
    %c5_79 = arith.constant 5 : index
    %c0_80 = arith.constant 0 : index
    %117 = vector.load %arg5[%c0_77, %c1_78, %c5_79, %c0_80] : memref<1x14x14x12xf32, #tpu.memory_space<vmem>>, vector<1x4x4x12xf32>
    %118 = vector.extract_strided_slice %5 {offsets = [18, 0], sizes = [1, 12], strides = [1, 1]} : vector<25x12xf32> to vector<1x12xf32>
    %119 = vector.shape_cast %118 : vector<1x12xf32> to vector<1x1x1x12xf32>
    %120 = vector.broadcast %119 : vector<1x1x1x12xf32> to vector<1x4x4x12xf32>
    %121 = arith.mulf %117, %120 : vector<1x4x4x12xf32>
    %122 = arith.addf %116, %121 : vector<1x4x4x12xf32>
    %c0_81 = arith.constant 0 : index
    %c2_82 = arith.constant 2 : index
    %c5_83 = arith.constant 5 : index
    %c0_84 = arith.constant 0 : index
    %123 = vector.load %arg5[%c0_81, %c2_82, %c5_83, %c0_84] : memref<1x14x14x12xf32, #tpu.memory_space<vmem>>, vector<1x4x4x12xf32>
    %124 = vector.extract_strided_slice %5 {offsets = [19, 0], sizes = [1, 12], strides = [1, 1]} : vector<25x12xf32> to vector<1x12xf32>
    %125 = vector.shape_cast %124 : vector<1x12xf32> to vector<1x1x1x12xf32>
    %126 = vector.broadcast %125 : vector<1x1x1x12xf32> to vector<1x4x4x12xf32>
    %127 = arith.mulf %123, %126 : vector<1x4x4x12xf32>
    %128 = arith.addf %122, %127 : vector<1x4x4x12xf32>
    %c0_85 = arith.constant 0 : index
    %c3_86 = arith.constant 3 : index
    %c5_87 = arith.constant 5 : index
    %c0_88 = arith.constant 0 : index
    %129 = vector.load %arg5[%c0_85, %c3_86, %c5_87, %c0_88] : memref<1x14x14x12xf32, #tpu.memory_space<vmem>>, vector<1x4x4x12xf32>
    %130 = vector.extract_strided_slice %5 {offsets = [20, 0], sizes = [1, 12], strides = [1, 1]} : vector<25x12xf32> to vector<1x12xf32>
    %131 = vector.shape_cast %130 : vector<1x12xf32> to vector<1x1x1x12xf32>
    %132 = vector.broadcast %131 : vector<1x1x1x12xf32> to vector<1x4x4x12xf32>
    %133 = arith.mulf %129, %132 : vector<1x4x4x12xf32>
    %134 = arith.addf %128, %133 : vector<1x4x4x12xf32>
    %c0_89 = arith.constant 0 : index
    %c7_90 = arith.constant 7 : index
    %c5_91 = arith.constant 5 : index
    %c0_92 = arith.constant 0 : index
    %135 = vector.load %arg5[%c0_89, %c7_90, %c5_91, %c0_92] : memref<1x14x14x12xf32, #tpu.memory_space<vmem>>, vector<1x4x4x12xf32>
    %136 = vector.extract_strided_slice %5 {offsets = [21, 0], sizes = [1, 12], strides = [1, 1]} : vector<25x12xf32> to vector<1x12xf32>
    %137 = vector.shape_cast %136 : vector<1x12xf32> to vector<1x1x1x12xf32>
    %138 = vector.broadcast %137 : vector<1x1x1x12xf32> to vector<1x4x4x12xf32>
    %139 = arith.mulf %135, %138 : vector<1x4x4x12xf32>
    %140 = arith.addf %134, %139 : vector<1x4x4x12xf32>
    %c0_93 = arith.constant 0 : index
    %c8_94 = arith.constant 8 : index
    %c5_95 = arith.constant 5 : index
    %c0_96 = arith.constant 0 : index
    %141 = vector.load %arg5[%c0_93, %c8_94, %c5_95, %c0_96] : memref<1x14x14x12xf32, #tpu.memory_space<vmem>>, vector<1x4x4x12xf32>
    %142 = vector.extract_strided_slice %5 {offsets = [22, 0], sizes = [1, 12], strides = [1, 1]} : vector<25x12xf32> to vector<1x12xf32>
    %143 = vector.shape_cast %142 : vector<1x12xf32> to vector<1x1x1x12xf32>
    %144 = vector.broadcast %143 : vector<1x1x1x12xf32> to vector<1x4x4x12xf32>
    %145 = arith.mulf %141, %144 : vector<1x4x4x12xf32>
    %146 = arith.addf %140, %145 : vector<1x4x4x12xf32>
    %c0_97 = arith.constant 0 : index
    %c9_98 = arith.constant 9 : index
    %c5_99 = arith.constant 5 : index
    %c0_100 = arith.constant 0 : index
    %147 = vector.load %arg5[%c0_97, %c9_98, %c5_99, %c0_100] : memref<1x14x14x12xf32, #tpu.memory_space<vmem>>, vector<1x4x4x12xf32>
    %148 = vector.extract_strided_slice %5 {offsets = [23, 0], sizes = [1, 12], strides = [1, 1]} : vector<25x12xf32> to vector<1x12xf32>
    %149 = vector.shape_cast %148 : vector<1x12xf32> to vector<1x1x1x12xf32>
    %150 = vector.broadcast %149 : vector<1x1x1x12xf32> to vector<1x4x4x12xf32>
    %151 = arith.mulf %147, %150 : vector<1x4x4x12xf32>
    %152 = arith.addf %146, %151 : vector<1x4x4x12xf32>
    %c0_101 = arith.constant 0 : index
    %c10_102 = arith.constant 10 : index
    %c5_103 = arith.constant 5 : index
    %c0_104 = arith.constant 0 : index
    %153 = vector.load %arg5[%c0_101, %c10_102, %c5_103, %c0_104] : memref<1x14x14x12xf32, #tpu.memory_space<vmem>>, vector<1x4x4x12xf32>
    %154 = vector.extract_strided_slice %5 {offsets = [24, 0], sizes = [1, 12], strides = [1, 1]} : vector<25x12xf32> to vector<1x12xf32>
    %155 = vector.shape_cast %154 : vector<1x12xf32> to vector<1x1x1x12xf32>
    %156 = vector.broadcast %155 : vector<1x1x1x12xf32> to vector<1x4x4x12xf32>
    %157 = arith.mulf %153, %156 : vector<1x4x4x12xf32>
    %158 = arith.addf %152, %157 : vector<1x4x4x12xf32>
    %159 = vector.extract_strided_slice %0 {offsets = [0, 0, 0, 0], sizes = [1, 4, 4, 20], strides = [1, 1, 1, 1]} : vector<1x4x4x32xf32> to vector<1x4x4x20xf32>
    %160 = tpu.concatenate %159, %158 in 3 : vector<1x4x4x20xf32>, vector<1x4x4x12xf32> -> vector<1x4x4x32xf32>
    %c0_105 = arith.constant 0 : index
    %c0_106 = arith.constant 0 : index
    %c0_107 = arith.constant 0 : index
    %c0_108 = arith.constant 0 : index
    %161 = vector.load %arg4[%c0_105, %c0_106, %c0_107, %c0_108] : memref<1x4x4x32xf32, #tpu.memory_space<vmem>>, vector<1x4x4x32xf32>
    tpu.vector_store %arg4[%c0_105, %c0_106, %c0_107, %c0_108], %160 {strides = array<i32>} : memref<1x4x4x32xf32, #tpu.memory_space<vmem>>, vector<1x4x4x32xf32>,
    return
  }
  func.func @transform_0(%arg0: i32) -> (i32, i32, i32, i32) {
    %c0_i32 = arith.constant 0 : i32
    %c0_i32_0 = arith.constant 0 : i32
    %c0_i32_1 = arith.constant 0 : i32
    %c0_i32_2 = arith.constant 0 : i32
    return %arg0, %c0_i32, %c0_i32_0, %c0_i32_1 : i32, i32, i32, i32
  }
  func.func @transform_1(%arg0: i32) -> (i32, i32) {
    %c0_i32 = arith.constant 0 : i32
    %c0_i32_0 = arith.constant 0 : i32
    %c0_i32_1 = arith.constant 0 : i32
    return %c0_i32, %c0_i32_0 : i32, i32
  }
  func.func @transform_2(%arg0: i32) -> (i32, i32) {
    %c0_i32 = arith.constant 0 : i32
    %c0_i32_0 = arith.constant 0 : i32
    %c0_i32_1 = arith.constant 0 : i32
    return %c0_i32, %c0_i32_0 : i32, i32
  }
  func.func @transform_3(%arg0: i32) -> (i32, i32, i32, i32) {
    %c0_i32 = arith.constant 0 : i32
    %c0_i32_0 = arith.constant 0 : i32
    %c0_i32_1 = arith.constant 0 : i32
    %c0_i32_2 = arith.constant 0 : i32
    return %arg0, %c0_i32, %c0_i32_0, %c0_i32_1 : i32, i32, i32, i32
  }
}

module attributes {stable_mosaic.version = 11 : i64} {
  func.func @_mlp_kernel(%arg0: i32, %arg1: memref<32x32xf32, #tpu.memory_space<vmem>>, %arg2: memref<32x32xf32, #tpu.memory_space<vmem>>, %arg3: memref<1x32xf32, #tpu.memory_space<vmem>>, %arg4: memref<1x32xf32, #tpu.memory_space<vmem>>, %arg5: memref<32x128xbf16, #tpu.memory_space<vmem>>, %arg6: memref<1x128xf32, #tpu.memory_space<vmem>>, %arg7: memref<128x32xbf16, #tpu.memory_space<vmem>>, %arg8: memref<1x32xf32, #tpu.memory_space<vmem>>, %arg9: memref<32x32xf32, #tpu.memory_space<vmem>>) attributes {dimension_semantics = [#tpu.dimension_semantics<parallel>], iteration_bounds = array<i64: 1>, scalar_prefetch = 0 : i64, scratch_operands = 0 : i64, tpu.core_type = #tpu.core_type<tc>, window_params = [{transform_indices = @transform_0, window_bounds = array<i64: 32, 32>}, {transform_indices = @transform_1, window_bounds = array<i64: 32, 32>}, {pipeline_mode = #tpu.pipeline_mode<synchronous>, transform_indices = @transform_2, window_bounds = array<i64: 1, 32>}, {pipeline_mode = #tpu.pipeline_mode<synchronous>, transform_indices = @transform_3, window_bounds = array<i64: 1, 32>}, {pipeline_mode = #tpu.pipeline_mode<synchronous>, transform_indices = @transform_4, window_bounds = array<i64: 32, 128>}, {pipeline_mode = #tpu.pipeline_mode<synchronous>, transform_indices = @transform_5, window_bounds = array<i64: 1, 128>}, {pipeline_mode = #tpu.pipeline_mode<synchronous>, transform_indices = @transform_6, window_bounds = array<i64: 128, 32>}, {pipeline_mode = #tpu.pipeline_mode<synchronous>, transform_indices = @transform_7, window_bounds = array<i64: 1, 32>}, {transform_indices = @transform_8, window_bounds = array<i64: 32, 32>}]} {
    %c0 = arith.constant 0 : index
    %c0_0 = arith.constant 0 : index
    %0 = vector.load %arg1[%c0, %c0_0] : memref<32x32xf32, #tpu.memory_space<vmem>>, vector<32x32xf32>
    %c0_1 = arith.constant 0 : index
    %c0_2 = arith.constant 0 : index
    %1 = vector.load %arg3[%c0_1, %c0_2] : memref<1x32xf32, #tpu.memory_space<vmem>>, vector<1x32xf32>
    %c0_3 = arith.constant 0 : index
    %c0_4 = arith.constant 0 : index
    %2 = vector.load %arg4[%c0_3, %c0_4] : memref<1x32xf32, #tpu.memory_space<vmem>>, vector<1x32xf32>
    %cst = arith.constant dense<0.000000e+00> : vector<32xf32>
    %3 = vector.multi_reduction <add>, %0, %cst [1] : vector<32x32xf32> to vector<32xf32>
    %4 = vector.shape_cast %3 : vector<32xf32> to vector<32x1xf32>
    %cst_5 = arith.constant 3.200000e+01 : f32
    %5 = vector.broadcast %cst_5 : f32 to vector<32x1xf32>
    %6 = arith.divf %4, %5 : vector<32x1xf32>
    %7 = vector.broadcast %6 : vector<32x1xf32> to vector<32x32xf32>
    %8 = arith.subf %0, %7 : vector<32x32xf32>
    %9 = arith.mulf %8, %8 : vector<32x32xf32>
    %cst_6 = arith.constant dense<0.000000e+00> : vector<32xf32>
    %10 = vector.multi_reduction <add>, %9, %cst_6 [1] : vector<32x32xf32> to vector<32xf32>
    %11 = vector.shape_cast %10 : vector<32xf32> to vector<32x1xf32>
    %cst_7 = arith.constant 3.200000e+01 : f32
    %12 = vector.broadcast %cst_7 : f32 to vector<32x1xf32>
    %13 = arith.divf %11, %12 : vector<32x1xf32>
    %cst_8 = arith.constant 9.99999997E-7 : f32
    %14 = vector.broadcast %cst_8 : f32 to vector<32x1xf32>
    %15 = arith.addf %13, %14 : vector<32x1xf32>
    %16 = math.rsqrt %15 : vector<32x1xf32>
    %17 = vector.broadcast %16 : vector<32x1xf32> to vector<32x32xf32>
    %18 = arith.mulf %8, %17 : vector<32x32xf32>
    %19 = vector.broadcast %1 : vector<1x32xf32> to vector<32x32xf32>
    %20 = arith.mulf %18, %19 : vector<32x32xf32>
    %21 = vector.broadcast %2 : vector<1x32xf32> to vector<32x32xf32>
    %22 = arith.addf %20, %21 : vector<32x32xf32>
    %c0_9 = arith.constant 0 : index
    %c0_10 = arith.constant 0 : index
    %23 = vector.load %arg5[%c0_9, %c0_10] : memref<32x128xbf16, #tpu.memory_space<vmem>>, vector<32x128xbf16>
    %24 = arith.truncf %22 : vector<32x32xf32> to vector<32x32xbf16>
    %cst_11 = arith.constant dense<0.000000e+00> : vector<32x128xf32>
    %25 = tpu.matmul %24, %23, %cst_11 {dimension_numbers = #tpu.dot_dimension_numbers<[1], [0], [0], [1], [0, 0, 1, 1], [], []>} : vector<32x32xbf16>, vector<32x128xbf16>, vector<32x128xf32> -> vector<32x128xf32>
    %c0_12 = arith.constant 0 : index
    %c0_13 = arith.constant 0 : index
    %26 = vector.load %arg6[%c0_12, %c0_13] : memref<1x128xf32, #tpu.memory_space<vmem>>, vector<1x128xf32>
    %27 = vector.broadcast %26 : vector<1x128xf32> to vector<32x128xf32>
    %28 = arith.addf %25, %27 : vector<32x128xf32>
    %cst_14 = arith.constant 5.000000e-01 : f32
    %29 = vector.broadcast %cst_14 : f32 to vector<32x128xf32>
    %30 = arith.mulf %29, %28 : vector<32x128xf32>
    %cst_15 = arith.constant 0.707106769 : f32
    %31 = vector.broadcast %cst_15 : f32 to vector<32x128xf32>
    %32 = arith.mulf %28, %31 : vector<32x128xf32>
    %33 = math.erf %32 : vector<32x128xf32>
    %cst_16 = arith.constant 1.000000e+00 : f32
    %34 = vector.broadcast %cst_16 : f32 to vector<32x128xf32>
    %35 = arith.addf %34, %33 : vector<32x128xf32>
    %36 = arith.mulf %30, %35 : vector<32x128xf32>
    %c0_17 = arith.constant 0 : index
    %c0_18 = arith.constant 0 : index
    %37 = vector.load %arg7[%c0_17, %c0_18] : memref<128x32xbf16, #tpu.memory_space<vmem>>, vector<128x32xbf16>
    %38 = arith.truncf %36 : vector<32x128xf32> to vector<32x128xbf16>
    %cst_19 = arith.constant dense<0.000000e+00> : vector<32x32xf32>
    %39 = tpu.matmul %38, %37, %cst_19 {dimension_numbers = #tpu.dot_dimension_numbers<[1], [0], [0], [1], [0, 0, 1, 1], [], []>} : vector<32x128xbf16>, vector<128x32xbf16>, vector<32x32xf32> -> vector<32x32xf32>
    %c0_20 = arith.constant 0 : index
    %c0_21 = arith.constant 0 : index
    %40 = vector.load %arg8[%c0_20, %c0_21] : memref<1x32xf32, #tpu.memory_space<vmem>>, vector<1x32xf32>
    %41 = vector.broadcast %40 : vector<1x32xf32> to vector<32x32xf32>
    %42 = arith.addf %39, %41 : vector<32x32xf32>
    %c0_22 = arith.constant 0 : index
    %c0_23 = arith.constant 0 : index
    %43 = vector.load %arg2[%c0_22, %c0_23] : memref<32x32xf32, #tpu.memory_space<vmem>>, vector<32x32xf32>
    %44 = arith.addf %43, %42 : vector<32x32xf32>
    %c0_24 = arith.constant 0 : index
    %c0_25 = arith.constant 0 : index
    %45 = vector.load %arg9[%c0_24, %c0_25] : memref<32x32xf32, #tpu.memory_space<vmem>>, vector<32x32xf32>
    tpu.vector_store %arg9[%c0_24, %c0_25], %44 {strides = array<i32>} : memref<32x32xf32, #tpu.memory_space<vmem>>, vector<32x32xf32>,
    return
  }
  func.func @transform_0(%arg0: i32) -> (i32, i32) {
    %c0_i32 = arith.constant 0 : i32
    %c0_i32_0 = arith.constant 0 : i32
    return %arg0, %c0_i32 : i32, i32
  }
  func.func @transform_1(%arg0: i32) -> (i32, i32) {
    %c0_i32 = arith.constant 0 : i32
    %c0_i32_0 = arith.constant 0 : i32
    return %arg0, %c0_i32 : i32, i32
  }
  func.func @transform_2(%arg0: i32) -> (i32, i32) {
    %c0_i32 = arith.constant 0 : i32
    %c0_i32_0 = arith.constant 0 : i32
    %c0_i32_1 = arith.constant 0 : i32
    return %c0_i32, %c0_i32_0 : i32, i32
  }
  func.func @transform_3(%arg0: i32) -> (i32, i32) {
    %c0_i32 = arith.constant 0 : i32
    %c0_i32_0 = arith.constant 0 : i32
    %c0_i32_1 = arith.constant 0 : i32
    return %c0_i32, %c0_i32_0 : i32, i32
  }
  func.func @transform_4(%arg0: i32) -> (i32, i32) {
    %c0_i32 = arith.constant 0 : i32
    %c0_i32_0 = arith.constant 0 : i32
    %c0_i32_1 = arith.constant 0 : i32
    return %c0_i32, %c0_i32_0 : i32, i32
  }
  func.func @transform_5(%arg0: i32) -> (i32, i32) {
    %c0_i32 = arith.constant 0 : i32
    %c0_i32_0 = arith.constant 0 : i32
    %c0_i32_1 = arith.constant 0 : i32
    return %c0_i32, %c0_i32_0 : i32, i32
  }
  func.func @transform_6(%arg0: i32) -> (i32, i32) {
    %c0_i32 = arith.constant 0 : i32
    %c0_i32_0 = arith.constant 0 : i32
    %c0_i32_1 = arith.constant 0 : i32
    return %c0_i32, %c0_i32_0 : i32, i32
  }
  func.func @transform_7(%arg0: i32) -> (i32, i32) {
    %c0_i32 = arith.constant 0 : i32
    %c0_i32_0 = arith.constant 0 : i32
    %c0_i32_1 = arith.constant 0 : i32
    return %c0_i32, %c0_i32_0 : i32, i32
  }
  func.func @transform_8(%arg0: i32) -> (i32, i32) {
    %c0_i32 = arith.constant 0 : i32
    %c0_i32_0 = arith.constant 0 : i32
    return %arg0, %c0_i32 : i32, i32
  }
}

module attributes {stable_mosaic.version = 11 : i64} {
  func.func @_ln_downsample_kernel(%arg0: i32, %arg1: memref<8x128xf32, #tpu.memory_space<vmem>>, %arg2: memref<1x32xf32, #tpu.memory_space<vmem>>, %arg3: memref<1x32xf32, #tpu.memory_space<vmem>>, %arg4: memref<128x64xbf16, #tpu.memory_space<vmem>>, %arg5: memref<1x64xf32, #tpu.memory_space<vmem>>, %arg6: memref<8x64xf32, #tpu.memory_space<vmem>>) attributes {dimension_semantics = [#tpu.dimension_semantics<parallel>], iteration_bounds = array<i64: 1>, scalar_prefetch = 0 : i64, scratch_operands = 0 : i64, tpu.core_type = #tpu.core_type<tc>, window_params = [{transform_indices = @transform_0, window_bounds = array<i64: 8, 128>}, {pipeline_mode = #tpu.pipeline_mode<synchronous>, transform_indices = @transform_1, window_bounds = array<i64: 1, 32>}, {pipeline_mode = #tpu.pipeline_mode<synchronous>, transform_indices = @transform_2, window_bounds = array<i64: 1, 32>}, {pipeline_mode = #tpu.pipeline_mode<synchronous>, transform_indices = @transform_3, window_bounds = array<i64: 128, 64>}, {pipeline_mode = #tpu.pipeline_mode<synchronous>, transform_indices = @transform_4, window_bounds = array<i64: 1, 64>}, {transform_indices = @transform_5, window_bounds = array<i64: 8, 64>}]} {
    %c0 = arith.constant 0 : index
    %c0_0 = arith.constant 0 : index
    %0 = vector.load %arg1[%c0, %c0_0] : memref<8x128xf32, #tpu.memory_space<vmem>>, vector<8x128xf32>
    %c0_1 = arith.constant 0 : index
    %c0_2 = arith.constant 0 : index
    %1 = vector.load %arg2[%c0_1, %c0_2] : memref<1x32xf32, #tpu.memory_space<vmem>>, vector<1x32xf32>
    %c0_3 = arith.constant 0 : index
    %c0_4 = arith.constant 0 : index
    %2 = vector.load %arg3[%c0_3, %c0_4] : memref<1x32xf32, #tpu.memory_space<vmem>>, vector<1x32xf32>
    %3 = vector.extract_strided_slice %0 {offsets = [0, 0], sizes = [8, 32], strides = [1, 1]} : vector<8x128xf32> to vector<8x32xf32>
    %cst = arith.constant dense<0.000000e+00> : vector<8xf32>
    %4 = vector.multi_reduction <add>, %3, %cst [1] : vector<8x32xf32> to vector<8xf32>
    %5 = vector.shape_cast %4 : vector<8xf32> to vector<8x1xf32>
    %cst_5 = arith.constant 3.200000e+01 : f32
    %6 = vector.broadcast %cst_5 : f32 to vector<8x1xf32>
    %7 = arith.divf %5, %6 : vector<8x1xf32>
    %8 = vector.broadcast %7 : vector<8x1xf32> to vector<8x32xf32>
    %9 = arith.subf %3, %8 : vector<8x32xf32>
    %10 = arith.mulf %9, %9 : vector<8x32xf32>
    %cst_6 = arith.constant dense<0.000000e+00> : vector<8xf32>
    %11 = vector.multi_reduction <add>, %10, %cst_6 [1] : vector<8x32xf32> to vector<8xf32>
    %12 = vector.shape_cast %11 : vector<8xf32> to vector<8x1xf32>
    %cst_7 = arith.constant 3.200000e+01 : f32
    %13 = vector.broadcast %cst_7 : f32 to vector<8x1xf32>
    %14 = arith.divf %12, %13 : vector<8x1xf32>
    %cst_8 = arith.constant 9.99999997E-7 : f32
    %15 = vector.broadcast %cst_8 : f32 to vector<8x1xf32>
    %16 = arith.addf %14, %15 : vector<8x1xf32>
    %17 = math.rsqrt %16 : vector<8x1xf32>
    %18 = vector.broadcast %17 : vector<8x1xf32> to vector<8x32xf32>
    %19 = arith.mulf %9, %18 : vector<8x32xf32>
    %20 = vector.broadcast %1 : vector<1x32xf32> to vector<8x32xf32>
    %21 = arith.mulf %19, %20 : vector<8x32xf32>
    %22 = vector.broadcast %2 : vector<1x32xf32> to vector<8x32xf32>
    %23 = arith.addf %21, %22 : vector<8x32xf32>
    %24 = vector.extract_strided_slice %0 {offsets = [0, 32], sizes = [8, 32], strides = [1, 1]} : vector<8x128xf32> to vector<8x32xf32>
    %cst_9 = arith.constant dense<0.000000e+00> : vector<8xf32>
    %25 = vector.multi_reduction <add>, %24, %cst_9 [1] : vector<8x32xf32> to vector<8xf32>
    %26 = vector.shape_cast %25 : vector<8xf32> to vector<8x1xf32>
    %cst_10 = arith.constant 3.200000e+01 : f32
    %27 = vector.broadcast %cst_10 : f32 to vector<8x1xf32>
    %28 = arith.divf %26, %27 : vector<8x1xf32>
    %29 = vector.broadcast %28 : vector<8x1xf32> to vector<8x32xf32>
    %30 = arith.subf %24, %29 : vector<8x32xf32>
    %31 = arith.mulf %30, %30 : vector<8x32xf32>
    %cst_11 = arith.constant dense<0.000000e+00> : vector<8xf32>
    %32 = vector.multi_reduction <add>, %31, %cst_11 [1] : vector<8x32xf32> to vector<8xf32>
    %33 = vector.shape_cast %32 : vector<8xf32> to vector<8x1xf32>
    %cst_12 = arith.constant 3.200000e+01 : f32
    %34 = vector.broadcast %cst_12 : f32 to vector<8x1xf32>
    %35 = arith.divf %33, %34 : vector<8x1xf32>
    %cst_13 = arith.constant 9.99999997E-7 : f32
    %36 = vector.broadcast %cst_13 : f32 to vector<8x1xf32>
    %37 = arith.addf %35, %36 : vector<8x1xf32>
    %38 = math.rsqrt %37 : vector<8x1xf32>
    %39 = vector.broadcast %38 : vector<8x1xf32> to vector<8x32xf32>
    %40 = arith.mulf %30, %39 : vector<8x32xf32>
    %41 = vector.broadcast %1 : vector<1x32xf32> to vector<8x32xf32>
    %42 = arith.mulf %40, %41 : vector<8x32xf32>
    %43 = vector.broadcast %2 : vector<1x32xf32> to vector<8x32xf32>
    %44 = arith.addf %42, %43 : vector<8x32xf32>
    %45 = vector.extract_strided_slice %0 {offsets = [0, 64], sizes = [8, 32], strides = [1, 1]} : vector<8x128xf32> to vector<8x32xf32>
    %cst_14 = arith.constant dense<0.000000e+00> : vector<8xf32>
    %46 = vector.multi_reduction <add>, %45, %cst_14 [1] : vector<8x32xf32> to vector<8xf32>
    %47 = vector.shape_cast %46 : vector<8xf32> to vector<8x1xf32>
    %cst_15 = arith.constant 3.200000e+01 : f32
    %48 = vector.broadcast %cst_15 : f32 to vector<8x1xf32>
    %49 = arith.divf %47, %48 : vector<8x1xf32>
    %50 = vector.broadcast %49 : vector<8x1xf32> to vector<8x32xf32>
    %51 = arith.subf %45, %50 : vector<8x32xf32>
    %52 = arith.mulf %51, %51 : vector<8x32xf32>
    %cst_16 = arith.constant dense<0.000000e+00> : vector<8xf32>
    %53 = vector.multi_reduction <add>, %52, %cst_16 [1] : vector<8x32xf32> to vector<8xf32>
    %54 = vector.shape_cast %53 : vector<8xf32> to vector<8x1xf32>
    %cst_17 = arith.constant 3.200000e+01 : f32
    %55 = vector.broadcast %cst_17 : f32 to vector<8x1xf32>
    %56 = arith.divf %54, %55 : vector<8x1xf32>
    %cst_18 = arith.constant 9.99999997E-7 : f32
    %57 = vector.broadcast %cst_18 : f32 to vector<8x1xf32>
    %58 = arith.addf %56, %57 : vector<8x1xf32>
    %59 = math.rsqrt %58 : vector<8x1xf32>
    %60 = vector.broadcast %59 : vector<8x1xf32> to vector<8x32xf32>
    %61 = arith.mulf %51, %60 : vector<8x32xf32>
    %62 = vector.broadcast %1 : vector<1x32xf32> to vector<8x32xf32>
    %63 = arith.mulf %61, %62 : vector<8x32xf32>
    %64 = vector.broadcast %2 : vector<1x32xf32> to vector<8x32xf32>
    %65 = arith.addf %63, %64 : vector<8x32xf32>
    %66 = vector.extract_strided_slice %0 {offsets = [0, 96], sizes = [8, 32], strides = [1, 1]} : vector<8x128xf32> to vector<8x32xf32>
    %cst_19 = arith.constant dense<0.000000e+00> : vector<8xf32>
    %67 = vector.multi_reduction <add>, %66, %cst_19 [1] : vector<8x32xf32> to vector<8xf32>
    %68 = vector.shape_cast %67 : vector<8xf32> to vector<8x1xf32>
    %cst_20 = arith.constant 3.200000e+01 : f32
    %69 = vector.broadcast %cst_20 : f32 to vector<8x1xf32>
    %70 = arith.divf %68, %69 : vector<8x1xf32>
    %71 = vector.broadcast %70 : vector<8x1xf32> to vector<8x32xf32>
    %72 = arith.subf %66, %71 : vector<8x32xf32>
    %73 = arith.mulf %72, %72 : vector<8x32xf32>
    %cst_21 = arith.constant dense<0.000000e+00> : vector<8xf32>
    %74 = vector.multi_reduction <add>, %73, %cst_21 [1] : vector<8x32xf32> to vector<8xf32>
    %75 = vector.shape_cast %74 : vector<8xf32> to vector<8x1xf32>
    %cst_22 = arith.constant 3.200000e+01 : f32
    %76 = vector.broadcast %cst_22 : f32 to vector<8x1xf32>
    %77 = arith.divf %75, %76 : vector<8x1xf32>
    %cst_23 = arith.constant 9.99999997E-7 : f32
    %78 = vector.broadcast %cst_23 : f32 to vector<8x1xf32>
    %79 = arith.addf %77, %78 : vector<8x1xf32>
    %80 = math.rsqrt %79 : vector<8x1xf32>
    %81 = vector.broadcast %80 : vector<8x1xf32> to vector<8x32xf32>
    %82 = arith.mulf %72, %81 : vector<8x32xf32>
    %83 = vector.broadcast %1 : vector<1x32xf32> to vector<8x32xf32>
    %84 = arith.mulf %82, %83 : vector<8x32xf32>
    %85 = vector.broadcast %2 : vector<1x32xf32> to vector<8x32xf32>
    %86 = arith.addf %84, %85 : vector<8x32xf32>
    %87 = tpu.concatenate %23, %44, %65, %86 in 1 : vector<8x32xf32>, vector<8x32xf32>, vector<8x32xf32>, vector<8x32xf32> -> vector<8x128xf32>
    %c0_24 = arith.constant 0 : index
    %c0_25 = arith.constant 0 : index
    %88 = vector.load %arg4[%c0_24, %c0_25] : memref<128x64xbf16, #tpu.memory_space<vmem>>, vector<128x64xbf16>
    %89 = arith.truncf %87 : vector<8x128xf32> to vector<8x128xbf16>
    %cst_26 = arith.constant dense<0.000000e+00> : vector<8x64xf32>
    %90 = tpu.matmul %89, %88, %cst_26 {dimension_numbers = #tpu.dot_dimension_numbers<[1], [0], [0], [1], [0, 0, 1, 1], [], []>} : vector<8x128xbf16>, vector<128x64xbf16>, vector<8x64xf32> -> vector<8x64xf32>
    %c0_27 = arith.constant 0 : index
    %c0_28 = arith.constant 0 : index
    %91 = vector.load %arg5[%c0_27, %c0_28] : memref<1x64xf32, #tpu.memory_space<vmem>>, vector<1x64xf32>
    %92 = vector.broadcast %91 : vector<1x64xf32> to vector<8x64xf32>
    %93 = arith.addf %90, %92 : vector<8x64xf32>
    %c0_29 = arith.constant 0 : index
    %c0_30 = arith.constant 0 : index
    %94 = vector.load %arg6[%c0_29, %c0_30] : memref<8x64xf32, #tpu.memory_space<vmem>>, vector<8x64xf32>
    tpu.vector_store %arg6[%c0_29, %c0_30], %93 {strides = array<i32>} : memref<8x64xf32, #tpu.memory_space<vmem>>, vector<8x64xf32>,
    return
  }
  func.func @transform_0(%arg0: i32) -> (i32, i32) {
    %c0_i32 = arith.constant 0 : i32
    %c0_i32_0 = arith.constant 0 : i32
    return %arg0, %c0_i32 : i32, i32
  }
  func.func @transform_1(%arg0: i32) -> (i32, i32) {
    %c0_i32 = arith.constant 0 : i32
    %c0_i32_0 = arith.constant 0 : i32
    %c0_i32_1 = arith.constant 0 : i32
    return %c0_i32, %c0_i32_0 : i32, i32
  }
  func.func @transform_2(%arg0: i32) -> (i32, i32) {
    %c0_i32 = arith.constant 0 : i32
    %c0_i32_0 = arith.constant 0 : i32
    %c0_i32_1 = arith.constant 0 : i32
    return %c0_i32, %c0_i32_0 : i32, i32
  }
  func.func @transform_3(%arg0: i32) -> (i32, i32) {
    %c0_i32 = arith.constant 0 : i32
    %c0_i32_0 = arith.constant 0 : i32
    %c0_i32_1 = arith.constant 0 : i32
    return %c0_i32, %c0_i32_0 : i32, i32
  }
  func.func @transform_4(%arg0: i32) -> (i32, i32) {
    %c0_i32 = arith.constant 0 : i32
    %c0_i32_0 = arith.constant 0 : i32
    %c0_i32_1 = arith.constant 0 : i32
    return %c0_i32, %c0_i32_0 : i32, i32
  }
  func.func @transform_5(%arg0: i32) -> (i32, i32) {
    %c0_i32 = arith.constant 0 : i32
    %c0_i32_0 = arith.constant 0 : i32
    return %arg0, %c0_i32 : i32, i32
  }
}

module attributes {stable_mosaic.version = 11 : i64} {
  func.func @_incdw_kernel(%arg0: i32, %arg1: memref<1x2x2x64xf32, #tpu.memory_space<vmem>>, %arg2: memref<25x24xf32, #tpu.memory_space<vmem>>, %arg3: memref<1x24xf32, #tpu.memory_space<vmem>>, %arg4: memref<1x2x2x64xf32, #tpu.memory_space<vmem>>, %arg5: memref<1x12x12x24xf32, #tpu.memory_space<vmem>>) attributes {dimension_semantics = [#tpu.dimension_semantics<parallel>], iteration_bounds = array<i64: 2>, scalar_prefetch = 0 : i64, scratch_operands = 1 : i64, tpu.core_type = #tpu.core_type<tc>, window_params = [{transform_indices = @transform_0, window_bounds = array<i64: 1, 2, 2, 64>}, {pipeline_mode = #tpu.pipeline_mode<synchronous>, transform_indices = @transform_1, window_bounds = array<i64: 25, 24>}, {pipeline_mode = #tpu.pipeline_mode<synchronous>, transform_indices = @transform_2, window_bounds = array<i64: 1, 24>}, {transform_indices = @transform_3, window_bounds = array<i64: 1, 2, 2, 64>}]} {
    %c0 = arith.constant 0 : index
    %c0_0 = arith.constant 0 : index
    %c0_1 = arith.constant 0 : index
    %c0_2 = arith.constant 0 : index
    %0 = vector.load %arg1[%c0, %c0_0, %c0_1, %c0_2] : memref<1x2x2x64xf32, #tpu.memory_space<vmem>>, vector<1x2x2x64xf32>
    %cst = arith.constant 0.000000e+00 : f32
    %1 = vector.broadcast %cst : f32 to vector<1x12x12x24xf32>
    %c0_3 = arith.constant 0 : index
    %c0_4 = arith.constant 0 : index
    %c0_5 = arith.constant 0 : index
    %c0_6 = arith.constant 0 : index
    %2 = vector.load %arg5[%c0_3, %c0_4, %c0_5, %c0_6] : memref<1x12x12x24xf32, #tpu.memory_space<vmem>>, vector<1x12x12x24xf32>
    tpu.vector_store %arg5[%c0_3, %c0_4, %c0_5, %c0_6], %1 {strides = array<i32>} : memref<1x12x12x24xf32, #tpu.memory_space<vmem>>, vector<1x12x12x24xf32>,
    %3 = vector.extract_strided_slice %0 {offsets = [0, 0, 0, 40], sizes = [1, 2, 2, 24], strides = [1, 1, 1, 1]} : vector<1x2x2x64xf32> to vector<1x2x2x24xf32>
    %c0_7 = arith.constant 0 : index
    %c5 = arith.constant 5 : index
    %c5_8 = arith.constant 5 : index
    %c0_9 = arith.constant 0 : index
    %4 = vector.load %arg5[%c0_7, %c5, %c5_8, %c0_9] : memref<1x12x12x24xf32, #tpu.memory_space<vmem>>, vector<1x2x2x24xf32>
    tpu.vector_store %arg5[%c0_7, %c5, %c5_8, %c0_9], %3 {strides = array<i32>} : memref<1x12x12x24xf32, #tpu.memory_space<vmem>>, vector<1x2x2x24xf32>,
    %c0_10 = arith.constant 0 : index
    %c0_11 = arith.constant 0 : index
    %5 = vector.load %arg2[%c0_10, %c0_11] : memref<25x24xf32, #tpu.memory_space<vmem>>, vector<25x24xf32>
    %c0_12 = arith.constant 0 : index
    %c0_13 = arith.constant 0 : index
    %6 = vector.load %arg3[%c0_12, %c0_13] : memref<1x24xf32, #tpu.memory_space<vmem>>, vector<1x24xf32>
    %c0_14 = arith.constant 0 : index
    %c4 = arith.constant 4 : index
    %c4_15 = arith.constant 4 : index
    %c0_16 = arith.constant 0 : index
    %7 = vector.load %arg5[%c0_14, %c4, %c4_15, %c0_16] : memref<1x12x12x24xf32, #tpu.memory_space<vmem>>, vector<1x2x2x24xf32>
    %8 = vector.extract_strided_slice %5 {offsets = [0, 0], sizes = [1, 24], strides = [1, 1]} : vector<25x24xf32> to vector<1x24xf32>
    %9 = vector.shape_cast %8 : vector<1x24xf32> to vector<1x1x1x24xf32>
    %10 = vector.broadcast %9 : vector<1x1x1x24xf32> to vector<1x2x2x24xf32>
    %11 = arith.mulf %7, %10 : vector<1x2x2x24xf32>
    %12 = vector.shape_cast %6 : vector<1x24xf32> to vector<1x1x1x24xf32>
    %13 = vector.broadcast %12 : vector<1x1x1x24xf32> to vector<1x2x2x24xf32>
    %14 = arith.addf %13, %11 : vector<1x2x2x24xf32>
    %c0_17 = arith.constant 0 : index
    %c4_18 = arith.constant 4 : index
    %c5_19 = arith.constant 5 : index
    %c0_20 = arith.constant 0 : index
    %15 = vector.load %arg5[%c0_17, %c4_18, %c5_19, %c0_20] : memref<1x12x12x24xf32, #tpu.memory_space<vmem>>, vector<1x2x2x24xf32>
    %16 = vector.extract_strided_slice %5 {offsets = [1, 0], sizes = [1, 24], strides = [1, 1]} : vector<25x24xf32> to vector<1x24xf32>
    %17 = vector.shape_cast %16 : vector<1x24xf32> to vector<1x1x1x24xf32>
    %18 = vector.broadcast %17 : vector<1x1x1x24xf32> to vector<1x2x2x24xf32>
    %19 = arith.mulf %15, %18 : vector<1x2x2x24xf32>
    %20 = arith.addf %14, %19 : vector<1x2x2x24xf32>
    %c0_21 = arith.constant 0 : index
    %c4_22 = arith.constant 4 : index
    %c6 = arith.constant 6 : index
    %c0_23 = arith.constant 0 : index
    %21 = vector.load %arg5[%c0_21, %c4_22, %c6, %c0_23] : memref<1x12x12x24xf32, #tpu.memory_space<vmem>>, vector<1x2x2x24xf32>
    %22 = vector.extract_strided_slice %5 {offsets = [2, 0], sizes = [1, 24], strides = [1, 1]} : vector<25x24xf32> to vector<1x24xf32>
    %23 = vector.shape_cast %22 : vector<1x24xf32> to vector<1x1x1x24xf32>
    %24 = vector.broadcast %23 : vector<1x1x1x24xf32> to vector<1x2x2x24xf32>
    %25 = arith.mulf %21, %24 : vector<1x2x2x24xf32>
    %26 = arith.addf %20, %25 : vector<1x2x2x24xf32>
    %c0_24 = arith.constant 0 : index
    %c5_25 = arith.constant 5 : index
    %c4_26 = arith.constant 4 : index
    %c0_27 = arith.constant 0 : index
    %27 = vector.load %arg5[%c0_24, %c5_25, %c4_26, %c0_27] : memref<1x12x12x24xf32, #tpu.memory_space<vmem>>, vector<1x2x2x24xf32>
    %28 = vector.extract_strided_slice %5 {offsets = [3, 0], sizes = [1, 24], strides = [1, 1]} : vector<25x24xf32> to vector<1x24xf32>
    %29 = vector.shape_cast %28 : vector<1x24xf32> to vector<1x1x1x24xf32>
    %30 = vector.broadcast %29 : vector<1x1x1x24xf32> to vector<1x2x2x24xf32>
    %31 = arith.mulf %27, %30 : vector<1x2x2x24xf32>
    %32 = arith.addf %26, %31 : vector<1x2x2x24xf32>
    %c0_28 = arith.constant 0 : index
    %c5_29 = arith.constant 5 : index
    %c5_30 = arith.constant 5 : index
    %c0_31 = arith.constant 0 : index
    %33 = vector.load %arg5[%c0_28, %c5_29, %c5_30, %c0_31] : memref<1x12x12x24xf32, #tpu.memory_space<vmem>>, vector<1x2x2x24xf32>
    %34 = vector.extract_strided_slice %5 {offsets = [4, 0], sizes = [1, 24], strides = [1, 1]} : vector<25x24xf32> to vector<1x24xf32>
    %35 = vector.shape_cast %34 : vector<1x24xf32> to vector<1x1x1x24xf32>
    %36 = vector.broadcast %35 : vector<1x1x1x24xf32> to vector<1x2x2x24xf32>
    %37 = arith.mulf %33, %36 : vector<1x2x2x24xf32>
    %38 = arith.addf %32, %37 : vector<1x2x2x24xf32>
    %c0_32 = arith.constant 0 : index
    %c5_33 = arith.constant 5 : index
    %c6_34 = arith.constant 6 : index
    %c0_35 = arith.constant 0 : index
    %39 = vector.load %arg5[%c0_32, %c5_33, %c6_34, %c0_35] : memref<1x12x12x24xf32, #tpu.memory_space<vmem>>, vector<1x2x2x24xf32>
    %40 = vector.extract_strided_slice %5 {offsets = [5, 0], sizes = [1, 24], strides = [1, 1]} : vector<25x24xf32> to vector<1x24xf32>
    %41 = vector.shape_cast %40 : vector<1x24xf32> to vector<1x1x1x24xf32>
    %42 = vector.broadcast %41 : vector<1x1x1x24xf32> to vector<1x2x2x24xf32>
    %43 = arith.mulf %39, %42 : vector<1x2x2x24xf32>
    %44 = arith.addf %38, %43 : vector<1x2x2x24xf32>
    %c0_36 = arith.constant 0 : index
    %c6_37 = arith.constant 6 : index
    %c4_38 = arith.constant 4 : index
    %c0_39 = arith.constant 0 : index
    %45 = vector.load %arg5[%c0_36, %c6_37, %c4_38, %c0_39] : memref<1x12x12x24xf32, #tpu.memory_space<vmem>>, vector<1x2x2x24xf32>
    %46 = vector.extract_strided_slice %5 {offsets = [6, 0], sizes = [1, 24], strides = [1, 1]} : vector<25x24xf32> to vector<1x24xf32>
    %47 = vector.shape_cast %46 : vector<1x24xf32> to vector<1x1x1x24xf32>
    %48 = vector.broadcast %47 : vector<1x1x1x24xf32> to vector<1x2x2x24xf32>
    %49 = arith.mulf %45, %48 : vector<1x2x2x24xf32>
    %50 = arith.addf %44, %49 : vector<1x2x2x24xf32>
    %c0_40 = arith.constant 0 : index
    %c6_41 = arith.constant 6 : index
    %c5_42 = arith.constant 5 : index
    %c0_43 = arith.constant 0 : index
    %51 = vector.load %arg5[%c0_40, %c6_41, %c5_42, %c0_43] : memref<1x12x12x24xf32, #tpu.memory_space<vmem>>, vector<1x2x2x24xf32>
    %52 = vector.extract_strided_slice %5 {offsets = [7, 0], sizes = [1, 24], strides = [1, 1]} : vector<25x24xf32> to vector<1x24xf32>
    %53 = vector.shape_cast %52 : vector<1x24xf32> to vector<1x1x1x24xf32>
    %54 = vector.broadcast %53 : vector<1x1x1x24xf32> to vector<1x2x2x24xf32>
    %55 = arith.mulf %51, %54 : vector<1x2x2x24xf32>
    %56 = arith.addf %50, %55 : vector<1x2x2x24xf32>
    %c0_44 = arith.constant 0 : index
    %c6_45 = arith.constant 6 : index
    %c6_46 = arith.constant 6 : index
    %c0_47 = arith.constant 0 : index
    %57 = vector.load %arg5[%c0_44, %c6_45, %c6_46, %c0_47] : memref<1x12x12x24xf32, #tpu.memory_space<vmem>>, vector<1x2x2x24xf32>
    %58 = vector.extract_strided_slice %5 {offsets = [8, 0], sizes = [1, 24], strides = [1, 1]} : vector<25x24xf32> to vector<1x24xf32>
    %59 = vector.shape_cast %58 : vector<1x24xf32> to vector<1x1x1x24xf32>
    %60 = vector.broadcast %59 : vector<1x1x1x24xf32> to vector<1x2x2x24xf32>
    %61 = arith.mulf %57, %60 : vector<1x2x2x24xf32>
    %62 = arith.addf %56, %61 : vector<1x2x2x24xf32>
    %c0_48 = arith.constant 0 : index
    %c5_49 = arith.constant 5 : index
    %c0_50 = arith.constant 0 : index
    %c0_51 = arith.constant 0 : index
    %63 = vector.load %arg5[%c0_48, %c5_49, %c0_50, %c0_51] : memref<1x12x12x24xf32, #tpu.memory_space<vmem>>, vector<1x2x2x24xf32>
    %64 = vector.extract_strided_slice %5 {offsets = [9, 0], sizes = [1, 24], strides = [1, 1]} : vector<25x24xf32> to vector<1x24xf32>
    %65 = vector.shape_cast %64 : vector<1x24xf32> to vector<1x1x1x24xf32>
    %66 = vector.broadcast %65 : vector<1x1x1x24xf32> to vector<1x2x2x24xf32>
    %67 = arith.mulf %63, %66 : vector<1x2x2x24xf32>
    %68 = arith.addf %62, %67 : vector<1x2x2x24xf32>
    %c0_52 = arith.constant 0 : index
    %c5_53 = arith.constant 5 : index
    %c1 = arith.constant 1 : index
    %c0_54 = arith.constant 0 : index
    %69 = vector.load %arg5[%c0_52, %c5_53, %c1, %c0_54] : memref<1x12x12x24xf32, #tpu.memory_space<vmem>>, vector<1x2x2x24xf32>
    %70 = vector.extract_strided_slice %5 {offsets = [10, 0], sizes = [1, 24], strides = [1, 1]} : vector<25x24xf32> to vector<1x24xf32>
    %71 = vector.shape_cast %70 : vector<1x24xf32> to vector<1x1x1x24xf32>
    %72 = vector.broadcast %71 : vector<1x1x1x24xf32> to vector<1x2x2x24xf32>
    %73 = arith.mulf %69, %72 : vector<1x2x2x24xf32>
    %74 = arith.addf %68, %73 : vector<1x2x2x24xf32>
    %c0_55 = arith.constant 0 : index
    %c5_56 = arith.constant 5 : index
    %c2 = arith.constant 2 : index
    %c0_57 = arith.constant 0 : index
    %75 = vector.load %arg5[%c0_55, %c5_56, %c2, %c0_57] : memref<1x12x12x24xf32, #tpu.memory_space<vmem>>, vector<1x2x2x24xf32>
    %76 = vector.extract_strided_slice %5 {offsets = [11, 0], sizes = [1, 24], strides = [1, 1]} : vector<25x24xf32> to vector<1x24xf32>
    %77 = vector.shape_cast %76 : vector<1x24xf32> to vector<1x1x1x24xf32>
    %78 = vector.broadcast %77 : vector<1x1x1x24xf32> to vector<1x2x2x24xf32>
    %79 = arith.mulf %75, %78 : vector<1x2x2x24xf32>
    %80 = arith.addf %74, %79 : vector<1x2x2x24xf32>
    %c0_58 = arith.constant 0 : index
    %c5_59 = arith.constant 5 : index
    %c3 = arith.constant 3 : index
    %c0_60 = arith.constant 0 : index
    %81 = vector.load %arg5[%c0_58, %c5_59, %c3, %c0_60] : memref<1x12x12x24xf32, #tpu.memory_space<vmem>>, vector<1x2x2x24xf32>
    %82 = vector.extract_strided_slice %5 {offsets = [12, 0], sizes = [1, 24], strides = [1, 1]} : vector<25x24xf32> to vector<1x24xf32>
    %83 = vector.shape_cast %82 : vector<1x24xf32> to vector<1x1x1x24xf32>
    %84 = vector.broadcast %83 : vector<1x1x1x24xf32> to vector<1x2x2x24xf32>
    %85 = arith.mulf %81, %84 : vector<1x2x2x24xf32>
    %86 = arith.addf %80, %85 : vector<1x2x2x24xf32>
    %c0_61 = arith.constant 0 : index
    %c5_62 = arith.constant 5 : index
    %c7 = arith.constant 7 : index
    %c0_63 = arith.constant 0 : index
    %87 = vector.load %arg5[%c0_61, %c5_62, %c7, %c0_63] : memref<1x12x12x24xf32, #tpu.memory_space<vmem>>, vector<1x2x2x24xf32>
    %88 = vector.extract_strided_slice %5 {offsets = [13, 0], sizes = [1, 24], strides = [1, 1]} : vector<25x24xf32> to vector<1x24xf32>
    %89 = vector.shape_cast %88 : vector<1x24xf32> to vector<1x1x1x24xf32>
    %90 = vector.broadcast %89 : vector<1x1x1x24xf32> to vector<1x2x2x24xf32>
    %91 = arith.mulf %87, %90 : vector<1x2x2x24xf32>
    %92 = arith.addf %86, %91 : vector<1x2x2x24xf32>
    %c0_64 = arith.constant 0 : index
    %c5_65 = arith.constant 5 : index
    %c8 = arith.constant 8 : index
    %c0_66 = arith.constant 0 : index
    %93 = vector.load %arg5[%c0_64, %c5_65, %c8, %c0_66] : memref<1x12x12x24xf32, #tpu.memory_space<vmem>>, vector<1x2x2x24xf32>
    %94 = vector.extract_strided_slice %5 {offsets = [14, 0], sizes = [1, 24], strides = [1, 1]} : vector<25x24xf32> to vector<1x24xf32>
    %95 = vector.shape_cast %94 : vector<1x24xf32> to vector<1x1x1x24xf32>
    %96 = vector.broadcast %95 : vector<1x1x1x24xf32> to vector<1x2x2x24xf32>
    %97 = arith.mulf %93, %96 : vector<1x2x2x24xf32>
    %98 = arith.addf %92, %97 : vector<1x2x2x24xf32>
    %c0_67 = arith.constant 0 : index
    %c5_68 = arith.constant 5 : index
    %c9 = arith.constant 9 : index
    %c0_69 = arith.constant 0 : index
    %99 = vector.load %arg5[%c0_67, %c5_68, %c9, %c0_69] : memref<1x12x12x24xf32, #tpu.memory_space<vmem>>, vector<1x2x2x24xf32>
    %100 = vector.extract_strided_slice %5 {offsets = [15, 0], sizes = [1, 24], strides = [1, 1]} : vector<25x24xf32> to vector<1x24xf32>
    %101 = vector.shape_cast %100 : vector<1x24xf32> to vector<1x1x1x24xf32>
    %102 = vector.broadcast %101 : vector<1x1x1x24xf32> to vector<1x2x2x24xf32>
    %103 = arith.mulf %99, %102 : vector<1x2x2x24xf32>
    %104 = arith.addf %98, %103 : vector<1x2x2x24xf32>
    %c0_70 = arith.constant 0 : index
    %c5_71 = arith.constant 5 : index
    %c10 = arith.constant 10 : index
    %c0_72 = arith.constant 0 : index
    %105 = vector.load %arg5[%c0_70, %c5_71, %c10, %c0_72] : memref<1x12x12x24xf32, #tpu.memory_space<vmem>>, vector<1x2x2x24xf32>
    %106 = vector.extract_strided_slice %5 {offsets = [16, 0], sizes = [1, 24], strides = [1, 1]} : vector<25x24xf32> to vector<1x24xf32>
    %107 = vector.shape_cast %106 : vector<1x24xf32> to vector<1x1x1x24xf32>
    %108 = vector.broadcast %107 : vector<1x1x1x24xf32> to vector<1x2x2x24xf32>
    %109 = arith.mulf %105, %108 : vector<1x2x2x24xf32>
    %110 = arith.addf %104, %109 : vector<1x2x2x24xf32>
    %c0_73 = arith.constant 0 : index
    %c0_74 = arith.constant 0 : index
    %c5_75 = arith.constant 5 : index
    %c0_76 = arith.constant 0 : index
    %111 = vector.load %arg5[%c0_73, %c0_74, %c5_75, %c0_76] : memref<1x12x12x24xf32, #tpu.memory_space<vmem>>, vector<1x2x2x24xf32>
    %112 = vector.extract_strided_slice %5 {offsets = [17, 0], sizes = [1, 24], strides = [1, 1]} : vector<25x24xf32> to vector<1x24xf32>
    %113 = vector.shape_cast %112 : vector<1x24xf32> to vector<1x1x1x24xf32>
    %114 = vector.broadcast %113 : vector<1x1x1x24xf32> to vector<1x2x2x24xf32>
    %115 = arith.mulf %111, %114 : vector<1x2x2x24xf32>
    %116 = arith.addf %110, %115 : vector<1x2x2x24xf32>
    %c0_77 = arith.constant 0 : index
    %c1_78 = arith.constant 1 : index
    %c5_79 = arith.constant 5 : index
    %c0_80 = arith.constant 0 : index
    %117 = vector.load %arg5[%c0_77, %c1_78, %c5_79, %c0_80] : memref<1x12x12x24xf32, #tpu.memory_space<vmem>>, vector<1x2x2x24xf32>
    %118 = vector.extract_strided_slice %5 {offsets = [18, 0], sizes = [1, 24], strides = [1, 1]} : vector<25x24xf32> to vector<1x24xf32>
    %119 = vector.shape_cast %118 : vector<1x24xf32> to vector<1x1x1x24xf32>
    %120 = vector.broadcast %119 : vector<1x1x1x24xf32> to vector<1x2x2x24xf32>
    %121 = arith.mulf %117, %120 : vector<1x2x2x24xf32>
    %122 = arith.addf %116, %121 : vector<1x2x2x24xf32>
    %c0_81 = arith.constant 0 : index
    %c2_82 = arith.constant 2 : index
    %c5_83 = arith.constant 5 : index
    %c0_84 = arith.constant 0 : index
    %123 = vector.load %arg5[%c0_81, %c2_82, %c5_83, %c0_84] : memref<1x12x12x24xf32, #tpu.memory_space<vmem>>, vector<1x2x2x24xf32>
    %124 = vector.extract_strided_slice %5 {offsets = [19, 0], sizes = [1, 24], strides = [1, 1]} : vector<25x24xf32> to vector<1x24xf32>
    %125 = vector.shape_cast %124 : vector<1x24xf32> to vector<1x1x1x24xf32>
    %126 = vector.broadcast %125 : vector<1x1x1x24xf32> to vector<1x2x2x24xf32>
    %127 = arith.mulf %123, %126 : vector<1x2x2x24xf32>
    %128 = arith.addf %122, %127 : vector<1x2x2x24xf32>
    %c0_85 = arith.constant 0 : index
    %c3_86 = arith.constant 3 : index
    %c5_87 = arith.constant 5 : index
    %c0_88 = arith.constant 0 : index
    %129 = vector.load %arg5[%c0_85, %c3_86, %c5_87, %c0_88] : memref<1x12x12x24xf32, #tpu.memory_space<vmem>>, vector<1x2x2x24xf32>
    %130 = vector.extract_strided_slice %5 {offsets = [20, 0], sizes = [1, 24], strides = [1, 1]} : vector<25x24xf32> to vector<1x24xf32>
    %131 = vector.shape_cast %130 : vector<1x24xf32> to vector<1x1x1x24xf32>
    %132 = vector.broadcast %131 : vector<1x1x1x24xf32> to vector<1x2x2x24xf32>
    %133 = arith.mulf %129, %132 : vector<1x2x2x24xf32>
    %134 = arith.addf %128, %133 : vector<1x2x2x24xf32>
    %c0_89 = arith.constant 0 : index
    %c7_90 = arith.constant 7 : index
    %c5_91 = arith.constant 5 : index
    %c0_92 = arith.constant 0 : index
    %135 = vector.load %arg5[%c0_89, %c7_90, %c5_91, %c0_92] : memref<1x12x12x24xf32, #tpu.memory_space<vmem>>, vector<1x2x2x24xf32>
    %136 = vector.extract_strided_slice %5 {offsets = [21, 0], sizes = [1, 24], strides = [1, 1]} : vector<25x24xf32> to vector<1x24xf32>
    %137 = vector.shape_cast %136 : vector<1x24xf32> to vector<1x1x1x24xf32>
    %138 = vector.broadcast %137 : vector<1x1x1x24xf32> to vector<1x2x2x24xf32>
    %139 = arith.mulf %135, %138 : vector<1x2x2x24xf32>
    %140 = arith.addf %134, %139 : vector<1x2x2x24xf32>
    %c0_93 = arith.constant 0 : index
    %c8_94 = arith.constant 8 : index
    %c5_95 = arith.constant 5 : index
    %c0_96 = arith.constant 0 : index
    %141 = vector.load %arg5[%c0_93, %c8_94, %c5_95, %c0_96] : memref<1x12x12x24xf32, #tpu.memory_space<vmem>>, vector<1x2x2x24xf32>
    %142 = vector.extract_strided_slice %5 {offsets = [22, 0], sizes = [1, 24], strides = [1, 1]} : vector<25x24xf32> to vector<1x24xf32>
    %143 = vector.shape_cast %142 : vector<1x24xf32> to vector<1x1x1x24xf32>
    %144 = vector.broadcast %143 : vector<1x1x1x24xf32> to vector<1x2x2x24xf32>
    %145 = arith.mulf %141, %144 : vector<1x2x2x24xf32>
    %146 = arith.addf %140, %145 : vector<1x2x2x24xf32>
    %c0_97 = arith.constant 0 : index
    %c9_98 = arith.constant 9 : index
    %c5_99 = arith.constant 5 : index
    %c0_100 = arith.constant 0 : index
    %147 = vector.load %arg5[%c0_97, %c9_98, %c5_99, %c0_100] : memref<1x12x12x24xf32, #tpu.memory_space<vmem>>, vector<1x2x2x24xf32>
    %148 = vector.extract_strided_slice %5 {offsets = [23, 0], sizes = [1, 24], strides = [1, 1]} : vector<25x24xf32> to vector<1x24xf32>
    %149 = vector.shape_cast %148 : vector<1x24xf32> to vector<1x1x1x24xf32>
    %150 = vector.broadcast %149 : vector<1x1x1x24xf32> to vector<1x2x2x24xf32>
    %151 = arith.mulf %147, %150 : vector<1x2x2x24xf32>
    %152 = arith.addf %146, %151 : vector<1x2x2x24xf32>
    %c0_101 = arith.constant 0 : index
    %c10_102 = arith.constant 10 : index
    %c5_103 = arith.constant 5 : index
    %c0_104 = arith.constant 0 : index
    %153 = vector.load %arg5[%c0_101, %c10_102, %c5_103, %c0_104] : memref<1x12x12x24xf32, #tpu.memory_space<vmem>>, vector<1x2x2x24xf32>
    %154 = vector.extract_strided_slice %5 {offsets = [24, 0], sizes = [1, 24], strides = [1, 1]} : vector<25x24xf32> to vector<1x24xf32>
    %155 = vector.shape_cast %154 : vector<1x24xf32> to vector<1x1x1x24xf32>
    %156 = vector.broadcast %155 : vector<1x1x1x24xf32> to vector<1x2x2x24xf32>
    %157 = arith.mulf %153, %156 : vector<1x2x2x24xf32>
    %158 = arith.addf %152, %157 : vector<1x2x2x24xf32>
    %159 = vector.extract_strided_slice %0 {offsets = [0, 0, 0, 0], sizes = [1, 2, 2, 40], strides = [1, 1, 1, 1]} : vector<1x2x2x64xf32> to vector<1x2x2x40xf32>
    %160 = tpu.concatenate %159, %158 in 3 : vector<1x2x2x40xf32>, vector<1x2x2x24xf32> -> vector<1x2x2x64xf32>
    %c0_105 = arith.constant 0 : index
    %c0_106 = arith.constant 0 : index
    %c0_107 = arith.constant 0 : index
    %c0_108 = arith.constant 0 : index
    %161 = vector.load %arg4[%c0_105, %c0_106, %c0_107, %c0_108] : memref<1x2x2x64xf32, #tpu.memory_space<vmem>>, vector<1x2x2x64xf32>
    tpu.vector_store %arg4[%c0_105, %c0_106, %c0_107, %c0_108], %160 {strides = array<i32>} : memref<1x2x2x64xf32, #tpu.memory_space<vmem>>, vector<1x2x2x64xf32>,
    return
  }
  func.func @transform_0(%arg0: i32) -> (i32, i32, i32, i32) {
    %c0_i32 = arith.constant 0 : i32
    %c0_i32_0 = arith.constant 0 : i32
    %c0_i32_1 = arith.constant 0 : i32
    %c0_i32_2 = arith.constant 0 : i32
    return %arg0, %c0_i32, %c0_i32_0, %c0_i32_1 : i32, i32, i32, i32
  }
  func.func @transform_1(%arg0: i32) -> (i32, i32) {
    %c0_i32 = arith.constant 0 : i32
    %c0_i32_0 = arith.constant 0 : i32
    %c0_i32_1 = arith.constant 0 : i32
    return %c0_i32, %c0_i32_0 : i32, i32
  }
  func.func @transform_2(%arg0: i32) -> (i32, i32) {
    %c0_i32 = arith.constant 0 : i32
    %c0_i32_0 = arith.constant 0 : i32
    %c0_i32_1 = arith.constant 0 : i32
    return %c0_i32, %c0_i32_0 : i32, i32
  }
  func.func @transform_3(%arg0: i32) -> (i32, i32, i32, i32) {
    %c0_i32 = arith.constant 0 : i32
    %c0_i32_0 = arith.constant 0 : i32
    %c0_i32_1 = arith.constant 0 : i32
    %c0_i32_2 = arith.constant 0 : i32
    return %arg0, %c0_i32, %c0_i32_0, %c0_i32_1 : i32, i32, i32, i32
  }
}

module attributes {stable_mosaic.version = 11 : i64} {
  func.func @_mlp_kernel(%arg0: i32, %arg1: memref<8x64xf32, #tpu.memory_space<vmem>>, %arg2: memref<8x64xf32, #tpu.memory_space<vmem>>, %arg3: memref<1x64xf32, #tpu.memory_space<vmem>>, %arg4: memref<1x64xf32, #tpu.memory_space<vmem>>, %arg5: memref<64x256xbf16, #tpu.memory_space<vmem>>, %arg6: memref<1x256xf32, #tpu.memory_space<vmem>>, %arg7: memref<256x64xbf16, #tpu.memory_space<vmem>>, %arg8: memref<1x64xf32, #tpu.memory_space<vmem>>, %arg9: memref<8x64xf32, #tpu.memory_space<vmem>>) attributes {dimension_semantics = [#tpu.dimension_semantics<parallel>], iteration_bounds = array<i64: 1>, scalar_prefetch = 0 : i64, scratch_operands = 0 : i64, tpu.core_type = #tpu.core_type<tc>, window_params = [{transform_indices = @transform_0, window_bounds = array<i64: 8, 64>}, {transform_indices = @transform_1, window_bounds = array<i64: 8, 64>}, {pipeline_mode = #tpu.pipeline_mode<synchronous>, transform_indices = @transform_2, window_bounds = array<i64: 1, 64>}, {pipeline_mode = #tpu.pipeline_mode<synchronous>, transform_indices = @transform_3, window_bounds = array<i64: 1, 64>}, {pipeline_mode = #tpu.pipeline_mode<synchronous>, transform_indices = @transform_4, window_bounds = array<i64: 64, 256>}, {pipeline_mode = #tpu.pipeline_mode<synchronous>, transform_indices = @transform_5, window_bounds = array<i64: 1, 256>}, {pipeline_mode = #tpu.pipeline_mode<synchronous>, transform_indices = @transform_6, window_bounds = array<i64: 256, 64>}, {pipeline_mode = #tpu.pipeline_mode<synchronous>, transform_indices = @transform_7, window_bounds = array<i64: 1, 64>}, {transform_indices = @transform_8, window_bounds = array<i64: 8, 64>}]} {
    %c0 = arith.constant 0 : index
    %c0_0 = arith.constant 0 : index
    %0 = vector.load %arg1[%c0, %c0_0] : memref<8x64xf32, #tpu.memory_space<vmem>>, vector<8x64xf32>
    %c0_1 = arith.constant 0 : index
    %c0_2 = arith.constant 0 : index
    %1 = vector.load %arg3[%c0_1, %c0_2] : memref<1x64xf32, #tpu.memory_space<vmem>>, vector<1x64xf32>
    %c0_3 = arith.constant 0 : index
    %c0_4 = arith.constant 0 : index
    %2 = vector.load %arg4[%c0_3, %c0_4] : memref<1x64xf32, #tpu.memory_space<vmem>>, vector<1x64xf32>
    %cst = arith.constant dense<0.000000e+00> : vector<8xf32>
    %3 = vector.multi_reduction <add>, %0, %cst [1] : vector<8x64xf32> to vector<8xf32>
    %4 = vector.shape_cast %3 : vector<8xf32> to vector<8x1xf32>
    %cst_5 = arith.constant 6.400000e+01 : f32
    %5 = vector.broadcast %cst_5 : f32 to vector<8x1xf32>
    %6 = arith.divf %4, %5 : vector<8x1xf32>
    %7 = vector.broadcast %6 : vector<8x1xf32> to vector<8x64xf32>
    %8 = arith.subf %0, %7 : vector<8x64xf32>
    %9 = arith.mulf %8, %8 : vector<8x64xf32>
    %cst_6 = arith.constant dense<0.000000e+00> : vector<8xf32>
    %10 = vector.multi_reduction <add>, %9, %cst_6 [1] : vector<8x64xf32> to vector<8xf32>
    %11 = vector.shape_cast %10 : vector<8xf32> to vector<8x1xf32>
    %cst_7 = arith.constant 6.400000e+01 : f32
    %12 = vector.broadcast %cst_7 : f32 to vector<8x1xf32>
    %13 = arith.divf %11, %12 : vector<8x1xf32>
    %cst_8 = arith.constant 9.99999997E-7 : f32
    %14 = vector.broadcast %cst_8 : f32 to vector<8x1xf32>
    %15 = arith.addf %13, %14 : vector<8x1xf32>
    %16 = math.rsqrt %15 : vector<8x1xf32>
    %17 = vector.broadcast %16 : vector<8x1xf32> to vector<8x64xf32>
    %18 = arith.mulf %8, %17 : vector<8x64xf32>
    %19 = vector.broadcast %1 : vector<1x64xf32> to vector<8x64xf32>
    %20 = arith.mulf %18, %19 : vector<8x64xf32>
    %21 = vector.broadcast %2 : vector<1x64xf32> to vector<8x64xf32>
    %22 = arith.addf %20, %21 : vector<8x64xf32>
    %c0_9 = arith.constant 0 : index
    %c0_10 = arith.constant 0 : index
    %23 = vector.load %arg5[%c0_9, %c0_10] : memref<64x256xbf16, #tpu.memory_space<vmem>>, vector<64x256xbf16>
    %24 = arith.truncf %22 : vector<8x64xf32> to vector<8x64xbf16>
    %cst_11 = arith.constant dense<0.000000e+00> : vector<8x256xf32>
    %25 = tpu.matmul %24, %23, %cst_11 {dimension_numbers = #tpu.dot_dimension_numbers<[1], [0], [0], [1], [0, 0, 1, 1], [], []>} : vector<8x64xbf16>, vector<64x256xbf16>, vector<8x256xf32> -> vector<8x256xf32>
    %c0_12 = arith.constant 0 : index
    %c0_13 = arith.constant 0 : index
    %26 = vector.load %arg6[%c0_12, %c0_13] : memref<1x256xf32, #tpu.memory_space<vmem>>, vector<1x256xf32>
    %27 = vector.broadcast %26 : vector<1x256xf32> to vector<8x256xf32>
    %28 = arith.addf %25, %27 : vector<8x256xf32>
    %cst_14 = arith.constant 5.000000e-01 : f32
    %29 = vector.broadcast %cst_14 : f32 to vector<8x256xf32>
    %30 = arith.mulf %29, %28 : vector<8x256xf32>
    %cst_15 = arith.constant 0.707106769 : f32
    %31 = vector.broadcast %cst_15 : f32 to vector<8x256xf32>
    %32 = arith.mulf %28, %31 : vector<8x256xf32>
    %33 = math.erf %32 : vector<8x256xf32>
    %cst_16 = arith.constant 1.000000e+00 : f32
    %34 = vector.broadcast %cst_16 : f32 to vector<8x256xf32>
    %35 = arith.addf %34, %33 : vector<8x256xf32>
    %36 = arith.mulf %30, %35 : vector<8x256xf32>
    %c0_17 = arith.constant 0 : index
    %c0_18 = arith.constant 0 : index
    %37 = vector.load %arg7[%c0_17, %c0_18] : memref<256x64xbf16, #tpu.memory_space<vmem>>, vector<256x64xbf16>
    %38 = arith.truncf %36 : vector<8x256xf32> to vector<8x256xbf16>
    %cst_19 = arith.constant dense<0.000000e+00> : vector<8x64xf32>
    %39 = tpu.matmul %38, %37, %cst_19 {dimension_numbers = #tpu.dot_dimension_numbers<[1], [0], [0], [1], [0, 0, 1, 1], [], []>} : vector<8x256xbf16>, vector<256x64xbf16>, vector<8x64xf32> -> vector<8x64xf32>
    %c0_20 = arith.constant 0 : index
    %c0_21 = arith.constant 0 : index
    %40 = vector.load %arg8[%c0_20, %c0_21] : memref<1x64xf32, #tpu.memory_space<vmem>>, vector<1x64xf32>
    %41 = vector.broadcast %40 : vector<1x64xf32> to vector<8x64xf32>
    %42 = arith.addf %39, %41 : vector<8x64xf32>
    %c0_22 = arith.constant 0 : index
    %c0_23 = arith.constant 0 : index
    %43 = vector.load %arg2[%c0_22, %c0_23] : memref<8x64xf32, #tpu.memory_space<vmem>>, vector<8x64xf32>
    %44 = arith.addf %43, %42 : vector<8x64xf32>
    %c0_24 = arith.constant 0 : index
    %c0_25 = arith.constant 0 : index
    %45 = vector.load %arg9[%c0_24, %c0_25] : memref<8x64xf32, #tpu.memory_space<vmem>>, vector<8x64xf32>
    tpu.vector_store %arg9[%c0_24, %c0_25], %44 {strides = array<i32>} : memref<8x64xf32, #tpu.memory_space<vmem>>, vector<8x64xf32>,
    return
  }
  func.func @transform_0(%arg0: i32) -> (i32, i32) {
    %c0_i32 = arith.constant 0 : i32
    %c0_i32_0 = arith.constant 0 : i32
    return %arg0, %c0_i32 : i32, i32
  }
  func.func @transform_1(%arg0: i32) -> (i32, i32) {
    %c0_i32 = arith.constant 0 : i32
    %c0_i32_0 = arith.constant 0 : i32
    return %arg0, %c0_i32 : i32, i32
  }
  func.func @transform_2(%arg0: i32) -> (i32, i32) {
    %c0_i32 = arith.constant 0 : i32
    %c0_i32_0 = arith.constant 0 : i32
    %c0_i32_1 = arith.constant 0 : i32
    return %c0_i32, %c0_i32_0 : i32, i32
  }
  func.func @transform_3(%arg0: i32) -> (i32, i32) {
    %c0_i32 = arith.constant 0 : i32
    %c0_i32_0 = arith.constant 0 : i32
    %c0_i32_1 = arith.constant 0 : i32
    return %c0_i32, %c0_i32_0 : i32, i32
  }
  func.func @transform_4(%arg0: i32) -> (i32, i32) {
    %c0_i32 = arith.constant 0 : i32
    %c0_i32_0 = arith.constant 0 : i32
    %c0_i32_1 = arith.constant 0 : i32
    return %c0_i32, %c0_i32_0 : i32, i32
  }
  func.func @transform_5(%arg0: i32) -> (i32, i32) {
    %c0_i32 = arith.constant 0 : i32
    %c0_i32_0 = arith.constant 0 : i32
    %c0_i32_1 = arith.constant 0 : i32
    return %c0_i32, %c0_i32_0 : i32, i32
  }
  func.func @transform_6(%arg0: i32) -> (i32, i32) {
    %c0_i32 = arith.constant 0 : i32
    %c0_i32_0 = arith.constant 0 : i32
    %c0_i32_1 = arith.constant 0 : i32
    return %c0_i32, %c0_i32_0 : i32, i32
  }
  func.func @transform_7(%arg0: i32) -> (i32, i32) {
    %c0_i32 = arith.constant 0 : i32
    %c0_i32_0 = arith.constant 0 : i32
    %c0_i32_1 = arith.constant 0 : i32
    return %c0_i32, %c0_i32_0 : i32, i32
  }
  func.func @transform_8(%arg0: i32) -> (i32, i32) {
    %c0_i32 = arith.constant 0 : i32
    %c0_i32_0 = arith.constant 0 : i32
    return %arg0, %c0_i32 : i32, i32
  }
}

module attributes {stable_mosaic.version = 11 : i64} {
  func.func @_ln_downsample_kernel(%arg0: i32, %arg1: memref<2x256xf32, #tpu.memory_space<vmem>>, %arg2: memref<1x64xf32, #tpu.memory_space<vmem>>, %arg3: memref<1x64xf32, #tpu.memory_space<vmem>>, %arg4: memref<256x128xbf16, #tpu.memory_space<vmem>>, %arg5: memref<1x128xf32, #tpu.memory_space<vmem>>, %arg6: memref<2x128xf32, #tpu.memory_space<vmem>>) attributes {dimension_semantics = [#tpu.dimension_semantics<parallel>], iteration_bounds = array<i64: 1>, scalar_prefetch = 0 : i64, scratch_operands = 0 : i64, tpu.core_type = #tpu.core_type<tc>, window_params = [{transform_indices = @transform_0, window_bounds = array<i64: 2, 256>}, {pipeline_mode = #tpu.pipeline_mode<synchronous>, transform_indices = @transform_1, window_bounds = array<i64: 1, 64>}, {pipeline_mode = #tpu.pipeline_mode<synchronous>, transform_indices = @transform_2, window_bounds = array<i64: 1, 64>}, {pipeline_mode = #tpu.pipeline_mode<synchronous>, transform_indices = @transform_3, window_bounds = array<i64: 256, 128>}, {pipeline_mode = #tpu.pipeline_mode<synchronous>, transform_indices = @transform_4, window_bounds = array<i64: 1, 128>}, {transform_indices = @transform_5, window_bounds = array<i64: 2, 128>}]} {
    %c0 = arith.constant 0 : index
    %c0_0 = arith.constant 0 : index
    %0 = vector.load %arg1[%c0, %c0_0] : memref<2x256xf32, #tpu.memory_space<vmem>>, vector<2x256xf32>
    %c0_1 = arith.constant 0 : index
    %c0_2 = arith.constant 0 : index
    %1 = vector.load %arg2[%c0_1, %c0_2] : memref<1x64xf32, #tpu.memory_space<vmem>>, vector<1x64xf32>
    %c0_3 = arith.constant 0 : index
    %c0_4 = arith.constant 0 : index
    %2 = vector.load %arg3[%c0_3, %c0_4] : memref<1x64xf32, #tpu.memory_space<vmem>>, vector<1x64xf32>
    %3 = vector.extract_strided_slice %0 {offsets = [0, 0], sizes = [2, 64], strides = [1, 1]} : vector<2x256xf32> to vector<2x64xf32>
    %cst = arith.constant dense<0.000000e+00> : vector<2xf32>
    %4 = vector.multi_reduction <add>, %3, %cst [1] : vector<2x64xf32> to vector<2xf32>
    %5 = vector.shape_cast %4 : vector<2xf32> to vector<2x1xf32>
    %cst_5 = arith.constant 6.400000e+01 : f32
    %6 = vector.broadcast %cst_5 : f32 to vector<2x1xf32>
    %7 = arith.divf %5, %6 : vector<2x1xf32>
    %8 = vector.broadcast %7 : vector<2x1xf32> to vector<2x64xf32>
    %9 = arith.subf %3, %8 : vector<2x64xf32>
    %10 = arith.mulf %9, %9 : vector<2x64xf32>
    %cst_6 = arith.constant dense<0.000000e+00> : vector<2xf32>
    %11 = vector.multi_reduction <add>, %10, %cst_6 [1] : vector<2x64xf32> to vector<2xf32>
    %12 = vector.shape_cast %11 : vector<2xf32> to vector<2x1xf32>
    %cst_7 = arith.constant 6.400000e+01 : f32
    %13 = vector.broadcast %cst_7 : f32 to vector<2x1xf32>
    %14 = arith.divf %12, %13 : vector<2x1xf32>
    %cst_8 = arith.constant 9.99999997E-7 : f32
    %15 = vector.broadcast %cst_8 : f32 to vector<2x1xf32>
    %16 = arith.addf %14, %15 : vector<2x1xf32>
    %17 = math.rsqrt %16 : vector<2x1xf32>
    %18 = vector.broadcast %17 : vector<2x1xf32> to vector<2x64xf32>
    %19 = arith.mulf %9, %18 : vector<2x64xf32>
    %20 = vector.broadcast %1 : vector<1x64xf32> to vector<2x64xf32>
    %21 = arith.mulf %19, %20 : vector<2x64xf32>
    %22 = vector.broadcast %2 : vector<1x64xf32> to vector<2x64xf32>
    %23 = arith.addf %21, %22 : vector<2x64xf32>
    %24 = vector.extract_strided_slice %0 {offsets = [0, 64], sizes = [2, 64], strides = [1, 1]} : vector<2x256xf32> to vector<2x64xf32>
    %cst_9 = arith.constant dense<0.000000e+00> : vector<2xf32>
    %25 = vector.multi_reduction <add>, %24, %cst_9 [1] : vector<2x64xf32> to vector<2xf32>
    %26 = vector.shape_cast %25 : vector<2xf32> to vector<2x1xf32>
    %cst_10 = arith.constant 6.400000e+01 : f32
    %27 = vector.broadcast %cst_10 : f32 to vector<2x1xf32>
    %28 = arith.divf %26, %27 : vector<2x1xf32>
    %29 = vector.broadcast %28 : vector<2x1xf32> to vector<2x64xf32>
    %30 = arith.subf %24, %29 : vector<2x64xf32>
    %31 = arith.mulf %30, %30 : vector<2x64xf32>
    %cst_11 = arith.constant dense<0.000000e+00> : vector<2xf32>
    %32 = vector.multi_reduction <add>, %31, %cst_11 [1] : vector<2x64xf32> to vector<2xf32>
    %33 = vector.shape_cast %32 : vector<2xf32> to vector<2x1xf32>
    %cst_12 = arith.constant 6.400000e+01 : f32
    %34 = vector.broadcast %cst_12 : f32 to vector<2x1xf32>
    %35 = arith.divf %33, %34 : vector<2x1xf32>
    %cst_13 = arith.constant 9.99999997E-7 : f32
    %36 = vector.broadcast %cst_13 : f32 to vector<2x1xf32>
    %37 = arith.addf %35, %36 : vector<2x1xf32>
    %38 = math.rsqrt %37 : vector<2x1xf32>
    %39 = vector.broadcast %38 : vector<2x1xf32> to vector<2x64xf32>
    %40 = arith.mulf %30, %39 : vector<2x64xf32>
    %41 = vector.broadcast %1 : vector<1x64xf32> to vector<2x64xf32>
    %42 = arith.mulf %40, %41 : vector<2x64xf32>
    %43 = vector.broadcast %2 : vector<1x64xf32> to vector<2x64xf32>
    %44 = arith.addf %42, %43 : vector<2x64xf32>
    %45 = vector.extract_strided_slice %0 {offsets = [0, 128], sizes = [2, 64], strides = [1, 1]} : vector<2x256xf32> to vector<2x64xf32>
    %cst_14 = arith.constant dense<0.000000e+00> : vector<2xf32>
    %46 = vector.multi_reduction <add>, %45, %cst_14 [1] : vector<2x64xf32> to vector<2xf32>
    %47 = vector.shape_cast %46 : vector<2xf32> to vector<2x1xf32>
    %cst_15 = arith.constant 6.400000e+01 : f32
    %48 = vector.broadcast %cst_15 : f32 to vector<2x1xf32>
    %49 = arith.divf %47, %48 : vector<2x1xf32>
    %50 = vector.broadcast %49 : vector<2x1xf32> to vector<2x64xf32>
    %51 = arith.subf %45, %50 : vector<2x64xf32>
    %52 = arith.mulf %51, %51 : vector<2x64xf32>
    %cst_16 = arith.constant dense<0.000000e+00> : vector<2xf32>
    %53 = vector.multi_reduction <add>, %52, %cst_16 [1] : vector<2x64xf32> to vector<2xf32>
    %54 = vector.shape_cast %53 : vector<2xf32> to vector<2x1xf32>
    %cst_17 = arith.constant 6.400000e+01 : f32
    %55 = vector.broadcast %cst_17 : f32 to vector<2x1xf32>
    %56 = arith.divf %54, %55 : vector<2x1xf32>
    %cst_18 = arith.constant 9.99999997E-7 : f32
    %57 = vector.broadcast %cst_18 : f32 to vector<2x1xf32>
    %58 = arith.addf %56, %57 : vector<2x1xf32>
    %59 = math.rsqrt %58 : vector<2x1xf32>
    %60 = vector.broadcast %59 : vector<2x1xf32> to vector<2x64xf32>
    %61 = arith.mulf %51, %60 : vector<2x64xf32>
    %62 = vector.broadcast %1 : vector<1x64xf32> to vector<2x64xf32>
    %63 = arith.mulf %61, %62 : vector<2x64xf32>
    %64 = vector.broadcast %2 : vector<1x64xf32> to vector<2x64xf32>
    %65 = arith.addf %63, %64 : vector<2x64xf32>
    %66 = vector.extract_strided_slice %0 {offsets = [0, 192], sizes = [2, 64], strides = [1, 1]} : vector<2x256xf32> to vector<2x64xf32>
    %cst_19 = arith.constant dense<0.000000e+00> : vector<2xf32>
    %67 = vector.multi_reduction <add>, %66, %cst_19 [1] : vector<2x64xf32> to vector<2xf32>
    %68 = vector.shape_cast %67 : vector<2xf32> to vector<2x1xf32>
    %cst_20 = arith.constant 6.400000e+01 : f32
    %69 = vector.broadcast %cst_20 : f32 to vector<2x1xf32>
    %70 = arith.divf %68, %69 : vector<2x1xf32>
    %71 = vector.broadcast %70 : vector<2x1xf32> to vector<2x64xf32>
    %72 = arith.subf %66, %71 : vector<2x64xf32>
    %73 = arith.mulf %72, %72 : vector<2x64xf32>
    %cst_21 = arith.constant dense<0.000000e+00> : vector<2xf32>
    %74 = vector.multi_reduction <add>, %73, %cst_21 [1] : vector<2x64xf32> to vector<2xf32>
    %75 = vector.shape_cast %74 : vector<2xf32> to vector<2x1xf32>
    %cst_22 = arith.constant 6.400000e+01 : f32
    %76 = vector.broadcast %cst_22 : f32 to vector<2x1xf32>
    %77 = arith.divf %75, %76 : vector<2x1xf32>
    %cst_23 = arith.constant 9.99999997E-7 : f32
    %78 = vector.broadcast %cst_23 : f32 to vector<2x1xf32>
    %79 = arith.addf %77, %78 : vector<2x1xf32>
    %80 = math.rsqrt %79 : vector<2x1xf32>
    %81 = vector.broadcast %80 : vector<2x1xf32> to vector<2x64xf32>
    %82 = arith.mulf %72, %81 : vector<2x64xf32>
    %83 = vector.broadcast %1 : vector<1x64xf32> to vector<2x64xf32>
    %84 = arith.mulf %82, %83 : vector<2x64xf32>
    %85 = vector.broadcast %2 : vector<1x64xf32> to vector<2x64xf32>
    %86 = arith.addf %84, %85 : vector<2x64xf32>
    %87 = tpu.concatenate %23, %44, %65, %86 in 1 : vector<2x64xf32>, vector<2x64xf32>, vector<2x64xf32>, vector<2x64xf32> -> vector<2x256xf32>
    %c0_24 = arith.constant 0 : index
    %c0_25 = arith.constant 0 : index
    %88 = vector.load %arg4[%c0_24, %c0_25] : memref<256x128xbf16, #tpu.memory_space<vmem>>, vector<256x128xbf16>
    %89 = arith.truncf %87 : vector<2x256xf32> to vector<2x256xbf16>
    %cst_26 = arith.constant dense<0.000000e+00> : vector<2x128xf32>
    %90 = tpu.matmul %89, %88, %cst_26 {dimension_numbers = #tpu.dot_dimension_numbers<[1], [0], [0], [1], [0, 0, 1, 1], [], []>} : vector<2x256xbf16>, vector<256x128xbf16>, vector<2x128xf32> -> vector<2x128xf32>
    %c0_27 = arith.constant 0 : index
    %c0_28 = arith.constant 0 : index
    %91 = vector.load %arg5[%c0_27, %c0_28] : memref<1x128xf32, #tpu.memory_space<vmem>>, vector<1x128xf32>
    %92 = vector.broadcast %91 : vector<1x128xf32> to vector<2x128xf32>
    %93 = arith.addf %90, %92 : vector<2x128xf32>
    %c0_29 = arith.constant 0 : index
    %c0_30 = arith.constant 0 : index
    %94 = vector.load %arg6[%c0_29, %c0_30] : memref<2x128xf32, #tpu.memory_space<vmem>>, vector<2x128xf32>
    tpu.vector_store %arg6[%c0_29, %c0_30], %93 {strides = array<i32>} : memref<2x128xf32, #tpu.memory_space<vmem>>, vector<2x128xf32>,
    return
  }
  func.func @transform_0(%arg0: i32) -> (i32, i32) {
    %c0_i32 = arith.constant 0 : i32
    %c0_i32_0 = arith.constant 0 : i32
    return %arg0, %c0_i32 : i32, i32
  }
  func.func @transform_1(%arg0: i32) -> (i32, i32) {
    %c0_i32 = arith.constant 0 : i32
    %c0_i32_0 = arith.constant 0 : i32
    %c0_i32_1 = arith.constant 0 : i32
    return %c0_i32, %c0_i32_0 : i32, i32
  }
  func.func @transform_2(%arg0: i32) -> (i32, i32) {
    %c0_i32 = arith.constant 0 : i32
    %c0_i32_0 = arith.constant 0 : i32
    %c0_i32_1 = arith.constant 0 : i32
    return %c0_i32, %c0_i32_0 : i32, i32
  }
  func.func @transform_3(%arg0: i32) -> (i32, i32) {
    %c0_i32 = arith.constant 0 : i32
    %c0_i32_0 = arith.constant 0 : i32
    %c0_i32_1 = arith.constant 0 : i32
    return %c0_i32, %c0_i32_0 : i32, i32
  }
  func.func @transform_4(%arg0: i32) -> (i32, i32) {
    %c0_i32 = arith.constant 0 : i32
    %c0_i32_0 = arith.constant 0 : i32
    %c0_i32_1 = arith.constant 0 : i32
    return %c0_i32, %c0_i32_0 : i32, i32
  }
  func.func @transform_5(%arg0: i32) -> (i32, i32) {
    %c0_i32 = arith.constant 0 : i32
    %c0_i32_0 = arith.constant 0 : i32
    return %arg0, %c0_i32 : i32, i32
  }
}

module attributes {stable_mosaic.version = 11 : i64} {
  func.func @_mlp_kernel(%arg0: i32, %arg1: memref<2x128xf32, #tpu.memory_space<vmem>>, %arg2: memref<2x128xf32, #tpu.memory_space<vmem>>, %arg3: memref<1x128xf32, #tpu.memory_space<vmem>>, %arg4: memref<1x128xf32, #tpu.memory_space<vmem>>, %arg5: memref<128x512xbf16, #tpu.memory_space<vmem>>, %arg6: memref<1x512xf32, #tpu.memory_space<vmem>>, %arg7: memref<512x128xbf16, #tpu.memory_space<vmem>>, %arg8: memref<1x128xf32, #tpu.memory_space<vmem>>, %arg9: memref<2x128xf32, #tpu.memory_space<vmem>>) attributes {dimension_semantics = [#tpu.dimension_semantics<parallel>], iteration_bounds = array<i64: 1>, scalar_prefetch = 0 : i64, scratch_operands = 0 : i64, tpu.core_type = #tpu.core_type<tc>, window_params = [{transform_indices = @transform_0, window_bounds = array<i64: 2, 128>}, {transform_indices = @transform_1, window_bounds = array<i64: 2, 128>}, {pipeline_mode = #tpu.pipeline_mode<synchronous>, transform_indices = @transform_2, window_bounds = array<i64: 1, 128>}, {pipeline_mode = #tpu.pipeline_mode<synchronous>, transform_indices = @transform_3, window_bounds = array<i64: 1, 128>}, {pipeline_mode = #tpu.pipeline_mode<synchronous>, transform_indices = @transform_4, window_bounds = array<i64: 128, 512>}, {pipeline_mode = #tpu.pipeline_mode<synchronous>, transform_indices = @transform_5, window_bounds = array<i64: 1, 512>}, {pipeline_mode = #tpu.pipeline_mode<synchronous>, transform_indices = @transform_6, window_bounds = array<i64: 512, 128>}, {pipeline_mode = #tpu.pipeline_mode<synchronous>, transform_indices = @transform_7, window_bounds = array<i64: 1, 128>}, {transform_indices = @transform_8, window_bounds = array<i64: 2, 128>}]} {
    %c0 = arith.constant 0 : index
    %c0_0 = arith.constant 0 : index
    %0 = vector.load %arg1[%c0, %c0_0] : memref<2x128xf32, #tpu.memory_space<vmem>>, vector<2x128xf32>
    %c0_1 = arith.constant 0 : index
    %c0_2 = arith.constant 0 : index
    %1 = vector.load %arg3[%c0_1, %c0_2] : memref<1x128xf32, #tpu.memory_space<vmem>>, vector<1x128xf32>
    %c0_3 = arith.constant 0 : index
    %c0_4 = arith.constant 0 : index
    %2 = vector.load %arg4[%c0_3, %c0_4] : memref<1x128xf32, #tpu.memory_space<vmem>>, vector<1x128xf32>
    %cst = arith.constant dense<0.000000e+00> : vector<2xf32>
    %3 = vector.multi_reduction <add>, %0, %cst [1] : vector<2x128xf32> to vector<2xf32>
    %4 = vector.shape_cast %3 : vector<2xf32> to vector<2x1xf32>
    %cst_5 = arith.constant 1.280000e+02 : f32
    %5 = vector.broadcast %cst_5 : f32 to vector<2x1xf32>
    %6 = arith.divf %4, %5 : vector<2x1xf32>
    %7 = vector.broadcast %6 : vector<2x1xf32> to vector<2x128xf32>
    %8 = arith.subf %0, %7 : vector<2x128xf32>
    %9 = arith.mulf %8, %8 : vector<2x128xf32>
    %cst_6 = arith.constant dense<0.000000e+00> : vector<2xf32>
    %10 = vector.multi_reduction <add>, %9, %cst_6 [1] : vector<2x128xf32> to vector<2xf32>
    %11 = vector.shape_cast %10 : vector<2xf32> to vector<2x1xf32>
    %cst_7 = arith.constant 1.280000e+02 : f32
    %12 = vector.broadcast %cst_7 : f32 to vector<2x1xf32>
    %13 = arith.divf %11, %12 : vector<2x1xf32>
    %cst_8 = arith.constant 9.99999997E-7 : f32
    %14 = vector.broadcast %cst_8 : f32 to vector<2x1xf32>
    %15 = arith.addf %13, %14 : vector<2x1xf32>
    %16 = math.rsqrt %15 : vector<2x1xf32>
    %17 = vector.broadcast %16 : vector<2x1xf32> to vector<2x128xf32>
    %18 = arith.mulf %8, %17 : vector<2x128xf32>
    %19 = vector.broadcast %1 : vector<1x128xf32> to vector<2x128xf32>
    %20 = arith.mulf %18, %19 : vector<2x128xf32>
    %21 = vector.broadcast %2 : vector<1x128xf32> to vector<2x128xf32>
    %22 = arith.addf %20, %21 : vector<2x128xf32>
    %c0_9 = arith.constant 0 : index
    %c0_10 = arith.constant 0 : index
    %23 = vector.load %arg5[%c0_9, %c0_10] : memref<128x512xbf16, #tpu.memory_space<vmem>>, vector<128x512xbf16>
    %24 = arith.truncf %22 : vector<2x128xf32> to vector<2x128xbf16>
    %cst_11 = arith.constant dense<0.000000e+00> : vector<2x512xf32>
    %25 = tpu.matmul %24, %23, %cst_11 {dimension_numbers = #tpu.dot_dimension_numbers<[1], [0], [0], [1], [0, 0, 1, 1], [], []>} : vector<2x128xbf16>, vector<128x512xbf16>, vector<2x512xf32> -> vector<2x512xf32>
    %c0_12 = arith.constant 0 : index
    %c0_13 = arith.constant 0 : index
    %26 = vector.load %arg6[%c0_12, %c0_13] : memref<1x512xf32, #tpu.memory_space<vmem>>, vector<1x512xf32>
    %27 = vector.broadcast %26 : vector<1x512xf32> to vector<2x512xf32>
    %28 = arith.addf %25, %27 : vector<2x512xf32>
    %cst_14 = arith.constant 5.000000e-01 : f32
    %29 = vector.broadcast %cst_14 : f32 to vector<2x512xf32>
    %30 = arith.mulf %29, %28 : vector<2x512xf32>
    %cst_15 = arith.constant 0.707106769 : f32
    %31 = vector.broadcast %cst_15 : f32 to vector<2x512xf32>
    %32 = arith.mulf %28, %31 : vector<2x512xf32>
    %33 = math.erf %32 : vector<2x512xf32>
    %cst_16 = arith.constant 1.000000e+00 : f32
    %34 = vector.broadcast %cst_16 : f32 to vector<2x512xf32>
    %35 = arith.addf %34, %33 : vector<2x512xf32>
    %36 = arith.mulf %30, %35 : vector<2x512xf32>
    %c0_17 = arith.constant 0 : index
    %c0_18 = arith.constant 0 : index
    %37 = vector.load %arg7[%c0_17, %c0_18] : memref<512x128xbf16, #tpu.memory_space<vmem>>, vector<512x128xbf16>
    %38 = arith.truncf %36 : vector<2x512xf32> to vector<2x512xbf16>
    %cst_19 = arith.constant dense<0.000000e+00> : vector<2x128xf32>
    %39 = tpu.matmul %38, %37, %cst_19 {dimension_numbers = #tpu.dot_dimension_numbers<[1], [0], [0], [1], [0, 0, 1, 1], [], []>} : vector<2x512xbf16>, vector<512x128xbf16>, vector<2x128xf32> -> vector<2x128xf32>
    %c0_20 = arith.constant 0 : index
    %c0_21 = arith.constant 0 : index
    %40 = vector.load %arg8[%c0_20, %c0_21] : memref<1x128xf32, #tpu.memory_space<vmem>>, vector<1x128xf32>
    %41 = vector.broadcast %40 : vector<1x128xf32> to vector<2x128xf32>
    %42 = arith.addf %39, %41 : vector<2x128xf32>
    %c0_22 = arith.constant 0 : index
    %c0_23 = arith.constant 0 : index
    %43 = vector.load %arg2[%c0_22, %c0_23] : memref<2x128xf32, #tpu.memory_space<vmem>>, vector<2x128xf32>
    %44 = arith.addf %43, %42 : vector<2x128xf32>
    %c0_24 = arith.constant 0 : index
    %c0_25 = arith.constant 0 : index
    %45 = vector.load %arg9[%c0_24, %c0_25] : memref<2x128xf32, #tpu.memory_space<vmem>>, vector<2x128xf32>
    tpu.vector_store %arg9[%c0_24, %c0_25], %44 {strides = array<i32>} : memref<2x128xf32, #tpu.memory_space<vmem>>, vector<2x128xf32>,
    return
  }
  func.func @transform_0(%arg0: i32) -> (i32, i32) {
    %c0_i32 = arith.constant 0 : i32
    %c0_i32_0 = arith.constant 0 : i32
    return %arg0, %c0_i32 : i32, i32
  }
  func.func @transform_1(%arg0: i32) -> (i32, i32) {
    %c0_i32 = arith.constant 0 : i32
    %c0_i32_0 = arith.constant 0 : i32
    return %arg0, %c0_i32 : i32, i32
  }
  func.func @transform_2(%arg0: i32) -> (i32, i32) {
    %c0_i32 = arith.constant 0 : i32
    %c0_i32_0 = arith.constant 0 : i32
    %c0_i32_1 = arith.constant 0 : i32
    return %c0_i32, %c0_i32_0 : i32, i32
  }
  func.func @transform_3(%arg0: i32) -> (i32, i32) {
    %c0_i32 = arith.constant 0 : i32
    %c0_i32_0 = arith.constant 0 : i32
    %c0_i32_1 = arith.constant 0 : i32
    return %c0_i32, %c0_i32_0 : i32, i32
  }
  func.func @transform_4(%arg0: i32) -> (i32, i32) {
    %c0_i32 = arith.constant 0 : i32
    %c0_i32_0 = arith.constant 0 : i32
    %c0_i32_1 = arith.constant 0 : i32
    return %c0_i32, %c0_i32_0 : i32, i32
  }
  func.func @transform_5(%arg0: i32) -> (i32, i32) {
    %c0_i32 = arith.constant 0 : i32
    %c0_i32_0 = arith.constant 0 : i32
    %c0_i32_1 = arith.constant 0 : i32
    return %c0_i32, %c0_i32_0 : i32, i32
  }
  func.func @transform_6(%arg0: i32) -> (i32, i32) {
    %c0_i32 = arith.constant 0 : i32
    %c0_i32_0 = arith.constant 0 : i32
    %c0_i32_1 = arith.constant 0 : i32
    return %c0_i32, %c0_i32_0 : i32, i32
  }
  func.func @transform_7(%arg0: i32) -> (i32, i32) {
    %c0_i32 = arith.constant 0 : i32
    %c0_i32_0 = arith.constant 0 : i32
    %c0_i32_1 = arith.constant 0 : i32
    return %c0_i32, %c0_i32_0 : i32, i32
  }
  func.func @transform_8(%arg0: i32) -> (i32, i32) {
    %c0_i32 = arith.constant 0 : i32
    %c0_i32_0 = arith.constant 0 : i32
    return %arg0, %c0_i32 : i32, i32
  }
}

module attributes {stable_mosaic.version = 11 : i64} {
  func.func @_incdw_kernel(%arg0: i32, %arg1: memref<1x1x1x128xf32, #tpu.memory_space<vmem>>, %arg2: memref<25x48xf32, #tpu.memory_space<vmem>>, %arg3: memref<1x48xf32, #tpu.memory_space<vmem>>, %arg4: memref<1x1x1x128xf32, #tpu.memory_space<vmem>>, %arg5: memref<1x11x11x48xf32, #tpu.memory_space<vmem>>) attributes {dimension_semantics = [#tpu.dimension_semantics<parallel>], iteration_bounds = array<i64: 2>, scalar_prefetch = 0 : i64, scratch_operands = 1 : i64, tpu.core_type = #tpu.core_type<tc>, window_params = [{transform_indices = @transform_0, window_bounds = array<i64: 1, 1, 1, 128>}, {pipeline_mode = #tpu.pipeline_mode<synchronous>, transform_indices = @transform_1, window_bounds = array<i64: 25, 48>}, {pipeline_mode = #tpu.pipeline_mode<synchronous>, transform_indices = @transform_2, window_bounds = array<i64: 1, 48>}, {transform_indices = @transform_3, window_bounds = array<i64: 1, 1, 1, 128>}]} {
    %c0 = arith.constant 0 : index
    %c0_0 = arith.constant 0 : index
    %c0_1 = arith.constant 0 : index
    %c0_2 = arith.constant 0 : index
    %0 = vector.load %arg1[%c0, %c0_0, %c0_1, %c0_2] : memref<1x1x1x128xf32, #tpu.memory_space<vmem>>, vector<1x1x1x128xf32>
    %cst = arith.constant 0.000000e+00 : f32
    %1 = vector.broadcast %cst : f32 to vector<1x11x11x48xf32>
    %c0_3 = arith.constant 0 : index
    %c0_4 = arith.constant 0 : index
    %c0_5 = arith.constant 0 : index
    %c0_6 = arith.constant 0 : index
    %2 = vector.load %arg5[%c0_3, %c0_4, %c0_5, %c0_6] : memref<1x11x11x48xf32, #tpu.memory_space<vmem>>, vector<1x11x11x48xf32>
    tpu.vector_store %arg5[%c0_3, %c0_4, %c0_5, %c0_6], %1 {strides = array<i32>} : memref<1x11x11x48xf32, #tpu.memory_space<vmem>>, vector<1x11x11x48xf32>,
    %3 = vector.extract_strided_slice %0 {offsets = [0, 0, 0, 80], sizes = [1, 1, 1, 48], strides = [1, 1, 1, 1]} : vector<1x1x1x128xf32> to vector<1x1x1x48xf32>
    %c0_7 = arith.constant 0 : index
    %c5 = arith.constant 5 : index
    %c5_8 = arith.constant 5 : index
    %c0_9 = arith.constant 0 : index
    %4 = vector.load %arg5[%c0_7, %c5, %c5_8, %c0_9] : memref<1x11x11x48xf32, #tpu.memory_space<vmem>>, vector<1x1x1x48xf32>
    tpu.vector_store %arg5[%c0_7, %c5, %c5_8, %c0_9], %3 {strides = array<i32>} : memref<1x11x11x48xf32, #tpu.memory_space<vmem>>, vector<1x1x1x48xf32>,
    %c0_10 = arith.constant 0 : index
    %c0_11 = arith.constant 0 : index
    %5 = vector.load %arg2[%c0_10, %c0_11] : memref<25x48xf32, #tpu.memory_space<vmem>>, vector<25x48xf32>
    %c0_12 = arith.constant 0 : index
    %c0_13 = arith.constant 0 : index
    %6 = vector.load %arg3[%c0_12, %c0_13] : memref<1x48xf32, #tpu.memory_space<vmem>>, vector<1x48xf32>
    %c0_14 = arith.constant 0 : index
    %c4 = arith.constant 4 : index
    %c4_15 = arith.constant 4 : index
    %c0_16 = arith.constant 0 : index
    %7 = vector.load %arg5[%c0_14, %c4, %c4_15, %c0_16] : memref<1x11x11x48xf32, #tpu.memory_space<vmem>>, vector<1x1x1x48xf32>
    %8 = vector.extract_strided_slice %5 {offsets = [0, 0], sizes = [1, 48], strides = [1, 1]} : vector<25x48xf32> to vector<1x48xf32>
    %9 = vector.shape_cast %8 : vector<1x48xf32> to vector<1x1x1x48xf32>
    %10 = arith.mulf %7, %9 : vector<1x1x1x48xf32>
    %11 = vector.shape_cast %6 : vector<1x48xf32> to vector<1x1x1x48xf32>
    %12 = arith.addf %11, %10 : vector<1x1x1x48xf32>
    %c0_17 = arith.constant 0 : index
    %c4_18 = arith.constant 4 : index
    %c5_19 = arith.constant 5 : index
    %c0_20 = arith.constant 0 : index
    %13 = vector.load %arg5[%c0_17, %c4_18, %c5_19, %c0_20] : memref<1x11x11x48xf32, #tpu.memory_space<vmem>>, vector<1x1x1x48xf32>
    %14 = vector.extract_strided_slice %5 {offsets = [1, 0], sizes = [1, 48], strides = [1, 1]} : vector<25x48xf32> to vector<1x48xf32>
    %15 = vector.shape_cast %14 : vector<1x48xf32> to vector<1x1x1x48xf32>
    %16 = arith.mulf %13, %15 : vector<1x1x1x48xf32>
    %17 = arith.addf %12, %16 : vector<1x1x1x48xf32>
    %c0_21 = arith.constant 0 : index
    %c4_22 = arith.constant 4 : index
    %c6 = arith.constant 6 : index
    %c0_23 = arith.constant 0 : index
    %18 = vector.load %arg5[%c0_21, %c4_22, %c6, %c0_23] : memref<1x11x11x48xf32, #tpu.memory_space<vmem>>, vector<1x1x1x48xf32>
    %19 = vector.extract_strided_slice %5 {offsets = [2, 0], sizes = [1, 48], strides = [1, 1]} : vector<25x48xf32> to vector<1x48xf32>
    %20 = vector.shape_cast %19 : vector<1x48xf32> to vector<1x1x1x48xf32>
    %21 = arith.mulf %18, %20 : vector<1x1x1x48xf32>
    %22 = arith.addf %17, %21 : vector<1x1x1x48xf32>
    %c0_24 = arith.constant 0 : index
    %c5_25 = arith.constant 5 : index
    %c4_26 = arith.constant 4 : index
    %c0_27 = arith.constant 0 : index
    %23 = vector.load %arg5[%c0_24, %c5_25, %c4_26, %c0_27] : memref<1x11x11x48xf32, #tpu.memory_space<vmem>>, vector<1x1x1x48xf32>
    %24 = vector.extract_strided_slice %5 {offsets = [3, 0], sizes = [1, 48], strides = [1, 1]} : vector<25x48xf32> to vector<1x48xf32>
    %25 = vector.shape_cast %24 : vector<1x48xf32> to vector<1x1x1x48xf32>
    %26 = arith.mulf %23, %25 : vector<1x1x1x48xf32>
    %27 = arith.addf %22, %26 : vector<1x1x1x48xf32>
    %c0_28 = arith.constant 0 : index
    %c5_29 = arith.constant 5 : index
    %c5_30 = arith.constant 5 : index
    %c0_31 = arith.constant 0 : index
    %28 = vector.load %arg5[%c0_28, %c5_29, %c5_30, %c0_31] : memref<1x11x11x48xf32, #tpu.memory_space<vmem>>, vector<1x1x1x48xf32>
    %29 = vector.extract_strided_slice %5 {offsets = [4, 0], sizes = [1, 48], strides = [1, 1]} : vector<25x48xf32> to vector<1x48xf32>
    %30 = vector.shape_cast %29 : vector<1x48xf32> to vector<1x1x1x48xf32>
    %31 = arith.mulf %28, %30 : vector<1x1x1x48xf32>
    %32 = arith.addf %27, %31 : vector<1x1x1x48xf32>
    %c0_32 = arith.constant 0 : index
    %c5_33 = arith.constant 5 : index
    %c6_34 = arith.constant 6 : index
    %c0_35 = arith.constant 0 : index
    %33 = vector.load %arg5[%c0_32, %c5_33, %c6_34, %c0_35] : memref<1x11x11x48xf32, #tpu.memory_space<vmem>>, vector<1x1x1x48xf32>
    %34 = vector.extract_strided_slice %5 {offsets = [5, 0], sizes = [1, 48], strides = [1, 1]} : vector<25x48xf32> to vector<1x48xf32>
    %35 = vector.shape_cast %34 : vector<1x48xf32> to vector<1x1x1x48xf32>
    %36 = arith.mulf %33, %35 : vector<1x1x1x48xf32>
    %37 = arith.addf %32, %36 : vector<1x1x1x48xf32>
    %c0_36 = arith.constant 0 : index
    %c6_37 = arith.constant 6 : index
    %c4_38 = arith.constant 4 : index
    %c0_39 = arith.constant 0 : index
    %38 = vector.load %arg5[%c0_36, %c6_37, %c4_38, %c0_39] : memref<1x11x11x48xf32, #tpu.memory_space<vmem>>, vector<1x1x1x48xf32>
    %39 = vector.extract_strided_slice %5 {offsets = [6, 0], sizes = [1, 48], strides = [1, 1]} : vector<25x48xf32> to vector<1x48xf32>
    %40 = vector.shape_cast %39 : vector<1x48xf32> to vector<1x1x1x48xf32>
    %41 = arith.mulf %38, %40 : vector<1x1x1x48xf32>
    %42 = arith.addf %37, %41 : vector<1x1x1x48xf32>
    %c0_40 = arith.constant 0 : index
    %c6_41 = arith.constant 6 : index
    %c5_42 = arith.constant 5 : index
    %c0_43 = arith.constant 0 : index
    %43 = vector.load %arg5[%c0_40, %c6_41, %c5_42, %c0_43] : memref<1x11x11x48xf32, #tpu.memory_space<vmem>>, vector<1x1x1x48xf32>
    %44 = vector.extract_strided_slice %5 {offsets = [7, 0], sizes = [1, 48], strides = [1, 1]} : vector<25x48xf32> to vector<1x48xf32>
    %45 = vector.shape_cast %44 : vector<1x48xf32> to vector<1x1x1x48xf32>
    %46 = arith.mulf %43, %45 : vector<1x1x1x48xf32>
    %47 = arith.addf %42, %46 : vector<1x1x1x48xf32>
    %c0_44 = arith.constant 0 : index
    %c6_45 = arith.constant 6 : index
    %c6_46 = arith.constant 6 : index
    %c0_47 = arith.constant 0 : index
    %48 = vector.load %arg5[%c0_44, %c6_45, %c6_46, %c0_47] : memref<1x11x11x48xf32, #tpu.memory_space<vmem>>, vector<1x1x1x48xf32>
    %49 = vector.extract_strided_slice %5 {offsets = [8, 0], sizes = [1, 48], strides = [1, 1]} : vector<25x48xf32> to vector<1x48xf32>
    %50 = vector.shape_cast %49 : vector<1x48xf32> to vector<1x1x1x48xf32>
    %51 = arith.mulf %48, %50 : vector<1x1x1x48xf32>
    %52 = arith.addf %47, %51 : vector<1x1x1x48xf32>
    %c0_48 = arith.constant 0 : index
    %c5_49 = arith.constant 5 : index
    %c0_50 = arith.constant 0 : index
    %c0_51 = arith.constant 0 : index
    %53 = vector.load %arg5[%c0_48, %c5_49, %c0_50, %c0_51] : memref<1x11x11x48xf32, #tpu.memory_space<vmem>>, vector<1x1x1x48xf32>
    %54 = vector.extract_strided_slice %5 {offsets = [9, 0], sizes = [1, 48], strides = [1, 1]} : vector<25x48xf32> to vector<1x48xf32>
    %55 = vector.shape_cast %54 : vector<1x48xf32> to vector<1x1x1x48xf32>
    %56 = arith.mulf %53, %55 : vector<1x1x1x48xf32>
    %57 = arith.addf %52, %56 : vector<1x1x1x48xf32>
    %c0_52 = arith.constant 0 : index
    %c5_53 = arith.constant 5 : index
    %c1 = arith.constant 1 : index
    %c0_54 = arith.constant 0 : index
    %58 = vector.load %arg5[%c0_52, %c5_53, %c1, %c0_54] : memref<1x11x11x48xf32, #tpu.memory_space<vmem>>, vector<1x1x1x48xf32>
    %59 = vector.extract_strided_slice %5 {offsets = [10, 0], sizes = [1, 48], strides = [1, 1]} : vector<25x48xf32> to vector<1x48xf32>
    %60 = vector.shape_cast %59 : vector<1x48xf32> to vector<1x1x1x48xf32>
    %61 = arith.mulf %58, %60 : vector<1x1x1x48xf32>
    %62 = arith.addf %57, %61 : vector<1x1x1x48xf32>
    %c0_55 = arith.constant 0 : index
    %c5_56 = arith.constant 5 : index
    %c2 = arith.constant 2 : index
    %c0_57 = arith.constant 0 : index
    %63 = vector.load %arg5[%c0_55, %c5_56, %c2, %c0_57] : memref<1x11x11x48xf32, #tpu.memory_space<vmem>>, vector<1x1x1x48xf32>
    %64 = vector.extract_strided_slice %5 {offsets = [11, 0], sizes = [1, 48], strides = [1, 1]} : vector<25x48xf32> to vector<1x48xf32>
    %65 = vector.shape_cast %64 : vector<1x48xf32> to vector<1x1x1x48xf32>
    %66 = arith.mulf %63, %65 : vector<1x1x1x48xf32>
    %67 = arith.addf %62, %66 : vector<1x1x1x48xf32>
    %c0_58 = arith.constant 0 : index
    %c5_59 = arith.constant 5 : index
    %c3 = arith.constant 3 : index
    %c0_60 = arith.constant 0 : index
    %68 = vector.load %arg5[%c0_58, %c5_59, %c3, %c0_60] : memref<1x11x11x48xf32, #tpu.memory_space<vmem>>, vector<1x1x1x48xf32>
    %69 = vector.extract_strided_slice %5 {offsets = [12, 0], sizes = [1, 48], strides = [1, 1]} : vector<25x48xf32> to vector<1x48xf32>
    %70 = vector.shape_cast %69 : vector<1x48xf32> to vector<1x1x1x48xf32>
    %71 = arith.mulf %68, %70 : vector<1x1x1x48xf32>
    %72 = arith.addf %67, %71 : vector<1x1x1x48xf32>
    %c0_61 = arith.constant 0 : index
    %c5_62 = arith.constant 5 : index
    %c7 = arith.constant 7 : index
    %c0_63 = arith.constant 0 : index
    %73 = vector.load %arg5[%c0_61, %c5_62, %c7, %c0_63] : memref<1x11x11x48xf32, #tpu.memory_space<vmem>>, vector<1x1x1x48xf32>
    %74 = vector.extract_strided_slice %5 {offsets = [13, 0], sizes = [1, 48], strides = [1, 1]} : vector<25x48xf32> to vector<1x48xf32>
    %75 = vector.shape_cast %74 : vector<1x48xf32> to vector<1x1x1x48xf32>
    %76 = arith.mulf %73, %75 : vector<1x1x1x48xf32>
    %77 = arith.addf %72, %76 : vector<1x1x1x48xf32>
    %c0_64 = arith.constant 0 : index
    %c5_65 = arith.constant 5 : index
    %c8 = arith.constant 8 : index
    %c0_66 = arith.constant 0 : index
    %78 = vector.load %arg5[%c0_64, %c5_65, %c8, %c0_66] : memref<1x11x11x48xf32, #tpu.memory_space<vmem>>, vector<1x1x1x48xf32>
    %79 = vector.extract_strided_slice %5 {offsets = [14, 0], sizes = [1, 48], strides = [1, 1]} : vector<25x48xf32> to vector<1x48xf32>
    %80 = vector.shape_cast %79 : vector<1x48xf32> to vector<1x1x1x48xf32>
    %81 = arith.mulf %78, %80 : vector<1x1x1x48xf32>
    %82 = arith.addf %77, %81 : vector<1x1x1x48xf32>
    %c0_67 = arith.constant 0 : index
    %c5_68 = arith.constant 5 : index
    %c9 = arith.constant 9 : index
    %c0_69 = arith.constant 0 : index
    %83 = vector.load %arg5[%c0_67, %c5_68, %c9, %c0_69] : memref<1x11x11x48xf32, #tpu.memory_space<vmem>>, vector<1x1x1x48xf32>
    %84 = vector.extract_strided_slice %5 {offsets = [15, 0], sizes = [1, 48], strides = [1, 1]} : vector<25x48xf32> to vector<1x48xf32>
    %85 = vector.shape_cast %84 : vector<1x48xf32> to vector<1x1x1x48xf32>
    %86 = arith.mulf %83, %85 : vector<1x1x1x48xf32>
    %87 = arith.addf %82, %86 : vector<1x1x1x48xf32>
    %c0_70 = arith.constant 0 : index
    %c5_71 = arith.constant 5 : index
    %c10 = arith.constant 10 : index
    %c0_72 = arith.constant 0 : index
    %88 = vector.load %arg5[%c0_70, %c5_71, %c10, %c0_72] : memref<1x11x11x48xf32, #tpu.memory_space<vmem>>, vector<1x1x1x48xf32>
    %89 = vector.extract_strided_slice %5 {offsets = [16, 0], sizes = [1, 48], strides = [1, 1]} : vector<25x48xf32> to vector<1x48xf32>
    %90 = vector.shape_cast %89 : vector<1x48xf32> to vector<1x1x1x48xf32>
    %91 = arith.mulf %88, %90 : vector<1x1x1x48xf32>
    %92 = arith.addf %87, %91 : vector<1x1x1x48xf32>
    %c0_73 = arith.constant 0 : index
    %c0_74 = arith.constant 0 : index
    %c5_75 = arith.constant 5 : index
    %c0_76 = arith.constant 0 : index
    %93 = vector.load %arg5[%c0_73, %c0_74, %c5_75, %c0_76] : memref<1x11x11x48xf32, #tpu.memory_space<vmem>>, vector<1x1x1x48xf32>
    %94 = vector.extract_strided_slice %5 {offsets = [17, 0], sizes = [1, 48], strides = [1, 1]} : vector<25x48xf32> to vector<1x48xf32>
    %95 = vector.shape_cast %94 : vector<1x48xf32> to vector<1x1x1x48xf32>
    %96 = arith.mulf %93, %95 : vector<1x1x1x48xf32>
    %97 = arith.addf %92, %96 : vector<1x1x1x48xf32>
    %c0_77 = arith.constant 0 : index
    %c1_78 = arith.constant 1 : index
    %c5_79 = arith.constant 5 : index
    %c0_80 = arith.constant 0 : index
    %98 = vector.load %arg5[%c0_77, %c1_78, %c5_79, %c0_80] : memref<1x11x11x48xf32, #tpu.memory_space<vmem>>, vector<1x1x1x48xf32>
    %99 = vector.extract_strided_slice %5 {offsets = [18, 0], sizes = [1, 48], strides = [1, 1]} : vector<25x48xf32> to vector<1x48xf32>
    %100 = vector.shape_cast %99 : vector<1x48xf32> to vector<1x1x1x48xf32>
    %101 = arith.mulf %98, %100 : vector<1x1x1x48xf32>
    %102 = arith.addf %97, %101 : vector<1x1x1x48xf32>
    %c0_81 = arith.constant 0 : index
    %c2_82 = arith.constant 2 : index
    %c5_83 = arith.constant 5 : index
    %c0_84 = arith.constant 0 : index
    %103 = vector.load %arg5[%c0_81, %c2_82, %c5_83, %c0_84] : memref<1x11x11x48xf32, #tpu.memory_space<vmem>>, vector<1x1x1x48xf32>
    %104 = vector.extract_strided_slice %5 {offsets = [19, 0], sizes = [1, 48], strides = [1, 1]} : vector<25x48xf32> to vector<1x48xf32>
    %105 = vector.shape_cast %104 : vector<1x48xf32> to vector<1x1x1x48xf32>
    %106 = arith.mulf %103, %105 : vector<1x1x1x48xf32>
    %107 = arith.addf %102, %106 : vector<1x1x1x48xf32>
    %c0_85 = arith.constant 0 : index
    %c3_86 = arith.constant 3 : index
    %c5_87 = arith.constant 5 : index
    %c0_88 = arith.constant 0 : index
    %108 = vector.load %arg5[%c0_85, %c3_86, %c5_87, %c0_88] : memref<1x11x11x48xf32, #tpu.memory_space<vmem>>, vector<1x1x1x48xf32>
    %109 = vector.extract_strided_slice %5 {offsets = [20, 0], sizes = [1, 48], strides = [1, 1]} : vector<25x48xf32> to vector<1x48xf32>
    %110 = vector.shape_cast %109 : vector<1x48xf32> to vector<1x1x1x48xf32>
    %111 = arith.mulf %108, %110 : vector<1x1x1x48xf32>
    %112 = arith.addf %107, %111 : vector<1x1x1x48xf32>
    %c0_89 = arith.constant 0 : index
    %c7_90 = arith.constant 7 : index
    %c5_91 = arith.constant 5 : index
    %c0_92 = arith.constant 0 : index
    %113 = vector.load %arg5[%c0_89, %c7_90, %c5_91, %c0_92] : memref<1x11x11x48xf32, #tpu.memory_space<vmem>>, vector<1x1x1x48xf32>
    %114 = vector.extract_strided_slice %5 {offsets = [21, 0], sizes = [1, 48], strides = [1, 1]} : vector<25x48xf32> to vector<1x48xf32>
    %115 = vector.shape_cast %114 : vector<1x48xf32> to vector<1x1x1x48xf32>
    %116 = arith.mulf %113, %115 : vector<1x1x1x48xf32>
    %117 = arith.addf %112, %116 : vector<1x1x1x48xf32>
    %c0_93 = arith.constant 0 : index
    %c8_94 = arith.constant 8 : index
    %c5_95 = arith.constant 5 : index
    %c0_96 = arith.constant 0 : index
    %118 = vector.load %arg5[%c0_93, %c8_94, %c5_95, %c0_96] : memref<1x11x11x48xf32, #tpu.memory_space<vmem>>, vector<1x1x1x48xf32>
    %119 = vector.extract_strided_slice %5 {offsets = [22, 0], sizes = [1, 48], strides = [1, 1]} : vector<25x48xf32> to vector<1x48xf32>
    %120 = vector.shape_cast %119 : vector<1x48xf32> to vector<1x1x1x48xf32>
    %121 = arith.mulf %118, %120 : vector<1x1x1x48xf32>
    %122 = arith.addf %117, %121 : vector<1x1x1x48xf32>
    %c0_97 = arith.constant 0 : index
    %c9_98 = arith.constant 9 : index
    %c5_99 = arith.constant 5 : index
    %c0_100 = arith.constant 0 : index
    %123 = vector.load %arg5[%c0_97, %c9_98, %c5_99, %c0_100] : memref<1x11x11x48xf32, #tpu.memory_space<vmem>>, vector<1x1x1x48xf32>
    %124 = vector.extract_strided_slice %5 {offsets = [23, 0], sizes = [1, 48], strides = [1, 1]} : vector<25x48xf32> to vector<1x48xf32>
    %125 = vector.shape_cast %124 : vector<1x48xf32> to vector<1x1x1x48xf32>
    %126 = arith.mulf %123, %125 : vector<1x1x1x48xf32>
    %127 = arith.addf %122, %126 : vector<1x1x1x48xf32>
    %c0_101 = arith.constant 0 : index
    %c10_102 = arith.constant 10 : index
    %c5_103 = arith.constant 5 : index
    %c0_104 = arith.constant 0 : index
    %128 = vector.load %arg5[%c0_101, %c10_102, %c5_103, %c0_104] : memref<1x11x11x48xf32, #tpu.memory_space<vmem>>, vector<1x1x1x48xf32>
    %129 = vector.extract_strided_slice %5 {offsets = [24, 0], sizes = [1, 48], strides = [1, 1]} : vector<25x48xf32> to vector<1x48xf32>
    %130 = vector.shape_cast %129 : vector<1x48xf32> to vector<1x1x1x48xf32>
    %131 = arith.mulf %128, %130 : vector<1x1x1x48xf32>
    %132 = arith.addf %127, %131 : vector<1x1x1x48xf32>
    %133 = vector.extract_strided_slice %0 {offsets = [0, 0, 0, 0], sizes = [1, 1, 1, 80], strides = [1, 1, 1, 1]} : vector<1x1x1x128xf32> to vector<1x1x1x80xf32>
    %134 = tpu.concatenate %133, %132 in 3 : vector<1x1x1x80xf32>, vector<1x1x1x48xf32> -> vector<1x1x1x128xf32>
    %c0_105 = arith.constant 0 : index
    %c0_106 = arith.constant 0 : index
    %c0_107 = arith.constant 0 : index
    %c0_108 = arith.constant 0 : index
    %135 = vector.load %arg4[%c0_105, %c0_106, %c0_107, %c0_108] : memref<1x1x1x128xf32, #tpu.memory_space<vmem>>, vector<1x1x1x128xf32>
    tpu.vector_store %arg4[%c0_105, %c0_106, %c0_107, %c0_108], %134 {strides = array<i32>} : memref<1x1x1x128xf32, #tpu.memory_space<vmem>>, vector<1x1x1x128xf32>,
    return
  }
  func.func @transform_0(%arg0: i32) -> (i32, i32, i32, i32) {
    %c0_i32 = arith.constant 0 : i32
    %c0_i32_0 = arith.constant 0 : i32
    %c0_i32_1 = arith.constant 0 : i32
    %c0_i32_2 = arith.constant 0 : i32
    return %arg0, %c0_i32, %c0_i32_0, %c0_i32_1 : i32, i32, i32, i32
  }
  func.func @transform_1(%arg0: i32) -> (i32, i32) {
    %c0_i32 = arith.constant 0 : i32
    %c0_i32_0 = arith.constant 0 : i32
    %c0_i32_1 = arith.constant 0 : i32
    return %c0_i32, %c0_i32_0 : i32, i32
  }
  func.func @transform_2(%arg0: i32) -> (i32, i32) {
    %c0_i32 = arith.constant 0 : i32
    %c0_i32_0 = arith.constant 0 : i32
    %c0_i32_1 = arith.constant 0 : i32
    return %c0_i32, %c0_i32_0 : i32, i32
  }
  func.func @transform_3(%arg0: i32) -> (i32, i32, i32, i32) {
    %c0_i32 = arith.constant 0 : i32
    %c0_i32_0 = arith.constant 0 : i32
    %c0_i32_1 = arith.constant 0 : i32
    %c0_i32_2 = arith.constant 0 : i32
    return %arg0, %c0_i32, %c0_i32_0, %c0_i32_1 : i32, i32, i32, i32
  }
}

</mosaic_0001>

<llo_original>
// kernel: forward.22
$region0: #{forward.22}
  #allocation0 [shape = 'u32[]', space=smem, size = 0x4, offset = 0x4, fixed_abs, tag = 'smem constant byte address 0x4 - core index']
  #allocation1 [shape = 'u32[144,128]{1,0:T(1,128)}', space=vmem, size = 0x12000, scoped, tag = 'internal scratch']
  %s0 = inlined_call_operand.vmem [shape: f32[128,16], index: 0, kind: input, shape index: {}, may-alias: {0,8}]
  %s1 = inlined_call_operand.vmem [shape: f32[128,16], index: 1, kind: input, shape index: {}]
  %s2 = inlined_call_operand.vmem [shape: f32[1,16], index: 2, kind: input, shape index: {}]
  %s3 = inlined_call_operand.vmem [shape: f32[1,16], index: 3, kind: input, shape index: {}]
  %s4 = inlined_call_operand.vmem [shape: bf16[16,64], index: 4, kind: input, shape index: {}]
  %s5 = inlined_call_operand.vmem [shape: f32[1,64], index: 5, kind: input, shape index: {}]
  %s6 = inlined_call_operand.vmem [shape: bf16[64,16], index: 6, kind: input, shape index: {}]
  %s7 = inlined_call_operand.vmem [shape: f32[1,16], index: 7, kind: input, shape index: {}]
  %s8 = inlined_call_operand.vmem [shape: f32[128,16], index: 8, kind: output, shape index: {}, may-alias: {0,8}]
  %s9 = sld [smem:[#allocation0]]
  $region42: #{forward.22} parent=0
    _
  %s11 = ssub.s32 1, %s9
  %s12 = scalar_select 0, %s11, %s9
  // Predicated region
  $region2: #{forward.22} parent=0 // pred_check
    _
  $region3: #{forward.22} parent=0 // pred_check_branch
    %14 = sbr.rel (0) target = $region5
  $region4: #{forward.22} parent=0 // pred_region
    _
  $region5: #{forward.22} parent=0 // pred_fallthru
    _
  // Predicated region
  $region6: #{forward.22} parent=0 // pred_check
    _
  $region7: #{forward.22} parent=0 // pred_check_branch
    %16 = sbr.rel (0) target = $region9
  $region8: #{forward.22} parent=0 // pred_region
    _
  $region9: #{forward.22} parent=0 // pred_fallthru
    _
  // Predicated region
  $region10: #{forward.22} parent=0 // pred_check
    _
  $region11: #{forward.22} parent=0 // pred_check_branch
    %18 = sbr.rel (0) target = $region13
  $region12: #{forward.22} parent=0 // pred_region
    _
  $region13: #{forward.22} parent=0 // pred_fallthru
    _
  // Predicated region
  $region14: #{forward.22} parent=0 // pred_check
    _
  $region15: #{forward.22} parent=0 // pred_check_branch
    %20 = sbr.rel (0) target = $region17
  $region16: #{forward.22} parent=0 // pred_region
    _
  $region17: #{forward.22} parent=0 // pred_fallthru
    _
  // Predicated region
  $region18: #{forward.22} parent=0 // pred_check
    _
  $region19: #{forward.22} parent=0 // pred_check_branch
    %22 = sbr.rel (0) target = $region21
  $region20: #{forward.22} parent=0 // pred_region
    _
  $region21: #{forward.22} parent=0 // pred_fallthru
    _
  // Predicated region
  $region22: #{forward.22} parent=0 // pred_check
    _
  $region23: #{forward.22} parent=0 // pred_check_branch
    %24 = sbr.rel (0) target = $region25
  $region24: #{forward.22} parent=0 // pred_region
    _
  $region25: #{forward.22} parent=0 // pred_fallthru
    _
  // Predicated region
  $region26: #{forward.22} parent=0 // pred_check
    _
  $region27: #{forward.22} parent=0 // pred_check_branch
    %26 = sbr.rel (0) target = $region29
  $region28: #{forward.22} parent=0 // pred_region
    _
  $region29: #{forward.22} parent=0 // pred_fallthru
    _
  // Predicated region
  $region30: #{forward.22} parent=0 // pred_check
    _
  $region31: #{forward.22} parent=0 // pred_check_branch
    %28 = sbr.rel (0) target = $region33
  $region32: #{forward.22} parent=0 // pred_region
    _
  $region33: #{forward.22} parent=0 // pred_fallthru
    _
  %v30 = vld [vmem:[%s0] sm:$0xff]
  %v31 = vld [vmem:[%s0 + $0x8] sm:$0xff]
  %v32 = vld [vmem:[%s0 + $0x10] sm:$0xff]
  %v33 = vld [vmem:[%s0 + $0x18] sm:$0xff]
  %v34 = vld [vmem:[%s0 + $0x20] sm:$0xff]
  %v35 = vld [vmem:[%s0 + $0x28] sm:$0xff]
  %v36 = vld [vmem:[%s0 + $0x30] sm:$0xff]
  %v37 = vld [vmem:[%s0 + $0x38] sm:$0xff]
  %v38 = vld [vmem:[%s0 + $0x40] sm:$0xff]
  %v39 = vld [vmem:[%s0 + $0x48] sm:$0xff]
  %v40 = vld [vmem:[%s0 + $0x50] sm:$0xff]
  %v41 = vld [vmem:[%s0 + $0x58] sm:$0xff]
  %v42 = vld [vmem:[%s0 + $0x60] sm:$0xff]
  %v43 = vld [vmem:[%s0 + $0x68] sm:$0xff]
  %v44 = vld [vmem:[%s0 + $0x70] sm:$0xff]
  %v45 = vld [vmem:[%s0 + $0x78] sm:$0xff]
  %v46 = vld [vmem:[%s2] sm:$0x1]
  %v47 = vld [vmem:[%s3] sm:$0x1]
  %vm48 = vcmask 130048
  %v49 = vsel %vm48, %v30, 0.0
  %50 = vadd.xlane.f32.xlu0 %v49
  %v51 = vpop.xlane.xlu0 %50
  %v52 = vsel %vm48, %v31, 0.0
  %53 = vadd.xlane.f32.xlu0 %v52
  %v54 = vpop.xlane.xlu0 %53
  %v55 = vsel %vm48, %v32, 0.0
  %56 = vadd.xlane.f32.xlu0 %v55
  %v57 = vpop.xlane.xlu0 %56
  %v58 = vsel %vm48, %v33, 0.0
  %59 = vadd.xlane.f32.xlu0 %v58
  %v60 = vpop.xlane.xlu0 %59
  %v61 = vsel %vm48, %v34, 0.0
  %62 = vadd.xlane.f32.xlu0 %v61
  %v63 = vpop.xlane.xlu0 %62
  %v64 = vsel %vm48, %v35, 0.0
  %65 = vadd.xlane.f32.xlu0 %v64
  %v66 = vpop.xlane.xlu0 %65
  %v67 = vsel %vm48, %v36, 0.0
  %68 = vadd.xlane.f32.xlu0 %v67
  %v69 = vpop.xlane.xlu0 %68
  %v70 = vsel %vm48, %v37, 0.0
  %71 = vadd.xlane.f32.xlu0 %v70
  %v72 = vpop.xlane.xlu0 %71
  %v73 = vsel %vm48, %v38, 0.0
  %74 = vadd.xlane.f32.xlu0 %v73
  %v75 = vpop.xlane.xlu0 %74
  %v76 = vsel %vm48, %v39, 0.0
  %77 = vadd.xlane.f32.xlu0 %v76
  %v78 = vpop.xlane.xlu0 %77
  %v79 = vsel %vm48, %v40, 0.0
  %80 = vadd.xlane.f32.xlu0 %v79
  %v81 = vpop.xlane.xlu0 %80
  %v82 = vsel %vm48, %v41, 0.0
  %83 = vadd.xlane.f32.xlu0 %v82
  %v84 = vpop.xlane.xlu0 %83
  %v85 = vsel %vm48, %v42, 0.0
  %86 = vadd.xlane.f32.xlu0 %v85
  %v87 = vpop.xlane.xlu0 %86
  %v88 = vsel %vm48, %v43, 0.0
  %89 = vadd.xlane.f32.xlu0 %v88
  %v90 = vpop.xlane.xlu0 %89
  %v91 = vsel %vm48, %v44, 0.0
  %92 = vadd.xlane.f32.xlu0 %v91
  %v93 = vpop.xlane.xlu0 %92
  %v94 = vsel %vm48, %v45, 0.0
  %95 = vadd.xlane.f32.xlu0 %v94
  %v96 = vpop.xlane.xlu0 %95
  %v97 = vrcp.pop 16.0
  %v98 = vmul.f32 %v51, %v97
  %v99 = vmul.f32 %v54, %v97
  %v100 = vmul.f32 %v57, %v97
  %v101 = vmul.f32 %v60, %v97
  %v102 = vmul.f32 %v63, %v97
  %v103 = vmul.f32 %v66, %v97
  %v104 = vmul.f32 %v69, %v97
  %v105 = vmul.f32 %v72, %v97
  %v106 = vmul.f32 %v75, %v97
  %v107 = vmul.f32 %v78, %v97
  %v108 = vmul.f32 %v81, %v97
  %v109 = vmul.f32 %v84, %v97
  %v110 = vmul.f32 %v87, %v97
  %v111 = vmul.f32 %v90, %v97
  %v112 = vmul.f32 %v93, %v97
  %v113 = vmul.f32 %v96, %v97
  %v114 = vsub.f32 %v30, %v98
  %v115 = vsub.f32 %v31, %v99
  %v116 = vsub.f32 %v32, %v100
  %v117 = vsub.f32 %v33, %v101
  %v118 = vsub.f32 %v34, %v102
  %v119 = vsub.f32 %v35, %v103
  %v120 = vsub.f32 %v36, %v104
  %v121 = vsub.f32 %v37, %v105
  %v122 = vsub.f32 %v38, %v106
  %v123 = vsub.f32 %v39, %v107
  %v124 = vsub.f32 %v40, %v108
  %v125 = vsub.f32 %v41, %v109
  %v126 = vsub.f32 %v42, %v110
  %v127 = vsub.f32 %v43, %v111
  %v128 = vsub.f32 %v44, %v112
  %v129 = vsub.f32 %v45, %v113
  %v130 = vmul.f32 %v114, %v114
  %v131 = vmul.f32 %v115, %v115
  %v132 = vmul.f32 %v116, %v116
  %v133 = vmul.f32 %v117, %v117
  %v134 = vmul.f32 %v118, %v118
  %v135 = vmul.f32 %v119, %v119
  %v136 = vmul.f32 %v120, %v120
  %v137 = vmul.f32 %v121, %v121
  %v138 = vmul.f32 %v122, %v122
  %v139 = vmul.f32 %v123, %v123
  %v140 = vmul.f32 %v124, %v124
  %v141 = vmul.f32 %v125, %v125
  %v142 = vmul.f32 %v126, %v126
  %v143 = vmul.f32 %v127, %v127
  %v144 = vmul.f32 %v128, %v128
  %v145 = vmul.f32 %v129, %v129
  %v146 = vsel %vm48, %v130, 0.0
  %147 = vadd.xlane.f32.xlu0 %v146
  %v148 = vpop.xlane.xlu0 %147
  %v149 = vsel %vm48, %v131, 0.0
  %150 = vadd.xlane.f32.xlu0 %v149
  %v151 = vpop.xlane.xlu0 %150
  %v152 = vsel %vm48, %v132, 0.0
  %153 = vadd.xlane.f32.xlu0 %v152
  %v154 = vpop.xlane.xlu0 %153
  %v155 = vsel %vm48, %v133, 0.0
  %156 = vadd.xlane.f32.xlu0 %v155
  %v157 = vpop.xlane.xlu0 %156
  %v158 = vsel %vm48, %v134, 0.0
  %159 = vadd.xlane.f32.xlu0 %v158
  %v160 = vpop.xlane.xlu0 %159
  %v161 = vsel %vm48, %v135, 0.0
  %162 = vadd.xlane.f32.xlu0 %v161
  %v163 = vpop.xlane.xlu0 %162
  %v164 = vsel %vm48, %v136, 0.0
  %165 = vadd.xlane.f32.xlu0 %v164
  %v166 = vpop.xlane.xlu0 %165
  %v167 = vsel %vm48, %v137, 0.0
  %168 = vadd.xlane.f32.xlu0 %v167
  %v169 = vpop.xlane.xlu0 %168
  %v170 = vsel %vm48, %v138, 0.0
  %171 = vadd.xlane.f32.xlu0 %v170
  %v172 = vpop.xlane.xlu0 %171
  %v173 = vsel %vm48, %v139, 0.0
  %174 = vadd.xlane.f32.xlu0 %v173
  %v175 = vpop.xlane.xlu0 %174
  %v176 = vsel %vm48, %v140, 0.0
  %177 = vadd.xlane.f32.xlu0 %v176
  %v178 = vpop.xlane.xlu0 %177
  %v179 = vsel %vm48, %v141, 0.0
  %180 = vadd.xlane.f32.xlu0 %v179
  %v181 = vpop.xlane.xlu0 %180
  %v182 = vsel %vm48, %v142, 0.0
  %183 = vadd.xlane.f32.xlu0 %v182
  %v184 = vpop.xlane.xlu0 %183
  %v185 = vsel %vm48, %v143, 0.0
  %186 = vadd.xlane.f32.xlu0 %v185
  %v187 = vpop.xlane.xlu0 %186
  %v188 = vsel %vm48, %v144, 0.0
  %189 = vadd.xlane.f32.xlu0 %v188
  %v190 = vpop.xlane.xlu0 %189
  %v191 = vsel %vm48, %v145, 0.0
  %192 = vadd.xlane.f32.xlu0 %v191
  %v193 = vpop.xlane.xlu0 %192
  %v194 = vmul.f32 %v148, %v97
  %v195 = vmul.f32 %v151, %v97
  %v196 = vmul.f32 %v154, %v97
  %v197 = vmul.f32 %v157, %v97
  %v198 = vmul.f32 %v160, %v97
  %v199 = vmul.f32 %v163, %v97
  %v200 = vmul.f32 %v166, %v97
  %v201 = vmul.f32 %v169, %v97
  %v202 = vmul.f32 %v172, %v97
  %v203 = vmul.f32 %v175, %v97
  %v204 = vmul.f32 %v178, %v97
  %v205 = vmul.f32 %v181, %v97
  %v206 = vmul.f32 %v184, %v97
  %v207 = vmul.f32 %v187, %v97
  %v208 = vmul.f32 %v190, %v97
  %v209 = vmul.f32 %v193, %v97
  %v210 = vadd.f32 %v194, 1e-06
  %v211 = vadd.f32 %v195, 1e-06
  %v212 = vadd.f32 %v196, 1e-06
  %v213 = vadd.f32 %v197, 1e-06
  %v214 = vadd.f32 %v198, 1e-06
  %v215 = vadd.f32 %v199, 1e-06
  %v216 = vadd.f32 %v200, 1e-06
  %v217 = vadd.f32 %v201, 1e-06
  %v218 = vadd.f32 %v202, 1e-06
  %v219 = vadd.f32 %v203, 1e-06
  %v220 = vadd.f32 %v204, 1e-06
  %v221 = vadd.f32 %v205, 1e-06
  %v222 = vadd.f32 %v206, 1e-06
  %v223 = vadd.f32 %v207, 1e-06
  %v224 = vadd.f32 %v208, 1e-06
  %v225 = vadd.f32 %v209, 1e-06
  %v226 = vrsqrt.pop %v210
  %v227 = vrsqrt.pop %v211
  %v228 = vrsqrt.pop %v212
  %v229 = vrsqrt.pop %v213
  %v230 = vrsqrt.pop %v214
  %v231 = vrsqrt.pop %v215
  %v232 = vrsqrt.pop %v216
  %v233 = vrsqrt.pop %v217
  %v234 = vrsqrt.pop %v218
  %v235 = vrsqrt.pop %v219
  %v236 = vrsqrt.pop %v220
  %v237 = vrsqrt.pop %v221
  %v238 = vrsqrt.pop %v222
  %v239 = vrsqrt.pop %v223
  %v240 = vrsqrt.pop %v224
  %v241 = vrsqrt.pop %v225
  %v242 = vmul.f32 %v114, %v226
  %v243 = vmul.f32 %v115, %v227
  %v244 = vmul.f32 %v116, %v228
  %v245 = vmul.f32 %v117, %v229
  %v246 = vmul.f32 %v118, %v230
  %v247 = vmul.f32 %v119, %v231
  %v248 = vmul.f32 %v120, %v232
  %v249 = vmul.f32 %v121, %v233
  %v250 = vmul.f32 %v122, %v234
  %v251 = vmul.f32 %v123, %v235
  %v252 = vmul.f32 %v124, %v236
  %v253 = vmul.f32 %v125, %v237
  %v254 = vmul.f32 %v126, %v238
  %v255 = vmul.f32 %v127, %v239
  %v256 = vmul.f32 %v128, %v240
  %v257 = vmul.f32 %v129, %v241
  %v259 = vlaneseq
  %v260 = vshrl.u32 %v259, 7
  %v261 = vsub.s32 0, %v260
  %v262 = vrot.slane %v46, %v261
  %v264 = vmul.f32 %v242, %v262
  %v265 = vmul.f32 %v243, %v262
  %v266 = vmul.f32 %v244, %v262
  %v267 = vmul.f32 %v245, %v262
  %v268 = vmul.f32 %v246, %v262
  %v269 = vmul.f32 %v247, %v262
  %v270 = vmul.f32 %v248, %v262
  %v271 = vmul.f32 %v249, %v262
  %v272 = vmul.f32 %v250, %v262
  %v273 = vmul.f32 %v251, %v262
  %v274 = vmul.f32 %v252, %v262
  %v275 = vmul.f32 %v253, %v262
  %v276 = vmul.f32 %v254, %v262
  %v277 = vmul.f32 %v255, %v262
  %v278 = vmul.f32 %v256, %v262
  %v279 = vmul.f32 %v257, %v262
  %v281 = vlaneseq
  %v282 = vshrl.u32 %v281, 7
  %v283 = vsub.s32 0, %v282
  %v284 = vrot.slane %v47, %v283
  %v286 = vadd.f32 %v264, %v284
  %v287 = vadd.f32 %v265, %v284
  %v288 = vadd.f32 %v266, %v284
  %v289 = vadd.f32 %v267, %v284
  %v290 = vadd.f32 %v268, %v284
  %v291 = vadd.f32 %v269, %v284
  %v292 = vadd.f32 %v270, %v284
  %v293 = vadd.f32 %v271, %v284
  %v294 = vadd.f32 %v272, %v284
  %v295 = vadd.f32 %v273, %v284
  %v296 = vadd.f32 %v274, %v284
  %v297 = vadd.f32 %v275, %v284
  %v298 = vadd.f32 %v276, %v284
  %v299 = vadd.f32 %v277, %v284
  %v300 = vadd.f32 %v278, %v284
  %v301 = vadd.f32 %v279, %v284
  %v302 = vld [vmem:[%s4] sm:$0xf]
  %v303 = vld [vmem:[%s4 + $0x4] sm:$0xf]
  %v304 = vpack.c.bf16 %v287, %v286
  %v305 = vpack.c.bf16 %v289, %v288
  %v306 = vpack.c.bf16 %v291, %v290
  %v307 = vpack.c.bf16 %v293, %v292
  %v308 = vpack.c.bf16 %v295, %v294
  %v309 = vpack.c.bf16 %v297, %v296
  %v310 = vpack.c.bf16 %v299, %v298
  %v311 = vpack.c.bf16 %v301, %v300
  %v312 = vld [vmem:[%s5] sm:$0x1]
  %v314 = vlaneseq
  %v315 = vshrl.u32 %v314, 7
  %v316 = vsub.s32 0, %v315
  %v317 = vrot.slane %v312, %v316
  %v321 = vunpack.c.l.b16 %v302
  %v322 = vunpack.c.l.b16 %v303
  %v323 = vpack.c.b16 %v322, %v321
  %v326 = vsel %vm48, %v304, 0
  %v329 = vsel %vm48, %v305, 0
  %v332 = vsel %vm48, %v306, 0
  %v335 = vsel %vm48, %v307, 0
  %v338 = vsel %vm48, %v308, 0
  %v341 = vsel %vm48, %v309, 0
  %v344 = vsel %vm48, %v310, 0
  %v347 = vsel %vm48, %v311, 0
  %349 = vmatprep.subr.bf16.mxu0 0
  %350 = vmatpush1.bf16.msra.mxu0 %v323
  %351 = vmatprep.subr.bf16.mxu0 0
  %352 = vmatpush1.bf16.msra.mxu0 0
  %353 = vmatprep.subr.bf16.mxu0 0
  %354 = vmatpush1.bf16.msra.mxu0 0
  %355 = vmatprep.subr.bf16.mxu0 0
  %356 = vmatpush1.bf16.msra.mxu0 0
  %357 = vmatprep.subr.bf16.mxu0 0
  %358 = vmatpush1.bf16.msra.mxu0 0
  %359 = vmatprep.subr.bf16.mxu0 0
  %360 = vmatpush1.bf16.msra.mxu0 0
  %361 = vmatprep.subr.bf16.mxu0 0
  %362 = vmatpush1.bf16.msra.mxu0 0
  %363 = vmatprep.subr.bf16.mxu0 0
  %364 = vmatpush1.bf16.msra.mxu0 0
  %365 = vmatprep.subr.bf16.mxu0 0
  %366 = vmatpush1.bf16.msra.mxu0 0
  %367 = vmatprep.subr.bf16.mxu0 0
  %368 = vmatpush1.bf16.msra.mxu0 0
  %369 = vmatprep.subr.bf16.mxu0 0
  %370 = vmatpush1.bf16.msra.mxu0 0
  %371 = vmatprep.subr.bf16.mxu0 0
  %372 = vmatpush1.bf16.msra.mxu0 0
  %373 = vmatprep.subr.bf16.mxu0 0
  %374 = vmatpush1.bf16.msra.mxu0 0
  %375 = vmatprep.subr.bf16.mxu0 0
  %376 = vmatpush1.bf16.msra.mxu0 0
  %377 = vmatprep.subr.bf16.mxu0 0
  %378 = vmatpush1.bf16.msra.mxu0 0
  %379 = vmatprep.subr.bf16.mxu0 0
  %380 = vmatpush1.bf16.msra.mxu0 0
  %381 = vmatprep.mubr.bf16.mxu0 0
  %382 = vmatmul.mubr.bf16.gmra.mrb[0].mxu0 %v326
  %v383 = vpop.f32.mrb[0].mxu0
  %v384 = vadd.f32 %v317, %v383
  %v385 = vpop.f32.mrb[0].mxu0
  %v386 = vpop.f32.mrb[0].mxu0
  %v387 = vadd.f32 %v317, %v386
  %v388 = vpop.f32.mrb[0].mxu0
  %389 = vmatprep.mubr.bf16.mxu0 0
  %390 = vmatmul.mubr.bf16.gmra.mrb[0].mxu0 %v329
  %v391 = vpop.f32.mrb[0].mxu0
  %v392 = vadd.f32 %v317, %v391
  %v393 = vpop.f32.mrb[0].mxu0
  %v394 = vpop.f32.mrb[0].mxu0
  %v395 = vadd.f32 %v317, %v394
  %v396 = vpop.f32.mrb[0].mxu0
  %397 = vmatprep.mubr.bf16.mxu0 0
  %398 = vmatmul.mubr.bf16.gmra.mrb[0].mxu0 %v332
  %v399 = vpop.f32.mrb[0].mxu0
  %v400 = vadd.f32 %v317, %v399
  %v401 = vpop.f32.mrb[0].mxu0
  %v402 = vpop.f32.mrb[0].mxu0
  %v403 = vadd.f32 %v317, %v402
  %v404 = vpop.f32.mrb[0].mxu0
  %405 = vmatprep.mubr.bf16.mxu0 0
  %406 = vmatmul.mubr.bf16.gmra.mrb[0].mxu0 %v335
  %v407 = vpop.f32.mrb[0].mxu0
  %v408 = vadd.f32 %v317, %v407
  %v409 = vpop.f32.mrb[0].mxu0
  %v410 = vpop.f32.mrb[0].mxu0
  %v411 = vadd.f32 %v317, %v410
  %v412 = vpop.f32.mrb[0].mxu0
  %413 = vmatprep.mubr.bf16.mxu0 0
  %414 = vmatmul.mubr.bf16.gmra.mrb[0].mxu0 %v338
  %v415 = vpop.f32.mrb[0].mxu0
  %v416 = vadd.f32 %v317, %v415
  %v417 = vpop.f32.mrb[0].mxu0
  %v418 = vpop.f32.mrb[0].mxu0
  %v419 = vadd.f32 %v317, %v418
  %v420 = vpop.f32.mrb[0].mxu0
  %421 = vmatprep.mubr.bf16.mxu0 0
  %422 = vmatmul.mubr.bf16.gmra.mrb[0].mxu0 %v341
  %v423 = vpop.f32.mrb[0].mxu0
  %v424 = vadd.f32 %v317, %v423
  %v425 = vpop.f32.mrb[0].mxu0
  %v426 = vpop.f32.mrb[0].mxu0
  %v427 = vadd.f32 %v317, %v426
  %v428 = vpop.f32.mrb[0].mxu0
  %429 = vmatprep.mubr.bf16.mxu0 0
  %430 = vmatmul.mubr.bf16.gmra.mrb[0].mxu0 %v344
  %v431 = vpop.f32.mrb[0].mxu0
  %v432 = vadd.f32 %v317, %v431
  %v433 = vpop.f32.mrb[0].mxu0
  %v434 = vpop.f32.mrb[0].mxu0
  %v435 = vadd.f32 %v317, %v434
  %v436 = vpop.f32.mrb[0].mxu0
  %437 = vmatprep.mubr.bf16.mxu0 0
  %438 = vmatmul.mubr.bf16.gmra.mrb[0].mxu0 %v347
  %v439 = vpop.f32.mrb[0].mxu0
  %v440 = vadd.f32 %v317, %v439
  %v441 = vpop.f32.mrb[0].mxu0
  %v442 = vpop.f32.mrb[0].mxu0
  %v443 = vadd.f32 %v317, %v442
  %v444 = vpop.f32.mrb[0].mxu0
  %445 = vdwg.mxu0
  %v446 = vmul.f32 %v384, 0.5
  %v447 = vmul.f32 %v387, 0.5
  %v448 = vmul.f32 %v392, 0.5
  %v449 = vmul.f32 %v395, 0.5
  %v450 = vmul.f32 %v400, 0.5
  %v451 = vmul.f32 %v403, 0.5
  %v452 = vmul.f32 %v408, 0.5
  %v453 = vmul.f32 %v411, 0.5
  %v454 = vmul.f32 %v416, 0.5
  %v455 = vmul.f32 %v419, 0.5
  %v456 = vmul.f32 %v424, 0.5
  %v457 = vmul.f32 %v427, 0.5
  %v458 = vmul.f32 %v432, 0.5
  %v459 = vmul.f32 %v435, 0.5
  %v460 = vmul.f32 %v440, 0.5
  %v461 = vmul.f32 %v443, 0.5
  %v462 = vmul.f32 %v384, 0.70710677
  %v463 = vmul.f32 %v387, 0.70710677
  %v464 = vmul.f32 %v392, 0.70710677
  %v465 = vmul.f32 %v395, 0.70710677
  %v466 = vmul.f32 %v400, 0.70710677
  %v467 = vmul.f32 %v403, 0.70710677
  %v468 = vmul.f32 %v408, 0.70710677
  %v469 = vmul.f32 %v411, 0.70710677
  %v470 = vmul.f32 %v416, 0.70710677
  %v471 = vmul.f32 %v419, 0.70710677
  %v472 = vmul.f32 %v424, 0.70710677
  %v473 = vmul.f32 %v427, 0.70710677
  %v474 = vmul.f32 %v432, 0.70710677
  %v475 = vmul.f32 %v435, 0.70710677
  %v476 = vmul.f32 %v440, 0.70710677
  %v477 = vmul.f32 %v443, 0.70710677
  %v478 = verf.f32.pop %v462
  %v479 = verf.f32.pop %v463
  %v480 = verf.f32.pop %v464
  %v481 = verf.f32.pop %v465
  %v482 = verf.f32.pop %v466
  %v483 = verf.f32.pop %v467
  %v484 = verf.f32.pop %v468
  %v485 = verf.f32.pop %v469
  %v486 = verf.f32.pop %v470
  %v487 = verf.f32.pop %v471
  %v488 = verf.f32.pop %v472
  %v489 = verf.f32.pop %v473
  %v490 = verf.f32.pop %v474
  %v491 = verf.f32.pop %v475
  %v492 = verf.f32.pop %v476
  %v493 = verf.f32.pop %v477
  %v494 = vadd.f32 %v478, 1.0
  %v495 = vadd.f32 %v479, 1.0
  %v496 = vadd.f32 %v480, 1.0
  %v497 = vadd.f32 %v481, 1.0
  %v498 = vadd.f32 %v482, 1.0
  %v499 = vadd.f32 %v483, 1.0
  %v500 = vadd.f32 %v484, 1.0
  %v501 = vadd.f32 %v485, 1.0
  %v502 = vadd.f32 %v486, 1.0
  %v503 = vadd.f32 %v487, 1.0
  %v504 = vadd.f32 %v488, 1.0
  %v505 = vadd.f32 %v489, 1.0
  %v506 = vadd.f32 %v490, 1.0
  %v507 = vadd.f32 %v491, 1.0
  %v508 = vadd.f32 %v492, 1.0
  %v509 = vadd.f32 %v493, 1.0
  %v510 = vmul.f32 %v446, %v494
  %v511 = vmul.f32 %v447, %v495
  %v512 = vmul.f32 %v448, %v496
  %v513 = vmul.f32 %v449, %v497
  %v514 = vmul.f32 %v450, %v498
  %v515 = vmul.f32 %v451, %v499
  %v516 = vmul.f32 %v452, %v500
  %v517 = vmul.f32 %v453, %v501
  %v518 = vmul.f32 %v454, %v502
  %v519 = vmul.f32 %v455, %v503
  %v520 = vmul.f32 %v456, %v504
  %v521 = vmul.f32 %v457, %v505
  %v522 = vmul.f32 %v458, %v506
  %v523 = vmul.f32 %v459, %v507
  %v524 = vmul.f32 %v460, %v508
  %v525 = vmul.f32 %v461, %v509
  %v526 = vld [vmem:[%s6] sm:$0xf]
  %v527 = vld [vmem:[%s6 + $0x4] sm:$0xf]
  %v528 = vld [vmem:[%s6 + $0x8] sm:$0xf]
  %v529 = vld [vmem:[%s6 + $0xc] sm:$0xf]
  %v530 = vld [vmem:[%s6 + $0x10] sm:$0xf]
  %v531 = vld [vmem:[%s6 + $0x14] sm:$0xf]
  %v532 = vld [vmem:[%s6 + $0x18] sm:$0xf]
  %v533 = vld [vmem:[%s6 + $0x1c] sm:$0xf]
  %v534 = vpack.c.bf16 %v511, %v510
  %v535 = vpack.c.bf16 %v513, %v512
  %v536 = vpack.c.bf16 %v515, %v514
  %v537 = vpack.c.bf16 %v517, %v516
  %v538 = vpack.c.bf16 %v519, %v518
  %v539 = vpack.c.bf16 %v521, %v520
  %v540 = vpack.c.bf16 %v523, %v522
  %v541 = vpack.c.bf16 %v525, %v524
  %v542 = vld [vmem:[%s7] sm:$0x1]
  %v544 = vlaneseq
  %v545 = vshrl.u32 %v544, 7
  %v546 = vsub.s32 0, %v545
  %v547 = vrot.slane %v542, %v546
  %v557 = vunpack.c.l.b16 %v526
  %v558 = vunpack.c.l.b16 %v527
  %v559 = vunpack.c.l.b16 %v528
  %v560 = vunpack.c.l.b16 %v529
  %v561 = vunpack.c.l.b16 %v530
  %v562 = vunpack.c.l.b16 %v531
  %v563 = vunpack.c.l.b16 %v532
  %v564 = vunpack.c.l.b16 %v533
  %v565 = vpack.c.b16 %v558, %v557
  %v566 = vpack.c.b16 %v560, %v559
  %v567 = vpack.c.b16 %v562, %v561
  %v568 = vpack.c.b16 %v564, %v563
  %vm573 = vcmask 523264
  %v575 = vsel %vm573, %v534, 0
  %v578 = vsel %vm573, %v535, 0
  %v581 = vsel %vm573, %v536, 0
  %v584 = vsel %vm573, %v537, 0
  %v587 = vsel %vm573, %v538, 0
  %v590 = vsel %vm573, %v539, 0
  %v593 = vsel %vm573, %v540, 0
  %v596 = vsel %vm573, %v541, 0
  %598 = vmatprep.subr.bf16.mxu0 0
  %599 = vmatpush1.bf16.msra.mxu0 %v565
  %600 = vmatprep.subr.bf16.mxu0 0
  %601 = vmatpush1.bf16.msra.mxu0 %v566
  %602 = vmatprep.subr.bf16.mxu0 0
  %603 = vmatpush1.bf16.msra.mxu0 %v567
  %604 = vmatprep.subr.bf16.mxu0 0
  %605 = vmatpush1.bf16.msra.mxu0 %v568
  %606 = vmatprep.subr.bf16.mxu0 0
  %607 = vmatpush1.bf16.msra.mxu0 0
  %608 = vmatprep.subr.bf16.mxu0 0
  %609 = vmatpush1.bf16.msra.mxu0 0
  %610 = vmatprep.subr.bf16.mxu0 0
  %611 = vmatpush1.bf16.msra.mxu0 0
  %612 = vmatprep.subr.bf16.mxu0 0
  %613 = vmatpush1.bf16.msra.mxu0 0
  %614 = vmatprep.subr.bf16.mxu0 0
  %615 = vmatpush1.bf16.msra.mxu0 0
  %616 = vmatprep.subr.bf16.mxu0 0
  %617 = vmatpush1.bf16.msra.mxu0 0
  %618 = vmatprep.subr.bf16.mxu0 0
  %619 = vmatpush1.bf16.msra.mxu0 0
  %620 = vmatprep.subr.bf16.mxu0 0
  %621 = vmatpush1.bf16.msra.mxu0 0
  %622 = vmatprep.subr.bf16.mxu0 0
  %623 = vmatpush1.bf16.msra.mxu0 0
  %624 = vmatprep.subr.bf16.mxu0 0
  %625 = vmatpush1.bf16.msra.mxu0 0
  %626 = vmatprep.subr.bf16.mxu0 0
  %627 = vmatpush1.bf16.msra.mxu0 0
  %628 = vmatprep.subr.bf16.mxu0 0
  %629 = vmatpush1.bf16.msra.mxu0 0
  %630 = vmatprep.mubr.bf16.mxu0 0
  %631 = vmatmul.mubr.bf16.gmra.mrb[0].mxu0 %v575
  %v632 = vpop.f32.mrb[0].mxu0
  %v633 = vadd.f32 %v547, %v632
  %v634 = vpop.f32.mrb[0].mxu0
  %v635 = vpop.f32.mrb[0].mxu0
  %v636 = vadd.f32 %v547, %v635
  %v637 = vpop.f32.mrb[0].mxu0
  %638 = vmatprep.mubr.bf16.mxu0 0
  %639 = vmatmul.mubr.bf16.gmra.mrb[0].mxu0 %v578
  %v640 = vpop.f32.mrb[0].mxu0
  %v641 = vadd.f32 %v547, %v640
  %v642 = vpop.f32.mrb[0].mxu0
  %v643 = vpop.f32.mrb[0].mxu0
  %v644 = vadd.f32 %v547, %v643
  %v645 = vpop.f32.mrb[0].mxu0
  %646 = vmatprep.mubr.bf16.mxu0 0
  %647 = vmatmul.mubr.bf16.gmra.mrb[0].mxu0 %v581
  %v648 = vpop.f32.mrb[0].mxu0
  %v649 = vadd.f32 %v547, %v648
  %v650 = vpop.f32.mrb[0].mxu0
  %v651 = vpop.f32.mrb[0].mxu0
  %v652 = vadd.f32 %v547, %v651
  %v653 = vpop.f32.mrb[0].mxu0
  %654 = vmatprep.mubr.bf16.mxu0 0
  %655 = vmatmul.mubr.bf16.gmra.mrb[0].mxu0 %v584
  %v656 = vpop.f32.mrb[0].mxu0
  %v657 = vadd.f32 %v547, %v656
  %v658 = vpop.f32.mrb[0].mxu0
  %v659 = vpop.f32.mrb[0].mxu0
  %v660 = vadd.f32 %v547, %v659
  %v661 = vpop.f32.mrb[0].mxu0
  %662 = vmatprep.mubr.bf16.mxu0 0
  %663 = vmatmul.mubr.bf16.gmra.mrb[0].mxu0 %v587
  %v664 = vpop.f32.mrb[0].mxu0
  %v665 = vadd.f32 %v547, %v664
  %v666 = vpop.f32.mrb[0].mxu0
  %v667 = vpop.f32.mrb[0].mxu0
  %v668 = vadd.f32 %v547, %v667
  %v669 = vpop.f32.mrb[0].mxu0
  %670 = vmatprep.mubr.bf16.mxu0 0
  %671 = vmatmul.mubr.bf16.gmra.mrb[0].mxu0 %v590
  %v672 = vpop.f32.mrb[0].mxu0
  %v673 = vadd.f32 %v547, %v672
  %v674 = vpop.f32.mrb[0].mxu0
  %v675 = vpop.f32.mrb[0].mxu0
  %v676 = vadd.f32 %v547, %v675
  %v677 = vpop.f32.mrb[0].mxu0
  %678 = vmatprep.mubr.bf16.mxu0 0
  %679 = vmatmul.mubr.bf16.gmra.mrb[0].mxu0 %v593
  %v680 = vpop.f32.mrb[0].mxu0
  %v681 = vadd.f32 %v547, %v680
  %v682 = vpop.f32.mrb[0].mxu0
  %v683 = vpop.f32.mrb[0].mxu0
  %v684 = vadd.f32 %v547, %v683
  %v685 = vpop.f32.mrb[0].mxu0
  %686 = vmatprep.mubr.bf16.mxu0 0
  %687 = vmatmul.mubr.bf16.gmra.mrb[0].mxu0 %v596
  %v688 = vpop.f32.mrb[0].mxu0
  %v689 = vadd.f32 %v547, %v688
  %v690 = vpop.f32.mrb[0].mxu0
  %v691 = vpop.f32.mrb[0].mxu0
  %v692 = vadd.f32 %v547, %v691
  %v693 = vpop.f32.mrb[0].mxu0
  %694 = vdwg.mxu0
  %v695 = vld [vmem:[%s1] sm:$0xff]
  %v696 = vld [vmem:[%s1 + $0x8] sm:$0xff]
  %v697 = vld [vmem:[%s1 + $0x10] sm:$0xff]
  %v698 = vld [vmem:[%s1 + $0x18] sm:$0xff]
  %v699 = vld [vmem:[%s1 + $0x20] sm:$0xff]
  %v700 = vld [vmem:[%s1 + $0x28] sm:$0xff]
  %v701 = vld [vmem:[%s1 + $0x30] sm:$0xff]
  %v702 = vld [vmem:[%s1 + $0x38] sm:$0xff]
  %v703 = vld [vmem:[%s1 + $0x40] sm:$0xff]
  %v704 = vld [vmem:[%s1 + $0x48] sm:$0xff]
  %v705 = vld [vmem:[%s1 + $0x50] sm:$0xff]
  %v706 = vld [vmem:[%s1 + $0x58] sm:$0xff]
  %v707 = vld [vmem:[%s1 + $0x60] sm:$0xff]
  %v708 = vld [vmem:[%s1 + $0x68] sm:$0xff]
  %v709 = vld [vmem:[%s1 + $0x70] sm:$0xff]
  %v710 = vld [vmem:[%s1 + $0x78] sm:$0xff]
  %v711 = vadd.f32 %v695, %v633
  %v712 = vadd.f32 %v696, %v636
  %v713 = vadd.f32 %v697, %v641
  %v714 = vadd.f32 %v698, %v644
  %v715 = vadd.f32 %v699, %v649
  %v716 = vadd.f32 %v700, %v652
  %v717 = vadd.f32 %v701, %v657
  %v718 = vadd.f32 %v702, %v660
  %v719 = vadd.f32 %v703, %v665
  %v720 = vadd.f32 %v704, %v668
  %v721 = vadd.f32 %v705, %v673
  %v722 = vadd.f32 %v706, %v676
  %v723 = vadd.f32 %v707, %v681
  %v724 = vadd.f32 %v708, %v684
  %v725 = vadd.f32 %v709, %v689
  %v726 = vadd.f32 %v710, %v692
  %727 = vst.msk [vmem:[%s8] sm:$0xff] %vm48, %v711
  %728 = vst.msk [vmem:[%s8 + $0x8] sm:$0xff] %vm48, %v712
  %729 = vst.msk [vmem:[%s8 + $0x10] sm:$0xff] %vm48, %v713
  %730 = vst.msk [vmem:[%s8 + $0x18] sm:$0xff] %vm48, %v714
  %731 = vst.msk [vmem:[%s8 + $0x20] sm:$0xff] %vm48, %v715
  %732 = vst.msk [vmem:[%s8 + $0x28] sm:$0xff] %vm48, %v716
  %733 = vst.msk [vmem:[%s8 + $0x30] sm:$0xff] %vm48, %v717
  %734 = vst.msk [vmem:[%s8 + $0x38] sm:$0xff] %vm48, %v718
  %735 = vst.msk [vmem:[%s8 + $0x40] sm:$0xff] %vm48, %v719
  %736 = vst.msk [vmem:[%s8 + $0x48] sm:$0xff] %vm48, %v720
  %737 = vst.msk [vmem:[%s8 + $0x50] sm:$0xff] %vm48, %v721
  %738 = vst.msk [vmem:[%s8 + $0x58] sm:$0xff] %vm48, %v722
  %739 = vst.msk [vmem:[%s8 + $0x60] sm:$0xff] %vm48, %v723
  %740 = vst.msk [vmem:[%s8 + $0x68] sm:$0xff] %vm48, %v724
  %741 = vst.msk [vmem:[%s8 + $0x70] sm:$0xff] %vm48, %v725
  %742 = vst.msk [vmem:[%s8 + $0x78] sm:$0xff] %vm48, %v726
  // Predicated region
  $region34: #{forward.22} parent=0 // pred_check
    _
  $region35: #{forward.22} parent=0 // pred_check_branch
    %744 = sbr.rel (0) target = $region37
  $region36: #{forward.22} parent=0 // pred_region
    _
  $region37: #{forward.22} parent=0 // pred_fallthru
    _
  // Predicated region
  $region38: #{forward.22} parent=0 // pred_check
    _
  $region39: #{forward.22} parent=0 // pred_check_branch
    %746 = sbr.rel (0) target = $region41
  $region40: #{forward.22} parent=0 // pred_region
    _
  $region41: #{forward.22} parent=0 // pred_fallthru
    _

// kernel: forward.20
$region0: #{forward.20}
  #allocation0 [shape = 'u32[]', space=smem, size = 0x4, offset = 0x4, fixed_abs, tag = 'smem constant byte address 0x4 - core index']
  #allocation1 [shape = 'u32[144,128]{1,0:T(1,128)}', space=vmem, size = 0x12000, scoped, tag = 'internal scratch']
  %s0 = inlined_call_operand.vmem [shape: f32[128,48], index: 0, kind: input, shape index: {}]
  %s1 = inlined_call_operand.vmem [shape: bf16[48,16], index: 1, kind: input, shape index: {}]
  %s2 = inlined_call_operand.vmem [shape: f32[1,16], index: 2, kind: input, shape index: {}]
  %s3 = inlined_call_operand.vmem [shape: f32[1,16], index: 3, kind: input, shape index: {}]
  %s4 = inlined_call_operand.vmem [shape: f32[1,16], index: 4, kind: input, shape index: {}]
  %s5 = inlined_call_operand.vmem [shape: f32[128,16], index: 5, kind: output, shape index: {}]
  %s6 = sld [smem:[#allocation0]]
  $region30: #{forward.20} parent=0
    _
  %s8 = ssub.s32 1, %s6
  %s9 = scalar_select 0, %s8, %s6
  // Predicated region
  $region2: #{forward.20} parent=0 // pred_check
    _
  $region3: #{forward.20} parent=0 // pred_check_branch
    %11 = sbr.rel (0) target = $region5
  $region4: #{forward.20} parent=0 // pred_region
    _
  $region5: #{forward.20} parent=0 // pred_fallthru
    _
  // Predicated region
  $region6: #{forward.20} parent=0 // pred_check
    _
  $region7: #{forward.20} parent=0 // pred_check_branch
    %13 = sbr.rel (0) target = $region9
  $region8: #{forward.20} parent=0 // pred_region
    _
  $region9: #{forward.20} parent=0 // pred_fallthru
    _
  // Predicated region
  $region10: #{forward.20} parent=0 // pred_check
    _
  $region11: #{forward.20} parent=0 // pred_check_branch
    %15 = sbr.rel (0) target = $region13
  $region12: #{forward.20} parent=0 // pred_region
    _
  $region13: #{forward.20} parent=0 // pred_fallthru
    _
  // Predicated region
  $region14: #{forward.20} parent=0 // pred_check
    _
  $region15: #{forward.20} parent=0 // pred_check_branch
    %17 = sbr.rel (0) target = $region17
  $region16: #{forward.20} parent=0 // pred_region
    _
  $region17: #{forward.20} parent=0 // pred_fallthru
    _
  // Predicated region
  $region18: #{forward.20} parent=0 // pred_check
    _
  $region19: #{forward.20} parent=0 // pred_check_branch
    %19 = sbr.rel (0) target = $region21
  $region20: #{forward.20} parent=0 // pred_region
    _
  $region21: #{forward.20} parent=0 // pred_fallthru
    _
  %v21 = vld [vmem:[%s0] sm:$0xff]
  %v22 = vld [vmem:[%s0 + $0x8] sm:$0xff]
  %v23 = vld [vmem:[%s0 + $0x10] sm:$0xff]
  %v24 = vld [vmem:[%s0 + $0x18] sm:$0xff]
  %v25 = vld [vmem:[%s0 + $0x20] sm:$0xff]
  %v26 = vld [vmem:[%s0 + $0x28] sm:$0xff]
  %v27 = vld [vmem:[%s0 + $0x30] sm:$0xff]
  %v28 = vld [vmem:[%s0 + $0x38] sm:$0xff]
  %v29 = vld [vmem:[%s0 + $0x40] sm:$0xff]
  %v30 = vld [vmem:[%s0 + $0x48] sm:$0xff]
  %v31 = vld [vmem:[%s0 + $0x50] sm:$0xff]
  %v32 = vld [vmem:[%s0 + $0x58] sm:$0xff]
  %v33 = vld [vmem:[%s0 + $0x60] sm:$0xff]
  %v34 = vld [vmem:[%s0 + $0x68] sm:$0xff]
  %v35 = vld [vmem:[%s0 + $0x70] sm:$0xff]
  %v36 = vld [vmem:[%s0 + $0x78] sm:$0xff]
  %v37 = vld [vmem:[%s1] sm:$0xf]
  %v38 = vld [vmem:[%s1 + $0x4] sm:$0xf]
  %v39 = vld [vmem:[%s1 + $0x8] sm:$0xf]
  %v40 = vld [vmem:[%s1 + $0xc] sm:$0xf]
  %v41 = vld [vmem:[%s1 + $0x10] sm:$0xf]
  %v42 = vld [vmem:[%s1 + $0x14] sm:$0xf]
  %v43 = vpack.c.bf16 %v22, %v21
  %v44 = vpack.c.bf16 %v24, %v23
  %v45 = vpack.c.bf16 %v26, %v25
  %v46 = vpack.c.bf16 %v28, %v27
  %v47 = vpack.c.bf16 %v30, %v29
  %v48 = vpack.c.bf16 %v32, %v31
  %v49 = vpack.c.bf16 %v34, %v33
  %v50 = vpack.c.bf16 %v36, %v35
  %v51 = vld [vmem:[%s2] sm:$0x1]
  %v53 = vlaneseq
  %v54 = vshrl.u32 %v53, 7
  %v55 = vsub.s32 0, %v54
  %v56 = vrot.slane %v51, %v55
  %v64 = vunpack.c.l.b16 %v37
  %v65 = vunpack.c.l.b16 %v38
  %v66 = vunpack.c.l.b16 %v39
  %v67 = vunpack.c.l.b16 %v40
  %v68 = vunpack.c.l.b16 %v41
  %v69 = vunpack.c.l.b16 %v42
  %v70 = vpack.c.b16 %v65, %v64
  %v71 = vpack.c.b16 %v67, %v66
  %v72 = vpack.c.b16 %v69, %v68
  %vm76 = vcmask 392192
  %v78 = vsel %vm76, %v43, 0
  %v81 = vsel %vm76, %v44, 0
  %v84 = vsel %vm76, %v45, 0
  %v87 = vsel %vm76, %v46, 0
  %v90 = vsel %vm76, %v47, 0
  %v93 = vsel %vm76, %v48, 0
  %v96 = vsel %vm76, %v49, 0
  %v99 = vsel %vm76, %v50, 0
  %101 = vmatprep.subr.bf16.mxu0 0
  %102 = vmatpush1.bf16.msra.mxu0 %v70
  %103 = vmatprep.subr.bf16.mxu0 0
  %104 = vmatpush1.bf16.msra.mxu0 %v71
  %105 = vmatprep.subr.bf16.mxu0 0
  %106 = vmatpush1.bf16.msra.mxu0 %v72
  %107 = vmatprep.subr.bf16.mxu0 0
  %108 = vmatpush1.bf16.msra.mxu0 0
  %109 = vmatprep.subr.bf16.mxu0 0
  %110 = vmatpush1.bf16.msra.mxu0 0
  %111 = vmatprep.subr.bf16.mxu0 0
  %112 = vmatpush1.bf16.msra.mxu0 0
  %113 = vmatprep.subr.bf16.mxu0 0
  %114 = vmatpush1.bf16.msra.mxu0 0
  %115 = vmatprep.subr.bf16.mxu0 0
  %116 = vmatpush1.bf16.msra.mxu0 0
  %117 = vmatprep.subr.bf16.mxu0 0
  %118 = vmatpush1.bf16.msra.mxu0 0
  %119 = vmatprep.subr.bf16.mxu0 0
  %120 = vmatpush1.bf16.msra.mxu0 0
  %121 = vmatprep.subr.bf16.mxu0 0
  %122 = vmatpush1.bf16.msra.mxu0 0
  %123 = vmatprep.subr.bf16.mxu0 0
  %124 = vmatpush1.bf16.msra.mxu0 0
  %125 = vmatprep.subr.bf16.mxu0 0
  %126 = vmatpush1.bf16.msra.mxu0 0
  %127 = vmatprep.subr.bf16.mxu0 0
  %128 = vmatpush1.bf16.msra.mxu0 0
  %129 = vmatprep.subr.bf16.mxu0 0
  %130 = vmatpush1.bf16.msra.mxu0 0
  %131 = vmatprep.subr.bf16.mxu0 0
  %132 = vmatpush1.bf16.msra.mxu0 0
  %133 = vmatprep.mubr.bf16.mxu0 0
  %134 = vmatmul.mubr.bf16.gmra.mrb[0].mxu0 %v78
  %v135 = vpop.f32.mrb[0].mxu0
  %v136 = vadd.f32 %v56, %v135
  %v137 = vpop.f32.mrb[0].mxu0
  %v138 = vpop.f32.mrb[0].mxu0
  %v139 = vadd.f32 %v56, %v138
  %v140 = vpop.f32.mrb[0].mxu0
  %141 = vmatprep.mubr.bf16.mxu0 0
  %142 = vmatmul.mubr.bf16.gmra.mrb[0].mxu0 %v81
  %v143 = vpop.f32.mrb[0].mxu0
  %v144 = vadd.f32 %v56, %v143
  %v145 = vpop.f32.mrb[0].mxu0
  %v146 = vpop.f32.mrb[0].mxu0
  %v147 = vadd.f32 %v56, %v146
  %v148 = vpop.f32.mrb[0].mxu0
  %149 = vmatprep.mubr.bf16.mxu0 0
  %150 = vmatmul.mubr.bf16.gmra.mrb[0].mxu0 %v84
  %v151 = vpop.f32.mrb[0].mxu0
  %v152 = vadd.f32 %v56, %v151
  %v153 = vpop.f32.mrb[0].mxu0
  %v154 = vpop.f32.mrb[0].mxu0
  %v155 = vadd.f32 %v56, %v154
  %v156 = vpop.f32.mrb[0].mxu0
  %157 = vmatprep.mubr.bf16.mxu0 0
  %158 = vmatmul.mubr.bf16.gmra.mrb[0].mxu0 %v87
  %v159 = vpop.f32.mrb[0].mxu0
  %v160 = vadd.f32 %v56, %v159
  %v161 = vpop.f32.mrb[0].mxu0
  %v162 = vpop.f32.mrb[0].mxu0
  %v163 = vadd.f32 %v56, %v162
  %v164 = vpop.f32.mrb[0].mxu0
  %165 = vmatprep.mubr.bf16.mxu0 0
  %166 = vmatmul.mubr.bf16.gmra.mrb[0].mxu0 %v90
  %v167 = vpop.f32.mrb[0].mxu0
  %v168 = vadd.f32 %v56, %v167
  %v169 = vpop.f32.mrb[0].mxu0
  %v170 = vpop.f32.mrb[0].mxu0
  %v171 = vadd.f32 %v56, %v170
  %v172 = vpop.f32.mrb[0].mxu0
  %173 = vmatprep.mubr.bf16.mxu0 0
  %174 = vmatmul.mubr.bf16.gmra.mrb[0].mxu0 %v93
  %v175 = vpop.f32.mrb[0].mxu0
  %v176 = vadd.f32 %v56, %v175
  %v177 = vpop.f32.mrb[0].mxu0
  %v178 = vpop.f32.mrb[0].mxu0
  %v179 = vadd.f32 %v56, %v178
  %v180 = vpop.f32.mrb[0].mxu0
  %181 = vmatprep.mubr.bf16.mxu0 0
  %182 = vmatmul.mubr.bf16.gmra.mrb[0].mxu0 %v96
  %v183 = vpop.f32.mrb[0].mxu0
  %v184 = vadd.f32 %v56, %v183
  %v185 = vpop.f32.mrb[0].mxu0
  %v186 = vpop.f32.mrb[0].mxu0
  %v187 = vadd.f32 %v56, %v186
  %v188 = vpop.f32.mrb[0].mxu0
  %189 = vmatprep.mubr.bf16.mxu0 0
  %190 = vmatmul.mubr.bf16.gmra.mrb[0].mxu0 %v99
  %v191 = vpop.f32.mrb[0].mxu0
  %v192 = vadd.f32 %v56, %v191
  %v193 = vpop.f32.mrb[0].mxu0
  %v194 = vpop.f32.mrb[0].mxu0
  %v195 = vadd.f32 %v56, %v194
  %v196 = vpop.f32.mrb[0].mxu0
  %197 = vdwg.mxu0
  %v198 = vld [vmem:[%s3] sm:$0x1]
  %v199 = vld [vmem:[%s4] sm:$0x1]
  %vm200 = vcmask 130048
  %v201 = vsel %vm200, %v136, 0.0
  %202 = vadd.xlane.f32.xlu0 %v201
  %v203 = vpop.xlane.xlu0 %202
  %v204 = vsel %vm200, %v139, 0.0
  %205 = vadd.xlane.f32.xlu0 %v204
  %v206 = vpop.xlane.xlu0 %205
  %v207 = vsel %vm200, %v144, 0.0
  %208 = vadd.xlane.f32.xlu0 %v207
  %v209 = vpop.xlane.xlu0 %208
  %v210 = vsel %vm200, %v147, 0.0
  %211 = vadd.xlane.f32.xlu0 %v210
  %v212 = vpop.xlane.xlu0 %211
  %v213 = vsel %vm200, %v152, 0.0
  %214 = vadd.xlane.f32.xlu0 %v213
  %v215 = vpop.xlane.xlu0 %214
  %v216 = vsel %vm200, %v155, 0.0
  %217 = vadd.xlane.f32.xlu0 %v216
  %v218 = vpop.xlane.xlu0 %217
  %v219 = vsel %vm200, %v160, 0.0
  %220 = vadd.xlane.f32.xlu0 %v219
  %v221 = vpop.xlane.xlu0 %220
  %v222 = vsel %vm200, %v163, 0.0
  %223 = vadd.xlane.f32.xlu0 %v222
  %v224 = vpop.xlane.xlu0 %223
  %v225 = vsel %vm200, %v168, 0.0
  %226 = vadd.xlane.f32.xlu0 %v225
  %v227 = vpop.xlane.xlu0 %226
  %v228 = vsel %vm200, %v171, 0.0
  %229 = vadd.xlane.f32.xlu0 %v228
  %v230 = vpop.xlane.xlu0 %229
  %v231 = vsel %vm200, %v176, 0.0
  %232 = vadd.xlane.f32.xlu0 %v231
  %v233 = vpop.xlane.xlu0 %232
  %v234 = vsel %vm200, %v179, 0.0
  %235 = vadd.xlane.f32.xlu0 %v234
  %v236 = vpop.xlane.xlu0 %235
  %v237 = vsel %vm200, %v184, 0.0
  %238 = vadd.xlane.f32.xlu0 %v237
  %v239 = vpop.xlane.xlu0 %238
  %v240 = vsel %vm200, %v187, 0.0
  %241 = vadd.xlane.f32.xlu0 %v240
  %v242 = vpop.xlane.xlu0 %241
  %v243 = vsel %vm200, %v192, 0.0
  %244 = vadd.xlane.f32.xlu0 %v243
  %v245 = vpop.xlane.xlu0 %244
  %v246 = vsel %vm200, %v195, 0.0
  %247 = vadd.xlane.f32.xlu0 %v246
  %v248 = vpop.xlane.xlu0 %247
  %v249 = vrcp.pop 16.0
  %v250 = vmul.f32 %v203, %v249
  %v251 = vmul.f32 %v206, %v249
  %v252 = vmul.f32 %v209, %v249
  %v253 = vmul.f32 %v212, %v249
  %v254 = vmul.f32 %v215, %v249
  %v255 = vmul.f32 %v218, %v249
  %v256 = vmul.f32 %v221, %v249
  %v257 = vmul.f32 %v224, %v249
  %v258 = vmul.f32 %v227, %v249
  %v259 = vmul.f32 %v230, %v249
  %v260 = vmul.f32 %v233, %v249
  %v261 = vmul.f32 %v236, %v249
  %v262 = vmul.f32 %v239, %v249
  %v263 = vmul.f32 %v242, %v249
  %v264 = vmul.f32 %v245, %v249
  %v265 = vmul.f32 %v248, %v249
  %v266 = vsub.f32 %v136, %v250
  %v267 = vsub.f32 %v139, %v251
  %v268 = vsub.f32 %v144, %v252
  %v269 = vsub.f32 %v147, %v253
  %v270 = vsub.f32 %v152, %v254
  %v271 = vsub.f32 %v155, %v255
  %v272 = vsub.f32 %v160, %v256
  %v273 = vsub.f32 %v163, %v257
  %v274 = vsub.f32 %v168, %v258
  %v275 = vsub.f32 %v171, %v259
  %v276 = vsub.f32 %v176, %v260
  %v277 = vsub.f32 %v179, %v261
  %v278 = vsub.f32 %v184, %v262
  %v279 = vsub.f32 %v187, %v263
  %v280 = vsub.f32 %v192, %v264
  %v281 = vsub.f32 %v195, %v265
  %v282 = vmul.f32 %v266, %v266
  %v283 = vmul.f32 %v267, %v267
  %v284 = vmul.f32 %v268, %v268
  %v285 = vmul.f32 %v269, %v269
  %v286 = vmul.f32 %v270, %v270
  %v287 = vmul.f32 %v271, %v271
  %v288 = vmul.f32 %v272, %v272
  %v289 = vmul.f32 %v273, %v273
  %v290 = vmul.f32 %v274, %v274
  %v291 = vmul.f32 %v275, %v275
  %v292 = vmul.f32 %v276, %v276
  %v293 = vmul.f32 %v277, %v277
  %v294 = vmul.f32 %v278, %v278
  %v295 = vmul.f32 %v279, %v279
  %v296 = vmul.f32 %v280, %v280
  %v297 = vmul.f32 %v281, %v281
  %v298 = vsel %vm200, %v282, 0.0
  %299 = vadd.xlane.f32.xlu0 %v298
  %v300 = vpop.xlane.xlu0 %299
  %v301 = vsel %vm200, %v283, 0.0
  %302 = vadd.xlane.f32.xlu0 %v301
  %v303 = vpop.xlane.xlu0 %302
  %v304 = vsel %vm200, %v284, 0.0
  %305 = vadd.xlane.f32.xlu0 %v304
  %v306 = vpop.xlane.xlu0 %305
  %v307 = vsel %vm200, %v285, 0.0
  %308 = vadd.xlane.f32.xlu0 %v307
  %v309 = vpop.xlane.xlu0 %308
  %v310 = vsel %vm200, %v286, 0.0
  %311 = vadd.xlane.f32.xlu0 %v310
  %v312 = vpop.xlane.xlu0 %311
  %v313 = vsel %vm200, %v287, 0.0
  %314 = vadd.xlane.f32.xlu0 %v313
  %v315 = vpop.xlane.xlu0 %314
  %v316 = vsel %vm200, %v288, 0.0
  %317 = vadd.xlane.f32.xlu0 %v316
  %v318 = vpop.xlane.xlu0 %317
  %v319 = vsel %vm200, %v289, 0.0
  %320 = vadd.xlane.f32.xlu0 %v319
  %v321 = vpop.xlane.xlu0 %320
  %v322 = vsel %vm200, %v290, 0.0
  %323 = vadd.xlane.f32.xlu0 %v322
  %v324 = vpop.xlane.xlu0 %323
  %v325 = vsel %vm200, %v291, 0.0
  %326 = vadd.xlane.f32.xlu0 %v325
  %v327 = vpop.xlane.xlu0 %326
  %v328 = vsel %vm200, %v292, 0.0
  %329 = vadd.xlane.f32.xlu0 %v328
  %v330 = vpop.xlane.xlu0 %329
  %v331 = vsel %vm200, %v293, 0.0
  %332 = vadd.xlane.f32.xlu0 %v331
  %v333 = vpop.xlane.xlu0 %332
  %v334 = vsel %vm200, %v294, 0.0
  %335 = vadd.xlane.f32.xlu0 %v334
  %v336 = vpop.xlane.xlu0 %335
  %v337 = vsel %vm200, %v295, 0.0
  %338 = vadd.xlane.f32.xlu0 %v337
  %v339 = vpop.xlane.xlu0 %338
  %v340 = vsel %vm200, %v296, 0.0
  %341 = vadd.xlane.f32.xlu0 %v340
  %v342 = vpop.xlane.xlu0 %341
  %v343 = vsel %vm200, %v297, 0.0
  %344 = vadd.xlane.f32.xlu0 %v343
  %v345 = vpop.xlane.xlu0 %344
  %v346 = vmul.f32 %v300, %v249
  %v347 = vmul.f32 %v303, %v249
  %v348 = vmul.f32 %v306, %v249
  %v349 = vmul.f32 %v309, %v249
  %v350 = vmul.f32 %v312, %v249
  %v351 = vmul.f32 %v315, %v249
  %v352 = vmul.f32 %v318, %v249
  %v353 = vmul.f32 %v321, %v249
  %v354 = vmul.f32 %v324, %v249
  %v355 = vmul.f32 %v327, %v249
  %v356 = vmul.f32 %v330, %v249
  %v357 = vmul.f32 %v333, %v249
  %v358 = vmul.f32 %v336, %v249
  %v359 = vmul.f32 %v339, %v249
  %v360 = vmul.f32 %v342, %v249
  %v361 = vmul.f32 %v345, %v249
  %v362 = vadd.f32 %v346, 1e-06
  %v363 = vadd.f32 %v347, 1e-06
  %v364 = vadd.f32 %v348, 1e-06
  %v365 = vadd.f32 %v349, 1e-06
  %v366 = vadd.f32 %v350, 1e-06
  %v367 = vadd.f32 %v351, 1e-06
  %v368 = vadd.f32 %v352, 1e-06
  %v369 = vadd.f32 %v353, 1e-06
  %v370 = vadd.f32 %v354, 1e-06
  %v371 = vadd.f32 %v355, 1e-06
  %v372 = vadd.f32 %v356, 1e-06
  %v373 = vadd.f32 %v357, 1e-06
  %v374 = vadd.f32 %v358, 1e-06
  %v375 = vadd.f32 %v359, 1e-06
  %v376 = vadd.f32 %v360, 1e-06
  %v377 = vadd.f32 %v361, 1e-06
  %v378 = vrsqrt.pop %v362
  %v379 = vrsqrt.pop %v363
  %v380 = vrsqrt.pop %v364
  %v381 = vrsqrt.pop %v365
  %v382 = vrsqrt.pop %v366
  %v383 = vrsqrt.pop %v367
  %v384 = vrsqrt.pop %v368
  %v385 = vrsqrt.pop %v369
  %v386 = vrsqrt.pop %v370
  %v387 = vrsqrt.pop %v371
  %v388 = vrsqrt.pop %v372
  %v389 = vrsqrt.pop %v373
  %v390 = vrsqrt.pop %v374
  %v391 = vrsqrt.pop %v375
  %v392 = vrsqrt.pop %v376
  %v393 = vrsqrt.pop %v377
  %v394 = vmul.f32 %v266, %v378
  %v395 = vmul.f32 %v267, %v379
  %v396 = vmul.f32 %v268, %v380
  %v397 = vmul.f32 %v269, %v381
  %v398 = vmul.f32 %v270, %v382
  %v399 = vmul.f32 %v271, %v383
  %v400 = vmul.f32 %v272, %v384
  %v401 = vmul.f32 %v273, %v385
  %v402 = vmul.f32 %v274, %v386
  %v403 = vmul.f32 %v275, %v387
  %v404 = vmul.f32 %v276, %v388
  %v405 = vmul.f32 %v277, %v389
  %v406 = vmul.f32 %v278, %v390
  %v407 = vmul.f32 %v279, %v391
  %v408 = vmul.f32 %v280, %v392
  %v409 = vmul.f32 %v281, %v393
  %v411 = vlaneseq
  %v412 = vshrl.u32 %v411, 7
  %v413 = vsub.s32 0, %v412
  %v414 = vrot.slane %v198, %v413
  %v416 = vmul.f32 %v394, %v414
  %v417 = vmul.f32 %v395, %v414
  %v418 = vmul.f32 %v396, %v414
  %v419 = vmul.f32 %v397, %v414
  %v420 = vmul.f32 %v398, %v414
  %v421 = vmul.f32 %v399, %v414
  %v422 = vmul.f32 %v400, %v414
  %v423 = vmul.f32 %v401, %v414
  %v424 = vmul.f32 %v402, %v414
  %v425 = vmul.f32 %v403, %v414
  %v426 = vmul.f32 %v404, %v414
  %v427 = vmul.f32 %v405, %v414
  %v428 = vmul.f32 %v406, %v414
  %v429 = vmul.f32 %v407, %v414
  %v430 = vmul.f32 %v408, %v414
  %v431 = vmul.f32 %v409, %v414
  %v433 = vlaneseq
  %v434 = vshrl.u32 %v433, 7
  %v435 = vsub.s32 0, %v434
  %v436 = vrot.slane %v199, %v435
  %v438 = vadd.f32 %v416, %v436
  %v439 = vadd.f32 %v417, %v436
  %v440 = vadd.f32 %v418, %v436
  %v441 = vadd.f32 %v419, %v436
  %v442 = vadd.f32 %v420, %v436
  %v443 = vadd.f32 %v421, %v436
  %v444 = vadd.f32 %v422, %v436
  %v445 = vadd.f32 %v423, %v436
  %v446 = vadd.f32 %v424, %v436
  %v447 = vadd.f32 %v425, %v436
  %v448 = vadd.f32 %v426, %v436
  %v449 = vadd.f32 %v427, %v436
  %v450 = vadd.f32 %v428, %v436
  %v451 = vadd.f32 %v429, %v436
  %v452 = vadd.f32 %v430, %v436
  %v453 = vadd.f32 %v431, %v436
  %454 = vst.msk [vmem:[%s5] sm:$0xff] %vm200, %v438
  %455 = vst.msk [vmem:[%s5 + $0x8] sm:$0xff] %vm200, %v439
  %456 = vst.msk [vmem:[%s5 + $0x10] sm:$0xff] %vm200, %v440
  %457 = vst.msk [vmem:[%s5 + $0x18] sm:$0xff] %vm200, %v441
  %458 = vst.msk [vmem:[%s5 + $0x20] sm:$0xff] %vm200, %v442
  %459 = vst.msk [vmem:[%s5 + $0x28] sm:$0xff] %vm200, %v443
  %460 = vst.msk [vmem:[%s5 + $0x30] sm:$0xff] %vm200, %v444
  %461 = vst.msk [vmem:[%s5 + $0x38] sm:$0xff] %vm200, %v445
  %462 = vst.msk [vmem:[%s5 + $0x40] sm:$0xff] %vm200, %v446
  %463 = vst.msk [vmem:[%s5 + $0x48] sm:$0xff] %vm200, %v447
  %464 = vst.msk [vmem:[%s5 + $0x50] sm:$0xff] %vm200, %v448
  %465 = vst.msk [vmem:[%s5 + $0x58] sm:$0xff] %vm200, %v449
  %466 = vst.msk [vmem:[%s5 + $0x60] sm:$0xff] %vm200, %v450
  %467 = vst.msk [vmem:[%s5 + $0x68] sm:$0xff] %vm200, %v451
  %468 = vst.msk [vmem:[%s5 + $0x70] sm:$0xff] %vm200, %v452
  %469 = vst.msk [vmem:[%s5 + $0x78] sm:$0xff] %vm200, %v453
  // Predicated region
  $region22: #{forward.20} parent=0 // pred_check
    _
  $region23: #{forward.20} parent=0 // pred_check_branch
    %471 = sbr.rel (0) target = $region25
  $region24: #{forward.20} parent=0 // pred_region
    _
  $region25: #{forward.20} parent=0 // pred_fallthru
    _
  // Predicated region
  $region26: #{forward.20} parent=0 // pred_check
    _
  $region27: #{forward.20} parent=0 // pred_check_branch
    %473 = sbr.rel (0) target = $region29
  $region28: #{forward.20} parent=0 // pred_region
    _
  $region29: #{forward.20} parent=0 // pred_fallthru
    _

// kernel: forward.21
$region0: #{forward.21}
  #allocation0 [shape = 'u32[]', space=smem, size = 0x4, offset = 0x4, fixed_abs, tag = 'smem constant byte address 0x4 - core index']
  #allocation1 [shape = 'u32[144,128]{1,0:T(1,128)}', space=vmem, size = 0x12000, scoped, tag = 'internal scratch']
  #allocation2 [shape = 'f32[1,18,18,6]{3,2,1,0:T(8,128)}', space=vmem, size = 0x36000, scoped, tag = 'scratch operand']
  %s0 = inlined_call_operand.vmem [shape: f32[2,8,8,16], index: 0, kind: input, shape index: {}]
  %s1 = inlined_call_operand.vmem [shape: f32[25,6], index: 1, kind: input, shape index: {}]
  %s2 = inlined_call_operand.vmem [shape: f32[1,6], index: 2, kind: input, shape index: {}]
  %s3 = inlined_call_operand.vmem [shape: f32[2,8,8,16], index: 3, kind: output, shape index: {}]
  %s4 = sld [smem:[#allocation0]]
  $region45: #{forward.21} parent=0
    _
  %s6 = ssub.s32 1, %s4
  %s7 = scalar_select 0, %s6, %s4
  loop: start=0, step=1, limit=4
  $region2: #{forward.21} parent=0 // loop_pre_header
    _
  $region3: #{forward.21} parent=0 // loop_header
    %s9 = sphi 0, %s13
    %p10 = scmp.ge.s32.totalorder %s9, 4
    %s19 = sphi 0, %s21
    %s22 = sphi 0, %s19
    %s23 = sphi 0, %s22
    %s39 = sphi 0, %s23
    %s43 = sphi 0, %s43
    %s45 = sphi 0, %s43
    %s46 = sphi 0, %s45
    %s60 = sphi 0, %s46
    %s64 = sphi 0, %s64
    %s66 = sphi 0, %s64
    %s67 = sphi 0, %s66
    %s81 = sphi 0, %s67
    %s87 = sphi 0, %s89
    %s90 = sphi 0, %s87
    %s91 = sphi 0, %s90
    %s107 = sphi 0, %s91
  $region4: #{forward.21} parent=0 // loop_header_branch
    %12 = sbr.rel (%p10) target = $region8
  $region5: #{forward.21} parent=0 // loop_body
    %s14 = ssub.s32 %s9, 1
    %s15 = ssub.s32 %s9, 2
    %s16 = sadd.s32 %s9, 1
    %s17 = ssub.s32 %s9, %s16
    %p18 = scmp.eq.s32.totalorder %s17, 0
    %s20 = sadd.s32 %s19, 1
    %s21 = scalar_select %p18, %s19, %s20
    %p24 = pneg %p18
    %p25 = scmp.eq.s32.totalorder %s9, 1
    %p26 = por %p24, %p25
    %p27 = scmp.ne.s32.totalorder %s19, %s22
    %p28 = scmp.eq.s32.totalorder %s9, 0
    %p29 = por %p27, %p28
    %p30 = scmp.ne.s32.totalorder %s19, %s22
    %p31 = scmp.eq.s32.totalorder %s14, 1
    %p32 = por %p30, %p31
    %p33 = scmp.ne.s32.totalorder %s22, %s23
    %p34 = scmp.eq.s32.totalorder %s14, 0
    %p35 = por %p33, %p34
    %p36 = scmp.ne.s32.totalorder %s22, %s23
    %p37 = scmp.eq.s32.totalorder %s15, 1
    %p38 = por %p36, %p37
    %p40 = scmp.ne.s32.totalorder %s23, %s39
    %p41 = scmp.eq.s32.totalorder %s15, 0
    %p42 = por %p40, %p41
    %s44 = sadd.s32 %s43, 1
    %p47 = scmp.eq.s32.totalorder %s9, 1
    %p48 = scmp.ne.s32.totalorder %s43, %s45
    %p49 = scmp.eq.s32.totalorder %s9, 0
    %p50 = por %p48, %p49
    %p51 = scmp.ne.s32.totalorder %s43, %s45
    %p52 = scmp.eq.s32.totalorder %s14, 1
    %p53 = por %p51, %p52
    %p54 = scmp.ne.s32.totalorder %s45, %s46
    %p55 = scmp.eq.s32.totalorder %s14, 0
    %p56 = por %p54, %p55
    %p57 = scmp.ne.s32.totalorder %s45, %s46
    %p58 = scmp.eq.s32.totalorder %s15, 1
    %p59 = por %p57, %p58
    %p61 = scmp.ne.s32.totalorder %s46, %s60
    %p62 = scmp.eq.s32.totalorder %s15, 0
    %p63 = por %p61, %p62
    %s65 = sadd.s32 %s64, 1
    %p68 = scmp.eq.s32.totalorder %s9, 1
    %p69 = scmp.ne.s32.totalorder %s64, %s66
    %p70 = scmp.eq.s32.totalorder %s9, 0
    %p71 = por %p69, %p70
    %p72 = scmp.ne.s32.totalorder %s64, %s66
    %p73 = scmp.eq.s32.totalorder %s14, 1
    %p74 = por %p72, %p73
    %p75 = scmp.ne.s32.totalorder %s66, %s67
    %p76 = scmp.eq.s32.totalorder %s14, 0
    %p77 = por %p75, %p76
    %p78 = scmp.ne.s32.totalorder %s66, %s67
    %p79 = scmp.eq.s32.totalorder %s15, 1
    %p80 = por %p78, %p79
    %p82 = scmp.ne.s32.totalorder %s67, %s81
    %p83 = scmp.eq.s32.totalorder %s15, 0
    %p84 = por %p82, %p83
    %s85 = ssub.s32 %s9, %s16
    %p86 = scmp.eq.s32.totalorder %s85, 0
    %s88 = sadd.s32 %s87, 1
    %s89 = scalar_select %p86, %s87, %s88
    %p92 = pneg %p86
    %p93 = scmp.eq.s32.totalorder %s9, 1
    %p94 = por %p92, %p93
    %p95 = scmp.ne.s32.totalorder %s87, %s90
    %p96 = scmp.eq.s32.totalorder %s9, 0
    %p97 = por %p95, %p96
    %p98 = scmp.ne.s32.totalorder %s87, %s90
    %p99 = scmp.eq.s32.totalorder %s14, 1
    %p100 = por %p98, %p99
    %p101 = scmp.ne.s32.totalorder %s90, %s91
    %p102 = scmp.eq.s32.totalorder %s14, 0
    %p103 = por %p101, %p102
    %p104 = scmp.ne.s32.totalorder %s90, %s91
    %p105 = scmp.eq.s32.totalorder %s15, 1
    %p106 = por %p104, %p105
    %p108 = scmp.ne.s32.totalorder %s91, %s107
    %p109 = scmp.eq.s32.totalorder %s15, 0
    %p110 = por %p108, %p109
    %p111 = scmp.le.s32.totalorder 1, %s9
    %p112 = scmp.lt.s32.totalorder %s9, 3
    %p113 = pnand %p111, %p112
    %p114 = pneg %p113
    // Predicated region
    $region9: #{forward.21} parent=5 // pred_check
      _
    $region10: #{forward.21} parent=5 // pred_check_branch
      %116 = sbr.rel (%p113) target = $region12
    $region11: #{forward.21} parent=5 // pred_region
      %s117 = ssub.s32 %s9, 1
      // Predicated region
      $region13: #{forward.21} parent=11 // pred_check
        %p118 = pneg %p56
      $region14: #{forward.21} parent=11 // pred_check_branch
        %120 = sbr.rel (%p118) target = $region16
      $region15: #{forward.21} parent=11 // pred_region
        _
      $region16: #{forward.21} parent=11 // pred_fallthru
        _
      // Predicated region
      $region17: #{forward.21} parent=11 // pred_check
        %p121 = pneg %p77
      $region18: #{forward.21} parent=11 // pred_check_branch
        %123 = sbr.rel (%p121) target = $region20
      $region19: #{forward.21} parent=11 // pred_region
        _
      $region20: #{forward.21} parent=11 // pred_fallthru
        _
    $region12: #{forward.21} parent=5 // pred_fallthru
      _
    %p124 = scmp.lt.s32.totalorder %s9, 2
    // Predicated region
    $region21: #{forward.21} parent=5 // pred_check
      %p125 = pneg %p124
    $region22: #{forward.21} parent=5 // pred_check_branch
      %127 = sbr.rel (%p125) target = $region24
    $region23: #{forward.21} parent=5 // pred_region
      // Predicated region
      $region25: #{forward.21} parent=23 // pred_check
        %p128 = pneg %p29
      $region26: #{forward.21} parent=23 // pred_check_branch
        %130 = sbr.rel (%p128) target = $region28
      $region27: #{forward.21} parent=23 // pred_region
        %p131 = scmp.lt.s32.totalorder %s9, 1
        %s132 = scalar_select %p131, %s9, 1
        %s133 = smul.addr %s132, 8
        %s134 = smul.addr %s133, 8
        %s135 = scalar_lea.vmem %s0, %s134
      $region28: #{forward.21} parent=23 // pred_fallthru
        _
    $region24: #{forward.21} parent=5 // pred_fallthru
      _
    %p136 = scmp.le.s32.totalorder 1, %s9
    %p137 = scmp.lt.s32.totalorder %s9, 3
    %p138 = pnand %p136, %p137
    %p139 = pneg %p138
    // Predicated region
    $region29: #{forward.21} parent=5 // pred_check
      _
    $region30: #{forward.21} parent=5 // pred_check_branch
      %141 = sbr.rel (%p138) target = $region32
    $region31: #{forward.21} parent=5 // pred_region
      %s142 = ssub.s32 %s9, 1
      %p143 = scmp.lt.s32.totalorder %s14, 1
      %s144 = scalar_select %p143, %s14, 1
      %s145 = smul.addr %s144, 8
      %s146 = smul.addr %s145, 8
      %s147 = scalar_lea.vmem %s0, %s146
      %p148 = pneg %p35
      %p149 = pneg %p32
      %p150 = pneg %p56
      %p151 = pneg %p53
      %p152 = pneg %p77
      %p153 = pneg %p74
      %p154 = pneg %p103
      %p155 = pneg %p100
      %p156 = scmp.lt.s32.totalorder %s14, 1
      %s157 = scalar_select %p156, %s14, 1
      %s158 = smul.addr %s157, 8
      %s159 = smul.addr %s158, 8
      %s160 = scalar_lea.vmem %s3, %s159
      %p161 = scmp.lt.s32.totalorder %s14, 1
      %s162 = scalar_select %p161, %s14, 1
      %s163 = smul.addr %s162, 8
      %s164 = smul.addr %s163, 8
      %s165 = scalar_lea.vmem %s0, %s164
      %p166 = scmp.lt.s32.totalorder %s14, 1
      %s167 = scalar_select %p166, %s14, 1
      %s168 = smul.addr %s167, 8
      %s169 = smul.addr %s168, 8
      %s170 = scalar_lea.vmem %s3, %s169
      %v171 = vld [vmem:[%s165] sm:$0xff]
      %v172 = vld [vmem:[%s165 + $0x8] sm:$0xff]
      %v173 = vld [vmem:[%s165 + $0x10] sm:$0xff]
      %v174 = vld [vmem:[%s165 + $0x18] sm:$0xff]
      %v175 = vld [vmem:[%s165 + $0x20] sm:$0xff]
      %v176 = vld [vmem:[%s165 + $0x28] sm:$0xff]
      %v177 = vld [vmem:[%s165 + $0x30] sm:$0xff]
      %v178 = vld [vmem:[%s165 + $0x38] sm:$0xff]
      %vm179 = vcmask 48128
      %180 = vst.msk [vmem:[#allocation2] sm:$0xff] %vm179, 0.0
      %181 = vst.msk [vmem:[#allocation2 + $0x8] sm:$0xff] %vm179, 0.0
      %vm182 = vcmask 41984
      %183 = vst.msk [vmem:[#allocation2 + $0x10] sm:$0x3] %vm182, 0.0
      %184 = vst.msk [vmem:[#allocation2 + $0x18] sm:$0xff] %vm179, 0.0
      %185 = vst.msk [vmem:[#allocation2 + $0x20] sm:$0xff] %vm179, 0.0
      %186 = vst.msk [vmem:[#allocation2 + $0x28] sm:$0x3] %vm182, 0.0
      %187 = vst.msk [vmem:[#allocation2 + $0x30] sm:$0xff] %vm179, 0.0
      %188 = vst.msk [vmem:[#allocation2 + $0x38] sm:$0xff] %vm179, 0.0
      %189 = vst.msk [vmem:[#allocation2 + $0x40] sm:$0x3] %vm182, 0.0
      %190 = vst.msk [vmem:[#allocation2 + $0x48] sm:$0xff] %vm179, 0.0
      %191 = vst.msk [vmem:[#allocation2 + $0x50] sm:$0xff] %vm179, 0.0
      %192 = vst.msk [vmem:[#allocation2 + $0x58] sm:$0x3] %vm182, 0.0
      %193 = vst.msk [vmem:[#allocation2 + $0x60] sm:$0xff] %vm179, 0.0
      %194 = vst.msk [vmem:[#allocation2 + $0x68] sm:$0xff] %vm179, 0.0
      %195 = vst.msk [vmem:[#allocation2 + $0x70] sm:$0x3] %vm182, 0.0
      %196 = vst.msk [vmem:[#allocation2 + $0x78] sm:$0xff] %vm179, 0.0
      %197 = vst.msk [vmem:[#allocation2 + $0x80] sm:$0xff] %vm179, 0.0
      %198 = vst.msk [vmem:[#allocation2 + $0x88] sm:$0x3] %vm182, 0.0
      %199 = vst.msk [vmem:[#allocation2 + $0x90] sm:$0xff] %vm179, 0.0
      %200 = vst.msk [vmem:[#allocation2 + $0x98] sm:$0xff] %vm179, 0.0
      %201 = vst.msk [vmem:[#allocation2 + $0xa0] sm:$0x3] %vm182, 0.0
      %202 = vst.msk [vmem:[#allocation2 + $0xa8] sm:$0xff] %vm179, 0.0
      %203 = vst.msk [vmem:[#allocation2 + $0xb0] sm:$0xff] %vm179, 0.0
      %204 = vst.msk [vmem:[#allocation2 + $0xb8] sm:$0x3] %vm182, 0.0
      %205 = vst.msk [vmem:[#allocation2 + $0xc0] sm:$0xff] %vm179, 0.0
      %206 = vst.msk [vmem:[#allocation2 + $0xc8] sm:$0xff] %vm179, 0.0
      %207 = vst.msk [vmem:[#allocation2 + $0xd0] sm:$0x3] %vm182, 0.0
      %208 = vst.msk [vmem:[#allocation2 + $0xd8] sm:$0xff] %vm179, 0.0
      %209 = vst.msk [vmem:[#allocation2 + $0xe0] sm:$0xff] %vm179, 0.0
      %210 = vst.msk [vmem:[#allocation2 + $0xe8] sm:$0x3] %vm182, 0.0
      %211 = vst.msk [vmem:[#allocation2 + $0xf0] sm:$0xff] %vm179, 0.0
      %212 = vst.msk [vmem:[#allocation2 + $0xf8] sm:$0xff] %vm179, 0.0
      %213 = vst.msk [vmem:[#allocation2 + $0x100] sm:$0x3] %vm182, 0.0
      %214 = vst.msk [vmem:[#allocation2 + $0x108] sm:$0xff] %vm179, 0.0
      %215 = vst.msk [vmem:[#allocation2 + $0x110] sm:$0xff] %vm179, 0.0
      %216 = vst.msk [vmem:[#allocation2 + $0x118] sm:$0x3] %vm182, 0.0
      %217 = vst.msk [vmem:[#allocation2 + $0x120] sm:$0xff] %vm179, 0.0
      %218 = vst.msk [vmem:[#allocation2 + $0x128] sm:$0xff] %vm179, 0.0
      %219 = vst.msk [vmem:[#allocation2 + $0x130] sm:$0x3] %vm182, 0.0
      %220 = vst.msk [vmem:[#allocation2 + $0x138] sm:$0xff] %vm179, 0.0
      %221 = vst.msk [vmem:[#allocation2 + $0x140] sm:$0xff] %vm179, 0.0
      %222 = vst.msk [vmem:[#allocation2 + $0x148] sm:$0x3] %vm182, 0.0
      %223 = vst.msk [vmem:[#allocation2 + $0x150] sm:$0xff] %vm179, 0.0
      %224 = vst.msk [vmem:[#allocation2 + $0x158] sm:$0xff] %vm179, 0.0
      %225 = vst.msk [vmem:[#allocation2 + $0x160] sm:$0x3] %vm182, 0.0
      %226 = vst.msk [vmem:[#allocation2 + $0x168] sm:$0xff] %vm179, 0.0
      %227 = vst.msk [vmem:[#allocation2 + $0x170] sm:$0xff] %vm179, 0.0
      %228 = vst.msk [vmem:[#allocation2 + $0x178] sm:$0x3] %vm182, 0.0
      %229 = vst.msk [vmem:[#allocation2 + $0x180] sm:$0xff] %vm179, 0.0
      %230 = vst.msk [vmem:[#allocation2 + $0x188] sm:$0xff] %vm179, 0.0
      %231 = vst.msk [vmem:[#allocation2 + $0x190] sm:$0x3] %vm182, 0.0
      %232 = vst.msk [vmem:[#allocation2 + $0x198] sm:$0xff] %vm179, 0.0
      %233 = vst.msk [vmem:[#allocation2 + $0x1a0] sm:$0xff] %vm179, 0.0
      %234 = vst.msk [vmem:[#allocation2 + $0x1a8] sm:$0x3] %vm182, 0.0
      %243 = vrot.lane.b32.xlu0 %v171, 118
      %v244 = vpop.permute.xlu0 %243
      %245 = vrot.lane.b32.xlu0 %v172, 118
      %v246 = vpop.permute.xlu0 %245
      %247 = vrot.lane.b32.xlu0 %v173, 118
      %v248 = vpop.permute.xlu0 %247
      %249 = vrot.lane.b32.xlu0 %v174, 118
      %v250 = vpop.permute.xlu0 %249
      %251 = vrot.lane.b32.xlu0 %v175, 118
      %v252 = vpop.permute.xlu0 %251
      %253 = vrot.lane.b32.xlu0 %v176, 118
      %v254 = vpop.permute.xlu0 %253
      %255 = vrot.lane.b32.xlu0 %v177, 118
      %v256 = vpop.permute.xlu0 %255
      %257 = vrot.lane.b32.xlu0 %v178, 118
      %v258 = vpop.permute.xlu0 %257
      %s267 = scalar_lea.vmem [#allocation2], 120
      %268 = vst.msk [vmem:[%s267 + $0x5] sm:$0xff] %vm179, %v244
      %269 = vst.msk [vmem:[%s267 + $0x1d] sm:$0xff] %vm179, %v246
      %270 = vst.msk [vmem:[%s267 + $0x35] sm:$0xff] %vm179, %v248
      %271 = vst.msk [vmem:[%s267 + $0x4d] sm:$0xff] %vm179, %v250
      %272 = vst.msk [vmem:[%s267 + $0x65] sm:$0xff] %vm179, %v252
      %273 = vst.msk [vmem:[%s267 + $0x7d] sm:$0xff] %vm179, %v254
      %274 = vst.msk [vmem:[%s267 + $0x95] sm:$0xff] %vm179, %v256
      %275 = vst.msk [vmem:[%s267 + $0xad] sm:$0xff] %vm179, %v258
      %v276 = vld [vmem:[%s1] sm:$0xff]
      %v277 = vld [vmem:[%s1 + $0x8] sm:$0xff]
      %v278 = vld [vmem:[%s1 + $0x10] sm:$0xff]
      %v279 = vld [vmem:[%s1 + $0x18] sm:$0x1]
      %v280 = vld [vmem:[%s2] sm:$0x1]
      %s281 = scalar_lea.vmem [#allocation2], 96
      %v282 = vld [vmem:[%s281 + $0x4] sm:$0xff]
      %v283 = vld [vmem:[%s281 + $0x1c] sm:$0xff]
      %v284 = vld [vmem:[%s281 + $0x34] sm:$0xff]
      %v285 = vld [vmem:[%s281 + $0x4c] sm:$0xff]
      %v286 = vld [vmem:[%s281 + $0x64] sm:$0xff]
      %v287 = vld [vmem:[%s281 + $0x7c] sm:$0xff]
      %v288 = vld [vmem:[%s281 + $0x94] sm:$0xff]
      %v289 = vld [vmem:[%s281 + $0xac] sm:$0xff]
      %v290 = vlaneseq
      %v291 = vshrl.u32 %v290, 7
      %v292 = vsub.s32 0, %v291
      %v293 = vrot.slane %v276, %v292
      %v294 = vmul.f32 %v282, %v293
      %v295 = vmul.f32 %v283, %v293
      %v296 = vmul.f32 %v284, %v293
      %v297 = vmul.f32 %v285, %v293
      %v298 = vmul.f32 %v286, %v293
      %v299 = vmul.f32 %v287, %v293
      %v300 = vmul.f32 %v288, %v293
      %v301 = vmul.f32 %v289, %v293
      %v303 = vlaneseq
      %v304 = vshrl.u32 %v303, 7
      %v305 = vsub.s32 0, %v304
      %v306 = vrot.slane %v280, %v305
      %v308 = vadd.f32 %v306, %v294
      %v309 = vadd.f32 %v306, %v295
      %v310 = vadd.f32 %v306, %v296
      %v311 = vadd.f32 %v306, %v297
      %v312 = vadd.f32 %v306, %v298
      %v313 = vadd.f32 %v306, %v299
      %v314 = vadd.f32 %v306, %v300
      %v315 = vadd.f32 %v306, %v301
      %v316 = vld [vmem:[%s281 + $0x5] sm:$0xff]
      %v317 = vld [vmem:[%s281 + $0x1d] sm:$0xff]
      %v318 = vld [vmem:[%s281 + $0x35] sm:$0xff]
      %v319 = vld [vmem:[%s281 + $0x4d] sm:$0xff]
      %v320 = vld [vmem:[%s281 + $0x65] sm:$0xff]
      %v321 = vld [vmem:[%s281 + $0x7d] sm:$0xff]
      %v322 = vld [vmem:[%s281 + $0x95] sm:$0xff]
      %v323 = vld [vmem:[%s281 + $0xad] sm:$0xff]
      %v324 = vlaneseq
      %v325 = vshrl.u32 %v324, 7
      %v326 = vsub.s32 1, %v325
      %v327 = vrot.slane %v276, %v326
      %v328 = vmul.f32 %v316, %v327
      %v329 = vmul.f32 %v317, %v327
      %v330 = vmul.f32 %v318, %v327
      %v331 = vmul.f32 %v319, %v327
      %v332 = vmul.f32 %v320, %v327
      %v333 = vmul.f32 %v321, %v327
      %v334 = vmul.f32 %v322, %v327
      %v335 = vmul.f32 %v323, %v327
      %v336 = vadd.f32 %v308, %v328
      %v337 = vadd.f32 %v309, %v329
      %v338 = vadd.f32 %v310, %v330
      %v339 = vadd.f32 %v311, %v331
      %v340 = vadd.f32 %v312, %v332
      %v341 = vadd.f32 %v313, %v333
      %v342 = vadd.f32 %v314, %v334
      %v343 = vadd.f32 %v315, %v335
      %v344 = vld [vmem:[%s281 + $0x6] sm:$0xff]
      %v345 = vld [vmem:[%s281 + $0x1e] sm:$0xff]
      %v346 = vld [vmem:[%s281 + $0x36] sm:$0xff]
      %v347 = vld [vmem:[%s281 + $0x4e] sm:$0xff]
      %v348 = vld [vmem:[%s281 + $0x66] sm:$0xff]
      %v349 = vld [vmem:[%s281 + $0x7e] sm:$0xff]
      %v350 = vld [vmem:[%s281 + $0x96] sm:$0xff]
      %v351 = vld [vmem:[%s281 + $0xae] sm:$0xff]
      %v352 = vlaneseq
      %v353 = vshrl.u32 %v352, 7
      %v354 = vsub.s32 2, %v353
      %v355 = vrot.slane %v276, %v354
      %v356 = vmul.f32 %v344, %v355
      %v357 = vmul.f32 %v345, %v355
      %v358 = vmul.f32 %v346, %v355
      %v359 = vmul.f32 %v347, %v355
      %v360 = vmul.f32 %v348, %v355
      %v361 = vmul.f32 %v349, %v355
      %v362 = vmul.f32 %v350, %v355
      %v363 = vmul.f32 %v351, %v355
      %v364 = vadd.f32 %v336, %v356
      %v365 = vadd.f32 %v337, %v357
      %v366 = vadd.f32 %v338, %v358
      %v367 = vadd.f32 %v339, %v359
      %v368 = vadd.f32 %v340, %v360
      %v369 = vadd.f32 %v341, %v361
      %v370 = vadd.f32 %v342, %v362
      %v371 = vadd.f32 %v343, %v363
      %v372 = vld [vmem:[%s267 + $0x4] sm:$0xff]
      %v373 = vld [vmem:[%s267 + $0x1c] sm:$0xff]
      %v374 = vld [vmem:[%s267 + $0x34] sm:$0xff]
      %v375 = vld [vmem:[%s267 + $0x4c] sm:$0xff]
      %v376 = vld [vmem:[%s267 + $0x64] sm:$0xff]
      %v377 = vld [vmem:[%s267 + $0x7c] sm:$0xff]
      %v378 = vld [vmem:[%s267 + $0x94] sm:$0xff]
      %v379 = vld [vmem:[%s267 + $0xac] sm:$0xff]
      %v380 = vlaneseq
      %v381 = vshrl.u32 %v380, 7
      %v382 = vsub.s32 3, %v381
      %v383 = vrot.slane %v276, %v382
      %v384 = vmul.f32 %v372, %v383
      %v385 = vmul.f32 %v373, %v383
      %v386 = vmul.f32 %v374, %v383
      %v387 = vmul.f32 %v375, %v383
      %v388 = vmul.f32 %v376, %v383
      %v389 = vmul.f32 %v377, %v383
      %v390 = vmul.f32 %v378, %v383
      %v391 = vmul.f32 %v379, %v383
      %v392 = vadd.f32 %v364, %v384
      %v393 = vadd.f32 %v365, %v385
      %v394 = vadd.f32 %v366, %v386
      %v395 = vadd.f32 %v367, %v387
      %v396 = vadd.f32 %v368, %v388
      %v397 = vadd.f32 %v369, %v389
      %v398 = vadd.f32 %v370, %v390
      %v399 = vadd.f32 %v371, %v391
      %v400 = vld [vmem:[%s267 + $0x5] sm:$0xff]
      %v401 = vld [vmem:[%s267 + $0x1d] sm:$0xff]
      %v402 = vld [vmem:[%s267 + $0x35] sm:$0xff]
      %v403 = vld [vmem:[%s267 + $0x4d] sm:$0xff]
      %v404 = vld [vmem:[%s267 + $0x65] sm:$0xff]
      %v405 = vld [vmem:[%s267 + $0x7d] sm:$0xff]
      %v406 = vld [vmem:[%s267 + $0x95] sm:$0xff]
      %v407 = vld [vmem:[%s267 + $0xad] sm:$0xff]
      %v408 = vlaneseq
      %v409 = vshrl.u32 %v408, 7
      %v410 = vsub.s32 4, %v409
      %v411 = vrot.slane %v276, %v410
      %v412 = vmul.f32 %v400, %v411
      %v413 = vmul.f32 %v401, %v411
      %v414 = vmul.f32 %v402, %v411
      %v415 = vmul.f32 %v403, %v411
      %v416 = vmul.f32 %v404, %v411
      %v417 = vmul.f32 %v405, %v411
      %v418 = vmul.f32 %v406, %v411
      %v419 = vmul.f32 %v407, %v411
      %v420 = vadd.f32 %v392, %v412
      %v421 = vadd.f32 %v393, %v413
      %v422 = vadd.f32 %v394, %v414
      %v423 = vadd.f32 %v395, %v415
      %v424 = vadd.f32 %v396, %v416
      %v425 = vadd.f32 %v397, %v417
      %v426 = vadd.f32 %v398, %v418
      %v427 = vadd.f32 %v399, %v419
      %v428 = vld [vmem:[%s267 + $0x6] sm:$0xff]
      %v429 = vld [vmem:[%s267 + $0x1e] sm:$0xff]
      %v430 = vld [vmem:[%s267 + $0x36] sm:$0xff]
      %v431 = vld [vmem:[%s267 + $0x4e] sm:$0xff]
      %v432 = vld [vmem:[%s267 + $0x66] sm:$0xff]
      %v433 = vld [vmem:[%s267 + $0x7e] sm:$0xff]
      %v434 = vld [vmem:[%s267 + $0x96] sm:$0xff]
      %v435 = vld [vmem:[%s267 + $0xae] sm:$0xff]
      %v436 = vlaneseq
      %v437 = vshrl.u32 %v436, 7
      %v438 = vsub.s32 5, %v437
      %v439 = vrot.slane %v276, %v438
      %v440 = vmul.f32 %v428, %v439
      %v441 = vmul.f32 %v429, %v439
      %v442 = vmul.f32 %v430, %v439
      %v443 = vmul.f32 %v431, %v439
      %v444 = vmul.f32 %v432, %v439
      %v445 = vmul.f32 %v433, %v439
      %v446 = vmul.f32 %v434, %v439
      %v447 = vmul.f32 %v435, %v439
      %v448 = vadd.f32 %v420, %v440
      %v449 = vadd.f32 %v421, %v441
      %v450 = vadd.f32 %v422, %v442
      %v451 = vadd.f32 %v423, %v443
      %v452 = vadd.f32 %v424, %v444
      %v453 = vadd.f32 %v425, %v445
      %v454 = vadd.f32 %v426, %v446
      %v455 = vadd.f32 %v427, %v447
      %s456 = scalar_lea.vmem [#allocation2], 144
      %v457 = vld [vmem:[%s456 + $0x4] sm:$0xff]
      %v458 = vld [vmem:[%s456 + $0x1c] sm:$0xff]
      %v459 = vld [vmem:[%s456 + $0x34] sm:$0xff]
      %v460 = vld [vmem:[%s456 + $0x4c] sm:$0xff]
      %v461 = vld [vmem:[%s456 + $0x64] sm:$0xff]
      %v462 = vld [vmem:[%s456 + $0x7c] sm:$0xff]
      %v463 = vld [vmem:[%s456 + $0x94] sm:$0xff]
      %v464 = vld [vmem:[%s456 + $0xac] sm:$0xff]
      %v465 = vlaneseq
      %v466 = vshrl.u32 %v465, 7
      %v467 = vsub.s32 6, %v466
      %v468 = vrot.slane %v276, %v467
      %v469 = vmul.f32 %v457, %v468
      %v470 = vmul.f32 %v458, %v468
      %v471 = vmul.f32 %v459, %v468
      %v472 = vmul.f32 %v460, %v468
      %v473 = vmul.f32 %v461, %v468
      %v474 = vmul.f32 %v462, %v468
      %v475 = vmul.f32 %v463, %v468
      %v476 = vmul.f32 %v464, %v468
      %v477 = vadd.f32 %v448, %v469
      %v478 = vadd.f32 %v449, %v470
      %v479 = vadd.f32 %v450, %v471
      %v480 = vadd.f32 %v451, %v472
      %v481 = vadd.f32 %v452, %v473
      %v482 = vadd.f32 %v453, %v474
      %v483 = vadd.f32 %v454, %v475
      %v484 = vadd.f32 %v455, %v476
      %v485 = vld [vmem:[%s456 + $0x5] sm:$0xff]
      %v486 = vld [vmem:[%s456 + $0x1d] sm:$0xff]
      %v487 = vld [vmem:[%s456 + $0x35] sm:$0xff]
      %v488 = vld [vmem:[%s456 + $0x4d] sm:$0xff]
      %v489 = vld [vmem:[%s456 + $0x65] sm:$0xff]
      %v490 = vld [vmem:[%s456 + $0x7d] sm:$0xff]
      %v491 = vld [vmem:[%s456 + $0x95] sm:$0xff]
      %v492 = vld [vmem:[%s456 + $0xad] sm:$0xff]
      %v493 = vlaneseq
      %v494 = vshrl.u32 %v493, 7
      %v495 = vsub.s32 7, %v494
      %v496 = vrot.slane %v276, %v495
      %v497 = vmul.f32 %v485, %v496
      %v498 = vmul.f32 %v486, %v496
      %v499 = vmul.f32 %v487, %v496
      %v500 = vmul.f32 %v488, %v496
      %v501 = vmul.f32 %v489, %v496
      %v502 = vmul.f32 %v490, %v496
      %v503 = vmul.f32 %v491, %v496
      %v504 = vmul.f32 %v492, %v496
      %v505 = vadd.f32 %v477, %v497
      %v506 = vadd.f32 %v478, %v498
      %v507 = vadd.f32 %v479, %v499
      %v508 = vadd.f32 %v480, %v500
      %v509 = vadd.f32 %v481, %v501
      %v510 = vadd.f32 %v482, %v502
      %v511 = vadd.f32 %v483, %v503
      %v512 = vadd.f32 %v484, %v504
      %v513 = vld [vmem:[%s456 + $0x6] sm:$0xff]
      %v514 = vld [vmem:[%s456 + $0x1e] sm:$0xff]
      %v515 = vld [vmem:[%s456 + $0x36] sm:$0xff]
      %v516 = vld [vmem:[%s456 + $0x4e] sm:$0xff]
      %v517 = vld [vmem:[%s456 + $0x66] sm:$0xff]
      %v518 = vld [vmem:[%s456 + $0x7e] sm:$0xff]
      %v519 = vld [vmem:[%s456 + $0x96] sm:$0xff]
      %v520 = vld [vmem:[%s456 + $0xae] sm:$0xff]
      %v521 = vlaneseq
      %v522 = vshrl.u32 %v521, 7
      %v523 = vsub.s32 0, %v522
      %v524 = vrot.slane %v277, %v523
      %v525 = vmul.f32 %v513, %v524
      %v526 = vmul.f32 %v514, %v524
      %v527 = vmul.f32 %v515, %v524
      %v528 = vmul.f32 %v516, %v524
      %v529 = vmul.f32 %v517, %v524
      %v530 = vmul.f32 %v518, %v524
      %v531 = vmul.f32 %v519, %v524
      %v532 = vmul.f32 %v520, %v524
      %v533 = vadd.f32 %v505, %v525
      %v534 = vadd.f32 %v506, %v526
      %v535 = vadd.f32 %v507, %v527
      %v536 = vadd.f32 %v508, %v528
      %v537 = vadd.f32 %v509, %v529
      %v538 = vadd.f32 %v510, %v530
      %v539 = vadd.f32 %v511, %v531
      %v540 = vadd.f32 %v512, %v532
      %v541 = vld [vmem:[%s267] sm:$0xff]
      %v542 = vld [vmem:[%s267 + $0x18] sm:$0xff]
      %v543 = vld [vmem:[%s267 + $0x30] sm:$0xff]
      %v544 = vld [vmem:[%s267 + $0x48] sm:$0xff]
      %v545 = vld [vmem:[%s267 + $0x60] sm:$0xff]
      %v546 = vld [vmem:[%s267 + $0x78] sm:$0xff]
      %v547 = vld [vmem:[%s267 + $0x90] sm:$0xff]
      %v548 = vld [vmem:[%s267 + $0xa8] sm:$0xff]
      %v549 = vlaneseq
      %v550 = vshrl.u32 %v549, 7
      %v551 = vsub.s32 1, %v550
      %v552 = vrot.slane %v277, %v551
      %v553 = vmul.f32 %v541, %v552
      %v554 = vmul.f32 %v542, %v552
      %v555 = vmul.f32 %v543, %v552
      %v556 = vmul.f32 %v544, %v552
      %v557 = vmul.f32 %v545, %v552
      %v558 = vmul.f32 %v546, %v552
      %v559 = vmul.f32 %v547, %v552
      %v560 = vmul.f32 %v548, %v552
      %v561 = vadd.f32 %v533, %v553
      %v562 = vadd.f32 %v534, %v554
      %v563 = vadd.f32 %v535, %v555
      %v564 = vadd.f32 %v536, %v556
      %v565 = vadd.f32 %v537, %v557
      %v566 = vadd.f32 %v538, %v558
      %v567 = vadd.f32 %v539, %v559
      %v568 = vadd.f32 %v540, %v560
      %v569 = vld [vmem:[%s267 + $0x1] sm:$0xff]
      %v570 = vld [vmem:[%s267 + $0x19] sm:$0xff]
      %v571 = vld [vmem:[%s267 + $0x31] sm:$0xff]
      %v572 = vld [vmem:[%s267 + $0x49] sm:$0xff]
      %v573 = vld [vmem:[%s267 + $0x61] sm:$0xff]
      %v574 = vld [vmem:[%s267 + $0x79] sm:$0xff]
      %v575 = vld [vmem:[%s267 + $0x91] sm:$0xff]
      %v576 = vld [vmem:[%s267 + $0xa9] sm:$0xff]
      %v577 = vlaneseq
      %v578 = vshrl.u32 %v577, 7
      %v579 = vsub.s32 2, %v578
      %v580 = vrot.slane %v277, %v579
      %v581 = vmul.f32 %v569, %v580
      %v582 = vmul.f32 %v570, %v580
      %v583 = vmul.f32 %v571, %v580
      %v584 = vmul.f32 %v572, %v580
      %v585 = vmul.f32 %v573, %v580
      %v586 = vmul.f32 %v574, %v580
      %v587 = vmul.f32 %v575, %v580
      %v588 = vmul.f32 %v576, %v580
      %v589 = vadd.f32 %v561, %v581
      %v590 = vadd.f32 %v562, %v582
      %v591 = vadd.f32 %v563, %v583
      %v592 = vadd.f32 %v564, %v584
      %v593 = vadd.f32 %v565, %v585
      %v594 = vadd.f32 %v566, %v586
      %v595 = vadd.f32 %v567, %v587
      %v596 = vadd.f32 %v568, %v588
      %v597 = vld [vmem:[%s267 + $0x2] sm:$0xff]
      %v598 = vld [vmem:[%s267 + $0x1a] sm:$0xff]
      %v599 = vld [vmem:[%s267 + $0x32] sm:$0xff]
      %v600 = vld [vmem:[%s267 + $0x4a] sm:$0xff]
      %v601 = vld [vmem:[%s267 + $0x62] sm:$0xff]
      %v602 = vld [vmem:[%s267 + $0x7a] sm:$0xff]
      %v603 = vld [vmem:[%s267 + $0x92] sm:$0xff]
      %v604 = vld [vmem:[%s267 + $0xaa] sm:$0xff]
      %v605 = vlaneseq
      %v606 = vshrl.u32 %v605, 7
      %v607 = vsub.s32 3, %v606
      %v608 = vrot.slane %v277, %v607
      %v609 = vmul.f32 %v597, %v608
      %v610 = vmul.f32 %v598, %v608
      %v611 = vmul.f32 %v599, %v608
      %v612 = vmul.f32 %v600, %v608
      %v613 = vmul.f32 %v601, %v608
      %v614 = vmul.f32 %v602, %v608
      %v615 = vmul.f32 %v603, %v608
      %v616 = vmul.f32 %v604, %v608
      %v617 = vadd.f32 %v589, %v609
      %v618 = vadd.f32 %v590, %v610
      %v619 = vadd.f32 %v591, %v611
      %v620 = vadd.f32 %v592, %v612
      %v621 = vadd.f32 %v593, %v613
      %v622 = vadd.f32 %v594, %v614
      %v623 = vadd.f32 %v595, %v615
      %v624 = vadd.f32 %v596, %v616
      %v625 = vld [vmem:[%s267 + $0x3] sm:$0xff]
      %v626 = vld [vmem:[%s267 + $0x1b] sm:$0xff]
      %v627 = vld [vmem:[%s267 + $0x33] sm:$0xff]
      %v628 = vld [vmem:[%s267 + $0x4b] sm:$0xff]
      %v629 = vld [vmem:[%s267 + $0x63] sm:$0xff]
      %v630 = vld [vmem:[%s267 + $0x7b] sm:$0xff]
      %v631 = vld [vmem:[%s267 + $0x93] sm:$0xff]
      %v632 = vld [vmem:[%s267 + $0xab] sm:$0xff]
      %v633 = vlaneseq
      %v634 = vshrl.u32 %v633, 7
      %v635 = vsub.s32 4, %v634
      %v636 = vrot.slane %v277, %v635
      %v637 = vmul.f32 %v625, %v636
      %v638 = vmul.f32 %v626, %v636
      %v639 = vmul.f32 %v627, %v636
      %v640 = vmul.f32 %v628, %v636
      %v641 = vmul.f32 %v629, %v636
      %v642 = vmul.f32 %v630, %v636
      %v643 = vmul.f32 %v631, %v636
      %v644 = vmul.f32 %v632, %v636
      %v645 = vadd.f32 %v617, %v637
      %v646 = vadd.f32 %v618, %v638
      %v647 = vadd.f32 %v619, %v639
      %v648 = vadd.f32 %v620, %v640
      %v649 = vadd.f32 %v621, %v641
      %v650 = vadd.f32 %v622, %v642
      %v651 = vadd.f32 %v623, %v643
      %v652 = vadd.f32 %v624, %v644
      %v653 = vld [vmem:[%s267 + $0x7] sm:$0xff]
      %v654 = vld [vmem:[%s267 + $0x1f] sm:$0xff]
      %v655 = vld [vmem:[%s267 + $0x37] sm:$0xff]
      %v656 = vld [vmem:[%s267 + $0x4f] sm:$0xff]
      %v657 = vld [vmem:[%s267 + $0x67] sm:$0xff]
      %v658 = vld [vmem:[%s267 + $0x7f] sm:$0xff]
      %v659 = vld [vmem:[%s267 + $0x97] sm:$0xff]
      %v660 = vld [vmem:[%s267 + $0xaf] sm:$0xff]
      %v661 = vlaneseq
      %v662 = vshrl.u32 %v661, 7
      %v663 = vsub.s32 5, %v662
      %v664 = vrot.slane %v277, %v663
      %v665 = vmul.f32 %v653, %v664
      %v666 = vmul.f32 %v654, %v664
      %v667 = vmul.f32 %v655, %v664
      %v668 = vmul.f32 %v656, %v664
      %v669 = vmul.f32 %v657, %v664
      %v670 = vmul.f32 %v658, %v664
      %v671 = vmul.f32 %v659, %v664
      %v672 = vmul.f32 %v660, %v664
      %v673 = vadd.f32 %v645, %v665
      %v674 = vadd.f32 %v646, %v666
      %v675 = vadd.f32 %v647, %v667
      %v676 = vadd.f32 %v648, %v668
      %v677 = vadd.f32 %v649, %v669
      %v678 = vadd.f32 %v650, %v670
      %v679 = vadd.f32 %v651, %v671
      %v680 = vadd.f32 %v652, %v672
      %v681 = vld [vmem:[%s267 + $0x8] sm:$0xff]
      %v682 = vld [vmem:[%s267 + $0x20] sm:$0xff]
      %v683 = vld [vmem:[%s267 + $0x38] sm:$0xff]
      %v684 = vld [vmem:[%s267 + $0x50] sm:$0xff]
      %v685 = vld [vmem:[%s267 + $0x68] sm:$0xff]
      %v686 = vld [vmem:[%s267 + $0x80] sm:$0xff]
      %v687 = vld [vmem:[%s267 + $0x98] sm:$0xff]
      %v688 = vld [vmem:[%s267 + $0xb0] sm:$0xff]
      %v689 = vlaneseq
      %v690 = vshrl.u32 %v689, 7
      %v691 = vsub.s32 6, %v690
      %v692 = vrot.slane %v277, %v691
      %v693 = vmul.f32 %v681, %v692
      %v694 = vmul.f32 %v682, %v692
      %v695 = vmul.f32 %v683, %v692
      %v696 = vmul.f32 %v684, %v692
      %v697 = vmul.f32 %v685, %v692
      %v698 = vmul.f32 %v686, %v692
      %v699 = vmul.f32 %v687, %v692
      %v700 = vmul.f32 %v688, %v692
      %v701 = vadd.f32 %v673, %v693
      %v702 = vadd.f32 %v674, %v694
      %v703 = vadd.f32 %v675, %v695
      %v704 = vadd.f32 %v676, %v696
      %v705 = vadd.f32 %v677, %v697
      %v706 = vadd.f32 %v678, %v698
      %v707 = vadd.f32 %v679, %v699
      %v708 = vadd.f32 %v680, %v700
      %v709 = vld [vmem:[%s267 + $0x9] sm:$0xff]
      %v710 = vld [vmem:[%s267 + $0x21] sm:$0xff]
      %v711 = vld [vmem:[%s267 + $0x39] sm:$0xff]
      %v712 = vld [vmem:[%s267 + $0x51] sm:$0xff]
      %v713 = vld [vmem:[%s267 + $0x69] sm:$0xff]
      %v714 = vld [vmem:[%s267 + $0x81] sm:$0xff]
      %v715 = vld [vmem:[%s267 + $0x99] sm:$0xff]
      %v716 = vld [vmem:[%s267 + $0xb1] sm:$0xff]
      %v717 = vlaneseq
      %v718 = vshrl.u32 %v717, 7
      %v719 = vsub.s32 7, %v718
      %v720 = vrot.slane %v277, %v719
      %v721 = vmul.f32 %v709, %v720
      %v722 = vmul.f32 %v710, %v720
      %v723 = vmul.f32 %v711, %v720
      %v724 = vmul.f32 %v712, %v720
      %v725 = vmul.f32 %v713, %v720
      %v726 = vmul.f32 %v714, %v720
      %v727 = vmul.f32 %v715, %v720
      %v728 = vmul.f32 %v716, %v720
      %v729 = vadd.f32 %v701, %v721
      %v730 = vadd.f32 %v702, %v722
      %v731 = vadd.f32 %v703, %v723
      %v732 = vadd.f32 %v704, %v724
      %v733 = vadd.f32 %v705, %v725
      %v734 = vadd.f32 %v706, %v726
      %v735 = vadd.f32 %v707, %v727
      %v736 = vadd.f32 %v708, %v728
      %v737 = vld [vmem:[%s267 + $0xa] sm:$0xff]
      %v738 = vld [vmem:[%s267 + $0x22] sm:$0xff]
      %v739 = vld [vmem:[%s267 + $0x3a] sm:$0xff]
      %v740 = vld [vmem:[%s267 + $0x52] sm:$0xff]
      %v741 = vld [vmem:[%s267 + $0x6a] sm:$0xff]
      %v742 = vld [vmem:[%s267 + $0x82] sm:$0xff]
      %v743 = vld [vmem:[%s267 + $0x9a] sm:$0xff]
      %v744 = vld [vmem:[%s267 + $0xb2] sm:$0xff]
      %v745 = vlaneseq
      %v746 = vshrl.u32 %v745, 7
      %v747 = vsub.s32 0, %v746
      %v748 = vrot.slane %v278, %v747
      %v749 = vmul.f32 %v737, %v748
      %v750 = vmul.f32 %v738, %v748
      %v751 = vmul.f32 %v739, %v748
      %v752 = vmul.f32 %v740, %v748
      %v753 = vmul.f32 %v741, %v748
      %v754 = vmul.f32 %v742, %v748
      %v755 = vmul.f32 %v743, %v748
      %v756 = vmul.f32 %v744, %v748
      %v757 = vadd.f32 %v729, %v749
      %v758 = vadd.f32 %v730, %v750
      %v759 = vadd.f32 %v731, %v751
      %v760 = vadd.f32 %v732, %v752
      %v761 = vadd.f32 %v733, %v753
      %v762 = vadd.f32 %v734, %v754
      %v763 = vadd.f32 %v735, %v755
      %v764 = vadd.f32 %v736, %v756
      %v765 = vld [vmem:[#allocation2 + $0x5] sm:$0xff]
      %v766 = vld [vmem:[#allocation2 + $0x1d] sm:$0xff]
      %v767 = vld [vmem:[#allocation2 + $0x35] sm:$0xff]
      %v768 = vld [vmem:[#allocation2 + $0x4d] sm:$0xff]
      %v769 = vld [vmem:[#allocation2 + $0x65] sm:$0xff]
      %v770 = vld [vmem:[#allocation2 + $0x7d] sm:$0xff]
      %v771 = vld [vmem:[#allocation2 + $0x95] sm:$0xff]
      %v772 = vld [vmem:[#allocation2 + $0xad] sm:$0xff]
      %v773 = vlaneseq
      %v774 = vshrl.u32 %v773, 7
      %v775 = vsub.s32 1, %v774
      %v776 = vrot.slane %v278, %v775
      %v777 = vmul.f32 %v765, %v776
      %v778 = vmul.f32 %v766, %v776
      %v779 = vmul.f32 %v767, %v776
      %v780 = vmul.f32 %v768, %v776
      %v781 = vmul.f32 %v769, %v776
      %v782 = vmul.f32 %v770, %v776
      %v783 = vmul.f32 %v771, %v776
      %v784 = vmul.f32 %v772, %v776
      %v785 = vadd.f32 %v757, %v777
      %v786 = vadd.f32 %v758, %v778
      %v787 = vadd.f32 %v759, %v779
      %v788 = vadd.f32 %v760, %v780
      %v789 = vadd.f32 %v761, %v781
      %v790 = vadd.f32 %v762, %v782
      %v791 = vadd.f32 %v763, %v783
      %v792 = vadd.f32 %v764, %v784
      %s793 = scalar_lea.vmem [#allocation2], 24
      %v794 = vld [vmem:[%s793 + $0x5] sm:$0xff]
      %v795 = vld [vmem:[%s793 + $0x1d] sm:$0xff]
      %v796 = vld [vmem:[%s793 + $0x35] sm:$0xff]
      %v797 = vld [vmem:[%s793 + $0x4d] sm:$0xff]
      %v798 = vld [vmem:[%s793 + $0x65] sm:$0xff]
      %v799 = vld [vmem:[%s793 + $0x7d] sm:$0xff]
      %v800 = vld [vmem:[%s793 + $0x95] sm:$0xff]
      %v801 = vld [vmem:[%s793 + $0xad] sm:$0xff]
      %v802 = vlaneseq
      %v803 = vshrl.u32 %v802, 7
      %v804 = vsub.s32 2, %v803
      %v805 = vrot.slane %v278, %v804
      %v806 = vmul.f32 %v794, %v805
      %v807 = vmul.f32 %v795, %v805
      %v808 = vmul.f32 %v796, %v805
      %v809 = vmul.f32 %v797, %v805
      %v810 = vmul.f32 %v798, %v805
      %v811 = vmul.f32 %v799, %v805
      %v812 = vmul.f32 %v800, %v805
      %v813 = vmul.f32 %v801, %v805
      %v814 = vadd.f32 %v785, %v806
      %v815 = vadd.f32 %v786, %v807
      %v816 = vadd.f32 %v787, %v808
      %v817 = vadd.f32 %v788, %v809
      %v818 = vadd.f32 %v789, %v810
      %v819 = vadd.f32 %v790, %v811
      %v820 = vadd.f32 %v791, %v812
      %v821 = vadd.f32 %v792, %v813
      %s822 = scalar_lea.vmem [#allocation2], 48
      %v823 = vld [vmem:[%s822 + $0x5] sm:$0xff]
      %v824 = vld [vmem:[%s822 + $0x1d] sm:$0xff]
      %v825 = vld [vmem:[%s822 + $0x35] sm:$0xff]
      %v826 = vld [vmem:[%s822 + $0x4d] sm:$0xff]
      %v827 = vld [vmem:[%s822 + $0x65] sm:$0xff]
      %v828 = vld [vmem:[%s822 + $0x7d] sm:$0xff]
      %v829 = vld [vmem:[%s822 + $0x95] sm:$0xff]
      %v830 = vld [vmem:[%s822 + $0xad] sm:$0xff]
      %v831 = vlaneseq
      %v832 = vshrl.u32 %v831, 7
      %v833 = vsub.s32 3, %v832
      %v834 = vrot.slane %v278, %v833
      %v835 = vmul.f32 %v823, %v834
      %v836 = vmul.f32 %v824, %v834
      %v837 = vmul.f32 %v825, %v834
      %v838 = vmul.f32 %v826, %v834
      %v839 = vmul.f32 %v827, %v834
      %v840 = vmul.f32 %v828, %v834
      %v841 = vmul.f32 %v829, %v834
      %v842 = vmul.f32 %v830, %v834
      %v843 = vadd.f32 %v814, %v835
      %v844 = vadd.f32 %v815, %v836
      %v845 = vadd.f32 %v816, %v837
      %v846 = vadd.f32 %v817, %v838
      %v847 = vadd.f32 %v818, %v839
      %v848 = vadd.f32 %v819, %v840
      %v849 = vadd.f32 %v820, %v841
      %v850 = vadd.f32 %v821, %v842
      %s851 = scalar_lea.vmem [#allocation2], 72
      %v852 = vld [vmem:[%s851 + $0x5] sm:$0xff]
      %v853 = vld [vmem:[%s851 + $0x1d] sm:$0xff]
      %v854 = vld [vmem:[%s851 + $0x35] sm:$0xff]
      %v855 = vld [vmem:[%s851 + $0x4d] sm:$0xff]
      %v856 = vld [vmem:[%s851 + $0x65] sm:$0xff]
      %v857 = vld [vmem:[%s851 + $0x7d] sm:$0xff]
      %v858 = vld [vmem:[%s851 + $0x95] sm:$0xff]
      %v859 = vld [vmem:[%s851 + $0xad] sm:$0xff]
      %v860 = vlaneseq
      %v861 = vshrl.u32 %v860, 7
      %v862 = vsub.s32 4, %v861
      %v863 = vrot.slane %v278, %v862
      %v864 = vmul.f32 %v852, %v863
      %v865 = vmul.f32 %v853, %v863
      %v866 = vmul.f32 %v854, %v863
      %v867 = vmul.f32 %v855, %v863
      %v868 = vmul.f32 %v856, %v863
      %v869 = vmul.f32 %v857, %v863
      %v870 = vmul.f32 %v858, %v863
      %v871 = vmul.f32 %v859, %v863
      %v872 = vadd.f32 %v843, %v864
      %v873 = vadd.f32 %v844, %v865
      %v874 = vadd.f32 %v845, %v866
      %v875 = vadd.f32 %v846, %v867
      %v876 = vadd.f32 %v847, %v868
      %v877 = vadd.f32 %v848, %v869
      %v878 = vadd.f32 %v849, %v870
      %v879 = vadd.f32 %v850, %v871
      %s880 = scalar_lea.vmem [#allocation2], 168
      %v881 = vld [vmem:[%s880 + $0x5] sm:$0xff]
      %v882 = vld [vmem:[%s880 + $0x1d] sm:$0xff]
      %v883 = vld [vmem:[%s880 + $0x35] sm:$0xff]
      %v884 = vld [vmem:[%s880 + $0x4d] sm:$0xff]
      %v885 = vld [vmem:[%s880 + $0x65] sm:$0xff]
      %v886 = vld [vmem:[%s880 + $0x7d] sm:$0xff]
      %v887 = vld [vmem:[%s880 + $0x95] sm:$0xff]
      %v888 = vld [vmem:[%s880 + $0xad] sm:$0xff]
      %v889 = vlaneseq
      %v890 = vshrl.u32 %v889, 7
      %v891 = vsub.s32 5, %v890
      %v892 = vrot.slane %v278, %v891
      %v893 = vmul.f32 %v881, %v892
      %v894 = vmul.f32 %v882, %v892
      %v895 = vmul.f32 %v883, %v892
      %v896 = vmul.f32 %v884, %v892
      %v897 = vmul.f32 %v885, %v892
      %v898 = vmul.f32 %v886, %v892
      %v899 = vmul.f32 %v887, %v892
      %v900 = vmul.f32 %v888, %v892
      %v901 = vadd.f32 %v872, %v893
      %v902 = vadd.f32 %v873, %v894
      %v903 = vadd.f32 %v874, %v895
      %v904 = vadd.f32 %v875, %v896
      %v905 = vadd.f32 %v876, %v897
      %v906 = vadd.f32 %v877, %v898
      %v907 = vadd.f32 %v878, %v899
      %v908 = vadd.f32 %v879, %v900
      %s909 = scalar_lea.vmem [#allocation2], 192
      %v910 = vld [vmem:[%s909 + $0x5] sm:$0xff]
      %v911 = vld [vmem:[%s909 + $0x1d] sm:$0xff]
      %v912 = vld [vmem:[%s909 + $0x35] sm:$0xff]
      %v913 = vld [vmem:[%s909 + $0x4d] sm:$0xff]
      %v914 = vld [vmem:[%s909 + $0x65] sm:$0xff]
      %v915 = vld [vmem:[%s909 + $0x7d] sm:$0xff]
      %v916 = vld [vmem:[%s909 + $0x95] sm:$0xff]
      %v917 = vld [vmem:[%s909 + $0xad] sm:$0xff]
      %v918 = vlaneseq
      %v919 = vshrl.u32 %v918, 7
      %v920 = vsub.s32 6, %v919
      %v921 = vrot.slane %v278, %v920
      %v922 = vmul.f32 %v910, %v921
      %v923 = vmul.f32 %v911, %v921
      %v924 = vmul.f32 %v912, %v921
      %v925 = vmul.f32 %v913, %v921
      %v926 = vmul.f32 %v914, %v921
      %v927 = vmul.f32 %v915, %v921
      %v928 = vmul.f32 %v916, %v921
      %v929 = vmul.f32 %v917, %v921
      %v930 = vadd.f32 %v901, %v922
      %v931 = vadd.f32 %v902, %v923
      %v932 = vadd.f32 %v903, %v924
      %v933 = vadd.f32 %v904, %v925
      %v934 = vadd.f32 %v905, %v926
      %v935 = vadd.f32 %v906, %v927
      %v936 = vadd.f32 %v907, %v928
      %v937 = vadd.f32 %v908, %v929
      %s938 = scalar_lea.vmem [#allocation2], 216
      %v939 = vld [vmem:[%s938 + $0x5] sm:$0xff]
      %v940 = vld [vmem:[%s938 + $0x1d] sm:$0xff]
      %v941 = vld [vmem:[%s938 + $0x35] sm:$0xff]
      %v942 = vld [vmem:[%s938 + $0x4d] sm:$0xff]
      %v943 = vld [vmem:[%s938 + $0x65] sm:$0xff]
      %v944 = vld [vmem:[%s938 + $0x7d] sm:$0xff]
      %v945 = vld [vmem:[%s938 + $0x95] sm:$0xff]
      %v946 = vld [vmem:[%s938 + $0xad] sm:$0xff]
      %v947 = vlaneseq
      %v948 = vshrl.u32 %v947, 7
      %v949 = vsub.s32 7, %v948
      %v950 = vrot.slane %v278, %v949
      %v951 = vmul.f32 %v939, %v950
      %v952 = vmul.f32 %v940, %v950
      %v953 = vmul.f32 %v941, %v950
      %v954 = vmul.f32 %v942, %v950
      %v955 = vmul.f32 %v943, %v950
      %v956 = vmul.f32 %v944, %v950
      %v957 = vmul.f32 %v945, %v950
      %v958 = vmul.f32 %v946, %v950
      %v959 = vadd.f32 %v930, %v951
      %v960 = vadd.f32 %v931, %v952
      %v961 = vadd.f32 %v932, %v953
      %v962 = vadd.f32 %v933, %v954
      %v963 = vadd.f32 %v934, %v955
      %v964 = vadd.f32 %v935, %v956
      %v965 = vadd.f32 %v936, %v957
      %v966 = vadd.f32 %v937, %v958
      %s967 = scalar_lea.vmem [#allocation2], 240
      %v968 = vld [vmem:[%s967 + $0x5] sm:$0xff]
      %v969 = vld [vmem:[%s967 + $0x1d] sm:$0xff]
      %v970 = vld [vmem:[%s967 + $0x35] sm:$0xff]
      %v971 = vld [vmem:[%s967 + $0x4d] sm:$0xff]
      %v972 = vld [vmem:[%s967 + $0x65] sm:$0xff]
      %v973 = vld [vmem:[%s967 + $0x7d] sm:$0xff]
      %v974 = vld [vmem:[%s967 + $0x95] sm:$0xff]
      %v975 = vld [vmem:[%s967 + $0xad] sm:$0xff]
      %v976 = vlaneseq
      %v977 = vshrl.u32 %v976, 7
      %v978 = vsub.s32 0, %v977
      %v979 = vrot.slane %v279, %v978
      %v980 = vmul.f32 %v968, %v979
      %v981 = vmul.f32 %v969, %v979
      %v982 = vmul.f32 %v970, %v979
      %v983 = vmul.f32 %v971, %v979
      %v984 = vmul.f32 %v972, %v979
      %v985 = vmul.f32 %v973, %v979
      %v986 = vmul.f32 %v974, %v979
      %v987 = vmul.f32 %v975, %v979
      %v988 = vadd.f32 %v959, %v980
      %v989 = vadd.f32 %v960, %v981
      %v990 = vadd.f32 %v961, %v982
      %v991 = vadd.f32 %v962, %v983
      %v992 = vadd.f32 %v963, %v984
      %v993 = vadd.f32 %v964, %v985
      %v994 = vadd.f32 %v965, %v986
      %v995 = vadd.f32 %v966, %v987
      %1004 = vrot.lane.b32.xlu0 %v988, 10
      %v1005 = vpop.permute.xlu0 %1004
      %1006 = vrot.lane.b32.xlu0 %v989, 10
      %v1007 = vpop.permute.xlu0 %1006
      %1008 = vrot.lane.b32.xlu0 %v990, 10
      %v1009 = vpop.permute.xlu0 %1008
      %1010 = vrot.lane.b32.xlu0 %v991, 10
      %v1011 = vpop.permute.xlu0 %1010
      %1012 = vrot.lane.b32.xlu0 %v992, 10
      %v1013 = vpop.permute.xlu0 %1012
      %1014 = vrot.lane.b32.xlu0 %v993, 10
      %v1015 = vpop.permute.xlu0 %1014
      %1016 = vrot.lane.b32.xlu0 %v994, 10
      %v1017 = vpop.permute.xlu0 %1016
      %1018 = vrot.lane.b32.xlu0 %v995, 10
      %v1019 = vpop.permute.xlu0 %1018
      %vm1028 = vcmask 80896
      %v1029 = vsel %vm1028, %v171, %v1005
      %v1030 = vsel %vm1028, %v172, %v1007
      %v1031 = vsel %vm1028, %v173, %v1009
      %v1032 = vsel %vm1028, %v174, %v1011
      %v1033 = vsel %vm1028, %v175, %v1013
      %v1034 = vsel %vm1028, %v176, %v1015
      %v1035 = vsel %vm1028, %v177, %v1017
      %v1036 = vsel %vm1028, %v178, %v1019
      %vm1037 = vcmask 130048
      %1038 = vst.msk [vmem:[%s170] sm:$0xff] %vm1037, %v1029
      %1039 = vst.msk [vmem:[%s170 + $0x8] sm:$0xff] %vm1037, %v1030
      %1040 = vst.msk [vmem:[%s170 + $0x10] sm:$0xff] %vm1037, %v1031
      %1041 = vst.msk [vmem:[%s170 + $0x18] sm:$0xff] %vm1037, %v1032
      %1042 = vst.msk [vmem:[%s170 + $0x20] sm:$0xff] %vm1037, %v1033
      %1043 = vst.msk [vmem:[%s170 + $0x28] sm:$0xff] %vm1037, %v1034
      %1044 = vst.msk [vmem:[%s170 + $0x30] sm:$0xff] %vm1037, %v1035
      %1045 = vst.msk [vmem:[%s170 + $0x38] sm:$0xff] %vm1037, %v1036
      %p1046 = scmp.lt.s32.totalorder %s14, 1
      %s1047 = scalar_select %p1046, %s14, 1
      %s1048 = smul.addr %s1047, 8
      %s1049 = smul.addr %s1048, 8
      %s1050 = scalar_lea.vmem %s3, %s1049
      // Predicated region
      $region33: #{forward.21} parent=31 // pred_check
        %p1051 = pneg %p100
      $region34: #{forward.21} parent=31 // pred_check_branch
        %1053 = sbr.rel (%p1051) target = $region36
      $region35: #{forward.21} parent=31 // pred_region
        _
      $region36: #{forward.21} parent=31 // pred_fallthru
        _
    $region32: #{forward.21} parent=5 // pred_fallthru
      _
    %p1054 = scmp.le.s32.totalorder 2, %s9
    // Predicated region
    $region37: #{forward.21} parent=5 // pred_check
      %p1055 = pneg %p1054
    $region38: #{forward.21} parent=5 // pred_check_branch
      %1057 = sbr.rel (%p1055) target = $region40
    $region39: #{forward.21} parent=5 // pred_region
      %s1058 = ssub.s32 %s9, 2
      // Predicated region
      $region41: #{forward.21} parent=39 // pred_check
        %p1059 = pneg %p106
      $region42: #{forward.21} parent=39 // pred_check_branch
        %1061 = sbr.rel (%p1059) target = $region44
      $region43: #{forward.21} parent=39 // pred_region
        %p1062 = scmp.lt.s32.totalorder %s15, 1
        %s1063 = scalar_select %p1062, %s15, 1
        %s1064 = smul.addr %s1063, 8
        %s1065 = smul.addr %s1064, 8
        %s1066 = scalar_lea.vmem %s3, %s1065
      $region44: #{forward.21} parent=39 // pred_fallthru
        _
    $region40: #{forward.21} parent=5 // pred_fallthru
      _
  $region6: #{forward.21} parent=0 // loop_footer
    %s13 = sadd.s32 1, %s9
  $region7: #{forward.21} parent=0 // loop_footer_branch
    %8 = sbr.rel target = $region3
  $region8: #{forward.21} parent=0 // loop_exit
    _

// kernel: forward.25
$region0: #{forward.25}
  #allocation0 [shape = 'u32[]', space=smem, size = 0x4, offset = 0x4, fixed_abs, tag = 'smem constant byte address 0x4 - core index']
  #allocation1 [shape = 'u32[144,128]{1,0:T(1,128)}', space=vmem, size = 0x12000, scoped, tag = 'internal scratch']
  %s0 = inlined_call_operand.vmem [shape: f32[32,64], index: 0, kind: input, shape index: {}]
  %s1 = inlined_call_operand.vmem [shape: f32[1,16], index: 1, kind: input, shape index: {}]
  %s2 = inlined_call_operand.vmem [shape: f32[1,16], index: 2, kind: input, shape index: {}]
  %s3 = inlined_call_operand.vmem [shape: bf16[64,32], index: 3, kind: input, shape index: {}]
  %s4 = inlined_call_operand.vmem [shape: f32[1,32], index: 4, kind: input, shape index: {}]
  %s5 = inlined_call_operand.vmem [shape: f32[32,32], index: 5, kind: output, shape index: {}]
  %s6 = sld [smem:[#allocation0]]
  $region30: #{forward.25} parent=0
    _
  %s8 = ssub.s32 1, %s6
  %s9 = scalar_select 0, %s8, %s6
  // Predicated region
  $region2: #{forward.25} parent=0 // pred_check
    _
  $region3: #{forward.25} parent=0 // pred_check_branch
    %11 = sbr.rel (0) target = $region5
  $region4: #{forward.25} parent=0 // pred_region
    _
  $region5: #{forward.25} parent=0 // pred_fallthru
    _
  // Predicated region
  $region6: #{forward.25} parent=0 // pred_check
    _
  $region7: #{forward.25} parent=0 // pred_check_branch
    %13 = sbr.rel (0) target = $region9
  $region8: #{forward.25} parent=0 // pred_region
    _
  $region9: #{forward.25} parent=0 // pred_fallthru
    _
  // Predicated region
  $region10: #{forward.25} parent=0 // pred_check
    _
  $region11: #{forward.25} parent=0 // pred_check_branch
    %15 = sbr.rel (0) target = $region13
  $region12: #{forward.25} parent=0 // pred_region
    _
  $region13: #{forward.25} parent=0 // pred_fallthru
    _
  // Predicated region
  $region14: #{forward.25} parent=0 // pred_check
    _
  $region15: #{forward.25} parent=0 // pred_check_branch
    %17 = sbr.rel (0) target = $region17
  $region16: #{forward.25} parent=0 // pred_region
    _
  $region17: #{forward.25} parent=0 // pred_fallthru
    _
  // Predicated region
  $region18: #{forward.25} parent=0 // pred_check
    _
  $region19: #{forward.25} parent=0 // pred_check_branch
    %19 = sbr.rel (0) target = $region21
  $region20: #{forward.25} parent=0 // pred_region
    _
  $region21: #{forward.25} parent=0 // pred_fallthru
    _
  %v21 = vld [vmem:[%s0] sm:$0xff]
  %v22 = vld [vmem:[%s0 + $0x8] sm:$0xff]
  %v23 = vld [vmem:[%s0 + $0x10] sm:$0xff]
  %v24 = vld [vmem:[%s0 + $0x18] sm:$0xff]
  %v25 = vld [vmem:[%s1] sm:$0x1]
  %v26 = vld [vmem:[%s2] sm:$0x1]
  %vm27 = vcmask 130048
  %v28 = vsel %vm27, %v21, 0.0
  %29 = vadd.xlane.f32.xlu0 %v28
  %v30 = vpop.xlane.xlu0 %29
  %v31 = vsel %vm27, %v22, 0.0
  %32 = vadd.xlane.f32.xlu0 %v31
  %v33 = vpop.xlane.xlu0 %32
  %v34 = vsel %vm27, %v23, 0.0
  %35 = vadd.xlane.f32.xlu0 %v34
  %v36 = vpop.xlane.xlu0 %35
  %v37 = vsel %vm27, %v24, 0.0
  %38 = vadd.xlane.f32.xlu0 %v37
  %v39 = vpop.xlane.xlu0 %38
  %v40 = vrcp.pop 16.0
  %v41 = vmul.f32 %v30, %v40
  %v42 = vmul.f32 %v33, %v40
  %v43 = vmul.f32 %v36, %v40
  %v44 = vmul.f32 %v39, %v40
  %v45 = vsub.f32 %v21, %v41
  %v46 = vsub.f32 %v22, %v42
  %v47 = vsub.f32 %v23, %v43
  %v48 = vsub.f32 %v24, %v44
  %v49 = vmul.f32 %v45, %v45
  %v50 = vmul.f32 %v46, %v46
  %v51 = vmul.f32 %v47, %v47
  %v52 = vmul.f32 %v48, %v48
  %v53 = vsel %vm27, %v49, 0.0
  %54 = vadd.xlane.f32.xlu0 %v53
  %v55 = vpop.xlane.xlu0 %54
  %v56 = vsel %vm27, %v50, 0.0
  %57 = vadd.xlane.f32.xlu0 %v56
  %v58 = vpop.xlane.xlu0 %57
  %v59 = vsel %vm27, %v51, 0.0
  %60 = vadd.xlane.f32.xlu0 %v59
  %v61 = vpop.xlane.xlu0 %60
  %v62 = vsel %vm27, %v52, 0.0
  %63 = vadd.xlane.f32.xlu0 %v62
  %v64 = vpop.xlane.xlu0 %63
  %v65 = vmul.f32 %v55, %v40
  %v66 = vmul.f32 %v58, %v40
  %v67 = vmul.f32 %v61, %v40
  %v68 = vmul.f32 %v64, %v40
  %v69 = vadd.f32 %v65, 1e-06
  %v70 = vadd.f32 %v66, 1e-06
  %v71 = vadd.f32 %v67, 1e-06
  %v72 = vadd.f32 %v68, 1e-06
  %v73 = vrsqrt.pop %v69
  %v74 = vrsqrt.pop %v70
  %v75 = vrsqrt.pop %v71
  %v76 = vrsqrt.pop %v72
  %v77 = vmul.f32 %v45, %v73
  %v78 = vmul.f32 %v46, %v74
  %v79 = vmul.f32 %v47, %v75
  %v80 = vmul.f32 %v48, %v76
  %v82 = vlaneseq
  %v83 = vshrl.u32 %v82, 7
  %v84 = vsub.s32 0, %v83
  %v85 = vrot.slane %v25, %v84
  %v87 = vmul.f32 %v77, %v85
  %v88 = vmul.f32 %v78, %v85
  %v89 = vmul.f32 %v79, %v85
  %v90 = vmul.f32 %v80, %v85
  %v92 = vlaneseq
  %v93 = vshrl.u32 %v92, 7
  %v94 = vsub.s32 0, %v93
  %v95 = vrot.slane %v26, %v94
  %v97 = vadd.f32 %v87, %v95
  %v98 = vadd.f32 %v88, %v95
  %v99 = vadd.f32 %v89, %v95
  %v100 = vadd.f32 %v90, %v95
  %105 = vrot.lane.b32.xlu0 %v21, 112
  %v106 = vpop.permute.xlu0 %105
  %107 = vrot.lane.b32.xlu0 %v22, 112
  %v108 = vpop.permute.xlu0 %107
  %109 = vrot.lane.b32.xlu0 %v23, 112
  %v110 = vpop.permute.xlu0 %109
  %111 = vrot.lane.b32.xlu0 %v24, 112
  %v112 = vpop.permute.xlu0 %111
  %v117 = vsel %vm27, %v106, 0.0
  %118 = vadd.xlane.f32.xlu0 %v117
  %v119 = vpop.xlane.xlu0 %118
  %v120 = vsel %vm27, %v108, 0.0
  %121 = vadd.xlane.f32.xlu0 %v120
  %v122 = vpop.xlane.xlu0 %121
  %v123 = vsel %vm27, %v110, 0.0
  %124 = vadd.xlane.f32.xlu0 %v123
  %v125 = vpop.xlane.xlu0 %124
  %v126 = vsel %vm27, %v112, 0.0
  %127 = vadd.xlane.f32.xlu0 %v126
  %v128 = vpop.xlane.xlu0 %127
  %v129 = vmul.f32 %v119, %v40
  %v130 = vmul.f32 %v122, %v40
  %v131 = vmul.f32 %v125, %v40
  %v132 = vmul.f32 %v128, %v40
  %v133 = vsub.f32 %v21, %v129
  %v134 = vsub.f32 %v22, %v130
  %v135 = vsub.f32 %v23, %v131
  %v136 = vsub.f32 %v24, %v132
  %v137 = vmul.f32 %v133, %v133
  %v138 = vmul.f32 %v134, %v134
  %v139 = vmul.f32 %v135, %v135
  %v140 = vmul.f32 %v136, %v136
  %145 = vrot.lane.b32.xlu0 %v137, 112
  %v146 = vpop.permute.xlu0 %145
  %147 = vrot.lane.b32.xlu0 %v138, 112
  %v148 = vpop.permute.xlu0 %147
  %149 = vrot.lane.b32.xlu0 %v139, 112
  %v150 = vpop.permute.xlu0 %149
  %151 = vrot.lane.b32.xlu0 %v140, 112
  %v152 = vpop.permute.xlu0 %151
  %v157 = vsel %vm27, %v146, 0.0
  %158 = vadd.xlane.f32.xlu0 %v157
  %v159 = vpop.xlane.xlu0 %158
  %v160 = vsel %vm27, %v148, 0.0
  %161 = vadd.xlane.f32.xlu0 %v160
  %v162 = vpop.xlane.xlu0 %161
  %v163 = vsel %vm27, %v150, 0.0
  %164 = vadd.xlane.f32.xlu0 %v163
  %v165 = vpop.xlane.xlu0 %164
  %v166 = vsel %vm27, %v152, 0.0
  %167 = vadd.xlane.f32.xlu0 %v166
  %v168 = vpop.xlane.xlu0 %167
  %v169 = vmul.f32 %v159, %v40
  %v170 = vmul.f32 %v162, %v40
  %v171 = vmul.f32 %v165, %v40
  %v172 = vmul.f32 %v168, %v40
  %v173 = vadd.f32 %v169, 1e-06
  %v174 = vadd.f32 %v170, 1e-06
  %v175 = vadd.f32 %v171, 1e-06
  %v176 = vadd.f32 %v172, 1e-06
  %v177 = vrsqrt.pop %v173
  %v178 = vrsqrt.pop %v174
  %v179 = vrsqrt.pop %v175
  %v180 = vrsqrt.pop %v176
  %v181 = vmul.f32 %v133, %v177
  %v182 = vmul.f32 %v134, %v178
  %v183 = vmul.f32 %v135, %v179
  %v184 = vmul.f32 %v136, %v180
  %185 = vrot.lane.b32.xlu0 %v85, 16
  %v186 = vpop.permute.xlu0 %185
  %v188 = vmul.f32 %v181, %v186
  %v189 = vmul.f32 %v182, %v186
  %v190 = vmul.f32 %v183, %v186
  %v191 = vmul.f32 %v184, %v186
  %192 = vrot.lane.b32.xlu0 %v95, 16
  %v193 = vpop.permute.xlu0 %192
  %v195 = vadd.f32 %v188, %v193
  %v196 = vadd.f32 %v189, %v193
  %v197 = vadd.f32 %v190, %v193
  %v198 = vadd.f32 %v191, %v193
  %199 = vrot.lane.b32.xlu0 %v21, 96
  %v200 = vpop.permute.xlu0 %199
  %201 = vrot.lane.b32.xlu0 %v22, 96
  %v202 = vpop.permute.xlu0 %201
  %203 = vrot.lane.b32.xlu0 %v23, 96
  %v204 = vpop.permute.xlu0 %203
  %205 = vrot.lane.b32.xlu0 %v24, 96
  %v206 = vpop.permute.xlu0 %205
  %v211 = vsel %vm27, %v200, 0.0
  %212 = vadd.xlane.f32.xlu0 %v211
  %v213 = vpop.xlane.xlu0 %212
  %v214 = vsel %vm27, %v202, 0.0
  %215 = vadd.xlane.f32.xlu0 %v214
  %v216 = vpop.xlane.xlu0 %215
  %v217 = vsel %vm27, %v204, 0.0
  %218 = vadd.xlane.f32.xlu0 %v217
  %v219 = vpop.xlane.xlu0 %218
  %v220 = vsel %vm27, %v206, 0.0
  %221 = vadd.xlane.f32.xlu0 %v220
  %v222 = vpop.xlane.xlu0 %221
  %v223 = vmul.f32 %v213, %v40
  %v224 = vmul.f32 %v216, %v40
  %v225 = vmul.f32 %v219, %v40
  %v226 = vmul.f32 %v222, %v40
  %v227 = vsub.f32 %v21, %v223
  %v228 = vsub.f32 %v22, %v224
  %v229 = vsub.f32 %v23, %v225
  %v230 = vsub.f32 %v24, %v226
  %v231 = vmul.f32 %v227, %v227
  %v232 = vmul.f32 %v228, %v228
  %v233 = vmul.f32 %v229, %v229
  %v234 = vmul.f32 %v230, %v230
  %239 = vrot.lane.b32.xlu0 %v231, 96
  %v240 = vpop.permute.xlu0 %239
  %241 = vrot.lane.b32.xlu0 %v232, 96
  %v242 = vpop.permute.xlu0 %241
  %243 = vrot.lane.b32.xlu0 %v233, 96
  %v244 = vpop.permute.xlu0 %243
  %245 = vrot.lane.b32.xlu0 %v234, 96
  %v246 = vpop.permute.xlu0 %245
  %v251 = vsel %vm27, %v240, 0.0
  %252 = vadd.xlane.f32.xlu0 %v251
  %v253 = vpop.xlane.xlu0 %252
  %v254 = vsel %vm27, %v242, 0.0
  %255 = vadd.xlane.f32.xlu0 %v254
  %v256 = vpop.xlane.xlu0 %255
  %v257 = vsel %vm27, %v244, 0.0
  %258 = vadd.xlane.f32.xlu0 %v257
  %v259 = vpop.xlane.xlu0 %258
  %v260 = vsel %vm27, %v246, 0.0
  %261 = vadd.xlane.f32.xlu0 %v260
  %v262 = vpop.xlane.xlu0 %261
  %v263 = vmul.f32 %v253, %v40
  %v264 = vmul.f32 %v256, %v40
  %v265 = vmul.f32 %v259, %v40
  %v266 = vmul.f32 %v262, %v40
  %v267 = vadd.f32 %v263, 1e-06
  %v268 = vadd.f32 %v264, 1e-06
  %v269 = vadd.f32 %v265, 1e-06
  %v270 = vadd.f32 %v266, 1e-06
  %v271 = vrsqrt.pop %v267
  %v272 = vrsqrt.pop %v268
  %v273 = vrsqrt.pop %v269
  %v274 = vrsqrt.pop %v270
  %v275 = vmul.f32 %v227, %v271
  %v276 = vmul.f32 %v228, %v272
  %v277 = vmul.f32 %v229, %v273
  %v278 = vmul.f32 %v230, %v274
  %279 = vrot.lane.b32.xlu0 %v85, 32
  %v280 = vpop.permute.xlu0 %279
  %v282 = vmul.f32 %v275, %v280
  %v283 = vmul.f32 %v276, %v280
  %v284 = vmul.f32 %v277, %v280
  %v285 = vmul.f32 %v278, %v280
  %286 = vrot.lane.b32.xlu0 %v95, 32
  %v287 = vpop.permute.xlu0 %286
  %v289 = vadd.f32 %v282, %v287
  %v290 = vadd.f32 %v283, %v287
  %v291 = vadd.f32 %v284, %v287
  %v292 = vadd.f32 %v285, %v287
  %293 = vrot.lane.b32.xlu0 %v21, 80
  %v294 = vpop.permute.xlu0 %293
  %295 = vrot.lane.b32.xlu0 %v22, 80
  %v296 = vpop.permute.xlu0 %295
  %297 = vrot.lane.b32.xlu0 %v23, 80
  %v298 = vpop.permute.xlu0 %297
  %299 = vrot.lane.b32.xlu0 %v24, 80
  %v300 = vpop.permute.xlu0 %299
  %v305 = vsel %vm27, %v294, 0.0
  %306 = vadd.xlane.f32.xlu0 %v305
  %v307 = vpop.xlane.xlu0 %306
  %v308 = vsel %vm27, %v296, 0.0
  %309 = vadd.xlane.f32.xlu0 %v308
  %v310 = vpop.xlane.xlu0 %309
  %v311 = vsel %vm27, %v298, 0.0
  %312 = vadd.xlane.f32.xlu0 %v311
  %v313 = vpop.xlane.xlu0 %312
  %v314 = vsel %vm27, %v300, 0.0
  %315 = vadd.xlane.f32.xlu0 %v314
  %v316 = vpop.xlane.xlu0 %315
  %v317 = vmul.f32 %v307, %v40
  %v318 = vmul.f32 %v310, %v40
  %v319 = vmul.f32 %v313, %v40
  %v320 = vmul.f32 %v316, %v40
  %v321 = vsub.f32 %v21, %v317
  %v322 = vsub.f32 %v22, %v318
  %v323 = vsub.f32 %v23, %v319
  %v324 = vsub.f32 %v24, %v320
  %v325 = vmul.f32 %v321, %v321
  %v326 = vmul.f32 %v322, %v322
  %v327 = vmul.f32 %v323, %v323
  %v328 = vmul.f32 %v324, %v324
  %333 = vrot.lane.b32.xlu0 %v325, 80
  %v334 = vpop.permute.xlu0 %333
  %335 = vrot.lane.b32.xlu0 %v326, 80
  %v336 = vpop.permute.xlu0 %335
  %337 = vrot.lane.b32.xlu0 %v327, 80
  %v338 = vpop.permute.xlu0 %337
  %339 = vrot.lane.b32.xlu0 %v328, 80
  %v340 = vpop.permute.xlu0 %339
  %v345 = vsel %vm27, %v334, 0.0
  %346 = vadd.xlane.f32.xlu0 %v345
  %v347 = vpop.xlane.xlu0 %346
  %v348 = vsel %vm27, %v336, 0.0
  %349 = vadd.xlane.f32.xlu0 %v348
  %v350 = vpop.xlane.xlu0 %349
  %v351 = vsel %vm27, %v338, 0.0
  %352 = vadd.xlane.f32.xlu0 %v351
  %v353 = vpop.xlane.xlu0 %352
  %v354 = vsel %vm27, %v340, 0.0
  %355 = vadd.xlane.f32.xlu0 %v354
  %v356 = vpop.xlane.xlu0 %355
  %v357 = vmul.f32 %v347, %v40
  %v358 = vmul.f32 %v350, %v40
  %v359 = vmul.f32 %v353, %v40
  %v360 = vmul.f32 %v356, %v40
  %v361 = vadd.f32 %v357, 1e-06
  %v362 = vadd.f32 %v358, 1e-06
  %v363 = vadd.f32 %v359, 1e-06
  %v364 = vadd.f32 %v360, 1e-06
  %v365 = vrsqrt.pop %v361
  %v366 = vrsqrt.pop %v362
  %v367 = vrsqrt.pop %v363
  %v368 = vrsqrt.pop %v364
  %v369 = vmul.f32 %v321, %v365
  %v370 = vmul.f32 %v322, %v366
  %v371 = vmul.f32 %v323, %v367
  %v372 = vmul.f32 %v324, %v368
  %373 = vrot.lane.b32.xlu0 %v85, 48
  %v374 = vpop.permute.xlu0 %373
  %v376 = vmul.f32 %v369, %v374
  %v377 = vmul.f32 %v370, %v374
  %v378 = vmul.f32 %v371, %v374
  %v379 = vmul.f32 %v372, %v374
  %380 = vrot.lane.b32.xlu0 %v95, 48
  %v381 = vpop.permute.xlu0 %380
  %v383 = vadd.f32 %v376, %v381
  %v384 = vadd.f32 %v377, %v381
  %v385 = vadd.f32 %v378, %v381
  %v386 = vadd.f32 %v379, %v381
  %v387 = vsel %vm27, %v97, %v195
  %v388 = vsel %vm27, %v98, %v196
  %v389 = vsel %vm27, %v99, %v197
  %v390 = vsel %vm27, %v100, %v198
  %vm391 = vcmask 261120
  %v392 = vsel %vm391, %v387, %v289
  %v393 = vsel %vm391, %v388, %v290
  %v394 = vsel %vm391, %v389, %v291
  %v395 = vsel %vm391, %v390, %v292
  %vm396 = vcmask 392192
  %v397 = vsel %vm396, %v392, %v383
  %v398 = vsel %vm396, %v393, %v384
  %v399 = vsel %vm396, %v394, %v385
  %v400 = vsel %vm396, %v395, %v386
  %v401 = vld [vmem:[%s3] sm:$0xf]
  %v402 = vld [vmem:[%s3 + $0x4] sm:$0xf]
  %v403 = vld [vmem:[%s3 + $0x8] sm:$0xf]
  %v404 = vld [vmem:[%s3 + $0xc] sm:$0xf]
  %v405 = vld [vmem:[%s3 + $0x10] sm:$0xf]
  %v406 = vld [vmem:[%s3 + $0x14] sm:$0xf]
  %v407 = vld [vmem:[%s3 + $0x18] sm:$0xf]
  %v408 = vld [vmem:[%s3 + $0x1c] sm:$0xf]
  %v409 = vpack.c.bf16 %v398, %v397
  %v410 = vpack.c.bf16 %v400, %v399
  %v411 = vld [vmem:[%s4] sm:$0x1]
  %v413 = vlaneseq
  %v414 = vshrl.u32 %v413, 7
  %v415 = vsub.s32 0, %v414
  %v416 = vrot.slane %v411, %v415
  %v426 = vunpack.c.l.b16 %v401
  %v427 = vunpack.c.l.b16 %v402
  %v428 = vunpack.c.l.b16 %v403
  %v429 = vunpack.c.l.b16 %v404
  %v430 = vunpack.c.l.b16 %v405
  %v431 = vunpack.c.l.b16 %v406
  %v432 = vunpack.c.l.b16 %v407
  %v433 = vunpack.c.l.b16 %v408
  %v434 = vpack.c.b16 %v427, %v426
  %v435 = vpack.c.b16 %v429, %v428
  %v436 = vpack.c.b16 %v431, %v430
  %v437 = vpack.c.b16 %v433, %v432
  %vm442 = vcmask 523264
  %v444 = vsel %vm442, %v409, 0
  %v447 = vsel %vm442, %v410, 0
  %449 = vmatprep.subr.bf16.mxu0 0
  %450 = vmatpush1.bf16.msra.mxu0 %v434
  %451 = vmatprep.subr.bf16.mxu0 0
  %452 = vmatpush1.bf16.msra.mxu0 %v435
  %453 = vmatprep.subr.bf16.mxu0 0
  %454 = vmatpush1.bf16.msra.mxu0 %v436
  %455 = vmatprep.subr.bf16.mxu0 0
  %456 = vmatpush1.bf16.msra.mxu0 %v437
  %457 = vmatprep.subr.bf16.mxu0 0
  %458 = vmatpush1.bf16.msra.mxu0 0
  %459 = vmatprep.subr.bf16.mxu0 0
  %460 = vmatpush1.bf16.msra.mxu0 0
  %461 = vmatprep.subr.bf16.mxu0 0
  %462 = vmatpush1.bf16.msra.mxu0 0
  %463 = vmatprep.subr.bf16.mxu0 0
  %464 = vmatpush1.bf16.msra.mxu0 0
  %465 = vmatprep.subr.bf16.mxu0 0
  %466 = vmatpush1.bf16.msra.mxu0 0
  %467 = vmatprep.subr.bf16.mxu0 0
  %468 = vmatpush1.bf16.msra.mxu0 0
  %469 = vmatprep.subr.bf16.mxu0 0
  %470 = vmatpush1.bf16.msra.mxu0 0
  %471 = vmatprep.subr.bf16.mxu0 0
  %472 = vmatpush1.bf16.msra.mxu0 0
  %473 = vmatprep.subr.bf16.mxu0 0
  %474 = vmatpush1.bf16.msra.mxu0 0
  %475 = vmatprep.subr.bf16.mxu0 0
  %476 = vmatpush1.bf16.msra.mxu0 0
  %477 = vmatprep.subr.bf16.mxu0 0
  %478 = vmatpush1.bf16.msra.mxu0 0
  %479 = vmatprep.subr.bf16.mxu0 0
  %480 = vmatpush1.bf16.msra.mxu0 0
  %481 = vmatprep.mubr.bf16.mxu0 0
  %482 = vmatmul.mubr.bf16.gmra.mrb[0].mxu0 %v444
  %v483 = vpop.f32.mrb[0].mxu0
  %v484 = vadd.f32 %v416, %v483
  %v485 = vpop.f32.mrb[0].mxu0
  %v486 = vpop.f32.mrb[0].mxu0
  %v487 = vadd.f32 %v416, %v486
  %v488 = vpop.f32.mrb[0].mxu0
  %489 = vmatprep.mubr.bf16.mxu0 0
  %490 = vmatmul.mubr.bf16.gmra.mrb[0].mxu0 %v447
  %v491 = vpop.f32.mrb[0].mxu0
  %v492 = vadd.f32 %v416, %v491
  %v493 = vpop.f32.mrb[0].mxu0
  %v494 = vpop.f32.mrb[0].mxu0
  %v495 = vadd.f32 %v416, %v494
  %v496 = vpop.f32.mrb[0].mxu0
  %497 = vdwg.mxu0
  %498 = vst.msk [vmem:[%s5] sm:$0xff] %vm391, %v484
  %499 = vst.msk [vmem:[%s5 + $0x8] sm:$0xff] %vm391, %v487
  %500 = vst.msk [vmem:[%s5 + $0x10] sm:$0xff] %vm391, %v492
  %501 = vst.msk [vmem:[%s5 + $0x18] sm:$0xff] %vm391, %v495
  // Predicated region
  $region22: #{forward.25} parent=0 // pred_check
    _
  $region23: #{forward.25} parent=0 // pred_check_branch
    %503 = sbr.rel (0) target = $region25
  $region24: #{forward.25} parent=0 // pred_region
    _
  $region25: #{forward.25} parent=0 // pred_fallthru
    _
  // Predicated region
  $region26: #{forward.25} parent=0 // pred_check
    _
  $region27: #{forward.25} parent=0 // pred_check_branch
    %505 = sbr.rel (0) target = $region29
  $region28: #{forward.25} parent=0 // pred_region
    _
  $region29: #{forward.25} parent=0 // pred_fallthru
    _

// kernel: forward.27
$region0: #{forward.27}
  #allocation0 [shape = 'u32[]', space=smem, size = 0x4, offset = 0x4, fixed_abs, tag = 'smem constant byte address 0x4 - core index']
  #allocation1 [shape = 'u32[144,128]{1,0:T(1,128)}', space=vmem, size = 0x12000, scoped, tag = 'internal scratch']
  %s0 = inlined_call_operand.vmem [shape: f32[32,32], index: 0, kind: input, shape index: {}, may-alias: {0,8}]
  %s1 = inlined_call_operand.vmem [shape: f32[32,32], index: 1, kind: input, shape index: {}]
  %s2 = inlined_call_operand.vmem [shape: f32[1,32], index: 2, kind: input, shape index: {}]
  %s3 = inlined_call_operand.vmem [shape: f32[1,32], index: 3, kind: input, shape index: {}]
  %s4 = inlined_call_operand.vmem [shape: bf16[32,128], index: 4, kind: input, shape index: {}]
  %s5 = inlined_call_operand.vmem [shape: f32[1,128], index: 5, kind: input, shape index: {}]
  %s6 = inlined_call_operand.vmem [shape: bf16[128,32], index: 6, kind: input, shape index: {}]
  %s7 = inlined_call_operand.vmem [shape: f32[1,32], index: 7, kind: input, shape index: {}]
  %s8 = inlined_call_operand.vmem [shape: f32[32,32], index: 8, kind: output, shape index: {}, may-alias: {0,8}]
  %s9 = sld [smem:[#allocation0]]
  $region42: #{forward.27} parent=0
    _
  %s11 = ssub.s32 1, %s9
  %s12 = scalar_select 0, %s11, %s9
  // Predicated region
  $region2: #{forward.27} parent=0 // pred_check
    _
  $region3: #{forward.27} parent=0 // pred_check_branch
    %14 = sbr.rel (0) target = $region5
  $region4: #{forward.27} parent=0 // pred_region
    _
  $region5: #{forward.27} parent=0 // pred_fallthru
    _
  // Predicated region
  $region6: #{forward.27} parent=0 // pred_check
    _
  $region7: #{forward.27} parent=0 // pred_check_branch
    %16 = sbr.rel (0) target = $region9
  $region8: #{forward.27} parent=0 // pred_region
    _
  $region9: #{forward.27} parent=0 // pred_fallthru
    _
  // Predicated region
  $region10: #{forward.27} parent=0 // pred_check
    _
  $region11: #{forward.27} parent=0 // pred_check_branch
    %18 = sbr.rel (0) target = $region13
  $region12: #{forward.27} parent=0 // pred_region
    _
  $region13: #{forward.27} parent=0 // pred_fallthru
    _
  // Predicated region
  $region14: #{forward.27} parent=0 // pred_check
    _
  $region15: #{forward.27} parent=0 // pred_check_branch
    %20 = sbr.rel (0) target = $region17
  $region16: #{forward.27} parent=0 // pred_region
    _
  $region17: #{forward.27} parent=0 // pred_fallthru
    _
  // Predicated region
  $region18: #{forward.27} parent=0 // pred_check
    _
  $region19: #{forward.27} parent=0 // pred_check_branch
    %22 = sbr.rel (0) target = $region21
  $region20: #{forward.27} parent=0 // pred_region
    _
  $region21: #{forward.27} parent=0 // pred_fallthru
    _
  // Predicated region
  $region22: #{forward.27} parent=0 // pred_check
    _
  $region23: #{forward.27} parent=0 // pred_check_branch
    %24 = sbr.rel (0) target = $region25
  $region24: #{forward.27} parent=0 // pred_region
    _
  $region25: #{forward.27} parent=0 // pred_fallthru
    _
  // Predicated region
  $region26: #{forward.27} parent=0 // pred_check
    _
  $region27: #{forward.27} parent=0 // pred_check_branch
    %26 = sbr.rel (0) target = $region29
  $region28: #{forward.27} parent=0 // pred_region
    _
  $region29: #{forward.27} parent=0 // pred_fallthru
    _
  // Predicated region
  $region30: #{forward.27} parent=0 // pred_check
    _
  $region31: #{forward.27} parent=0 // pred_check_branch
    %28 = sbr.rel (0) target = $region33
  $region32: #{forward.27} parent=0 // pred_region
    _
  $region33: #{forward.27} parent=0 // pred_fallthru
    _
  %v30 = vld [vmem:[%s0] sm:$0xff]
  %v31 = vld [vmem:[%s0 + $0x8] sm:$0xff]
  %v32 = vld [vmem:[%s0 + $0x10] sm:$0xff]
  %v33 = vld [vmem:[%s0 + $0x18] sm:$0xff]
  %v34 = vld [vmem:[%s2] sm:$0x1]
  %v35 = vld [vmem:[%s3] sm:$0x1]
  %vm36 = vcmask 261120
  %v37 = vsel %vm36, %v30, 0.0
  %38 = vadd.xlane.f32.xlu0 %v37
  %v39 = vpop.xlane.xlu0 %38
  %v40 = vsel %vm36, %v31, 0.0
  %41 = vadd.xlane.f32.xlu0 %v40
  %v42 = vpop.xlane.xlu0 %41
  %v43 = vsel %vm36, %v32, 0.0
  %44 = vadd.xlane.f32.xlu0 %v43
  %v45 = vpop.xlane.xlu0 %44
  %v46 = vsel %vm36, %v33, 0.0
  %47 = vadd.xlane.f32.xlu0 %v46
  %v48 = vpop.xlane.xlu0 %47
  %v49 = vrcp.pop 32.0
  %v50 = vmul.f32 %v39, %v49
  %v51 = vmul.f32 %v42, %v49
  %v52 = vmul.f32 %v45, %v49
  %v53 = vmul.f32 %v48, %v49
  %v54 = vsub.f32 %v30, %v50
  %v55 = vsub.f32 %v31, %v51
  %v56 = vsub.f32 %v32, %v52
  %v57 = vsub.f32 %v33, %v53
  %v58 = vmul.f32 %v54, %v54
  %v59 = vmul.f32 %v55, %v55
  %v60 = vmul.f32 %v56, %v56
  %v61 = vmul.f32 %v57, %v57
  %v62 = vsel %vm36, %v58, 0.0
  %63 = vadd.xlane.f32.xlu0 %v62
  %v64 = vpop.xlane.xlu0 %63
  %v65 = vsel %vm36, %v59, 0.0
  %66 = vadd.xlane.f32.xlu0 %v65
  %v67 = vpop.xlane.xlu0 %66
  %v68 = vsel %vm36, %v60, 0.0
  %69 = vadd.xlane.f32.xlu0 %v68
  %v70 = vpop.xlane.xlu0 %69
  %v71 = vsel %vm36, %v61, 0.0
  %72 = vadd.xlane.f32.xlu0 %v71
  %v73 = vpop.xlane.xlu0 %72
  %v74 = vmul.f32 %v64, %v49
  %v75 = vmul.f32 %v67, %v49
  %v76 = vmul.f32 %v70, %v49
  %v77 = vmul.f32 %v73, %v49
  %v78 = vadd.f32 %v74, 1e-06
  %v79 = vadd.f32 %v75, 1e-06
  %v80 = vadd.f32 %v76, 1e-06
  %v81 = vadd.f32 %v77, 1e-06
  %v82 = vrsqrt.pop %v78
  %v83 = vrsqrt.pop %v79
  %v84 = vrsqrt.pop %v80
  %v85 = vrsqrt.pop %v81
  %v86 = vmul.f32 %v54, %v82
  %v87 = vmul.f32 %v55, %v83
  %v88 = vmul.f32 %v56, %v84
  %v89 = vmul.f32 %v57, %v85
  %v91 = vlaneseq
  %v92 = vshrl.u32 %v91, 7
  %v93 = vsub.s32 0, %v92
  %v94 = vrot.slane %v34, %v93
  %v96 = vmul.f32 %v86, %v94
  %v97 = vmul.f32 %v87, %v94
  %v98 = vmul.f32 %v88, %v94
  %v99 = vmul.f32 %v89, %v94
  %v101 = vlaneseq
  %v102 = vshrl.u32 %v101, 7
  %v103 = vsub.s32 0, %v102
  %v104 = vrot.slane %v35, %v103
  %v106 = vadd.f32 %v96, %v104
  %v107 = vadd.f32 %v97, %v104
  %v108 = vadd.f32 %v98, %v104
  %v109 = vadd.f32 %v99, %v104
  %v110 = vld [vmem:[%s4] sm:$0xf]
  %v111 = vld [vmem:[%s4 + $0x4] sm:$0xf]
  %v112 = vld [vmem:[%s4 + $0x8] sm:$0xf]
  %v113 = vld [vmem:[%s4 + $0xc] sm:$0xf]
  %v114 = vpack.c.bf16 %v107, %v106
  %v115 = vpack.c.bf16 %v109, %v108
  %v116 = vld [vmem:[%s5] sm:$0x1]
  %v118 = vlaneseq
  %v119 = vshrl.u32 %v118, 7
  %v120 = vsub.s32 0, %v119
  %v121 = vrot.slane %v116, %v120
  %v127 = vunpack.c.l.b16 %v110
  %v128 = vunpack.c.l.b16 %v111
  %v129 = vunpack.c.l.b16 %v112
  %v130 = vunpack.c.l.b16 %v113
  %v131 = vpack.c.b16 %v128, %v127
  %v132 = vpack.c.b16 %v130, %v129
  %v136 = vsel %vm36, %v114, 0
  %v139 = vsel %vm36, %v115, 0
  %141 = vmatprep.subr.bf16.mxu0 0
  %142 = vmatpush1.bf16.msra.mxu0 %v131
  %143 = vmatprep.subr.bf16.mxu0 0
  %144 = vmatpush1.bf16.msra.mxu0 %v132
  %145 = vmatprep.subr.bf16.mxu0 0
  %146 = vmatpush1.bf16.msra.mxu0 0
  %147 = vmatprep.subr.bf16.mxu0 0
  %148 = vmatpush1.bf16.msra.mxu0 0
  %149 = vmatprep.subr.bf16.mxu0 0
  %150 = vmatpush1.bf16.msra.mxu0 0
  %151 = vmatprep.subr.bf16.mxu0 0
  %152 = vmatpush1.bf16.msra.mxu0 0
  %153 = vmatprep.subr.bf16.mxu0 0
  %154 = vmatpush1.bf16.msra.mxu0 0
  %155 = vmatprep.subr.bf16.mxu0 0
  %156 = vmatpush1.bf16.msra.mxu0 0
  %157 = vmatprep.subr.bf16.mxu0 0
  %158 = vmatpush1.bf16.msra.mxu0 0
  %159 = vmatprep.subr.bf16.mxu0 0
  %160 = vmatpush1.bf16.msra.mxu0 0
  %161 = vmatprep.subr.bf16.mxu0 0
  %162 = vmatpush1.bf16.msra.mxu0 0
  %163 = vmatprep.subr.bf16.mxu0 0
  %164 = vmatpush1.bf16.msra.mxu0 0
  %165 = vmatprep.subr.bf16.mxu0 0
  %166 = vmatpush1.bf16.msra.mxu0 0
  %167 = vmatprep.subr.bf16.mxu0 0
  %168 = vmatpush1.bf16.msra.mxu0 0
  %169 = vmatprep.subr.bf16.mxu0 0
  %170 = vmatpush1.bf16.msra.mxu0 0
  %171 = vmatprep.subr.bf16.mxu0 0
  %172 = vmatpush1.bf16.msra.mxu0 0
  %173 = vmatprep.mubr.bf16.mxu0 0
  %174 = vmatmul.mubr.bf16.gmra.mrb[0].mxu0 %v136
  %v175 = vpop.f32.mrb[0].mxu0
  %v176 = vadd.f32 %v121, %v175
  %v177 = vpop.f32.mrb[0].mxu0
  %v178 = vpop.f32.mrb[0].mxu0
  %v179 = vadd.f32 %v121, %v178
  %v180 = vpop.f32.mrb[0].mxu0
  %181 = vmatprep.mubr.bf16.mxu0 0
  %182 = vmatmul.mubr.bf16.gmra.mrb[0].mxu0 %v139
  %v183 = vpop.f32.mrb[0].mxu0
  %v184 = vadd.f32 %v121, %v183
  %v185 = vpop.f32.mrb[0].mxu0
  %v186 = vpop.f32.mrb[0].mxu0
  %v187 = vadd.f32 %v121, %v186
  %v188 = vpop.f32.mrb[0].mxu0
  %189 = vdwg.mxu0
  %v190 = vmul.f32 %v176, 0.5
  %v191 = vmul.f32 %v179, 0.5
  %v192 = vmul.f32 %v184, 0.5
  %v193 = vmul.f32 %v187, 0.5
  %v194 = vmul.f32 %v176, 0.70710677
  %v195 = vmul.f32 %v179, 0.70710677
  %v196 = vmul.f32 %v184, 0.70710677
  %v197 = vmul.f32 %v187, 0.70710677
  %v198 = verf.f32.pop %v194
  %v199 = verf.f32.pop %v195
  %v200 = verf.f32.pop %v196
  %v201 = verf.f32.pop %v197
  %v202 = vadd.f32 %v198, 1.0
  %v203 = vadd.f32 %v199, 1.0
  %v204 = vadd.f32 %v200, 1.0
  %v205 = vadd.f32 %v201, 1.0
  %v206 = vmul.f32 %v190, %v202
  %v207 = vmul.f32 %v191, %v203
  %v208 = vmul.f32 %v192, %v204
  %v209 = vmul.f32 %v193, %v205
  %v210 = vld [vmem:[%s6] sm:$0xf]
  %v211 = vld [vmem:[%s6 + $0x4] sm:$0xf]
  %v212 = vld [vmem:[%s6 + $0x8] sm:$0xf]
  %v213 = vld [vmem:[%s6 + $0xc] sm:$0xf]
  %v214 = vld [vmem:[%s6 + $0x10] sm:$0xf]
  %v215 = vld [vmem:[%s6 + $0x14] sm:$0xf]
  %v216 = vld [vmem:[%s6 + $0x18] sm:$0xf]
  %v217 = vld [vmem:[%s6 + $0x1c] sm:$0xf]
  %v218 = vld [vmem:[%s6 + $0x20] sm:$0xf]
  %v219 = vld [vmem:[%s6 + $0x24] sm:$0xf]
  %v220 = vld [vmem:[%s6 + $0x28] sm:$0xf]
  %v221 = vld [vmem:[%s6 + $0x2c] sm:$0xf]
  %v222 = vld [vmem:[%s6 + $0x30] sm:$0xf]
  %v223 = vld [vmem:[%s6 + $0x34] sm:$0xf]
  %v224 = vld [vmem:[%s6 + $0x38] sm:$0xf]
  %v225 = vld [vmem:[%s6 + $0x3c] sm:$0xf]
  %v226 = vpack.c.bf16 %v207, %v206
  %v227 = vpack.c.bf16 %v209, %v208
  %v228 = vld [vmem:[%s7] sm:$0x1]
  %v230 = vlaneseq
  %v231 = vshrl.u32 %v230, 7
  %v232 = vsub.s32 0, %v231
  %v233 = vrot.slane %v228, %v232
  %v251 = vunpack.c.l.b16 %v210
  %v252 = vunpack.c.l.b16 %v211
  %v253 = vunpack.c.l.b16 %v212
  %v254 = vunpack.c.l.b16 %v213
  %v255 = vunpack.c.l.b16 %v214
  %v256 = vunpack.c.l.b16 %v215
  %v257 = vunpack.c.l.b16 %v216
  %v258 = vunpack.c.l.b16 %v217
  %v259 = vunpack.c.l.b16 %v218
  %v260 = vunpack.c.l.b16 %v219
  %v261 = vunpack.c.l.b16 %v220
  %v262 = vunpack.c.l.b16 %v221
  %v263 = vunpack.c.l.b16 %v222
  %v264 = vunpack.c.l.b16 %v223
  %v265 = vunpack.c.l.b16 %v224
  %v266 = vunpack.c.l.b16 %v225
  %v267 = vpack.c.b16 %v252, %v251
  %v268 = vpack.c.b16 %v254, %v253
  %v269 = vpack.c.b16 %v256, %v255
  %v270 = vpack.c.b16 %v258, %v257
  %v271 = vpack.c.b16 %v260, %v259
  %v272 = vpack.c.b16 %v262, %v261
  %v273 = vpack.c.b16 %v264, %v263
  %v274 = vpack.c.b16 %v266, %v265
  %283 = vmatprep.subr.bf16.mxu0 0
  %284 = vmatpush1.bf16.msra.mxu0 %v267
  %285 = vmatprep.subr.bf16.mxu0 0
  %286 = vmatpush1.bf16.msra.mxu0 %v268
  %287 = vmatprep.subr.bf16.mxu0 0
  %288 = vmatpush1.bf16.msra.mxu0 %v269
  %289 = vmatprep.subr.bf16.mxu0 0
  %290 = vmatpush1.bf16.msra.mxu0 %v270
  %291 = vmatprep.subr.bf16.mxu0 0
  %292 = vmatpush1.bf16.msra.mxu0 %v271
  %293 = vmatprep.subr.bf16.mxu0 0
  %294 = vmatpush1.bf16.msra.mxu0 %v272
  %295 = vmatprep.subr.bf16.mxu0 0
  %296 = vmatpush1.bf16.msra.mxu0 %v273
  %297 = vmatprep.subr.bf16.mxu0 0
  %298 = vmatpush1.bf16.msra.mxu0 %v274
  %299 = vmatprep.subr.bf16.mxu0 0
  %300 = vmatpush1.bf16.msra.mxu0 0
  %301 = vmatprep.subr.bf16.mxu0 0
  %302 = vmatpush1.bf16.msra.mxu0 0
  %303 = vmatprep.subr.bf16.mxu0 0
  %304 = vmatpush1.bf16.msra.mxu0 0
  %305 = vmatprep.subr.bf16.mxu0 0
  %306 = vmatpush1.bf16.msra.mxu0 0
  %307 = vmatprep.subr.bf16.mxu0 0
  %308 = vmatpush1.bf16.msra.mxu0 0
  %309 = vmatprep.subr.bf16.mxu0 0
  %310 = vmatpush1.bf16.msra.mxu0 0
  %311 = vmatprep.subr.bf16.mxu0 0
  %312 = vmatpush1.bf16.msra.mxu0 0
  %313 = vmatprep.subr.bf16.mxu0 0
  %314 = vmatpush1.bf16.msra.mxu0 0
  %315 = vmatprep.mubr.bf16.mxu0 0
  %316 = vmatmul.mubr.bf16.gmra.mrb[0].mxu0 %v226
  %v317 = vpop.f32.mrb[0].mxu0
  %v318 = vadd.f32 %v233, %v317
  %v319 = vpop.f32.mrb[0].mxu0
  %v320 = vpop.f32.mrb[0].mxu0
  %v321 = vadd.f32 %v233, %v320
  %v322 = vpop.f32.mrb[0].mxu0
  %323 = vmatprep.mubr.bf16.mxu0 0
  %324 = vmatmul.mubr.bf16.gmra.mrb[0].mxu0 %v227
  %v325 = vpop.f32.mrb[0].mxu0
  %v326 = vadd.f32 %v233, %v325
  %v327 = vpop.f32.mrb[0].mxu0
  %v328 = vpop.f32.mrb[0].mxu0
  %v329 = vadd.f32 %v233, %v328
  %v330 = vpop.f32.mrb[0].mxu0
  %331 = vdwg.mxu0
  %v332 = vld [vmem:[%s1] sm:$0xff]
  %v333 = vld [vmem:[%s1 + $0x8] sm:$0xff]
  %v334 = vld [vmem:[%s1 + $0x10] sm:$0xff]
  %v335 = vld [vmem:[%s1 + $0x18] sm:$0xff]
  %v336 = vadd.f32 %v332, %v318
  %v337 = vadd.f32 %v333, %v321
  %v338 = vadd.f32 %v334, %v326
  %v339 = vadd.f32 %v335, %v329
  %340 = vst.msk [vmem:[%s8] sm:$0xff] %vm36, %v336
  %341 = vst.msk [vmem:[%s8 + $0x8] sm:$0xff] %vm36, %v337
  %342 = vst.msk [vmem:[%s8 + $0x10] sm:$0xff] %vm36, %v338
  %343 = vst.msk [vmem:[%s8 + $0x18] sm:$0xff] %vm36, %v339
  // Predicated region
  $region34: #{forward.27} parent=0 // pred_check
    _
  $region35: #{forward.27} parent=0 // pred_check_branch
    %345 = sbr.rel (0) target = $region37
  $region36: #{forward.27} parent=0 // pred_region
    _
  $region37: #{forward.27} parent=0 // pred_fallthru
    _
  // Predicated region
  $region38: #{forward.27} parent=0 // pred_check
    _
  $region39: #{forward.27} parent=0 // pred_check_branch
    %347 = sbr.rel (0) target = $region41
  $region40: #{forward.27} parent=0 // pred_region
    _
  $region41: #{forward.27} parent=0 // pred_fallthru
    _

// kernel: forward.26
$region0: #{forward.26}
  #allocation0 [shape = 'u32[]', space=smem, size = 0x4, offset = 0x4, fixed_abs, tag = 'smem constant byte address 0x4 - core index']
  #allocation1 [shape = 'u32[144,128]{1,0:T(1,128)}', space=vmem, size = 0x12000, scoped, tag = 'internal scratch']
  #allocation2 [shape = 'f32[1,14,14,12]{3,2,1,0:T(8,128)}', space=vmem, size = 0x1c000, scoped, tag = 'scratch operand']
  %s0 = inlined_call_operand.vmem [shape: f32[2,4,4,32], index: 0, kind: input, shape index: {}]
  %s1 = inlined_call_operand.vmem [shape: f32[25,12], index: 1, kind: input, shape index: {}]
  %s2 = inlined_call_operand.vmem [shape: f32[1,12], index: 2, kind: input, shape index: {}]
  %s3 = inlined_call_operand.vmem [shape: f32[2,4,4,32], index: 3, kind: output, shape index: {}]
  %s4 = sld [smem:[#allocation0]]
  $region45: #{forward.26} parent=0
    _
  %s6 = ssub.s32 1, %s4
  %s7 = scalar_select 0, %s6, %s4
  loop: start=0, step=1, limit=4
  $region2: #{forward.26} parent=0 // loop_pre_header
    _
  $region3: #{forward.26} parent=0 // loop_header
    %s9 = sphi 0, %s13
    %p10 = scmp.ge.s32.totalorder %s9, 4
    %s19 = sphi 0, %s21
    %s22 = sphi 0, %s19
    %s23 = sphi 0, %s22
    %s39 = sphi 0, %s23
    %s43 = sphi 0, %s43
    %s45 = sphi 0, %s43
    %s46 = sphi 0, %s45
    %s60 = sphi 0, %s46
    %s64 = sphi 0, %s64
    %s66 = sphi 0, %s64
    %s67 = sphi 0, %s66
    %s81 = sphi 0, %s67
    %s87 = sphi 0, %s89
    %s90 = sphi 0, %s87
    %s91 = sphi 0, %s90
    %s107 = sphi 0, %s91
  $region4: #{forward.26} parent=0 // loop_header_branch
    %12 = sbr.rel (%p10) target = $region8
  $region5: #{forward.26} parent=0 // loop_body
    %s14 = ssub.s32 %s9, 1
    %s15 = ssub.s32 %s9, 2
    %s16 = sadd.s32 %s9, 1
    %s17 = ssub.s32 %s9, %s16
    %p18 = scmp.eq.s32.totalorder %s17, 0
    %s20 = sadd.s32 %s19, 1
    %s21 = scalar_select %p18, %s19, %s20
    %p24 = pneg %p18
    %p25 = scmp.eq.s32.totalorder %s9, 1
    %p26 = por %p24, %p25
    %p27 = scmp.ne.s32.totalorder %s19, %s22
    %p28 = scmp.eq.s32.totalorder %s9, 0
    %p29 = por %p27, %p28
    %p30 = scmp.ne.s32.totalorder %s19, %s22
    %p31 = scmp.eq.s32.totalorder %s14, 1
    %p32 = por %p30, %p31
    %p33 = scmp.ne.s32.totalorder %s22, %s23
    %p34 = scmp.eq.s32.totalorder %s14, 0
    %p35 = por %p33, %p34
    %p36 = scmp.ne.s32.totalorder %s22, %s23
    %p37 = scmp.eq.s32.totalorder %s15, 1
    %p38 = por %p36, %p37
    %p40 = scmp.ne.s32.totalorder %s23, %s39
    %p41 = scmp.eq.s32.totalorder %s15, 0
    %p42 = por %p40, %p41
    %s44 = sadd.s32 %s43, 1
    %p47 = scmp.eq.s32.totalorder %s9, 1
    %p48 = scmp.ne.s32.totalorder %s43, %s45
    %p49 = scmp.eq.s32.totalorder %s9, 0
    %p50 = por %p48, %p49
    %p51 = scmp.ne.s32.totalorder %s43, %s45
    %p52 = scmp.eq.s32.totalorder %s14, 1
    %p53 = por %p51, %p52
    %p54 = scmp.ne.s32.totalorder %s45, %s46
    %p55 = scmp.eq.s32.totalorder %s14, 0
    %p56 = por %p54, %p55
    %p57 = scmp.ne.s32.totalorder %s45, %s46
    %p58 = scmp.eq.s32.totalorder %s15, 1
    %p59 = por %p57, %p58
    %p61 = scmp.ne.s32.totalorder %s46, %s60
    %p62 = scmp.eq.s32.totalorder %s15, 0
    %p63 = por %p61, %p62
    %s65 = sadd.s32 %s64, 1
    %p68 = scmp.eq.s32.totalorder %s9, 1
    %p69 = scmp.ne.s32.totalorder %s64, %s66
    %p70 = scmp.eq.s32.totalorder %s9, 0
    %p71 = por %p69, %p70
    %p72 = scmp.ne.s32.totalorder %s64, %s66
    %p73 = scmp.eq.s32.totalorder %s14, 1
    %p74 = por %p72, %p73
    %p75 = scmp.ne.s32.totalorder %s66, %s67
    %p76 = scmp.eq.s32.totalorder %s14, 0
    %p77 = por %p75, %p76
    %p78 = scmp.ne.s32.totalorder %s66, %s67
    %p79 = scmp.eq.s32.totalorder %s15, 1
    %p80 = por %p78, %p79
    %p82 = scmp.ne.s32.totalorder %s67, %s81
    %p83 = scmp.eq.s32.totalorder %s15, 0
    %p84 = por %p82, %p83
    %s85 = ssub.s32 %s9, %s16
    %p86 = scmp.eq.s32.totalorder %s85, 0
    %s88 = sadd.s32 %s87, 1
    %s89 = scalar_select %p86, %s87, %s88
    %p92 = pneg %p86
    %p93 = scmp.eq.s32.totalorder %s9, 1
    %p94 = por %p92, %p93
    %p95 = scmp.ne.s32.totalorder %s87, %s90
    %p96 = scmp.eq.s32.totalorder %s9, 0
    %p97 = por %p95, %p96
    %p98 = scmp.ne.s32.totalorder %s87, %s90
    %p99 = scmp.eq.s32.totalorder %s14, 1
    %p100 = por %p98, %p99
    %p101 = scmp.ne.s32.totalorder %s90, %s91
    %p102 = scmp.eq.s32.totalorder %s14, 0
    %p103 = por %p101, %p102
    %p104 = scmp.ne.s32.totalorder %s90, %s91
    %p105 = scmp.eq.s32.totalorder %s15, 1
    %p106 = por %p104, %p105
    %p108 = scmp.ne.s32.totalorder %s91, %s107
    %p109 = scmp.eq.s32.totalorder %s15, 0
    %p110 = por %p108, %p109
    %p111 = scmp.le.s32.totalorder 1, %s9
    %p112 = scmp.lt.s32.totalorder %s9, 3
    %p113 = pnand %p111, %p112
    %p114 = pneg %p113
    // Predicated region
    $region9: #{forward.26} parent=5 // pred_check
      _
    $region10: #{forward.26} parent=5 // pred_check_branch
      %116 = sbr.rel (%p113) target = $region12
    $region11: #{forward.26} parent=5 // pred_region
      %s117 = ssub.s32 %s9, 1
      // Predicated region
      $region13: #{forward.26} parent=11 // pred_check
        %p118 = pneg %p56
      $region14: #{forward.26} parent=11 // pred_check_branch
        %120 = sbr.rel (%p118) target = $region16
      $region15: #{forward.26} parent=11 // pred_region
        _
      $region16: #{forward.26} parent=11 // pred_fallthru
        _
      // Predicated region
      $region17: #{forward.26} parent=11 // pred_check
        %p121 = pneg %p77
      $region18: #{forward.26} parent=11 // pred_check_branch
        %123 = sbr.rel (%p121) target = $region20
      $region19: #{forward.26} parent=11 // pred_region
        _
      $region20: #{forward.26} parent=11 // pred_fallthru
        _
    $region12: #{forward.26} parent=5 // pred_fallthru
      _
    %p124 = scmp.lt.s32.totalorder %s9, 2
    // Predicated region
    $region21: #{forward.26} parent=5 // pred_check
      %p125 = pneg %p124
    $region22: #{forward.26} parent=5 // pred_check_branch
      %127 = sbr.rel (%p125) target = $region24
    $region23: #{forward.26} parent=5 // pred_region
      // Predicated region
      $region25: #{forward.26} parent=23 // pred_check
        %p128 = pneg %p29
      $region26: #{forward.26} parent=23 // pred_check_branch
        %130 = sbr.rel (%p128) target = $region28
      $region27: #{forward.26} parent=23 // pred_region
        %p131 = scmp.lt.s32.totalorder %s9, 1
        %s132 = scalar_select %p131, %s9, 1
        %s133 = smul.addr %s132, 4
        %s134 = smul.addr %s133, 4
        %s135 = scalar_lea.vmem %s0, %s134
      $region28: #{forward.26} parent=23 // pred_fallthru
        _
    $region24: #{forward.26} parent=5 // pred_fallthru
      _
    %p136 = scmp.le.s32.totalorder 1, %s9
    %p137 = scmp.lt.s32.totalorder %s9, 3
    %p138 = pnand %p136, %p137
    %p139 = pneg %p138
    // Predicated region
    $region29: #{forward.26} parent=5 // pred_check
      _
    $region30: #{forward.26} parent=5 // pred_check_branch
      %141 = sbr.rel (%p138) target = $region32
    $region31: #{forward.26} parent=5 // pred_region
      %s142 = ssub.s32 %s9, 1
      %p143 = scmp.lt.s32.totalorder %s14, 1
      %s144 = scalar_select %p143, %s14, 1
      %s145 = smul.addr %s144, 4
      %s146 = smul.addr %s145, 4
      %s147 = scalar_lea.vmem %s0, %s146
      %p148 = pneg %p35
      %p149 = pneg %p32
      %p150 = pneg %p56
      %p151 = pneg %p53
      %p152 = pneg %p77
      %p153 = pneg %p74
      %p154 = pneg %p103
      %p155 = pneg %p100
      %p156 = scmp.lt.s32.totalorder %s14, 1
      %s157 = scalar_select %p156, %s14, 1
      %s158 = smul.addr %s157, 4
      %s159 = smul.addr %s158, 4
      %s160 = scalar_lea.vmem %s3, %s159
      %p161 = scmp.lt.s32.totalorder %s14, 1
      %s162 = scalar_select %p161, %s14, 1
      %s163 = smul.addr %s162, 4
      %s164 = smul.addr %s163, 4
      %s165 = scalar_lea.vmem %s0, %s164
      %p166 = scmp.lt.s32.totalorder %s14, 1
      %s167 = scalar_select %p166, %s14, 1
      %s168 = smul.addr %s167, 4
      %s169 = smul.addr %s168, 4
      %s170 = scalar_lea.vmem %s3, %s169
      %v171 = vld [vmem:[%s165] sm:$0xf]
      %v172 = vld [vmem:[%s165 + $0x4] sm:$0xf]
      %v173 = vld [vmem:[%s165 + $0x8] sm:$0xf]
      %v174 = vld [vmem:[%s165 + $0xc] sm:$0xf]
      %vm175 = vcmask 97280
      %176 = vst.msk [vmem:[#allocation2] sm:$0xff] %vm175, 0.0
      %vm177 = vcmask 95232
      %178 = vst.msk [vmem:[#allocation2 + $0x8] sm:$0x3f] %vm177, 0.0
      %179 = vst.msk [vmem:[#allocation2 + $0x10] sm:$0xff] %vm175, 0.0
      %180 = vst.msk [vmem:[#allocation2 + $0x18] sm:$0x3f] %vm177, 0.0
      %181 = vst.msk [vmem:[#allocation2 + $0x20] sm:$0xff] %vm175, 0.0
      %182 = vst.msk [vmem:[#allocation2 + $0x28] sm:$0x3f] %vm177, 0.0
      %183 = vst.msk [vmem:[#allocation2 + $0x30] sm:$0xff] %vm175, 0.0
      %184 = vst.msk [vmem:[#allocation2 + $0x38] sm:$0x3f] %vm177, 0.0
      %185 = vst.msk [vmem:[#allocation2 + $0x40] sm:$0xff] %vm175, 0.0
      %186 = vst.msk [vmem:[#allocation2 + $0x48] sm:$0x3f] %vm177, 0.0
      %187 = vst.msk [vmem:[#allocation2 + $0x50] sm:$0xff] %vm175, 0.0
      %188 = vst.msk [vmem:[#allocation2 + $0x58] sm:$0x3f] %vm177, 0.0
      %189 = vst.msk [vmem:[#allocation2 + $0x60] sm:$0xff] %vm175, 0.0
      %190 = vst.msk [vmem:[#allocation2 + $0x68] sm:$0x3f] %vm177, 0.0
      %191 = vst.msk [vmem:[#allocation2 + $0x70] sm:$0xff] %vm175, 0.0
      %192 = vst.msk [vmem:[#allocation2 + $0x78] sm:$0x3f] %vm177, 0.0
      %193 = vst.msk [vmem:[#allocation2 + $0x80] sm:$0xff] %vm175, 0.0
      %194 = vst.msk [vmem:[#allocation2 + $0x88] sm:$0x3f] %vm177, 0.0
      %195 = vst.msk [vmem:[#allocation2 + $0x90] sm:$0xff] %vm175, 0.0
      %196 = vst.msk [vmem:[#allocation2 + $0x98] sm:$0x3f] %vm177, 0.0
      %197 = vst.msk [vmem:[#allocation2 + $0xa0] sm:$0xff] %vm175, 0.0
      %198 = vst.msk [vmem:[#allocation2 + $0xa8] sm:$0x3f] %vm177, 0.0
      %199 = vst.msk [vmem:[#allocation2 + $0xb0] sm:$0xff] %vm175, 0.0
      %200 = vst.msk [vmem:[#allocation2 + $0xb8] sm:$0x3f] %vm177, 0.0
      %201 = vst.msk [vmem:[#allocation2 + $0xc0] sm:$0xff] %vm175, 0.0
      %202 = vst.msk [vmem:[#allocation2 + $0xc8] sm:$0x3f] %vm177, 0.0
      %203 = vst.msk [vmem:[#allocation2 + $0xd0] sm:$0xff] %vm175, 0.0
      %204 = vst.msk [vmem:[#allocation2 + $0xd8] sm:$0x3f] %vm177, 0.0
      %209 = vrot.lane.b32.xlu0 %v171, 108
      %v210 = vpop.permute.xlu0 %209
      %211 = vrot.lane.b32.xlu0 %v172, 108
      %v212 = vpop.permute.xlu0 %211
      %213 = vrot.lane.b32.xlu0 %v173, 108
      %v214 = vpop.permute.xlu0 %213
      %215 = vrot.lane.b32.xlu0 %v174, 108
      %v216 = vpop.permute.xlu0 %215
      %s221 = scalar_lea.vmem [#allocation2], 80
      %vm222 = vcmask 93184
      %223 = vst.msk [vmem:[%s221 + $0x5] sm:$0xf] %vm222, %v210
      %224 = vst.msk [vmem:[%s221 + $0x15] sm:$0xf] %vm222, %v212
      %225 = vst.msk [vmem:[%s221 + $0x25] sm:$0xf] %vm222, %v214
      %226 = vst.msk [vmem:[%s221 + $0x35] sm:$0xf] %vm222, %v216
      %v227 = vld [vmem:[%s1] sm:$0xff]
      %v228 = vld [vmem:[%s1 + $0x8] sm:$0xff]
      %v229 = vld [vmem:[%s1 + $0x10] sm:$0xff]
      %v230 = vld [vmem:[%s1 + $0x18] sm:$0x1]
      %v231 = vld [vmem:[%s2] sm:$0x1]
      %s232 = scalar_lea.vmem [#allocation2], 64
      %v233 = vld [vmem:[%s232 + $0x4] sm:$0xf]
      %v234 = vld [vmem:[%s232 + $0x14] sm:$0xf]
      %v235 = vld [vmem:[%s232 + $0x24] sm:$0xf]
      %v236 = vld [vmem:[%s232 + $0x34] sm:$0xf]
      %v237 = vlaneseq
      %v238 = vshrl.u32 %v237, 7
      %v239 = vsub.s32 0, %v238
      %v240 = vrot.slane %v227, %v239
      %v241 = vmul.f32 %v233, %v240
      %v242 = vmul.f32 %v234, %v240
      %v243 = vmul.f32 %v235, %v240
      %v244 = vmul.f32 %v236, %v240
      %v246 = vlaneseq
      %v247 = vshrl.u32 %v246, 7
      %v248 = vsub.s32 0, %v247
      %v249 = vrot.slane %v231, %v248
      %v251 = vadd.f32 %v249, %v241
      %v252 = vadd.f32 %v249, %v242
      %v253 = vadd.f32 %v249, %v243
      %v254 = vadd.f32 %v249, %v244
      %v255 = vld [vmem:[%s232 + $0x5] sm:$0xf]
      %v256 = vld [vmem:[%s232 + $0x15] sm:$0xf]
      %v257 = vld [vmem:[%s232 + $0x25] sm:$0xf]
      %v258 = vld [vmem:[%s232 + $0x35] sm:$0xf]
      %v259 = vlaneseq
      %v260 = vshrl.u32 %v259, 7
      %v261 = vsub.s32 1, %v260
      %v262 = vrot.slane %v227, %v261
      %v263 = vmul.f32 %v255, %v262
      %v264 = vmul.f32 %v256, %v262
      %v265 = vmul.f32 %v257, %v262
      %v266 = vmul.f32 %v258, %v262
      %v267 = vadd.f32 %v251, %v263
      %v268 = vadd.f32 %v252, %v264
      %v269 = vadd.f32 %v253, %v265
      %v270 = vadd.f32 %v254, %v266
      %v271 = vld [vmem:[%s232 + $0x6] sm:$0xf]
      %v272 = vld [vmem:[%s232 + $0x16] sm:$0xf]
      %v273 = vld [vmem:[%s232 + $0x26] sm:$0xf]
      %v274 = vld [vmem:[%s232 + $0x36] sm:$0xf]
      %v275 = vlaneseq
      %v276 = vshrl.u32 %v275, 7
      %v277 = vsub.s32 2, %v276
      %v278 = vrot.slane %v227, %v277
      %v279 = vmul.f32 %v271, %v278
      %v280 = vmul.f32 %v272, %v278
      %v281 = vmul.f32 %v273, %v278
      %v282 = vmul.f32 %v274, %v278
      %v283 = vadd.f32 %v267, %v279
      %v284 = vadd.f32 %v268, %v280
      %v285 = vadd.f32 %v269, %v281
      %v286 = vadd.f32 %v270, %v282
      %v287 = vld [vmem:[%s221 + $0x4] sm:$0xf]
      %v288 = vld [vmem:[%s221 + $0x14] sm:$0xf]
      %v289 = vld [vmem:[%s221 + $0x24] sm:$0xf]
      %v290 = vld [vmem:[%s221 + $0x34] sm:$0xf]
      %v291 = vlaneseq
      %v292 = vshrl.u32 %v291, 7
      %v293 = vsub.s32 3, %v292
      %v294 = vrot.slane %v227, %v293
      %v295 = vmul.f32 %v287, %v294
      %v296 = vmul.f32 %v288, %v294
      %v297 = vmul.f32 %v289, %v294
      %v298 = vmul.f32 %v290, %v294
      %v299 = vadd.f32 %v283, %v295
      %v300 = vadd.f32 %v284, %v296
      %v301 = vadd.f32 %v285, %v297
      %v302 = vadd.f32 %v286, %v298
      %v303 = vld [vmem:[%s221 + $0x5] sm:$0xf]
      %v304 = vld [vmem:[%s221 + $0x15] sm:$0xf]
      %v305 = vld [vmem:[%s221 + $0x25] sm:$0xf]
      %v306 = vld [vmem:[%s221 + $0x35] sm:$0xf]
      %v307 = vlaneseq
      %v308 = vshrl.u32 %v307, 7
      %v309 = vsub.s32 4, %v308
      %v310 = vrot.slane %v227, %v309
      %v311 = vmul.f32 %v303, %v310
      %v312 = vmul.f32 %v304, %v310
      %v313 = vmul.f32 %v305, %v310
      %v314 = vmul.f32 %v306, %v310
      %v315 = vadd.f32 %v299, %v311
      %v316 = vadd.f32 %v300, %v312
      %v317 = vadd.f32 %v301, %v313
      %v318 = vadd.f32 %v302, %v314
      %v319 = vld [vmem:[%s221 + $0x6] sm:$0xf]
      %v320 = vld [vmem:[%s221 + $0x16] sm:$0xf]
      %v321 = vld [vmem:[%s221 + $0x26] sm:$0xf]
      %v322 = vld [vmem:[%s221 + $0x36] sm:$0xf]
      %v323 = vlaneseq
      %v324 = vshrl.u32 %v323, 7
      %v325 = vsub.s32 5, %v324
      %v326 = vrot.slane %v227, %v325
      %v327 = vmul.f32 %v319, %v326
      %v328 = vmul.f32 %v320, %v326
      %v329 = vmul.f32 %v321, %v326
      %v330 = vmul.f32 %v322, %v326
      %v331 = vadd.f32 %v315, %v327
      %v332 = vadd.f32 %v316, %v328
      %v333 = vadd.f32 %v317, %v329
      %v334 = vadd.f32 %v318, %v330
      %s335 = scalar_lea.vmem [#allocation2], 96
      %v336 = vld [vmem:[%s335 + $0x4] sm:$0xf]
      %v337 = vld [vmem:[%s335 + $0x14] sm:$0xf]
      %v338 = vld [vmem:[%s335 + $0x24] sm:$0xf]
      %v339 = vld [vmem:[%s335 + $0x34] sm:$0xf]
      %v340 = vlaneseq
      %v341 = vshrl.u32 %v340, 7
      %v342 = vsub.s32 6, %v341
      %v343 = vrot.slane %v227, %v342
      %v344 = vmul.f32 %v336, %v343
      %v345 = vmul.f32 %v337, %v343
      %v346 = vmul.f32 %v338, %v343
      %v347 = vmul.f32 %v339, %v343
      %v348 = vadd.f32 %v331, %v344
      %v349 = vadd.f32 %v332, %v345
      %v350 = vadd.f32 %v333, %v346
      %v351 = vadd.f32 %v334, %v347
      %v352 = vld [vmem:[%s335 + $0x5] sm:$0xf]
      %v353 = vld [vmem:[%s335 + $0x15] sm:$0xf]
      %v354 = vld [vmem:[%s335 + $0x25] sm:$0xf]
      %v355 = vld [vmem:[%s335 + $0x35] sm:$0xf]
      %v356 = vlaneseq
      %v357 = vshrl.u32 %v356, 7
      %v358 = vsub.s32 7, %v357
      %v359 = vrot.slane %v227, %v358
      %v360 = vmul.f32 %v352, %v359
      %v361 = vmul.f32 %v353, %v359
      %v362 = vmul.f32 %v354, %v359
      %v363 = vmul.f32 %v355, %v359
      %v364 = vadd.f32 %v348, %v360
      %v365 = vadd.f32 %v349, %v361
      %v366 = vadd.f32 %v350, %v362
      %v367 = vadd.f32 %v351, %v363
      %v368 = vld [vmem:[%s335 + $0x6] sm:$0xf]
      %v369 = vld [vmem:[%s335 + $0x16] sm:$0xf]
      %v370 = vld [vmem:[%s335 + $0x26] sm:$0xf]
      %v371 = vld [vmem:[%s335 + $0x36] sm:$0xf]
      %v372 = vlaneseq
      %v373 = vshrl.u32 %v372, 7
      %v374 = vsub.s32 0, %v373
      %v375 = vrot.slane %v228, %v374
      %v376 = vmul.f32 %v368, %v375
      %v377 = vmul.f32 %v369, %v375
      %v378 = vmul.f32 %v370, %v375
      %v379 = vmul.f32 %v371, %v375
      %v380 = vadd.f32 %v364, %v376
      %v381 = vadd.f32 %v365, %v377
      %v382 = vadd.f32 %v366, %v378
      %v383 = vadd.f32 %v367, %v379
      %v384 = vld [vmem:[%s221] sm:$0xf]
      %v385 = vld [vmem:[%s221 + $0x10] sm:$0xf]
      %v386 = vld [vmem:[%s221 + $0x20] sm:$0xf]
      %v387 = vld [vmem:[%s221 + $0x30] sm:$0xf]
      %v388 = vlaneseq
      %v389 = vshrl.u32 %v388, 7
      %v390 = vsub.s32 1, %v389
      %v391 = vrot.slane %v228, %v390
      %v392 = vmul.f32 %v384, %v391
      %v393 = vmul.f32 %v385, %v391
      %v394 = vmul.f32 %v386, %v391
      %v395 = vmul.f32 %v387, %v391
      %v396 = vadd.f32 %v380, %v392
      %v397 = vadd.f32 %v381, %v393
      %v398 = vadd.f32 %v382, %v394
      %v399 = vadd.f32 %v383, %v395
      %v400 = vld [vmem:[%s221 + $0x1] sm:$0xf]
      %v401 = vld [vmem:[%s221 + $0x11] sm:$0xf]
      %v402 = vld [vmem:[%s221 + $0x21] sm:$0xf]
      %v403 = vld [vmem:[%s221 + $0x31] sm:$0xf]
      %v404 = vlaneseq
      %v405 = vshrl.u32 %v404, 7
      %v406 = vsub.s32 2, %v405
      %v407 = vrot.slane %v228, %v406
      %v408 = vmul.f32 %v400, %v407
      %v409 = vmul.f32 %v401, %v407
      %v410 = vmul.f32 %v402, %v407
      %v411 = vmul.f32 %v403, %v407
      %v412 = vadd.f32 %v396, %v408
      %v413 = vadd.f32 %v397, %v409
      %v414 = vadd.f32 %v398, %v410
      %v415 = vadd.f32 %v399, %v411
      %v416 = vld [vmem:[%s221 + $0x2] sm:$0xf]
      %v417 = vld [vmem:[%s221 + $0x12] sm:$0xf]
      %v418 = vld [vmem:[%s221 + $0x22] sm:$0xf]
      %v419 = vld [vmem:[%s221 + $0x32] sm:$0xf]
      %v420 = vlaneseq
      %v421 = vshrl.u32 %v420, 7
      %v422 = vsub.s32 3, %v421
      %v423 = vrot.slane %v228, %v422
      %v424 = vmul.f32 %v416, %v423
      %v425 = vmul.f32 %v417, %v423
      %v426 = vmul.f32 %v418, %v423
      %v427 = vmul.f32 %v419, %v423
      %v428 = vadd.f32 %v412, %v424
      %v429 = vadd.f32 %v413, %v425
      %v430 = vadd.f32 %v414, %v426
      %v431 = vadd.f32 %v415, %v427
      %v432 = vld [vmem:[%s221 + $0x3] sm:$0xf]
      %v433 = vld [vmem:[%s221 + $0x13] sm:$0xf]
      %v434 = vld [vmem:[%s221 + $0x23] sm:$0xf]
      %v435 = vld [vmem:[%s221 + $0x33] sm:$0xf]
      %v436 = vlaneseq
      %v437 = vshrl.u32 %v436, 7
      %v438 = vsub.s32 4, %v437
      %v439 = vrot.slane %v228, %v438
      %v440 = vmul.f32 %v432, %v439
      %v441 = vmul.f32 %v433, %v439
      %v442 = vmul.f32 %v434, %v439
      %v443 = vmul.f32 %v435, %v439
      %v444 = vadd.f32 %v428, %v440
      %v445 = vadd.f32 %v429, %v441
      %v446 = vadd.f32 %v430, %v442
      %v447 = vadd.f32 %v431, %v443
      %v448 = vld [vmem:[%s221 + $0x7] sm:$0xf]
      %v449 = vld [vmem:[%s221 + $0x17] sm:$0xf]
      %v450 = vld [vmem:[%s221 + $0x27] sm:$0xf]
      %v451 = vld [vmem:[%s221 + $0x37] sm:$0xf]
      %v452 = vlaneseq
      %v453 = vshrl.u32 %v452, 7
      %v454 = vsub.s32 5, %v453
      %v455 = vrot.slane %v228, %v454
      %v456 = vmul.f32 %v448, %v455
      %v457 = vmul.f32 %v449, %v455
      %v458 = vmul.f32 %v450, %v455
      %v459 = vmul.f32 %v451, %v455
      %v460 = vadd.f32 %v444, %v456
      %v461 = vadd.f32 %v445, %v457
      %v462 = vadd.f32 %v446, %v458
      %v463 = vadd.f32 %v447, %v459
      %v464 = vld [vmem:[%s221 + $0x8] sm:$0xf]
      %v465 = vld [vmem:[%s221 + $0x18] sm:$0xf]
      %v466 = vld [vmem:[%s221 + $0x28] sm:$0xf]
      %v467 = vld [vmem:[%s221 + $0x38] sm:$0xf]
      %v468 = vlaneseq
      %v469 = vshrl.u32 %v468, 7
      %v470 = vsub.s32 6, %v469
      %v471 = vrot.slane %v228, %v470
      %v472 = vmul.f32 %v464, %v471
      %v473 = vmul.f32 %v465, %v471
      %v474 = vmul.f32 %v466, %v471
      %v475 = vmul.f32 %v467, %v471
      %v476 = vadd.f32 %v460, %v472
      %v477 = vadd.f32 %v461, %v473
      %v478 = vadd.f32 %v462, %v474
      %v479 = vadd.f32 %v463, %v475
      %v480 = vld [vmem:[%s221 + $0x9] sm:$0xf]
      %v481 = vld [vmem:[%s221 + $0x19] sm:$0xf]
      %v482 = vld [vmem:[%s221 + $0x29] sm:$0xf]
      %v483 = vld [vmem:[%s221 + $0x39] sm:$0xf]
      %v484 = vlaneseq
      %v485 = vshrl.u32 %v484, 7
      %v486 = vsub.s32 7, %v485
      %v487 = vrot.slane %v228, %v486
      %v488 = vmul.f32 %v480, %v487
      %v489 = vmul.f32 %v481, %v487
      %v490 = vmul.f32 %v482, %v487
      %v491 = vmul.f32 %v483, %v487
      %v492 = vadd.f32 %v476, %v488
      %v493 = vadd.f32 %v477, %v489
      %v494 = vadd.f32 %v478, %v490
      %v495 = vadd.f32 %v479, %v491
      %v496 = vld [vmem:[%s221 + $0xa] sm:$0xf]
      %v497 = vld [vmem:[%s221 + $0x1a] sm:$0xf]
      %v498 = vld [vmem:[%s221 + $0x2a] sm:$0xf]
      %v499 = vld [vmem:[%s221 + $0x3a] sm:$0xf]
      %v500 = vlaneseq
      %v501 = vshrl.u32 %v500, 7
      %v502 = vsub.s32 0, %v501
      %v503 = vrot.slane %v229, %v502
      %v504 = vmul.f32 %v496, %v503
      %v505 = vmul.f32 %v497, %v503
      %v506 = vmul.f32 %v498, %v503
      %v507 = vmul.f32 %v499, %v503
      %v508 = vadd.f32 %v492, %v504
      %v509 = vadd.f32 %v493, %v505
      %v510 = vadd.f32 %v494, %v506
      %v511 = vadd.f32 %v495, %v507
      %v512 = vld [vmem:[#allocation2 + $0x5] sm:$0xf]
      %v513 = vld [vmem:[#allocation2 + $0x15] sm:$0xf]
      %v514 = vld [vmem:[#allocation2 + $0x25] sm:$0xf]
      %v515 = vld [vmem:[#allocation2 + $0x35] sm:$0xf]
      %v516 = vlaneseq
      %v517 = vshrl.u32 %v516, 7
      %v518 = vsub.s32 1, %v517
      %v519 = vrot.slane %v229, %v518
      %v520 = vmul.f32 %v512, %v519
      %v521 = vmul.f32 %v513, %v519
      %v522 = vmul.f32 %v514, %v519
      %v523 = vmul.f32 %v515, %v519
      %v524 = vadd.f32 %v508, %v520
      %v525 = vadd.f32 %v509, %v521
      %v526 = vadd.f32 %v510, %v522
      %v527 = vadd.f32 %v511, %v523
      %s528 = scalar_lea.vmem [#allocation2], 16
      %v529 = vld [vmem:[%s528 + $0x5] sm:$0xf]
      %v530 = vld [vmem:[%s528 + $0x15] sm:$0xf]
      %v531 = vld [vmem:[%s528 + $0x25] sm:$0xf]
      %v532 = vld [vmem:[%s528 + $0x35] sm:$0xf]
      %v533 = vlaneseq
      %v534 = vshrl.u32 %v533, 7
      %v535 = vsub.s32 2, %v534
      %v536 = vrot.slane %v229, %v535
      %v537 = vmul.f32 %v529, %v536
      %v538 = vmul.f32 %v530, %v536
      %v539 = vmul.f32 %v531, %v536
      %v540 = vmul.f32 %v532, %v536
      %v541 = vadd.f32 %v524, %v537
      %v542 = vadd.f32 %v525, %v538
      %v543 = vadd.f32 %v526, %v539
      %v544 = vadd.f32 %v527, %v540
      %s545 = scalar_lea.vmem [#allocation2], 32
      %v546 = vld [vmem:[%s545 + $0x5] sm:$0xf]
      %v547 = vld [vmem:[%s545 + $0x15] sm:$0xf]
      %v548 = vld [vmem:[%s545 + $0x25] sm:$0xf]
      %v549 = vld [vmem:[%s545 + $0x35] sm:$0xf]
      %v550 = vlaneseq
      %v551 = vshrl.u32 %v550, 7
      %v552 = vsub.s32 3, %v551
      %v553 = vrot.slane %v229, %v552
      %v554 = vmul.f32 %v546, %v553
      %v555 = vmul.f32 %v547, %v553
      %v556 = vmul.f32 %v548, %v553
      %v557 = vmul.f32 %v549, %v553
      %v558 = vadd.f32 %v541, %v554
      %v559 = vadd.f32 %v542, %v555
      %v560 = vadd.f32 %v543, %v556
      %v561 = vadd.f32 %v544, %v557
      %s562 = scalar_lea.vmem [#allocation2], 48
      %v563 = vld [vmem:[%s562 + $0x5] sm:$0xf]
      %v564 = vld [vmem:[%s562 + $0x15] sm:$0xf]
      %v565 = vld [vmem:[%s562 + $0x25] sm:$0xf]
      %v566 = vld [vmem:[%s562 + $0x35] sm:$0xf]
      %v567 = vlaneseq
      %v568 = vshrl.u32 %v567, 7
      %v569 = vsub.s32 4, %v568
      %v570 = vrot.slane %v229, %v569
      %v571 = vmul.f32 %v563, %v570
      %v572 = vmul.f32 %v564, %v570
      %v573 = vmul.f32 %v565, %v570
      %v574 = vmul.f32 %v566, %v570
      %v575 = vadd.f32 %v558, %v571
      %v576 = vadd.f32 %v559, %v572
      %v577 = vadd.f32 %v560, %v573
      %v578 = vadd.f32 %v561, %v574
      %s579 = scalar_lea.vmem [#allocation2], 112
      %v580 = vld [vmem:[%s579 + $0x5] sm:$0xf]
      %v581 = vld [vmem:[%s579 + $0x15] sm:$0xf]
      %v582 = vld [vmem:[%s579 + $0x25] sm:$0xf]
      %v583 = vld [vmem:[%s579 + $0x35] sm:$0xf]
      %v584 = vlaneseq
      %v585 = vshrl.u32 %v584, 7
      %v586 = vsub.s32 5, %v585
      %v587 = vrot.slane %v229, %v586
      %v588 = vmul.f32 %v580, %v587
      %v589 = vmul.f32 %v581, %v587
      %v590 = vmul.f32 %v582, %v587
      %v591 = vmul.f32 %v583, %v587
      %v592 = vadd.f32 %v575, %v588
      %v593 = vadd.f32 %v576, %v589
      %v594 = vadd.f32 %v577, %v590
      %v595 = vadd.f32 %v578, %v591
      %s596 = scalar_lea.vmem [#allocation2], 128
      %v597 = vld [vmem:[%s596 + $0x5] sm:$0xf]
      %v598 = vld [vmem:[%s596 + $0x15] sm:$0xf]
      %v599 = vld [vmem:[%s596 + $0x25] sm:$0xf]
      %v600 = vld [vmem:[%s596 + $0x35] sm:$0xf]
      %v601 = vlaneseq
      %v602 = vshrl.u32 %v601, 7
      %v603 = vsub.s32 6, %v602
      %v604 = vrot.slane %v229, %v603
      %v605 = vmul.f32 %v597, %v604
      %v606 = vmul.f32 %v598, %v604
      %v607 = vmul.f32 %v599, %v604
      %v608 = vmul.f32 %v600, %v604
      %v609 = vadd.f32 %v592, %v605
      %v610 = vadd.f32 %v593, %v606
      %v611 = vadd.f32 %v594, %v607
      %v612 = vadd.f32 %v595, %v608
      %s613 = scalar_lea.vmem [#allocation2], 144
      %v614 = vld [vmem:[%s613 + $0x5] sm:$0xf]
      %v615 = vld [vmem:[%s613 + $0x15] sm:$0xf]
      %v616 = vld [vmem:[%s613 + $0x25] sm:$0xf]
      %v617 = vld [vmem:[%s613 + $0x35] sm:$0xf]
      %v618 = vlaneseq
      %v619 = vshrl.u32 %v618, 7
      %v620 = vsub.s32 7, %v619
      %v621 = vrot.slane %v229, %v620
      %v622 = vmul.f32 %v614, %v621
      %v623 = vmul.f32 %v615, %v621
      %v624 = vmul.f32 %v616, %v621
      %v625 = vmul.f32 %v617, %v621
      %v626 = vadd.f32 %v609, %v622
      %v627 = vadd.f32 %v610, %v623
      %v628 = vadd.f32 %v611, %v624
      %v629 = vadd.f32 %v612, %v625
      %s630 = scalar_lea.vmem [#allocation2], 160
      %v631 = vld [vmem:[%s630 + $0x5] sm:$0xf]
      %v632 = vld [vmem:[%s630 + $0x15] sm:$0xf]
      %v633 = vld [vmem:[%s630 + $0x25] sm:$0xf]
      %v634 = vld [vmem:[%s630 + $0x35] sm:$0xf]
      %v635 = vlaneseq
      %v636 = vshrl.u32 %v635, 7
      %v637 = vsub.s32 0, %v636
      %v638 = vrot.slane %v230, %v637
      %v639 = vmul.f32 %v631, %v638
      %v640 = vmul.f32 %v632, %v638
      %v641 = vmul.f32 %v633, %v638
      %v642 = vmul.f32 %v634, %v638
      %v643 = vadd.f32 %v626, %v639
      %v644 = vadd.f32 %v627, %v640
      %v645 = vadd.f32 %v628, %v641
      %v646 = vadd.f32 %v629, %v642
      %651 = vrot.lane.b32.xlu0 %v643, 20
      %v652 = vpop.permute.xlu0 %651
      %653 = vrot.lane.b32.xlu0 %v644, 20
      %v654 = vpop.permute.xlu0 %653
      %655 = vrot.lane.b32.xlu0 %v645, 20
      %v656 = vpop.permute.xlu0 %655
      %657 = vrot.lane.b32.xlu0 %v646, 20
      %v658 = vpop.permute.xlu0 %657
      %vm663 = vcmask 162816
      %v664 = vsel %vm663, %v171, %v652
      %v665 = vsel %vm663, %v172, %v654
      %v666 = vsel %vm663, %v173, %v656
      %v667 = vsel %vm663, %v174, %v658
      %vm668 = vcmask 257024
      %669 = vst.msk [vmem:[%s170] sm:$0xf] %vm668, %v664
      %670 = vst.msk [vmem:[%s170 + $0x4] sm:$0xf] %vm668, %v665
      %671 = vst.msk [vmem:[%s170 + $0x8] sm:$0xf] %vm668, %v666
      %672 = vst.msk [vmem:[%s170 + $0xc] sm:$0xf] %vm668, %v667
      %p673 = scmp.lt.s32.totalorder %s14, 1
      %s674 = scalar_select %p673, %s14, 1
      %s675 = smul.addr %s674, 4
      %s676 = smul.addr %s675, 4
      %s677 = scalar_lea.vmem %s3, %s676
      // Predicated region
      $region33: #{forward.26} parent=31 // pred_check
        %p678 = pneg %p100
      $region34: #{forward.26} parent=31 // pred_check_branch
        %680 = sbr.rel (%p678) target = $region36
      $region35: #{forward.26} parent=31 // pred_region
        _
      $region36: #{forward.26} parent=31 // pred_fallthru
        _
    $region32: #{forward.26} parent=5 // pred_fallthru
      _
    %p681 = scmp.le.s32.totalorder 2, %s9
    // Predicated region
    $region37: #{forward.26} parent=5 // pred_check
      %p682 = pneg %p681
    $region38: #{forward.26} parent=5 // pred_check_branch
      %684 = sbr.rel (%p682) target = $region40
    $region39: #{forward.26} parent=5 // pred_region
      %s685 = ssub.s32 %s9, 2
      // Predicated region
      $region41: #{forward.26} parent=39 // pred_check
        %p686 = pneg %p106
      $region42: #{forward.26} parent=39 // pred_check_branch
        %688 = sbr.rel (%p686) target = $region44
      $region43: #{forward.26} parent=39 // pred_region
        %p689 = scmp.lt.s32.totalorder %s15, 1
        %s690 = scalar_select %p689, %s15, 1
        %s691 = smul.addr %s690, 4
        %s692 = smul.addr %s691, 4
        %s693 = scalar_lea.vmem %s3, %s692
      $region44: #{forward.26} parent=39 // pred_fallthru
        _
    $region40: #{forward.26} parent=5 // pred_fallthru
      _
  $region6: #{forward.26} parent=0 // loop_footer
    %s13 = sadd.s32 1, %s9
  $region7: #{forward.26} parent=0 // loop_footer_branch
    %8 = sbr.rel target = $region3
  $region8: #{forward.26} parent=0 // loop_exit
    _

// kernel: forward.30
$region0: #{forward.30}
  #allocation0 [shape = 'u32[]', space=smem, size = 0x4, offset = 0x4, fixed_abs, tag = 'smem constant byte address 0x4 - core index']
  #allocation1 [shape = 'u32[144,128]{1,0:T(1,128)}', space=vmem, size = 0x12000, scoped, tag = 'internal scratch']
  %s0 = inlined_call_operand.vmem [shape: f32[8,128], index: 0, kind: input, shape index: {}]
  %s1 = inlined_call_operand.vmem [shape: f32[1,32], index: 1, kind: input, shape index: {}]
  %s2 = inlined_call_operand.vmem [shape: f32[1,32], index: 2, kind: input, shape index: {}]
  %s3 = inlined_call_operand.vmem [shape: bf16[128,64], index: 3, kind: input, shape index: {}]
  %s4 = inlined_call_operand.vmem [shape: f32[1,64], index: 4, kind: input, shape index: {}]
  %s5 = inlined_call_operand.vmem [shape: f32[8,64], index: 5, kind: output, shape index: {}]
  %s6 = sld [smem:[#allocation0]]
  $region30: #{forward.30} parent=0
    _
  %s8 = ssub.s32 1, %s6
  %s9 = scalar_select 0, %s8, %s6
  // Predicated region
  $region2: #{forward.30} parent=0 // pred_check
    _
  $region3: #{forward.30} parent=0 // pred_check_branch
    %11 = sbr.rel (0) target = $region5
  $region4: #{forward.30} parent=0 // pred_region
    _
  $region5: #{forward.30} parent=0 // pred_fallthru
    _
  // Predicated region
  $region6: #{forward.30} parent=0 // pred_check
    _
  $region7: #{forward.30} parent=0 // pred_check_branch
    %13 = sbr.rel (0) target = $region9
  $region8: #{forward.30} parent=0 // pred_region
    _
  $region9: #{forward.30} parent=0 // pred_fallthru
    _
  // Predicated region
  $region10: #{forward.30} parent=0 // pred_check
    _
  $region11: #{forward.30} parent=0 // pred_check_branch
    %15 = sbr.rel (0) target = $region13
  $region12: #{forward.30} parent=0 // pred_region
    _
  $region13: #{forward.30} parent=0 // pred_fallthru
    _
  // Predicated region
  $region14: #{forward.30} parent=0 // pred_check
    _
  $region15: #{forward.30} parent=0 // pred_check_branch
    %17 = sbr.rel (0) target = $region17
  $region16: #{forward.30} parent=0 // pred_region
    _
  $region17: #{forward.30} parent=0 // pred_fallthru
    _
  // Predicated region
  $region18: #{forward.30} parent=0 // pred_check
    _
  $region19: #{forward.30} parent=0 // pred_check_branch
    %19 = sbr.rel (0) target = $region21
  $region20: #{forward.30} parent=0 // pred_region
    _
  $region21: #{forward.30} parent=0 // pred_fallthru
    _
  %v21 = vld [vmem:[%s0] sm:$0xff]
  %v22 = vld [vmem:[%s1] sm:$0x1]
  %v23 = vld [vmem:[%s2] sm:$0x1]
  %vm24 = vcmask 261120
  %v25 = vsel %vm24, %v21, 0.0
  %26 = vadd.xlane.f32.xlu0 %v25
  %v27 = vpop.xlane.xlu0 %26
  %v28 = vrcp.pop 32.0
  %v29 = vmul.f32 %v27, %v28
  %v30 = vsub.f32 %v21, %v29
  %v31 = vmul.f32 %v30, %v30
  %v32 = vsel %vm24, %v31, 0.0
  %33 = vadd.xlane.f32.xlu0 %v32
  %v34 = vpop.xlane.xlu0 %33
  %v35 = vmul.f32 %v34, %v28
  %v36 = vadd.f32 %v35, 1e-06
  %v37 = vrsqrt.pop %v36
  %v38 = vmul.f32 %v30, %v37
  %v40 = vlaneseq
  %v41 = vshrl.u32 %v40, 7
  %v42 = vsub.s32 0, %v41
  %v43 = vrot.slane %v22, %v42
  %v45 = vmul.f32 %v38, %v43
  %v47 = vlaneseq
  %v48 = vshrl.u32 %v47, 7
  %v49 = vsub.s32 0, %v48
  %v50 = vrot.slane %v23, %v49
  %v52 = vadd.f32 %v45, %v50
  %54 = vrot.lane.b32.xlu0 %v21, 96
  %v55 = vpop.permute.xlu0 %54
  %v57 = vsel %vm24, %v55, 0.0
  %58 = vadd.xlane.f32.xlu0 %v57
  %v59 = vpop.xlane.xlu0 %58
  %v60 = vmul.f32 %v59, %v28
  %v61 = vsub.f32 %v21, %v60
  %v62 = vmul.f32 %v61, %v61
  %64 = vrot.lane.b32.xlu0 %v62, 96
  %v65 = vpop.permute.xlu0 %64
  %v67 = vsel %vm24, %v65, 0.0
  %68 = vadd.xlane.f32.xlu0 %v67
  %v69 = vpop.xlane.xlu0 %68
  %v70 = vmul.f32 %v69, %v28
  %v71 = vadd.f32 %v70, 1e-06
  %v72 = vrsqrt.pop %v71
  %v73 = vmul.f32 %v61, %v72
  %74 = vrot.lane.b32.xlu0 %v43, 32
  %v75 = vpop.permute.xlu0 %74
  %v77 = vmul.f32 %v73, %v75
  %78 = vrot.lane.b32.xlu0 %v50, 32
  %v79 = vpop.permute.xlu0 %78
  %v81 = vadd.f32 %v77, %v79
  %82 = vrot.lane.b32.xlu0 %v21, 64
  %v83 = vpop.permute.xlu0 %82
  %v85 = vsel %vm24, %v83, 0.0
  %86 = vadd.xlane.f32.xlu0 %v85
  %v87 = vpop.xlane.xlu0 %86
  %v88 = vmul.f32 %v87, %v28
  %v89 = vsub.f32 %v21, %v88
  %v90 = vmul.f32 %v89, %v89
  %92 = vrot.lane.b32.xlu0 %v90, 64
  %v93 = vpop.permute.xlu0 %92
  %v95 = vsel %vm24, %v93, 0.0
  %96 = vadd.xlane.f32.xlu0 %v95
  %v97 = vpop.xlane.xlu0 %96
  %v98 = vmul.f32 %v97, %v28
  %v99 = vadd.f32 %v98, 1e-06
  %v100 = vrsqrt.pop %v99
  %v101 = vmul.f32 %v89, %v100
  %102 = vrot.lane.b32.xlu0 %v43, 64
  %v103 = vpop.permute.xlu0 %102
  %v105 = vmul.f32 %v101, %v103
  %106 = vrot.lane.b32.xlu0 %v50, 64
  %v107 = vpop.permute.xlu0 %106
  %v109 = vadd.f32 %v105, %v107
  %110 = vrot.lane.b32.xlu0 %v21, 32
  %v111 = vpop.permute.xlu0 %110
  %v113 = vsel %vm24, %v111, 0.0
  %114 = vadd.xlane.f32.xlu0 %v113
  %v115 = vpop.xlane.xlu0 %114
  %v116 = vmul.f32 %v115, %v28
  %v117 = vsub.f32 %v21, %v116
  %v118 = vmul.f32 %v117, %v117
  %120 = vrot.lane.b32.xlu0 %v118, 32
  %v121 = vpop.permute.xlu0 %120
  %v123 = vsel %vm24, %v121, 0.0
  %124 = vadd.xlane.f32.xlu0 %v123
  %v125 = vpop.xlane.xlu0 %124
  %v126 = vmul.f32 %v125, %v28
  %v127 = vadd.f32 %v126, 1e-06
  %v128 = vrsqrt.pop %v127
  %v129 = vmul.f32 %v117, %v128
  %130 = vrot.lane.b32.xlu0 %v43, 96
  %v131 = vpop.permute.xlu0 %130
  %v133 = vmul.f32 %v129, %v131
  %134 = vrot.lane.b32.xlu0 %v50, 96
  %v135 = vpop.permute.xlu0 %134
  %v137 = vadd.f32 %v133, %v135
  %v138 = vsel %vm24, %v52, %v81
  %vm139 = vcmask 523264
  %v140 = vsel %vm139, %v138, %v109
  %vm141 = vcmask 785408
  %v142 = vsel %vm141, %v140, %v137
  %v143 = vld [vmem:[%s3] sm:$0xf]
  %v144 = vld [vmem:[%s3 + $0x4] sm:$0xf]
  %v145 = vld [vmem:[%s3 + $0x8] sm:$0xf]
  %v146 = vld [vmem:[%s3 + $0xc] sm:$0xf]
  %v147 = vld [vmem:[%s3 + $0x10] sm:$0xf]
  %v148 = vld [vmem:[%s3 + $0x14] sm:$0xf]
  %v149 = vld [vmem:[%s3 + $0x18] sm:$0xf]
  %v150 = vld [vmem:[%s3 + $0x1c] sm:$0xf]
  %v151 = vld [vmem:[%s3 + $0x20] sm:$0xf]
  %v152 = vld [vmem:[%s3 + $0x24] sm:$0xf]
  %v153 = vld [vmem:[%s3 + $0x28] sm:$0xf]
  %v154 = vld [vmem:[%s3 + $0x2c] sm:$0xf]
  %v155 = vld [vmem:[%s3 + $0x30] sm:$0xf]
  %v156 = vld [vmem:[%s3 + $0x34] sm:$0xf]
  %v157 = vld [vmem:[%s3 + $0x38] sm:$0xf]
  %v158 = vld [vmem:[%s3 + $0x3c] sm:$0xf]
  %v159 = vpack.c.bf16 %v142, %v142
  %v160 = vld [vmem:[%s4] sm:$0x1]
  %v162 = vlaneseq
  %v163 = vshrl.u32 %v162, 7
  %v164 = vsub.s32 0, %v163
  %v165 = vrot.slane %v160, %v164
  %v183 = vunpack.c.l.b16 %v143
  %v184 = vunpack.c.l.b16 %v144
  %v185 = vunpack.c.l.b16 %v145
  %v186 = vunpack.c.l.b16 %v146
  %v187 = vunpack.c.l.b16 %v147
  %v188 = vunpack.c.l.b16 %v148
  %v189 = vunpack.c.l.b16 %v149
  %v190 = vunpack.c.l.b16 %v150
  %v191 = vunpack.c.l.b16 %v151
  %v192 = vunpack.c.l.b16 %v152
  %v193 = vunpack.c.l.b16 %v153
  %v194 = vunpack.c.l.b16 %v154
  %v195 = vunpack.c.l.b16 %v155
  %v196 = vunpack.c.l.b16 %v156
  %v197 = vunpack.c.l.b16 %v157
  %v198 = vunpack.c.l.b16 %v158
  %v199 = vpack.c.b16 %v184, %v183
  %v200 = vpack.c.b16 %v186, %v185
  %v201 = vpack.c.b16 %v188, %v187
  %v202 = vpack.c.b16 %v190, %v189
  %v203 = vpack.c.b16 %v192, %v191
  %v204 = vpack.c.b16 %v194, %v193
  %v205 = vpack.c.b16 %v196, %v195
  %v206 = vpack.c.b16 %v198, %v197
  %215 = vmatprep.subr.bf16.mxu0 0
  %216 = vmatpush1.bf16.msra.mxu0 %v199
  %217 = vmatprep.subr.bf16.mxu0 0
  %218 = vmatpush1.bf16.msra.mxu0 %v200
  %219 = vmatprep.subr.bf16.mxu0 0
  %220 = vmatpush1.bf16.msra.mxu0 %v201
  %221 = vmatprep.subr.bf16.mxu0 0
  %222 = vmatpush1.bf16.msra.mxu0 %v202
  %223 = vmatprep.subr.bf16.mxu0 0
  %224 = vmatpush1.bf16.msra.mxu0 %v203
  %225 = vmatprep.subr.bf16.mxu0 0
  %226 = vmatpush1.bf16.msra.mxu0 %v204
  %227 = vmatprep.subr.bf16.mxu0 0
  %228 = vmatpush1.bf16.msra.mxu0 %v205
  %229 = vmatprep.subr.bf16.mxu0 0
  %230 = vmatpush1.bf16.msra.mxu0 %v206
  %231 = vmatprep.subr.bf16.mxu0 0
  %232 = vmatpush1.bf16.msra.mxu0 0
  %233 = vmatprep.subr.bf16.mxu0 0
  %234 = vmatpush1.bf16.msra.mxu0 0
  %235 = vmatprep.subr.bf16.mxu0 0
  %236 = vmatpush1.bf16.msra.mxu0 0
  %237 = vmatprep.subr.bf16.mxu0 0
  %238 = vmatpush1.bf16.msra.mxu0 0
  %239 = vmatprep.subr.bf16.mxu0 0
  %240 = vmatpush1.bf16.msra.mxu0 0
  %241 = vmatprep.subr.bf16.mxu0 0
  %242 = vmatpush1.bf16.msra.mxu0 0
  %243 = vmatprep.subr.bf16.mxu0 0
  %244 = vmatpush1.bf16.msra.mxu0 0
  %245 = vmatprep.subr.bf16.mxu0 0
  %246 = vmatpush1.bf16.msra.mxu0 0
  %247 = vmatprep.mubr.bf16.mxu0 0
  %248 = vmatmul.mubr.bf16.gmra.mrb[0].mxu0 %v159
  %v249 = vpop.f32.mrb[0].mxu0
  %v250 = vadd.f32 %v165, %v249
  %v251 = vpop.f32.mrb[0].mxu0
  %v252 = vpop.f32.mrb[0].mxu0
  %v253 = vpop.f32.mrb[0].mxu0
  %254 = vdwg.mxu0
  %255 = vst.msk [vmem:[%s5] sm:$0xff] %vm139, %v250
  // Predicated region
  $region22: #{forward.30} parent=0 // pred_check
    _
  $region23: #{forward.30} parent=0 // pred_check_branch
    %257 = sbr.rel (0) target = $region25
  $region24: #{forward.30} parent=0 // pred_region
    _
  $region25: #{forward.30} parent=0 // pred_fallthru
    _
  // Predicated region
  $region26: #{forward.30} parent=0 // pred_check
    _
  $region27: #{forward.30} parent=0 // pred_check_branch
    %259 = sbr.rel (0) target = $region29
  $region28: #{forward.30} parent=0 // pred_region
    _
  $region29: #{forward.30} parent=0 // pred_fallthru
    _

// kernel: forward.31
$region0: #{forward.31}
  #allocation0 [shape = 'u32[]', space=smem, size = 0x4, offset = 0x4, fixed_abs, tag = 'smem constant byte address 0x4 - core index']
  #allocation1 [shape = 'u32[144,128]{1,0:T(1,128)}', space=vmem, size = 0x12000, scoped, tag = 'internal scratch']
  #allocation2 [shape = 'f32[1,12,12,24]{3,2,1,0:T(8,128)}', space=vmem, size = 0x18000, scoped, tag = 'scratch operand']
  %s0 = inlined_call_operand.vmem [shape: f32[2,2,2,64], index: 0, kind: input, shape index: {}]
  %s1 = inlined_call_operand.vmem [shape: f32[25,24], index: 1, kind: input, shape index: {}]
  %s2 = inlined_call_operand.vmem [shape: f32[1,24], index: 2, kind: input, shape index: {}]
  %s3 = inlined_call_operand.vmem [shape: f32[2,2,2,64], index: 3, kind: output, shape index: {}]
  %s4 = sld [smem:[#allocation0]]
  $region45: #{forward.31} parent=0
    _
  %s6 = ssub.s32 1, %s4
  %s7 = scalar_select 0, %s6, %s4
  loop: start=0, step=1, limit=4
  $region2: #{forward.31} parent=0 // loop_pre_header
    _
  $region3: #{forward.31} parent=0 // loop_header
    %s9 = sphi 0, %s13
    %p10 = scmp.ge.s32.totalorder %s9, 4
    %s19 = sphi 0, %s21
    %s22 = sphi 0, %s19
    %s23 = sphi 0, %s22
    %s39 = sphi 0, %s23
    %s43 = sphi 0, %s43
    %s45 = sphi 0, %s43
    %s46 = sphi 0, %s45
    %s60 = sphi 0, %s46
    %s64 = sphi 0, %s64
    %s66 = sphi 0, %s64
    %s67 = sphi 0, %s66
    %s81 = sphi 0, %s67
    %s87 = sphi 0, %s89
    %s90 = sphi 0, %s87
    %s91 = sphi 0, %s90
    %s107 = sphi 0, %s91
  $region4: #{forward.31} parent=0 // loop_header_branch
    %12 = sbr.rel (%p10) target = $region8
  $region5: #{forward.31} parent=0 // loop_body
    %s14 = ssub.s32 %s9, 1
    %s15 = ssub.s32 %s9, 2
    %s16 = sadd.s32 %s9, 1
    %s17 = ssub.s32 %s9, %s16
    %p18 = scmp.eq.s32.totalorder %s17, 0
    %s20 = sadd.s32 %s19, 1
    %s21 = scalar_select %p18, %s19, %s20
    %p24 = pneg %p18
    %p25 = scmp.eq.s32.totalorder %s9, 1
    %p26 = por %p24, %p25
    %p27 = scmp.ne.s32.totalorder %s19, %s22
    %p28 = scmp.eq.s32.totalorder %s9, 0
    %p29 = por %p27, %p28
    %p30 = scmp.ne.s32.totalorder %s19, %s22
    %p31 = scmp.eq.s32.totalorder %s14, 1
    %p32 = por %p30, %p31
    %p33 = scmp.ne.s32.totalorder %s22, %s23
    %p34 = scmp.eq.s32.totalorder %s14, 0
    %p35 = por %p33, %p34
    %p36 = scmp.ne.s32.totalorder %s22, %s23
    %p37 = scmp.eq.s32.totalorder %s15, 1
    %p38 = por %p36, %p37
    %p40 = scmp.ne.s32.totalorder %s23, %s39
    %p41 = scmp.eq.s32.totalorder %s15, 0
    %p42 = por %p40, %p41
    %s44 = sadd.s32 %s43, 1
    %p47 = scmp.eq.s32.totalorder %s9, 1
    %p48 = scmp.ne.s32.totalorder %s43, %s45
    %p49 = scmp.eq.s32.totalorder %s9, 0
    %p50 = por %p48, %p49
    %p51 = scmp.ne.s32.totalorder %s43, %s45
    %p52 = scmp.eq.s32.totalorder %s14, 1
    %p53 = por %p51, %p52
    %p54 = scmp.ne.s32.totalorder %s45, %s46
    %p55 = scmp.eq.s32.totalorder %s14, 0
    %p56 = por %p54, %p55
    %p57 = scmp.ne.s32.totalorder %s45, %s46
    %p58 = scmp.eq.s32.totalorder %s15, 1
    %p59 = por %p57, %p58
    %p61 = scmp.ne.s32.totalorder %s46, %s60
    %p62 = scmp.eq.s32.totalorder %s15, 0
    %p63 = por %p61, %p62
    %s65 = sadd.s32 %s64, 1
    %p68 = scmp.eq.s32.totalorder %s9, 1
    %p69 = scmp.ne.s32.totalorder %s64, %s66
    %p70 = scmp.eq.s32.totalorder %s9, 0
    %p71 = por %p69, %p70
    %p72 = scmp.ne.s32.totalorder %s64, %s66
    %p73 = scmp.eq.s32.totalorder %s14, 1
    %p74 = por %p72, %p73
    %p75 = scmp.ne.s32.totalorder %s66, %s67
    %p76 = scmp.eq.s32.totalorder %s14, 0
    %p77 = por %p75, %p76
    %p78 = scmp.ne.s32.totalorder %s66, %s67
    %p79 = scmp.eq.s32.totalorder %s15, 1
    %p80 = por %p78, %p79
    %p82 = scmp.ne.s32.totalorder %s67, %s81
    %p83 = scmp.eq.s32.totalorder %s15, 0
    %p84 = por %p82, %p83
    %s85 = ssub.s32 %s9, %s16
    %p86 = scmp.eq.s32.totalorder %s85, 0
    %s88 = sadd.s32 %s87, 1
    %s89 = scalar_select %p86, %s87, %s88
    %p92 = pneg %p86
    %p93 = scmp.eq.s32.totalorder %s9, 1
    %p94 = por %p92, %p93
    %p95 = scmp.ne.s32.totalorder %s87, %s90
    %p96 = scmp.eq.s32.totalorder %s9, 0
    %p97 = por %p95, %p96
    %p98 = scmp.ne.s32.totalorder %s87, %s90
    %p99 = scmp.eq.s32.totalorder %s14, 1
    %p100 = por %p98, %p99
    %p101 = scmp.ne.s32.totalorder %s90, %s91
    %p102 = scmp.eq.s32.totalorder %s14, 0
    %p103 = por %p101, %p102
    %p104 = scmp.ne.s32.totalorder %s90, %s91
    %p105 = scmp.eq.s32.totalorder %s15, 1
    %p106 = por %p104, %p105
    %p108 = scmp.ne.s32.totalorder %s91, %s107
    %p109 = scmp.eq.s32.totalorder %s15, 0
    %p110 = por %p108, %p109
    %p111 = scmp.le.s32.totalorder 1, %s9
    %p112 = scmp.lt.s32.totalorder %s9, 3
    %p113 = pnand %p111, %p112
    %p114 = pneg %p113
    // Predicated region
    $region9: #{forward.31} parent=5 // pred_check
      _
    $region10: #{forward.31} parent=5 // pred_check_branch
      %116 = sbr.rel (%p113) target = $region12
    $region11: #{forward.31} parent=5 // pred_region
      %s117 = ssub.s32 %s9, 1
      // Predicated region
      $region13: #{forward.31} parent=11 // pred_check
        %p118 = pneg %p56
      $region14: #{forward.31} parent=11 // pred_check_branch
        %120 = sbr.rel (%p118) target = $region16
      $region15: #{forward.31} parent=11 // pred_region
        _
      $region16: #{forward.31} parent=11 // pred_fallthru
        _
      // Predicated region
      $region17: #{forward.31} parent=11 // pred_check
        %p121 = pneg %p77
      $region18: #{forward.31} parent=11 // pred_check_branch
        %123 = sbr.rel (%p121) target = $region20
      $region19: #{forward.31} parent=11 // pred_region
        _
      $region20: #{forward.31} parent=11 // pred_fallthru
        _
    $region12: #{forward.31} parent=5 // pred_fallthru
      _
    %p124 = scmp.lt.s32.totalorder %s9, 2
    // Predicated region
    $region21: #{forward.31} parent=5 // pred_check
      %p125 = pneg %p124
    $region22: #{forward.31} parent=5 // pred_check_branch
      %127 = sbr.rel (%p125) target = $region24
    $region23: #{forward.31} parent=5 // pred_region
      // Predicated region
      $region25: #{forward.31} parent=23 // pred_check
        %p128 = pneg %p29
      $region26: #{forward.31} parent=23 // pred_check_branch
        %130 = sbr.rel (%p128) target = $region28
      $region27: #{forward.31} parent=23 // pred_region
        %p131 = scmp.lt.s32.totalorder %s9, 1
        %s132 = scalar_select %p131, %s9, 1
        %s133 = smul.addr %s132, 2
        %s134 = smul.addr %s133, 2
        %s135 = scalar_lea.vmem %s0, %s134
      $region28: #{forward.31} parent=23 // pred_fallthru
        _
    $region24: #{forward.31} parent=5 // pred_fallthru
      _
    %p136 = scmp.le.s32.totalorder 1, %s9
    %p137 = scmp.lt.s32.totalorder %s9, 3
    %p138 = pnand %p136, %p137
    %p139 = pneg %p138
    // Predicated region
    $region29: #{forward.31} parent=5 // pred_check
      _
    $region30: #{forward.31} parent=5 // pred_check_branch
      %141 = sbr.rel (%p138) target = $region32
    $region31: #{forward.31} parent=5 // pred_region
      %s142 = ssub.s32 %s9, 1
      %p143 = scmp.lt.s32.totalorder %s14, 1
      %s144 = scalar_select %p143, %s14, 1
      %s145 = smul.addr %s144, 2
      %s146 = smul.addr %s145, 2
      %s147 = scalar_lea.vmem %s0, %s146
      %p148 = pneg %p35
      %p149 = pneg %p32
      %p150 = pneg %p56
      %p151 = pneg %p53
      %p152 = pneg %p77
      %p153 = pneg %p74
      %p154 = pneg %p103
      %p155 = pneg %p100
      %p156 = scmp.lt.s32.totalorder %s14, 1
      %s157 = scalar_select %p156, %s14, 1
      %s158 = smul.addr %s157, 2
      %s159 = smul.addr %s158, 2
      %s160 = scalar_lea.vmem %s3, %s159
      %p161 = scmp.lt.s32.totalorder %s14, 1
      %s162 = scalar_select %p161, %s14, 1
      %s163 = smul.addr %s162, 2
      %s164 = smul.addr %s163, 2
      %s165 = scalar_lea.vmem %s0, %s164
      %p166 = scmp.lt.s32.totalorder %s14, 1
      %s167 = scalar_select %p166, %s14, 1
      %s168 = smul.addr %s167, 2
      %s169 = smul.addr %s168, 2
      %s170 = scalar_lea.vmem %s3, %s169
      %v171 = vld [vmem:[%s165] sm:$0x3]
      %v172 = vld [vmem:[%s165 + $0x2] sm:$0x3]
      %vm173 = vcmask 195584
      %174 = vst.msk [vmem:[#allocation2] sm:$0xff] %vm173, 0.0
      %vm175 = vcmask 191488
      %176 = vst.msk [vmem:[#allocation2 + $0x8] sm:$0xf] %vm175, 0.0
      %177 = vst.msk [vmem:[#allocation2 + $0x10] sm:$0xff] %vm173, 0.0
      %178 = vst.msk [vmem:[#allocation2 + $0x18] sm:$0xf] %vm175, 0.0
      %179 = vst.msk [vmem:[#allocation2 + $0x20] sm:$0xff] %vm173, 0.0
      %180 = vst.msk [vmem:[#allocation2 + $0x28] sm:$0xf] %vm175, 0.0
      %181 = vst.msk [vmem:[#allocation2 + $0x30] sm:$0xff] %vm173, 0.0
      %182 = vst.msk [vmem:[#allocation2 + $0x38] sm:$0xf] %vm175, 0.0
      %183 = vst.msk [vmem:[#allocation2 + $0x40] sm:$0xff] %vm173, 0.0
      %184 = vst.msk [vmem:[#allocation2 + $0x48] sm:$0xf] %vm175, 0.0
      %185 = vst.msk [vmem:[#allocation2 + $0x50] sm:$0xff] %vm173, 0.0
      %186 = vst.msk [vmem:[#allocation2 + $0x58] sm:$0xf] %vm175, 0.0
      %187 = vst.msk [vmem:[#allocation2 + $0x60] sm:$0xff] %vm173, 0.0
      %188 = vst.msk [vmem:[#allocation2 + $0x68] sm:$0xf] %vm175, 0.0
      %189 = vst.msk [vmem:[#allocation2 + $0x70] sm:$0xff] %vm173, 0.0
      %190 = vst.msk [vmem:[#allocation2 + $0x78] sm:$0xf] %vm175, 0.0
      %191 = vst.msk [vmem:[#allocation2 + $0x80] sm:$0xff] %vm173, 0.0
      %192 = vst.msk [vmem:[#allocation2 + $0x88] sm:$0xf] %vm175, 0.0
      %193 = vst.msk [vmem:[#allocation2 + $0x90] sm:$0xff] %vm173, 0.0
      %194 = vst.msk [vmem:[#allocation2 + $0x98] sm:$0xf] %vm175, 0.0
      %195 = vst.msk [vmem:[#allocation2 + $0xa0] sm:$0xff] %vm173, 0.0
      %196 = vst.msk [vmem:[#allocation2 + $0xa8] sm:$0xf] %vm175, 0.0
      %197 = vst.msk [vmem:[#allocation2 + $0xb0] sm:$0xff] %vm173, 0.0
      %198 = vst.msk [vmem:[#allocation2 + $0xb8] sm:$0xf] %vm175, 0.0
      %201 = vrot.lane.b32.xlu0 %v171, 88
      %v202 = vpop.permute.xlu0 %201
      %203 = vrot.lane.b32.xlu0 %v172, 88
      %v204 = vpop.permute.xlu0 %203
      %s207 = scalar_lea.vmem [#allocation2], 80
      %vm208 = vcmask 189440
      %209 = vst.msk [vmem:[%s207 + $0x5] sm:$0x3] %vm208, %v202
      %210 = vst.msk [vmem:[%s207 + $0x15] sm:$0x3] %vm208, %v204
      %v211 = vld [vmem:[%s1] sm:$0xff]
      %v212 = vld [vmem:[%s1 + $0x8] sm:$0xff]
      %v213 = vld [vmem:[%s1 + $0x10] sm:$0xff]
      %v214 = vld [vmem:[%s1 + $0x18] sm:$0x1]
      %v215 = vld [vmem:[%s2] sm:$0x1]
      %s216 = scalar_lea.vmem [#allocation2], 64
      %v217 = vld [vmem:[%s216 + $0x4] sm:$0x3]
      %v218 = vld [vmem:[%s216 + $0x14] sm:$0x3]
      %v219 = vlaneseq
      %v220 = vshrl.u32 %v219, 7
      %v221 = vsub.s32 0, %v220
      %v222 = vrot.slane %v211, %v221
      %v223 = vmul.f32 %v217, %v222
      %v224 = vmul.f32 %v218, %v222
      %v226 = vlaneseq
      %v227 = vshrl.u32 %v226, 7
      %v228 = vsub.s32 0, %v227
      %v229 = vrot.slane %v215, %v228
      %v231 = vadd.f32 %v229, %v223
      %v232 = vadd.f32 %v229, %v224
      %v233 = vld [vmem:[%s216 + $0x5] sm:$0x3]
      %v234 = vld [vmem:[%s216 + $0x15] sm:$0x3]
      %v235 = vlaneseq
      %v236 = vshrl.u32 %v235, 7
      %v237 = vsub.s32 1, %v236
      %v238 = vrot.slane %v211, %v237
      %v239 = vmul.f32 %v233, %v238
      %v240 = vmul.f32 %v234, %v238
      %v241 = vadd.f32 %v231, %v239
      %v242 = vadd.f32 %v232, %v240
      %v243 = vld [vmem:[%s216 + $0x6] sm:$0x3]
      %v244 = vld [vmem:[%s216 + $0x16] sm:$0x3]
      %v245 = vlaneseq
      %v246 = vshrl.u32 %v245, 7
      %v247 = vsub.s32 2, %v246
      %v248 = vrot.slane %v211, %v247
      %v249 = vmul.f32 %v243, %v248
      %v250 = vmul.f32 %v244, %v248
      %v251 = vadd.f32 %v241, %v249
      %v252 = vadd.f32 %v242, %v250
      %v253 = vld [vmem:[%s207 + $0x4] sm:$0x3]
      %v254 = vld [vmem:[%s207 + $0x14] sm:$0x3]
      %v255 = vlaneseq
      %v256 = vshrl.u32 %v255, 7
      %v257 = vsub.s32 3, %v256
      %v258 = vrot.slane %v211, %v257
      %v259 = vmul.f32 %v253, %v258
      %v260 = vmul.f32 %v254, %v258
      %v261 = vadd.f32 %v251, %v259
      %v262 = vadd.f32 %v252, %v260
      %v263 = vld [vmem:[%s207 + $0x5] sm:$0x3]
      %v264 = vld [vmem:[%s207 + $0x15] sm:$0x3]
      %v265 = vlaneseq
      %v266 = vshrl.u32 %v265, 7
      %v267 = vsub.s32 4, %v266
      %v268 = vrot.slane %v211, %v267
      %v269 = vmul.f32 %v263, %v268
      %v270 = vmul.f32 %v264, %v268
      %v271 = vadd.f32 %v261, %v269
      %v272 = vadd.f32 %v262, %v270
      %v273 = vld [vmem:[%s207 + $0x6] sm:$0x3]
      %v274 = vld [vmem:[%s207 + $0x16] sm:$0x3]
      %v275 = vlaneseq
      %v276 = vshrl.u32 %v275, 7
      %v277 = vsub.s32 5, %v276
      %v278 = vrot.slane %v211, %v277
      %v279 = vmul.f32 %v273, %v278
      %v280 = vmul.f32 %v274, %v278
      %v281 = vadd.f32 %v271, %v279
      %v282 = vadd.f32 %v272, %v280
      %s283 = scalar_lea.vmem [#allocation2], 96
      %v284 = vld [vmem:[%s283 + $0x4] sm:$0x3]
      %v285 = vld [vmem:[%s283 + $0x14] sm:$0x3]
      %v286 = vlaneseq
      %v287 = vshrl.u32 %v286, 7
      %v288 = vsub.s32 6, %v287
      %v289 = vrot.slane %v211, %v288
      %v290 = vmul.f32 %v284, %v289
      %v291 = vmul.f32 %v285, %v289
      %v292 = vadd.f32 %v281, %v290
      %v293 = vadd.f32 %v282, %v291
      %v294 = vld [vmem:[%s283 + $0x5] sm:$0x3]
      %v295 = vld [vmem:[%s283 + $0x15] sm:$0x3]
      %v296 = vlaneseq
      %v297 = vshrl.u32 %v296, 7
      %v298 = vsub.s32 7, %v297
      %v299 = vrot.slane %v211, %v298
      %v300 = vmul.f32 %v294, %v299
      %v301 = vmul.f32 %v295, %v299
      %v302 = vadd.f32 %v292, %v300
      %v303 = vadd.f32 %v293, %v301
      %v304 = vld [vmem:[%s283 + $0x6] sm:$0x3]
      %v305 = vld [vmem:[%s283 + $0x16] sm:$0x3]
      %v306 = vlaneseq
      %v307 = vshrl.u32 %v306, 7
      %v308 = vsub.s32 0, %v307
      %v309 = vrot.slane %v212, %v308
      %v310 = vmul.f32 %v304, %v309
      %v311 = vmul.f32 %v305, %v309
      %v312 = vadd.f32 %v302, %v310
      %v313 = vadd.f32 %v303, %v311
      %v314 = vld [vmem:[%s207] sm:$0x3]
      %v315 = vld [vmem:[%s207 + $0x10] sm:$0x3]
      %v316 = vlaneseq
      %v317 = vshrl.u32 %v316, 7
      %v318 = vsub.s32 1, %v317
      %v319 = vrot.slane %v212, %v318
      %v320 = vmul.f32 %v314, %v319
      %v321 = vmul.f32 %v315, %v319
      %v322 = vadd.f32 %v312, %v320
      %v323 = vadd.f32 %v313, %v321
      %v324 = vld [vmem:[%s207 + $0x1] sm:$0x3]
      %v325 = vld [vmem:[%s207 + $0x11] sm:$0x3]
      %v326 = vlaneseq
      %v327 = vshrl.u32 %v326, 7
      %v328 = vsub.s32 2, %v327
      %v329 = vrot.slane %v212, %v328
      %v330 = vmul.f32 %v324, %v329
      %v331 = vmul.f32 %v325, %v329
      %v332 = vadd.f32 %v322, %v330
      %v333 = vadd.f32 %v323, %v331
      %v334 = vld [vmem:[%s207 + $0x2] sm:$0x3]
      %v335 = vld [vmem:[%s207 + $0x12] sm:$0x3]
      %v336 = vlaneseq
      %v337 = vshrl.u32 %v336, 7
      %v338 = vsub.s32 3, %v337
      %v339 = vrot.slane %v212, %v338
      %v340 = vmul.f32 %v334, %v339
      %v341 = vmul.f32 %v335, %v339
      %v342 = vadd.f32 %v332, %v340
      %v343 = vadd.f32 %v333, %v341
      %v344 = vld [vmem:[%s207 + $0x3] sm:$0x3]
      %v345 = vld [vmem:[%s207 + $0x13] sm:$0x3]
      %v346 = vlaneseq
      %v347 = vshrl.u32 %v346, 7
      %v348 = vsub.s32 4, %v347
      %v349 = vrot.slane %v212, %v348
      %v350 = vmul.f32 %v344, %v349
      %v351 = vmul.f32 %v345, %v349
      %v352 = vadd.f32 %v342, %v350
      %v353 = vadd.f32 %v343, %v351
      %v354 = vld [vmem:[%s207 + $0x7] sm:$0x3]
      %v355 = vld [vmem:[%s207 + $0x17] sm:$0x3]
      %v356 = vlaneseq
      %v357 = vshrl.u32 %v356, 7
      %v358 = vsub.s32 5, %v357
      %v359 = vrot.slane %v212, %v358
      %v360 = vmul.f32 %v354, %v359
      %v361 = vmul.f32 %v355, %v359
      %v362 = vadd.f32 %v352, %v360
      %v363 = vadd.f32 %v353, %v361
      %v364 = vld [vmem:[%s207 + $0x8] sm:$0x3]
      %v365 = vld [vmem:[%s207 + $0x18] sm:$0x3]
      %v366 = vlaneseq
      %v367 = vshrl.u32 %v366, 7
      %v368 = vsub.s32 6, %v367
      %v369 = vrot.slane %v212, %v368
      %v370 = vmul.f32 %v364, %v369
      %v371 = vmul.f32 %v365, %v369
      %v372 = vadd.f32 %v362, %v370
      %v373 = vadd.f32 %v363, %v371
      %v374 = vld [vmem:[%s207 + $0x9] sm:$0x3]
      %v375 = vld [vmem:[%s207 + $0x19] sm:$0x3]
      %v376 = vlaneseq
      %v377 = vshrl.u32 %v376, 7
      %v378 = vsub.s32 7, %v377
      %v379 = vrot.slane %v212, %v378
      %v380 = vmul.f32 %v374, %v379
      %v381 = vmul.f32 %v375, %v379
      %v382 = vadd.f32 %v372, %v380
      %v383 = vadd.f32 %v373, %v381
      %v384 = vld [vmem:[%s207 + $0xa] sm:$0x3]
      %v385 = vld [vmem:[%s207 + $0x1a] sm:$0x3]
      %v386 = vlaneseq
      %v387 = vshrl.u32 %v386, 7
      %v388 = vsub.s32 0, %v387
      %v389 = vrot.slane %v213, %v388
      %v390 = vmul.f32 %v384, %v389
      %v391 = vmul.f32 %v385, %v389
      %v392 = vadd.f32 %v382, %v390
      %v393 = vadd.f32 %v383, %v391
      %v394 = vld [vmem:[#allocation2 + $0x5] sm:$0x3]
      %v395 = vld [vmem:[#allocation2 + $0x15] sm:$0x3]
      %v396 = vlaneseq
      %v397 = vshrl.u32 %v396, 7
      %v398 = vsub.s32 1, %v397
      %v399 = vrot.slane %v213, %v398
      %v400 = vmul.f32 %v394, %v399
      %v401 = vmul.f32 %v395, %v399
      %v402 = vadd.f32 %v392, %v400
      %v403 = vadd.f32 %v393, %v401
      %s404 = scalar_lea.vmem [#allocation2], 16
      %v405 = vld [vmem:[%s404 + $0x5] sm:$0x3]
      %v406 = vld [vmem:[%s404 + $0x15] sm:$0x3]
      %v407 = vlaneseq
      %v408 = vshrl.u32 %v407, 7
      %v409 = vsub.s32 2, %v408
      %v410 = vrot.slane %v213, %v409
      %v411 = vmul.f32 %v405, %v410
      %v412 = vmul.f32 %v406, %v410
      %v413 = vadd.f32 %v402, %v411
      %v414 = vadd.f32 %v403, %v412
      %s415 = scalar_lea.vmem [#allocation2], 32
      %v416 = vld [vmem:[%s415 + $0x5] sm:$0x3]
      %v417 = vld [vmem:[%s415 + $0x15] sm:$0x3]
      %v418 = vlaneseq
      %v419 = vshrl.u32 %v418, 7
      %v420 = vsub.s32 3, %v419
      %v421 = vrot.slane %v213, %v420
      %v422 = vmul.f32 %v416, %v421
      %v423 = vmul.f32 %v417, %v421
      %v424 = vadd.f32 %v413, %v422
      %v425 = vadd.f32 %v414, %v423
      %s426 = scalar_lea.vmem [#allocation2], 48
      %v427 = vld [vmem:[%s426 + $0x5] sm:$0x3]
      %v428 = vld [vmem:[%s426 + $0x15] sm:$0x3]
      %v429 = vlaneseq
      %v430 = vshrl.u32 %v429, 7
      %v431 = vsub.s32 4, %v430
      %v432 = vrot.slane %v213, %v431
      %v433 = vmul.f32 %v427, %v432
      %v434 = vmul.f32 %v428, %v432
      %v435 = vadd.f32 %v424, %v433
      %v436 = vadd.f32 %v425, %v434
      %s437 = scalar_lea.vmem [#allocation2], 112
      %v438 = vld [vmem:[%s437 + $0x5] sm:$0x3]
      %v439 = vld [vmem:[%s437 + $0x15] sm:$0x3]
      %v440 = vlaneseq
      %v441 = vshrl.u32 %v440, 7
      %v442 = vsub.s32 5, %v441
      %v443 = vrot.slane %v213, %v442
      %v444 = vmul.f32 %v438, %v443
      %v445 = vmul.f32 %v439, %v443
      %v446 = vadd.f32 %v435, %v444
      %v447 = vadd.f32 %v436, %v445
      %s448 = scalar_lea.vmem [#allocation2], 128
      %v449 = vld [vmem:[%s448 + $0x5] sm:$0x3]
      %v450 = vld [vmem:[%s448 + $0x15] sm:$0x3]
      %v451 = vlaneseq
      %v452 = vshrl.u32 %v451, 7
      %v453 = vsub.s32 6, %v452
      %v454 = vrot.slane %v213, %v453
      %v455 = vmul.f32 %v449, %v454
      %v456 = vmul.f32 %v450, %v454
      %v457 = vadd.f32 %v446, %v455
      %v458 = vadd.f32 %v447, %v456
      %s459 = scalar_lea.vmem [#allocation2], 144
      %v460 = vld [vmem:[%s459 + $0x5] sm:$0x3]
      %v461 = vld [vmem:[%s459 + $0x15] sm:$0x3]
      %v462 = vlaneseq
      %v463 = vshrl.u32 %v462, 7
      %v464 = vsub.s32 7, %v463
      %v465 = vrot.slane %v213, %v464
      %v466 = vmul.f32 %v460, %v465
      %v467 = vmul.f32 %v461, %v465
      %v468 = vadd.f32 %v457, %v466
      %v469 = vadd.f32 %v458, %v467
      %s470 = scalar_lea.vmem [#allocation2], 160
      %v471 = vld [vmem:[%s470 + $0x5] sm:$0x3]
      %v472 = vld [vmem:[%s470 + $0x15] sm:$0x3]
      %v473 = vlaneseq
      %v474 = vshrl.u32 %v473, 7
      %v475 = vsub.s32 0, %v474
      %v476 = vrot.slane %v214, %v475
      %v477 = vmul.f32 %v471, %v476
      %v478 = vmul.f32 %v472, %v476
      %v479 = vadd.f32 %v468, %v477
      %v480 = vadd.f32 %v469, %v478
      %483 = vrot.lane.b32.xlu0 %v479, 40
      %v484 = vpop.permute.xlu0 %483
      %485 = vrot.lane.b32.xlu0 %v480, 40
      %v486 = vpop.permute.xlu0 %485
      %vm489 = vcmask 326656
      %v490 = vsel %vm489, %v171, %v484
      %v491 = vsel %vm489, %v172, %v486
      %vm492 = vcmask 517120
      %493 = vst.msk [vmem:[%s170] sm:$0x3] %vm492, %v490
      %494 = vst.msk [vmem:[%s170 + $0x2] sm:$0x3] %vm492, %v491
      %p495 = scmp.lt.s32.totalorder %s14, 1
      %s496 = scalar_select %p495, %s14, 1
      %s497 = smul.addr %s496, 2
      %s498 = smul.addr %s497, 2
      %s499 = scalar_lea.vmem %s3, %s498
      // Predicated region
      $region33: #{forward.31} parent=31 // pred_check
        %p500 = pneg %p100
      $region34: #{forward.31} parent=31 // pred_check_branch
        %502 = sbr.rel (%p500) target = $region36
      $region35: #{forward.31} parent=31 // pred_region
        _
      $region36: #{forward.31} parent=31 // pred_fallthru
        _
    $region32: #{forward.31} parent=5 // pred_fallthru
      _
    %p503 = scmp.le.s32.totalorder 2, %s9
    // Predicated region
    $region37: #{forward.31} parent=5 // pred_check
      %p504 = pneg %p503
    $region38: #{forward.31} parent=5 // pred_check_branch
      %506 = sbr.rel (%p504) target = $region40
    $region39: #{forward.31} parent=5 // pred_region
      %s507 = ssub.s32 %s9, 2
      // Predicated region
      $region41: #{forward.31} parent=39 // pred_check
        %p508 = pneg %p106
      $region42: #{forward.31} parent=39 // pred_check_branch
        %510 = sbr.rel (%p508) target = $region44
      $region43: #{forward.31} parent=39 // pred_region
        %p511 = scmp.lt.s32.totalorder %s15, 1
        %s512 = scalar_select %p511, %s15, 1
        %s513 = smul.addr %s512, 2
        %s514 = smul.addr %s513, 2
        %s515 = scalar_lea.vmem %s3, %s514
      $region44: #{forward.31} parent=39 // pred_fallthru
        _
    $region40: #{forward.31} parent=5 // pred_fallthru
      _
  $region6: #{forward.31} parent=0 // loop_footer
    %s13 = sadd.s32 1, %s9
  $region7: #{forward.31} parent=0 // loop_footer_branch
    %8 = sbr.rel target = $region3
  $region8: #{forward.31} parent=0 // loop_exit
    _

// kernel: forward.32
$region0: #{forward.32}
  #allocation0 [shape = 'u32[]', space=smem, size = 0x4, offset = 0x4, fixed_abs, tag = 'smem constant byte address 0x4 - core index']
  #allocation1 [shape = 'u32[144,128]{1,0:T(1,128)}', space=vmem, size = 0x12000, scoped, tag = 'internal scratch']
  %s0 = inlined_call_operand.vmem [shape: f32[8,64], index: 0, kind: input, shape index: {}, may-alias: {0,8}]
  %s1 = inlined_call_operand.vmem [shape: f32[8,64], index: 1, kind: input, shape index: {}]
  %s2 = inlined_call_operand.vmem [shape: f32[1,64], index: 2, kind: input, shape index: {}]
  %s3 = inlined_call_operand.vmem [shape: f32[1,64], index: 3, kind: input, shape index: {}]
  %s4 = inlined_call_operand.vmem [shape: bf16[64,256], index: 4, kind: input, shape index: {}]
  %s5 = inlined_call_operand.vmem [shape: f32[1,256], index: 5, kind: input, shape index: {}]
  %s6 = inlined_call_operand.vmem [shape: bf16[256,64], index: 6, kind: input, shape index: {}]
  %s7 = inlined_call_operand.vmem [shape: f32[1,64], index: 7, kind: input, shape index: {}]
  %s8 = inlined_call_operand.vmem [shape: f32[8,64], index: 8, kind: output, shape index: {}, may-alias: {0,8}]
  %s9 = sld [smem:[#allocation0]]
  $region42: #{forward.32} parent=0
    _
  %s11 = ssub.s32 1, %s9
  %s12 = scalar_select 0, %s11, %s9
  // Predicated region
  $region2: #{forward.32} parent=0 // pred_check
    _
  $region3: #{forward.32} parent=0 // pred_check_branch
    %14 = sbr.rel (0) target = $region5
  $region4: #{forward.32} parent=0 // pred_region
    _
  $region5: #{forward.32} parent=0 // pred_fallthru
    _
  // Predicated region
  $region6: #{forward.32} parent=0 // pred_check
    _
  $region7: #{forward.32} parent=0 // pred_check_branch
    %16 = sbr.rel (0) target = $region9
  $region8: #{forward.32} parent=0 // pred_region
    _
  $region9: #{forward.32} parent=0 // pred_fallthru
    _
  // Predicated region
  $region10: #{forward.32} parent=0 // pred_check
    _
  $region11: #{forward.32} parent=0 // pred_check_branch
    %18 = sbr.rel (0) target = $region13
  $region12: #{forward.32} parent=0 // pred_region
    _
  $region13: #{forward.32} parent=0 // pred_fallthru
    _
  // Predicated region
  $region14: #{forward.32} parent=0 // pred_check
    _
  $region15: #{forward.32} parent=0 // pred_check_branch
    %20 = sbr.rel (0) target = $region17
  $region16: #{forward.32} parent=0 // pred_region
    _
  $region17: #{forward.32} parent=0 // pred_fallthru
    _
  // Predicated region
  $region18: #{forward.32} parent=0 // pred_check
    _
  $region19: #{forward.32} parent=0 // pred_check_branch
    %22 = sbr.rel (0) target = $region21
  $region20: #{forward.32} parent=0 // pred_region
    _
  $region21: #{forward.32} parent=0 // pred_fallthru
    _
  // Predicated region
  $region22: #{forward.32} parent=0 // pred_check
    _
  $region23: #{forward.32} parent=0 // pred_check_branch
    %24 = sbr.rel (0) target = $region25
  $region24: #{forward.32} parent=0 // pred_region
    _
  $region25: #{forward.32} parent=0 // pred_fallthru
    _
  // Predicated region
  $region26: #{forward.32} parent=0 // pred_check
    _
  $region27: #{forward.32} parent=0 // pred_check_branch
    %26 = sbr.rel (0) target = $region29
  $region28: #{forward.32} parent=0 // pred_region
    _
  $region29: #{forward.32} parent=0 // pred_fallthru
    _
  // Predicated region
  $region30: #{forward.32} parent=0 // pred_check
    _
  $region31: #{forward.32} parent=0 // pred_check_branch
    %28 = sbr.rel (0) target = $region33
  $region32: #{forward.32} parent=0 // pred_region
    _
  $region33: #{forward.32} parent=0 // pred_fallthru
    _
  %v30 = vld [vmem:[%s0] sm:$0xff]
  %v31 = vld [vmem:[%s2] sm:$0x1]
  %v32 = vld [vmem:[%s3] sm:$0x1]
  %vm33 = vcmask 523264
  %v34 = vsel %vm33, %v30, 0.0
  %35 = vadd.xlane.f32.xlu0 %v34
  %v36 = vpop.xlane.xlu0 %35
  %v37 = vrcp.pop 64.0
  %v38 = vmul.f32 %v36, %v37
  %v39 = vsub.f32 %v30, %v38
  %v40 = vmul.f32 %v39, %v39
  %v41 = vsel %vm33, %v40, 0.0
  %42 = vadd.xlane.f32.xlu0 %v41
  %v43 = vpop.xlane.xlu0 %42
  %v44 = vmul.f32 %v43, %v37
  %v45 = vadd.f32 %v44, 1e-06
  %v46 = vrsqrt.pop %v45
  %v47 = vmul.f32 %v39, %v46
  %v49 = vlaneseq
  %v50 = vshrl.u32 %v49, 7
  %v51 = vsub.s32 0, %v50
  %v52 = vrot.slane %v31, %v51
  %v54 = vmul.f32 %v47, %v52
  %v56 = vlaneseq
  %v57 = vshrl.u32 %v56, 7
  %v58 = vsub.s32 0, %v57
  %v59 = vrot.slane %v32, %v58
  %v61 = vadd.f32 %v54, %v59
  %v62 = vld [vmem:[%s4] sm:$0xff]
  %v63 = vld [vmem:[%s4 + $0x8] sm:$0xff]
  %v64 = vld [vmem:[%s4 + $0x10] sm:$0xff]
  %v65 = vld [vmem:[%s4 + $0x18] sm:$0xff]
  %v66 = vld [vmem:[%s4 + $0x20] sm:$0xff]
  %v67 = vld [vmem:[%s4 + $0x28] sm:$0xff]
  %v68 = vld [vmem:[%s4 + $0x30] sm:$0xff]
  %v69 = vld [vmem:[%s4 + $0x38] sm:$0xff]
  %v70 = vpack.c.bf16 %v61, %v61
  %v71 = vld [vmem:[%s5] sm:$0x3]
  %v73 = vlaneseq
  %v74 = vshrl.u32 %v73, 7
  %v75 = vsub.s32 0, %v74
  %v76 = vrot.slane %v71, %v75
  %v77 = vlaneseq
  %v78 = vshrl.u32 %v77, 7
  %v79 = vsub.s32 1, %v78
  %v80 = vrot.slane %v71, %v79
  %v91 = vunpack.c.l.b16 %v62
  %v92 = vunpack.c.h.b16 %v62
  %v93 = vunpack.c.l.b16 %v63
  %v94 = vunpack.c.h.b16 %v63
  %v95 = vunpack.c.l.b16 %v64
  %v96 = vunpack.c.h.b16 %v64
  %v97 = vunpack.c.l.b16 %v65
  %v98 = vunpack.c.h.b16 %v65
  %v99 = vunpack.c.l.b16 %v66
  %v100 = vunpack.c.h.b16 %v66
  %v101 = vunpack.c.l.b16 %v67
  %v102 = vunpack.c.h.b16 %v67
  %v103 = vunpack.c.l.b16 %v68
  %v104 = vunpack.c.h.b16 %v68
  %v105 = vunpack.c.l.b16 %v69
  %v106 = vunpack.c.h.b16 %v69
  %v107 = vpack.c.b16 %v93, %v91
  %v108 = vpack.c.b16 %v94, %v92
  %v109 = vpack.c.b16 %v97, %v95
  %v110 = vpack.c.b16 %v98, %v96
  %v111 = vpack.c.b16 %v101, %v99
  %v112 = vpack.c.b16 %v102, %v100
  %v113 = vpack.c.b16 %v105, %v103
  %v114 = vpack.c.b16 %v106, %v104
  %v124 = vsel %vm33, %v70, 0
  %126 = vmatprep.subr.bf16.mxu0 %v108
  %127 = vmatpush1.bf16.msra.mxu0 %v107
  %128 = vmatprep.subr.bf16.mxu0 %v110
  %129 = vmatpush1.bf16.msra.mxu0 %v109
  %130 = vmatprep.subr.bf16.mxu0 %v112
  %131 = vmatpush1.bf16.msra.mxu0 %v111
  %132 = vmatprep.subr.bf16.mxu0 %v114
  %133 = vmatpush1.bf16.msra.mxu0 %v113
  %134 = vmatprep.subr.bf16.mxu0 0
  %135 = vmatpush1.bf16.msra.mxu0 0
  %136 = vmatprep.subr.bf16.mxu0 0
  %137 = vmatpush1.bf16.msra.mxu0 0
  %138 = vmatprep.subr.bf16.mxu0 0
  %139 = vmatpush1.bf16.msra.mxu0 0
  %140 = vmatprep.subr.bf16.mxu0 0
  %141 = vmatpush1.bf16.msra.mxu0 0
  %142 = vmatprep.subr.bf16.mxu0 0
  %143 = vmatpush1.bf16.msra.mxu0 0
  %144 = vmatprep.subr.bf16.mxu0 0
  %145 = vmatpush1.bf16.msra.mxu0 0
  %146 = vmatprep.subr.bf16.mxu0 0
  %147 = vmatpush1.bf16.msra.mxu0 0
  %148 = vmatprep.subr.bf16.mxu0 0
  %149 = vmatpush1.bf16.msra.mxu0 0
  %150 = vmatprep.subr.bf16.mxu0 0
  %151 = vmatpush1.bf16.msra.mxu0 0
  %152 = vmatprep.subr.bf16.mxu0 0
  %153 = vmatpush1.bf16.msra.mxu0 0
  %154 = vmatprep.subr.bf16.mxu0 0
  %155 = vmatpush1.bf16.msra.mxu0 0
  %156 = vmatprep.subr.bf16.mxu0 0
  %157 = vmatpush1.bf16.msra.mxu0 0
  %158 = vmatprep.mubr.bf16.mxu0 0
  %159 = vmatmul.mubr.bf16.gmra.mrb[0].mxu0 %v124
  %v160 = vpop.f32.mrb[0].mxu0
  %v161 = vadd.f32 %v76, %v160
  %v162 = vpop.f32.mrb[0].mxu0
  %v163 = vadd.f32 %v80, %v162
  %v164 = vpop.f32.mrb[0].mxu0
  %v165 = vpop.f32.mrb[0].mxu0
  %166 = vdwg.mxu0
  %v167 = vmul.f32 %v161, 0.5
  %v168 = vmul.f32 %v163, 0.5
  %v169 = vmul.f32 %v161, 0.70710677
  %v170 = vmul.f32 %v163, 0.70710677
  %v171 = verf.f32.pop %v169
  %v172 = verf.f32.pop %v170
  %v173 = vadd.f32 %v171, 1.0
  %v174 = vadd.f32 %v172, 1.0
  %v175 = vmul.f32 %v167, %v173
  %v176 = vmul.f32 %v168, %v174
  %v177 = vld [vmem:[%s6] sm:$0xf]
  %v178 = vld [vmem:[%s6 + $0x4] sm:$0xf]
  %v179 = vld [vmem:[%s6 + $0x8] sm:$0xf]
  %v180 = vld [vmem:[%s6 + $0xc] sm:$0xf]
  %v181 = vld [vmem:[%s6 + $0x10] sm:$0xf]
  %v182 = vld [vmem:[%s6 + $0x14] sm:$0xf]
  %v183 = vld [vmem:[%s6 + $0x18] sm:$0xf]
  %v184 = vld [vmem:[%s6 + $0x1c] sm:$0xf]
  %v185 = vld [vmem:[%s6 + $0x20] sm:$0xf]
  %v186 = vld [vmem:[%s6 + $0x24] sm:$0xf]
  %v187 = vld [vmem:[%s6 + $0x28] sm:$0xf]
  %v188 = vld [vmem:[%s6 + $0x2c] sm:$0xf]
  %v189 = vld [vmem:[%s6 + $0x30] sm:$0xf]
  %v190 = vld [vmem:[%s6 + $0x34] sm:$0xf]
  %v191 = vld [vmem:[%s6 + $0x38] sm:$0xf]
  %v192 = vld [vmem:[%s6 + $0x3c] sm:$0xf]
  %v193 = vld [vmem:[%s6 + $0x40] sm:$0xf]
  %v194 = vld [vmem:[%s6 + $0x44] sm:$0xf]
  %v195 = vld [vmem:[%s6 + $0x48] sm:$0xf]
  %v196 = vld [vmem:[%s6 + $0x4c] sm:$0xf]
  %v197 = vld [vmem:[%s6 + $0x50] sm:$0xf]
  %v198 = vld [vmem:[%s6 + $0x54] sm:$0xf]
  %v199 = vld [vmem:[%s6 + $0x58] sm:$0xf]
  %v200 = vld [vmem:[%s6 + $0x5c] sm:$0xf]
  %v201 = vld [vmem:[%s6 + $0x60] sm:$0xf]
  %v202 = vld [vmem:[%s6 + $0x64] sm:$0xf]
  %v203 = vld [vmem:[%s6 + $0x68] sm:$0xf]
  %v204 = vld [vmem:[%s6 + $0x6c] sm:$0xf]
  %v205 = vld [vmem:[%s6 + $0x70] sm:$0xf]
  %v206 = vld [vmem:[%s6 + $0x74] sm:$0xf]
  %v207 = vld [vmem:[%s6 + $0x78] sm:$0xf]
  %v208 = vld [vmem:[%s6 + $0x7c] sm:$0xf]
  %v209 = vpack.c.bf16 %v175, %v175
  %v210 = vpack.c.bf16 %v176, %v176
  %v211 = vld [vmem:[%s7] sm:$0x1]
  %v213 = vlaneseq
  %v214 = vshrl.u32 %v213, 7
  %v215 = vsub.s32 0, %v214
  %v216 = vrot.slane %v211, %v215
  %v250 = vunpack.c.l.b16 %v177
  %v251 = vunpack.c.l.b16 %v178
  %v252 = vunpack.c.l.b16 %v179
  %v253 = vunpack.c.l.b16 %v180
  %v254 = vunpack.c.l.b16 %v181
  %v255 = vunpack.c.l.b16 %v182
  %v256 = vunpack.c.l.b16 %v183
  %v257 = vunpack.c.l.b16 %v184
  %v258 = vunpack.c.l.b16 %v185
  %v259 = vunpack.c.l.b16 %v186
  %v260 = vunpack.c.l.b16 %v187
  %v261 = vunpack.c.l.b16 %v188
  %v262 = vunpack.c.l.b16 %v189
  %v263 = vunpack.c.l.b16 %v190
  %v264 = vunpack.c.l.b16 %v191
  %v265 = vunpack.c.l.b16 %v192
  %v266 = vunpack.c.l.b16 %v193
  %v267 = vunpack.c.l.b16 %v194
  %v268 = vunpack.c.l.b16 %v195
  %v269 = vunpack.c.l.b16 %v196
  %v270 = vunpack.c.l.b16 %v197
  %v271 = vunpack.c.l.b16 %v198
  %v272 = vunpack.c.l.b16 %v199
  %v273 = vunpack.c.l.b16 %v200
  %v274 = vunpack.c.l.b16 %v201
  %v275 = vunpack.c.l.b16 %v202
  %v276 = vunpack.c.l.b16 %v203
  %v277 = vunpack.c.l.b16 %v204
  %v278 = vunpack.c.l.b16 %v205
  %v279 = vunpack.c.l.b16 %v206
  %v280 = vunpack.c.l.b16 %v207
  %v281 = vunpack.c.l.b16 %v208
  %v282 = vpack.c.b16 %v251, %v250
  %v283 = vpack.c.b16 %v253, %v252
  %v284 = vpack.c.b16 %v255, %v254
  %v285 = vpack.c.b16 %v257, %v256
  %v286 = vpack.c.b16 %v259, %v258
  %v287 = vpack.c.b16 %v261, %v260
  %v288 = vpack.c.b16 %v263, %v262
  %v289 = vpack.c.b16 %v265, %v264
  %v290 = vpack.c.b16 %v267, %v266
  %v291 = vpack.c.b16 %v269, %v268
  %v292 = vpack.c.b16 %v271, %v270
  %v293 = vpack.c.b16 %v273, %v272
  %v294 = vpack.c.b16 %v275, %v274
  %v295 = vpack.c.b16 %v277, %v276
  %v296 = vpack.c.b16 %v279, %v278
  %v297 = vpack.c.b16 %v281, %v280
  %314 = vmatprep.subr.bf16.mxu0 0
  %315 = vmatpush1.bf16.msra.mxu0 %v282
  %316 = vmatprep.subr.bf16.mxu0 0
  %317 = vmatpush1.bf16.msra.mxu0 %v283
  %318 = vmatprep.subr.bf16.mxu0 0
  %319 = vmatpush1.bf16.msra.mxu0 %v284
  %320 = vmatprep.subr.bf16.mxu0 0
  %321 = vmatpush1.bf16.msra.mxu0 %v285
  %322 = vmatprep.subr.bf16.mxu0 0
  %323 = vmatpush1.bf16.msra.mxu0 %v286
  %324 = vmatprep.subr.bf16.mxu0 0
  %325 = vmatpush1.bf16.msra.mxu0 %v287
  %326 = vmatprep.subr.bf16.mxu0 0
  %327 = vmatpush1.bf16.msra.mxu0 %v288
  %328 = vmatprep.subr.bf16.mxu0 0
  %329 = vmatpush1.bf16.msra.mxu0 %v289
  %330 = vmatprep.subr.bf16.mxu0 0
  %331 = vmatpush1.bf16.msra.mxu0 %v290
  %332 = vmatprep.subr.bf16.mxu0 0
  %333 = vmatpush1.bf16.msra.mxu0 %v291
  %334 = vmatprep.subr.bf16.mxu0 0
  %335 = vmatpush1.bf16.msra.mxu0 %v292
  %336 = vmatprep.subr.bf16.mxu0 0
  %337 = vmatpush1.bf16.msra.mxu0 %v293
  %338 = vmatprep.subr.bf16.mxu0 0
  %339 = vmatpush1.bf16.msra.mxu0 %v294
  %340 = vmatprep.subr.bf16.mxu0 0
  %341 = vmatpush1.bf16.msra.mxu0 %v295
  %342 = vmatprep.subr.bf16.mxu0 0
  %343 = vmatpush1.bf16.msra.mxu0 %v296
  %344 = vmatprep.subr.bf16.mxu0 0
  %345 = vmatpush1.bf16.msra.mxu0 %v297
  %346 = vmatprep.mubr.bf16.mxu0 %v210
  %347 = vmatmul.mubr.bf16.gmra.mrb[0].mxu0 %v209
  %v348 = vpop.f32.mrb[0].mxu0
  %v349 = vadd.f32 %v216, %v348
  %v350 = vpop.f32.mrb[0].mxu0
  %v351 = vpop.f32.mrb[0].mxu0
  %v352 = vpop.f32.mrb[0].mxu0
  %353 = vdwg.mxu0
  %v354 = vld [vmem:[%s1] sm:$0xff]
  %v355 = vadd.f32 %v354, %v349
  %356 = vst.msk [vmem:[%s8] sm:$0xff] %vm33, %v355
  // Predicated region
  $region34: #{forward.32} parent=0 // pred_check
    _
  $region35: #{forward.32} parent=0 // pred_check_branch
    %358 = sbr.rel (0) target = $region37
  $region36: #{forward.32} parent=0 // pred_region
    _
  $region37: #{forward.32} parent=0 // pred_fallthru
    _
  // Predicated region
  $region38: #{forward.32} parent=0 // pred_check
    _
  $region39: #{forward.32} parent=0 // pred_check_branch
    %360 = sbr.rel (0) target = $region41
  $region40: #{forward.32} parent=0 // pred_region
    _
  $region41: #{forward.32} parent=0 // pred_fallthru
    _

// kernel: forward.35
$region0: #{forward.35}
  #allocation0 [shape = 'u32[]', space=smem, size = 0x4, offset = 0x4, fixed_abs, tag = 'smem constant byte address 0x4 - core index']
  #allocation1 [shape = 'u32[144,128]{1,0:T(1,128)}', space=vmem, size = 0x12000, scoped, tag = 'internal scratch']
  %s0 = inlined_call_operand.vmem [shape: f32[2,256], index: 0, kind: input, shape index: {}]
  %s1 = inlined_call_operand.vmem [shape: f32[1,64], index: 1, kind: input, shape index: {}]
  %s2 = inlined_call_operand.vmem [shape: f32[1,64], index: 2, kind: input, shape index: {}]
  %s3 = inlined_call_operand.vmem [shape: bf16[256,128], index: 3, kind: input, shape index: {}]
  %s4 = inlined_call_operand.vmem [shape: f32[1,128], index: 4, kind: input, shape index: {}]
  %s5 = inlined_call_operand.vmem [shape: f32[2,128], index: 5, kind: output, shape index: {}]
  %s6 = sld [smem:[#allocation0]]
  $region30: #{forward.35} parent=0
    _
  %s8 = ssub.s32 1, %s6
  %s9 = scalar_select 0, %s8, %s6
  // Predicated region
  $region2: #{forward.35} parent=0 // pred_check
    _
  $region3: #{forward.35} parent=0 // pred_check_branch
    %11 = sbr.rel (0) target = $region5
  $region4: #{forward.35} parent=0 // pred_region
    _
  $region5: #{forward.35} parent=0 // pred_fallthru
    _
  // Predicated region
  $region6: #{forward.35} parent=0 // pred_check
    _
  $region7: #{forward.35} parent=0 // pred_check_branch
    %13 = sbr.rel (0) target = $region9
  $region8: #{forward.35} parent=0 // pred_region
    _
  $region9: #{forward.35} parent=0 // pred_fallthru
    _
  // Predicated region
  $region10: #{forward.35} parent=0 // pred_check
    _
  $region11: #{forward.35} parent=0 // pred_check_branch
    %15 = sbr.rel (0) target = $region13
  $region12: #{forward.35} parent=0 // pred_region
    _
  $region13: #{forward.35} parent=0 // pred_fallthru
    _
  // Predicated region
  $region14: #{forward.35} parent=0 // pred_check
    _
  $region15: #{forward.35} parent=0 // pred_check_branch
    %17 = sbr.rel (0) target = $region17
  $region16: #{forward.35} parent=0 // pred_region
    _
  $region17: #{forward.35} parent=0 // pred_fallthru
    _
  // Predicated region
  $region18: #{forward.35} parent=0 // pred_check
    _
  $region19: #{forward.35} parent=0 // pred_check_branch
    %19 = sbr.rel (0) target = $region21
  $region20: #{forward.35} parent=0 // pred_region
    _
  $region21: #{forward.35} parent=0 // pred_fallthru
    _
  %v21 = vld [vmem:[%s0] sm:$0xf]
  %v22 = vld [vmem:[%s1] sm:$0x1]
  %v23 = vld [vmem:[%s2] sm:$0x1]
  %vm24 = vcmask 517120
  %v25 = vsel %vm24, %v21, 0.0
  %26 = vadd.xlane.f32.xlu0 %v25
  %v27 = vpop.xlane.xlu0 %26
  %v28 = vrcp.pop 64.0
  %v29 = vmul.f32 %v27, %v28
  %v30 = vsub.f32 %v21, %v29
  %v31 = vmul.f32 %v30, %v30
  %v32 = vsel %vm24, %v31, 0.0
  %33 = vadd.xlane.f32.xlu0 %v32
  %v34 = vpop.xlane.xlu0 %33
  %v35 = vmul.f32 %v34, %v28
  %v36 = vadd.f32 %v35, 1e-06
  %v37 = vrsqrt.pop %v36
  %v38 = vmul.f32 %v30, %v37
  %v40 = vlaneseq
  %v41 = vshrl.u32 %v40, 7
  %v42 = vsub.s32 0, %v41
  %v43 = vrot.slane %v22, %v42
  %v45 = vmul.f32 %v38, %v43
  %v47 = vlaneseq
  %v48 = vshrl.u32 %v47, 7
  %v49 = vsub.s32 0, %v48
  %v50 = vrot.slane %v23, %v49
  %v52 = vadd.f32 %v45, %v50
  %v55 = vunpack.c.l.s4 1983009808
  %v56 = vunpack.c.0.s8 %v55
  %v57 = vlaneseq
  %v58 = vshrl.u32 %v57, 7
  %v59 = vsub.s32 %v56, %v58
  %v60 = vrot.slane %v21, %v59
  %61 = vrot.lane.b32.xlu0 %v60, 64
  %v62 = vpop.permute.xlu0 %61
  %v64 = vsel %vm24, %v62, 0.0
  %65 = vadd.xlane.f32.xlu0 %v64
  %v66 = vpop.xlane.xlu0 %65
  %v67 = vmul.f32 %v66, %v28
  %v68 = vsub.f32 %v21, %v67
  %v69 = vmul.f32 %v68, %v68
  %v72 = vunpack.c.l.s4 1983009808
  %v73 = vunpack.c.0.s8 %v72
  %v74 = vlaneseq
  %v75 = vshrl.u32 %v74, 7
  %v76 = vsub.s32 %v73, %v75
  %v77 = vrot.slane %v69, %v76
  %78 = vrot.lane.b32.xlu0 %v77, 64
  %v79 = vpop.permute.xlu0 %78
  %v81 = vsel %vm24, %v79, 0.0
  %82 = vadd.xlane.f32.xlu0 %v81
  %v83 = vpop.xlane.xlu0 %82
  %v84 = vmul.f32 %v83, %v28
  %v85 = vadd.f32 %v84, 1e-06
  %v86 = vrsqrt.pop %v85
  %v87 = vmul.f32 %v68, %v86
  %v89 = vunpack.c.l.s4 1983009808
  %v90 = vunpack.c.0.s8 %v89
  %v91 = vlaneseq
  %v92 = vshrl.u32 %v91, 7
  %v93 = vsub.s32 %v90, %v92
  %v94 = vrot.slane %v43, %v93
  %95 = vrot.lane.b32.xlu0 %v94, 64
  %v96 = vpop.permute.xlu0 %95
  %v98 = vmul.f32 %v87, %v96
  %v100 = vunpack.c.l.s4 1983009808
  %v101 = vunpack.c.0.s8 %v100
  %v102 = vlaneseq
  %v103 = vshrl.u32 %v102, 7
  %v104 = vsub.s32 %v101, %v103
  %v105 = vrot.slane %v50, %v104
  %106 = vrot.lane.b32.xlu0 %v105, 64
  %v107 = vpop.permute.xlu0 %106
  %v109 = vadd.f32 %v98, %v107
  %v110 = vcombine.high %v60, %v60
  %v112 = vsel %vm24, %v110, 0.0
  %113 = vadd.xlane.f32.xlu0 %v112
  %v114 = vpop.xlane.xlu0 %113
  %v115 = vmul.f32 %v114, %v28
  %v116 = vrot.slane %v21, 2
  %v118 = vsub.f32 %v116, %v115
  %v119 = vmul.f32 %v118, %v118
  %v120 = vsel %vm24, %v119, 0.0
  %121 = vadd.xlane.f32.xlu0 %v120
  %v122 = vpop.xlane.xlu0 %121
  %v123 = vmul.f32 %v122, %v28
  %v124 = vadd.f32 %v123, 1e-06
  %v125 = vrsqrt.pop %v124
  %v126 = vmul.f32 %v118, %v125
  %v127 = vmul.f32 %v126, %v43
  %v128 = vadd.f32 %v127, %v50
  %129 = vrot.lane.b32.xlu0 %v110, 64
  %v130 = vpop.permute.xlu0 %129
  %v132 = vsel %vm24, %v130, 0.0
  %133 = vadd.xlane.f32.xlu0 %v132
  %v134 = vpop.xlane.xlu0 %133
  %v135 = vmul.f32 %v134, %v28
  %136 = vrot.lane.b32.xlu0 %v21, 64
  %v137 = vpop.permute.xlu0 %136
  %v138 = vrot.slane %v137, 2
  %v140 = vsub.f32 %v138, %v135
  %v141 = vmul.f32 %v140, %v140
  %v142 = vsel %vm24, %v141, 0.0
  %143 = vadd.xlane.f32.xlu0 %v142
  %v144 = vpop.xlane.xlu0 %143
  %v145 = vmul.f32 %v144, %v28
  %v146 = vadd.f32 %v145, 1e-06
  %v147 = vrsqrt.pop %v146
  %v148 = vmul.f32 %v140, %v147
  %v149 = vmul.f32 %v148, %v43
  %v150 = vadd.f32 %v149, %v50
  %v153 = vunpack.c.l.s4 1983009808
  %v154 = vunpack.c.0.s8 %v153
  %v155 = vlaneseq
  %v156 = vshrl.u32 %v155, 7
  %v157 = vsub.s32 %v154, %v156
  %v158 = vrot.slane %v150, %v157
  %159 = vrot.lane.b32.xlu0 %v158, 64
  %v160 = vpop.permute.xlu0 %159
  %vm162 = vcmask 523264
  %v163 = vsel %vm162, %v52, %v109
  %v164 = vsel %vm162, %v128, %v160
  %v165 = vld [vmem:[%s3] sm:$0xf]
  %v166 = vld [vmem:[%s3 + $0x4] sm:$0xf]
  %v167 = vld [vmem:[%s3 + $0x8] sm:$0xf]
  %v168 = vld [vmem:[%s3 + $0xc] sm:$0xf]
  %v169 = vld [vmem:[%s3 + $0x10] sm:$0xf]
  %v170 = vld [vmem:[%s3 + $0x14] sm:$0xf]
  %v171 = vld [vmem:[%s3 + $0x18] sm:$0xf]
  %v172 = vld [vmem:[%s3 + $0x1c] sm:$0xf]
  %v173 = vld [vmem:[%s3 + $0x20] sm:$0xf]
  %v174 = vld [vmem:[%s3 + $0x24] sm:$0xf]
  %v175 = vld [vmem:[%s3 + $0x28] sm:$0xf]
  %v176 = vld [vmem:[%s3 + $0x2c] sm:$0xf]
  %v177 = vld [vmem:[%s3 + $0x30] sm:$0xf]
  %v178 = vld [vmem:[%s3 + $0x34] sm:$0xf]
  %v179 = vld [vmem:[%s3 + $0x38] sm:$0xf]
  %v180 = vld [vmem:[%s3 + $0x3c] sm:$0xf]
  %v181 = vld [vmem:[%s3 + $0x40] sm:$0xf]
  %v182 = vld [vmem:[%s3 + $0x44] sm:$0xf]
  %v183 = vld [vmem:[%s3 + $0x48] sm:$0xf]
  %v184 = vld [vmem:[%s3 + $0x4c] sm:$0xf]
  %v185 = vld [vmem:[%s3 + $0x50] sm:$0xf]
  %v186 = vld [vmem:[%s3 + $0x54] sm:$0xf]
  %v187 = vld [vmem:[%s3 + $0x58] sm:$0xf]
  %v188 = vld [vmem:[%s3 + $0x5c] sm:$0xf]
  %v189 = vld [vmem:[%s3 + $0x60] sm:$0xf]
  %v190 = vld [vmem:[%s3 + $0x64] sm:$0xf]
  %v191 = vld [vmem:[%s3 + $0x68] sm:$0xf]
  %v192 = vld [vmem:[%s3 + $0x6c] sm:$0xf]
  %v193 = vld [vmem:[%s3 + $0x70] sm:$0xf]
  %v194 = vld [vmem:[%s3 + $0x74] sm:$0xf]
  %v195 = vld [vmem:[%s3 + $0x78] sm:$0xf]
  %v196 = vld [vmem:[%s3 + $0x7c] sm:$0xf]
  %v197 = vpack.c.bf16 %v163, %v163
  %v198 = vpack.c.bf16 %v164, %v164
  %v199 = vld [vmem:[%s4] sm:$0x1]
  %v201 = vlaneseq
  %v202 = vshrl.u32 %v201, 7
  %v203 = vsub.s32 0, %v202
  %v204 = vrot.slane %v199, %v203
  %v238 = vunpack.c.l.b16 %v165
  %v239 = vunpack.c.l.b16 %v166
  %v240 = vunpack.c.l.b16 %v167
  %v241 = vunpack.c.l.b16 %v168
  %v242 = vunpack.c.l.b16 %v169
  %v243 = vunpack.c.l.b16 %v170
  %v244 = vunpack.c.l.b16 %v171
  %v245 = vunpack.c.l.b16 %v172
  %v246 = vunpack.c.l.b16 %v173
  %v247 = vunpack.c.l.b16 %v174
  %v248 = vunpack.c.l.b16 %v175
  %v249 = vunpack.c.l.b16 %v176
  %v250 = vunpack.c.l.b16 %v177
  %v251 = vunpack.c.l.b16 %v178
  %v252 = vunpack.c.l.b16 %v179
  %v253 = vunpack.c.l.b16 %v180
  %v254 = vunpack.c.l.b16 %v181
  %v255 = vunpack.c.l.b16 %v182
  %v256 = vunpack.c.l.b16 %v183
  %v257 = vunpack.c.l.b16 %v184
  %v258 = vunpack.c.l.b16 %v185
  %v259 = vunpack.c.l.b16 %v186
  %v260 = vunpack.c.l.b16 %v187
  %v261 = vunpack.c.l.b16 %v188
  %v262 = vunpack.c.l.b16 %v189
  %v263 = vunpack.c.l.b16 %v190
  %v264 = vunpack.c.l.b16 %v191
  %v265 = vunpack.c.l.b16 %v192
  %v266 = vunpack.c.l.b16 %v193
  %v267 = vunpack.c.l.b16 %v194
  %v268 = vunpack.c.l.b16 %v195
  %v269 = vunpack.c.l.b16 %v196
  %v270 = vpack.c.b16 %v239, %v238
  %v271 = vpack.c.b16 %v241, %v240
  %v272 = vpack.c.b16 %v243, %v242
  %v273 = vpack.c.b16 %v245, %v244
  %v274 = vpack.c.b16 %v247, %v246
  %v275 = vpack.c.b16 %v249, %v248
  %v276 = vpack.c.b16 %v251, %v250
  %v277 = vpack.c.b16 %v253, %v252
  %v278 = vpack.c.b16 %v255, %v254
  %v279 = vpack.c.b16 %v257, %v256
  %v280 = vpack.c.b16 %v259, %v258
  %v281 = vpack.c.b16 %v261, %v260
  %v282 = vpack.c.b16 %v263, %v262
  %v283 = vpack.c.b16 %v265, %v264
  %v284 = vpack.c.b16 %v267, %v266
  %v285 = vpack.c.b16 %v269, %v268
  %302 = vmatprep.subr.bf16.mxu0 0
  %303 = vmatpush1.bf16.msra.mxu0 %v270
  %304 = vmatprep.subr.bf16.mxu0 0
  %305 = vmatpush1.bf16.msra.mxu0 %v271
  %306 = vmatprep.subr.bf16.mxu0 0
  %307 = vmatpush1.bf16.msra.mxu0 %v272
  %308 = vmatprep.subr.bf16.mxu0 0
  %309 = vmatpush1.bf16.msra.mxu0 %v273
  %310 = vmatprep.subr.bf16.mxu0 0
  %311 = vmatpush1.bf16.msra.mxu0 %v274
  %312 = vmatprep.subr.bf16.mxu0 0
  %313 = vmatpush1.bf16.msra.mxu0 %v275
  %314 = vmatprep.subr.bf16.mxu0 0
  %315 = vmatpush1.bf16.msra.mxu0 %v276
  %316 = vmatprep.subr.bf16.mxu0 0
  %317 = vmatpush1.bf16.msra.mxu0 %v277
  %318 = vmatprep.subr.bf16.mxu0 0
  %319 = vmatpush1.bf16.msra.mxu0 %v278
  %320 = vmatprep.subr.bf16.mxu0 0
  %321 = vmatpush1.bf16.msra.mxu0 %v279
  %322 = vmatprep.subr.bf16.mxu0 0
  %323 = vmatpush1.bf16.msra.mxu0 %v280
  %324 = vmatprep.subr.bf16.mxu0 0
  %325 = vmatpush1.bf16.msra.mxu0 %v281
  %326 = vmatprep.subr.bf16.mxu0 0
  %327 = vmatpush1.bf16.msra.mxu0 %v282
  %328 = vmatprep.subr.bf16.mxu0 0
  %329 = vmatpush1.bf16.msra.mxu0 %v283
  %330 = vmatprep.subr.bf16.mxu0 0
  %331 = vmatpush1.bf16.msra.mxu0 %v284
  %332 = vmatprep.subr.bf16.mxu0 0
  %333 = vmatpush1.bf16.msra.mxu0 %v285
  %334 = vmatprep.mubr.bf16.mxu0 %v198
  %335 = vmatmul.mubr.bf16.gmra.mrb[0].mxu0 %v197
  %v336 = vpop.f32.mrb[0].mxu0
  %v337 = vadd.f32 %v204, %v336
  %v338 = vpop.f32.mrb[0].mxu0
  %v339 = vpop.f32.mrb[0].mxu0
  %v340 = vpop.f32.mrb[0].mxu0
  %341 = vdwg.mxu0
  %342 = vst [vmem:[%s5] sm:$0x3] %v337
  // Predicated region
  $region22: #{forward.35} parent=0 // pred_check
    _
  $region23: #{forward.35} parent=0 // pred_check_branch
    %344 = sbr.rel (0) target = $region25
  $region24: #{forward.35} parent=0 // pred_region
    _
  $region25: #{forward.35} parent=0 // pred_fallthru
    _
  // Predicated region
  $region26: #{forward.35} parent=0 // pred_check
    _
  $region27: #{forward.35} parent=0 // pred_check_branch
    %346 = sbr.rel (0) target = $region29
  $region28: #{forward.35} parent=0 // pred_region
    _
  $region29: #{forward.35} parent=0 // pred_fallthru
    _

// kernel: forward.37
$region0: #{forward.37}
  #allocation0 [shape = 'u32[]', space=smem, size = 0x4, offset = 0x4, fixed_abs, tag = 'smem constant byte address 0x4 - core index']
  #allocation1 [shape = 'u32[144,128]{1,0:T(1,128)}', space=vmem, size = 0x12000, scoped, tag = 'internal scratch']
  %s0 = inlined_call_operand.vmem [shape: f32[2,128], index: 0, kind: input, shape index: {}, may-alias: {0,8}]
  %s1 = inlined_call_operand.vmem [shape: f32[2,128], index: 1, kind: input, shape index: {}]
  %s2 = inlined_call_operand.vmem [shape: f32[1,128], index: 2, kind: input, shape index: {}]
  %s3 = inlined_call_operand.vmem [shape: f32[1,128], index: 3, kind: input, shape index: {}]
  %s4 = inlined_call_operand.vmem [shape: bf16[128,512], index: 4, kind: input, shape index: {}]
  %s5 = inlined_call_operand.vmem [shape: f32[1,512], index: 5, kind: input, shape index: {}]
  %s6 = inlined_call_operand.vmem [shape: bf16[512,128], index: 6, kind: input, shape index: {}]
  %s7 = inlined_call_operand.vmem [shape: f32[1,128], index: 7, kind: input, shape index: {}]
  %s8 = inlined_call_operand.vmem [shape: f32[2,128], index: 8, kind: output, shape index: {}, may-alias: {0,8}]
  %s9 = sld [smem:[#allocation0]]
  $region42: #{forward.37} parent=0
    _
  %s11 = ssub.s32 1, %s9
  %s12 = scalar_select 0, %s11, %s9
  // Predicated region
  $region2: #{forward.37} parent=0 // pred_check
    _
  $region3: #{forward.37} parent=0 // pred_check_branch
    %14 = sbr.rel (0) target = $region5
  $region4: #{forward.37} parent=0 // pred_region
    _
  $region5: #{forward.37} parent=0 // pred_fallthru
    _
  // Predicated region
  $region6: #{forward.37} parent=0 // pred_check
    _
  $region7: #{forward.37} parent=0 // pred_check_branch
    %16 = sbr.rel (0) target = $region9
  $region8: #{forward.37} parent=0 // pred_region
    _
  $region9: #{forward.37} parent=0 // pred_fallthru
    _
  // Predicated region
  $region10: #{forward.37} parent=0 // pred_check
    _
  $region11: #{forward.37} parent=0 // pred_check_branch
    %18 = sbr.rel (0) target = $region13
  $region12: #{forward.37} parent=0 // pred_region
    _
  $region13: #{forward.37} parent=0 // pred_fallthru
    _
  // Predicated region
  $region14: #{forward.37} parent=0 // pred_check
    _
  $region15: #{forward.37} parent=0 // pred_check_branch
    %20 = sbr.rel (0) target = $region17
  $region16: #{forward.37} parent=0 // pred_region
    _
  $region17: #{forward.37} parent=0 // pred_fallthru
    _
  // Predicated region
  $region18: #{forward.37} parent=0 // pred_check
    _
  $region19: #{forward.37} parent=0 // pred_check_branch
    %22 = sbr.rel (0) target = $region21
  $region20: #{forward.37} parent=0 // pred_region
    _
  $region21: #{forward.37} parent=0 // pred_fallthru
    _
  // Predicated region
  $region22: #{forward.37} parent=0 // pred_check
    _
  $region23: #{forward.37} parent=0 // pred_check_branch
    %24 = sbr.rel (0) target = $region25
  $region24: #{forward.37} parent=0 // pred_region
    _
  $region25: #{forward.37} parent=0 // pred_fallthru
    _
  // Predicated region
  $region26: #{forward.37} parent=0 // pred_check
    _
  $region27: #{forward.37} parent=0 // pred_check_branch
    %26 = sbr.rel (0) target = $region29
  $region28: #{forward.37} parent=0 // pred_region
    _
  $region29: #{forward.37} parent=0 // pred_fallthru
    _
  // Predicated region
  $region30: #{forward.37} parent=0 // pred_check
    _
  $region31: #{forward.37} parent=0 // pred_check_branch
    %28 = sbr.rel (0) target = $region33
  $region32: #{forward.37} parent=0 // pred_region
    _
  $region33: #{forward.37} parent=0 // pred_fallthru
    _
  %v30 = vld [vmem:[%s0] sm:$0x3]
  %v31 = vld [vmem:[%s2] sm:$0x1]
  %v32 = vld [vmem:[%s3] sm:$0x1]
  %vm33 = vcmask 1041408
  %v34 = vsel %vm33, %v30, 0.0
  %35 = vadd.xlane.f32.xlu0 %v34
  %v36 = vpop.xlane.xlu0 %35
  %v37 = vrcp.pop 128.0
  %v38 = vmul.f32 %v36, %v37
  %v39 = vsub.f32 %v30, %v38
  %v40 = vmul.f32 %v39, %v39
  %v41 = vsel %vm33, %v40, 0.0
  %42 = vadd.xlane.f32.xlu0 %v41
  %v43 = vpop.xlane.xlu0 %42
  %v44 = vmul.f32 %v43, %v37
  %v45 = vadd.f32 %v44, 1e-06
  %v46 = vrsqrt.pop %v45
  %v47 = vmul.f32 %v39, %v46
  %v49 = vlaneseq
  %v50 = vshrl.u32 %v49, 7
  %v51 = vsub.s32 0, %v50
  %v52 = vrot.slane %v31, %v51
  %v54 = vmul.f32 %v47, %v52
  %v56 = vlaneseq
  %v57 = vshrl.u32 %v56, 7
  %v58 = vsub.s32 0, %v57
  %v59 = vrot.slane %v32, %v58
  %v61 = vadd.f32 %v54, %v59
  %v62 = vld [vmem:[%s4] sm:$0xff]
  %v63 = vld [vmem:[%s4 + $0x8] sm:$0xff]
  %v64 = vld [vmem:[%s4 + $0x10] sm:$0xff]
  %v65 = vld [vmem:[%s4 + $0x18] sm:$0xff]
  %v66 = vld [vmem:[%s4 + $0x20] sm:$0xff]
  %v67 = vld [vmem:[%s4 + $0x28] sm:$0xff]
  %v68 = vld [vmem:[%s4 + $0x30] sm:$0xff]
  %v69 = vld [vmem:[%s4 + $0x38] sm:$0xff]
  %v70 = vld [vmem:[%s4 + $0x40] sm:$0xff]
  %v71 = vld [vmem:[%s4 + $0x48] sm:$0xff]
  %v72 = vld [vmem:[%s4 + $0x50] sm:$0xff]
  %v73 = vld [vmem:[%s4 + $0x58] sm:$0xff]
  %v74 = vld [vmem:[%s4 + $0x60] sm:$0xff]
  %v75 = vld [vmem:[%s4 + $0x68] sm:$0xff]
  %v76 = vld [vmem:[%s4 + $0x70] sm:$0xff]
  %v77 = vld [vmem:[%s4 + $0x78] sm:$0xff]
  %v78 = vld [vmem:[%s4 + $0x80] sm:$0xff]
  %v79 = vld [vmem:[%s4 + $0x88] sm:$0xff]
  %v80 = vld [vmem:[%s4 + $0x90] sm:$0xff]
  %v81 = vld [vmem:[%s4 + $0x98] sm:$0xff]
  %v82 = vld [vmem:[%s4 + $0xa0] sm:$0xff]
  %v83 = vld [vmem:[%s4 + $0xa8] sm:$0xff]
  %v84 = vld [vmem:[%s4 + $0xb0] sm:$0xff]
  %v85 = vld [vmem:[%s4 + $0xb8] sm:$0xff]
  %v86 = vld [vmem:[%s4 + $0xc0] sm:$0xff]
  %v87 = vld [vmem:[%s4 + $0xc8] sm:$0xff]
  %v88 = vld [vmem:[%s4 + $0xd0] sm:$0xff]
  %v89 = vld [vmem:[%s4 + $0xd8] sm:$0xff]
  %v90 = vld [vmem:[%s4 + $0xe0] sm:$0xff]
  %v91 = vld [vmem:[%s4 + $0xe8] sm:$0xff]
  %v92 = vld [vmem:[%s4 + $0xf0] sm:$0xff]
  %v93 = vld [vmem:[%s4 + $0xf8] sm:$0xff]
  %v94 = vpack.c.bf16 %v61, %v61
  %v95 = vld [vmem:[%s5] sm:$0xf]
  %v97 = vlaneseq
  %v98 = vshrl.u32 %v97, 7
  %v99 = vsub.s32 0, %v98
  %v100 = vrot.slane %v95, %v99
  %v101 = vlaneseq
  %v102 = vshrl.u32 %v101, 7
  %v103 = vsub.s32 1, %v102
  %v104 = vrot.slane %v95, %v103
  %v105 = vlaneseq
  %v106 = vshrl.u32 %v105, 7
  %v107 = vsub.s32 2, %v106
  %v108 = vrot.slane %v95, %v107
  %v109 = vlaneseq
  %v110 = vshrl.u32 %v109, 7
  %v111 = vsub.s32 3, %v110
  %v112 = vrot.slane %v95, %v111
  %v149 = vunpack.c.l.b16 %v62
  %v150 = vunpack.c.h.b16 %v62
  %v151 = vunpack.c.l.b16 %v63
  %v152 = vunpack.c.h.b16 %v63
  %v153 = vunpack.c.l.b16 %v64
  %v154 = vunpack.c.h.b16 %v64
  %v155 = vunpack.c.l.b16 %v65
  %v156 = vunpack.c.h.b16 %v65
  %v157 = vunpack.c.l.b16 %v66
  %v158 = vunpack.c.h.b16 %v66
  %v159 = vunpack.c.l.b16 %v67
  %v160 = vunpack.c.h.b16 %v67
  %v161 = vunpack.c.l.b16 %v68
  %v162 = vunpack.c.h.b16 %v68
  %v163 = vunpack.c.l.b16 %v69
  %v164 = vunpack.c.h.b16 %v69
  %v165 = vunpack.c.l.b16 %v70
  %v166 = vunpack.c.h.b16 %v70
  %v167 = vunpack.c.l.b16 %v71
  %v168 = vunpack.c.h.b16 %v71
  %v169 = vunpack.c.l.b16 %v72
  %v170 = vunpack.c.h.b16 %v72
  %v171 = vunpack.c.l.b16 %v73
  %v172 = vunpack.c.h.b16 %v73
  %v173 = vunpack.c.l.b16 %v74
  %v174 = vunpack.c.h.b16 %v74
  %v175 = vunpack.c.l.b16 %v75
  %v176 = vunpack.c.h.b16 %v75
  %v177 = vunpack.c.l.b16 %v76
  %v178 = vunpack.c.h.b16 %v76
  %v179 = vunpack.c.l.b16 %v77
  %v180 = vunpack.c.h.b16 %v77
  %v181 = vunpack.c.l.b16 %v78
  %v182 = vunpack.c.h.b16 %v78
  %v183 = vunpack.c.l.b16 %v79
  %v184 = vunpack.c.h.b16 %v79
  %v185 = vunpack.c.l.b16 %v80
  %v186 = vunpack.c.h.b16 %v80
  %v187 = vunpack.c.l.b16 %v81
  %v188 = vunpack.c.h.b16 %v81
  %v189 = vunpack.c.l.b16 %v82
  %v190 = vunpack.c.h.b16 %v82
  %v191 = vunpack.c.l.b16 %v83
  %v192 = vunpack.c.h.b16 %v83
  %v193 = vunpack.c.l.b16 %v84
  %v194 = vunpack.c.h.b16 %v84
  %v195 = vunpack.c.l.b16 %v85
  %v196 = vunpack.c.h.b16 %v85
  %v197 = vunpack.c.l.b16 %v86
  %v198 = vunpack.c.h.b16 %v86
  %v199 = vunpack.c.l.b16 %v87
  %v200 = vunpack.c.h.b16 %v87
  %v201 = vunpack.c.l.b16 %v88
  %v202 = vunpack.c.h.b16 %v88
  %v203 = vunpack.c.l.b16 %v89
  %v204 = vunpack.c.h.b16 %v89
  %v205 = vunpack.c.l.b16 %v90
  %v206 = vunpack.c.h.b16 %v90
  %v207 = vunpack.c.l.b16 %v91
  %v208 = vunpack.c.h.b16 %v91
  %v209 = vunpack.c.l.b16 %v92
  %v210 = vunpack.c.h.b16 %v92
  %v211 = vunpack.c.l.b16 %v93
  %v212 = vunpack.c.h.b16 %v93
  %v213 = vpack.c.b16 %v153, %v149
  %v214 = vpack.c.b16 %v154, %v150
  %v215 = vpack.c.b16 %v155, %v151
  %v216 = vpack.c.b16 %v156, %v152
  %v217 = vpack.c.b16 %v161, %v157
  %v218 = vpack.c.b16 %v162, %v158
  %v219 = vpack.c.b16 %v163, %v159
  %v220 = vpack.c.b16 %v164, %v160
  %v221 = vpack.c.b16 %v169, %v165
  %v222 = vpack.c.b16 %v170, %v166
  %v223 = vpack.c.b16 %v171, %v167
  %v224 = vpack.c.b16 %v172, %v168
  %v225 = vpack.c.b16 %v177, %v173
  %v226 = vpack.c.b16 %v178, %v174
  %v227 = vpack.c.b16 %v179, %v175
  %v228 = vpack.c.b16 %v180, %v176
  %v229 = vpack.c.b16 %v185, %v181
  %v230 = vpack.c.b16 %v186, %v182
  %v231 = vpack.c.b16 %v187, %v183
  %v232 = vpack.c.b16 %v188, %v184
  %v233 = vpack.c.b16 %v193, %v189
  %v234 = vpack.c.b16 %v194, %v190
  %v235 = vpack.c.b16 %v195, %v191
  %v236 = vpack.c.b16 %v196, %v192
  %v237 = vpack.c.b16 %v201, %v197
  %v238 = vpack.c.b16 %v202, %v198
  %v239 = vpack.c.b16 %v203, %v199
  %v240 = vpack.c.b16 %v204, %v200
  %v241 = vpack.c.b16 %v209, %v205
  %v242 = vpack.c.b16 %v210, %v206
  %v243 = vpack.c.b16 %v211, %v207
  %v244 = vpack.c.b16 %v212, %v208
  %277 = vmatprep.subr.bf16.mxu0 %v214
  %278 = vmatpush1.bf16.msra.mxu0 %v213
  %279 = vmatprep.subr.bf16.mxu0 %v218
  %280 = vmatpush1.bf16.msra.mxu0 %v217
  %281 = vmatprep.subr.bf16.mxu0 %v222
  %282 = vmatpush1.bf16.msra.mxu0 %v221
  %283 = vmatprep.subr.bf16.mxu0 %v226
  %284 = vmatpush1.bf16.msra.mxu0 %v225
  %285 = vmatprep.subr.bf16.mxu0 %v230
  %286 = vmatpush1.bf16.msra.mxu0 %v229
  %287 = vmatprep.subr.bf16.mxu0 %v234
  %288 = vmatpush1.bf16.msra.mxu0 %v233
  %289 = vmatprep.subr.bf16.mxu0 %v238
  %290 = vmatpush1.bf16.msra.mxu0 %v237
  %291 = vmatprep.subr.bf16.mxu0 %v242
  %292 = vmatpush1.bf16.msra.mxu0 %v241
  %293 = vmatprep.subr.bf16.mxu0 0
  %294 = vmatpush1.bf16.msra.mxu0 0
  %295 = vmatprep.subr.bf16.mxu0 0
  %296 = vmatpush1.bf16.msra.mxu0 0
  %297 = vmatprep.subr.bf16.mxu0 0
  %298 = vmatpush1.bf16.msra.mxu0 0
  %299 = vmatprep.subr.bf16.mxu0 0
  %300 = vmatpush1.bf16.msra.mxu0 0
  %301 = vmatprep.subr.bf16.mxu0 0
  %302 = vmatpush1.bf16.msra.mxu0 0
  %303 = vmatprep.subr.bf16.mxu0 0
  %304 = vmatpush1.bf16.msra.mxu0 0
  %305 = vmatprep.subr.bf16.mxu0 0
  %306 = vmatpush1.bf16.msra.mxu0 0
  %307 = vmatprep.subr.bf16.mxu0 0
  %308 = vmatpush1.bf16.msra.mxu0 0
  %309 = vmatprep.mubr.bf16.mxu0 0
  %310 = vmatmul.mubr.bf16.gmra.mrb[0].mxu0 %v94
  %v311 = vpop.f32.mrb[0].mxu0
  %v312 = vadd.f32 %v100, %v311
  %v313 = vpop.f32.mrb[0].mxu0
  %v314 = vadd.f32 %v104, %v313
  %v315 = vpop.f32.mrb[0].mxu0
  %v316 = vpop.f32.mrb[0].mxu0
  %317 = vdwg.mxu0
  %318 = vmatprep.subr.bf16.mxu0 %v216
  %319 = vmatpush1.bf16.msra.mxu0 %v215
  %320 = vmatprep.subr.bf16.mxu0 %v220
  %321 = vmatpush1.bf16.msra.mxu0 %v219
  %322 = vmatprep.subr.bf16.mxu0 %v224
  %323 = vmatpush1.bf16.msra.mxu0 %v223
  %324 = vmatprep.subr.bf16.mxu0 %v228
  %325 = vmatpush1.bf16.msra.mxu0 %v227
  %326 = vmatprep.subr.bf16.mxu0 %v232
  %327 = vmatpush1.bf16.msra.mxu0 %v231
  %328 = vmatprep.subr.bf16.mxu0 %v236
  %329 = vmatpush1.bf16.msra.mxu0 %v235
  %330 = vmatprep.subr.bf16.mxu0 %v240
  %331 = vmatpush1.bf16.msra.mxu0 %v239
  %332 = vmatprep.subr.bf16.mxu0 %v244
  %333 = vmatpush1.bf16.msra.mxu0 %v243
  %334 = vmatprep.subr.bf16.mxu0 0
  %335 = vmatpush1.bf16.msra.mxu0 0
  %336 = vmatprep.subr.bf16.mxu0 0
  %337 = vmatpush1.bf16.msra.mxu0 0
  %338 = vmatprep.subr.bf16.mxu0 0
  %339 = vmatpush1.bf16.msra.mxu0 0
  %340 = vmatprep.subr.bf16.mxu0 0
  %341 = vmatpush1.bf16.msra.mxu0 0
  %342 = vmatprep.subr.bf16.mxu0 0
  %343 = vmatpush1.bf16.msra.mxu0 0
  %344 = vmatprep.subr.bf16.mxu0 0
  %345 = vmatpush1.bf16.msra.mxu0 0
  %346 = vmatprep.subr.bf16.mxu0 0
  %347 = vmatpush1.bf16.msra.mxu0 0
  %348 = vmatprep.subr.bf16.mxu0 0
  %349 = vmatpush1.bf16.msra.mxu0 0
  %350 = vmatprep.mubr.bf16.mxu0 0
  %351 = vmatmul.mubr.bf16.gmra.mrb[0].mxu0 %v94
  %v352 = vpop.f32.mrb[0].mxu0
  %v353 = vadd.f32 %v108, %v352
  %v354 = vpop.f32.mrb[0].mxu0
  %v355 = vadd.f32 %v112, %v354
  %v356 = vpop.f32.mrb[0].mxu0
  %v357 = vpop.f32.mrb[0].mxu0
  %358 = vdwg.mxu0
  %v359 = vmul.f32 %v312, 0.5
  %v360 = vmul.f32 %v314, 0.5
  %v361 = vmul.f32 %v353, 0.5
  %v362 = vmul.f32 %v355, 0.5
  %v363 = vmul.f32 %v312, 0.70710677
  %v364 = vmul.f32 %v314, 0.70710677
  %v365 = vmul.f32 %v353, 0.70710677
  %v366 = vmul.f32 %v355, 0.70710677
  %v367 = verf.f32.pop %v363
  %v368 = verf.f32.pop %v364
  %v369 = verf.f32.pop %v365
  %v370 = verf.f32.pop %v366
  %v371 = vadd.f32 %v367, 1.0
  %v372 = vadd.f32 %v368, 1.0
  %v373 = vadd.f32 %v369, 1.0
  %v374 = vadd.f32 %v370, 1.0
  %v375 = vmul.f32 %v359, %v371
  %v376 = vmul.f32 %v360, %v372
  %v377 = vmul.f32 %v361, %v373
  %v378 = vmul.f32 %v362, %v374
  %v379 = vld [vmem:[%s6] sm:$0xf]
  %v380 = vld [vmem:[%s6 + $0x4] sm:$0xf]
  %v381 = vld [vmem:[%s6 + $0x8] sm:$0xf]
  %v382 = vld [vmem:[%s6 + $0xc] sm:$0xf]
  %v383 = vld [vmem:[%s6 + $0x10] sm:$0xf]
  %v384 = vld [vmem:[%s6 + $0x14] sm:$0xf]
  %v385 = vld [vmem:[%s6 + $0x18] sm:$0xf]
  %v386 = vld [vmem:[%s6 + $0x1c] sm:$0xf]
  %v387 = vld [vmem:[%s6 + $0x20] sm:$0xf]
  %v388 = vld [vmem:[%s6 + $0x24] sm:$0xf]
  %v389 = vld [vmem:[%s6 + $0x28] sm:$0xf]
  %v390 = vld [vmem:[%s6 + $0x2c] sm:$0xf]
  %v391 = vld [vmem:[%s6 + $0x30] sm:$0xf]
  %v392 = vld [vmem:[%s6 + $0x34] sm:$0xf]
  %v393 = vld [vmem:[%s6 + $0x38] sm:$0xf]
  %v394 = vld [vmem:[%s6 + $0x3c] sm:$0xf]
  %v395 = vld [vmem:[%s6 + $0x40] sm:$0xf]
  %v396 = vld [vmem:[%s6 + $0x44] sm:$0xf]
  %v397 = vld [vmem:[%s6 + $0x48] sm:$0xf]
  %v398 = vld [vmem:[%s6 + $0x4c] sm:$0xf]
  %v399 = vld [vmem:[%s6 + $0x50] sm:$0xf]
  %v400 = vld [vmem:[%s6 + $0x54] sm:$0xf]
  %v401 = vld [vmem:[%s6 + $0x58] sm:$0xf]
  %v402 = vld [vmem:[%s6 + $0x5c] sm:$0xf]
  %v403 = vld [vmem:[%s6 + $0x60] sm:$0xf]
  %v404 = vld [vmem:[%s6 + $0x64] sm:$0xf]
  %v405 = vld [vmem:[%s6 + $0x68] sm:$0xf]
  %v406 = vld [vmem:[%s6 + $0x6c] sm:$0xf]
  %v407 = vld [vmem:[%s6 + $0x70] sm:$0xf]
  %v408 = vld [vmem:[%s6 + $0x74] sm:$0xf]
  %v409 = vld [vmem:[%s6 + $0x78] sm:$0xf]
  %v410 = vld [vmem:[%s6 + $0x7c] sm:$0xf]
  %v411 = vld [vmem:[%s6 + $0x80] sm:$0xf]
  %v412 = vld [vmem:[%s6 + $0x84] sm:$0xf]
  %v413 = vld [vmem:[%s6 + $0x88] sm:$0xf]
  %v414 = vld [vmem:[%s6 + $0x8c] sm:$0xf]
  %v415 = vld [vmem:[%s6 + $0x90] sm:$0xf]
  %v416 = vld [vmem:[%s6 + $0x94] sm:$0xf]
  %v417 = vld [vmem:[%s6 + $0x98] sm:$0xf]
  %v418 = vld [vmem:[%s6 + $0x9c] sm:$0xf]
  %v419 = vld [vmem:[%s6 + $0xa0] sm:$0xf]
  %v420 = vld [vmem:[%s6 + $0xa4] sm:$0xf]
  %v421 = vld [vmem:[%s6 + $0xa8] sm:$0xf]
  %v422 = vld [vmem:[%s6 + $0xac] sm:$0xf]
  %v423 = vld [vmem:[%s6 + $0xb0] sm:$0xf]
  %v424 = vld [vmem:[%s6 + $0xb4] sm:$0xf]
  %v425 = vld [vmem:[%s6 + $0xb8] sm:$0xf]
  %v426 = vld [vmem:[%s6 + $0xbc] sm:$0xf]
  %v427 = vld [vmem:[%s6 + $0xc0] sm:$0xf]
  %v428 = vld [vmem:[%s6 + $0xc4] sm:$0xf]
  %v429 = vld [vmem:[%s6 + $0xc8] sm:$0xf]
  %v430 = vld [vmem:[%s6 + $0xcc] sm:$0xf]
  %v431 = vld [vmem:[%s6 + $0xd0] sm:$0xf]
  %v432 = vld [vmem:[%s6 + $0xd4] sm:$0xf]
  %v433 = vld [vmem:[%s6 + $0xd8] sm:$0xf]
  %v434 = vld [vmem:[%s6 + $0xdc] sm:$0xf]
  %v435 = vld [vmem:[%s6 + $0xe0] sm:$0xf]
  %v436 = vld [vmem:[%s6 + $0xe4] sm:$0xf]
  %v437 = vld [vmem:[%s6 + $0xe8] sm:$0xf]
  %v438 = vld [vmem:[%s6 + $0xec] sm:$0xf]
  %v439 = vld [vmem:[%s6 + $0xf0] sm:$0xf]
  %v440 = vld [vmem:[%s6 + $0xf4] sm:$0xf]
  %v441 = vld [vmem:[%s6 + $0xf8] sm:$0xf]
  %v442 = vld [vmem:[%s6 + $0xfc] sm:$0xf]
  %v443 = vpack.c.bf16 %v375, %v375
  %v444 = vpack.c.bf16 %v376, %v376
  %v445 = vpack.c.bf16 %v377, %v377
  %v446 = vpack.c.bf16 %v378, %v378
  %v447 = vld [vmem:[%s7] sm:$0x1]
  %v449 = vlaneseq
  %v450 = vshrl.u32 %v449, 7
  %v451 = vsub.s32 0, %v450
  %v452 = vrot.slane %v447, %v451
  %v518 = vunpack.c.l.b16 %v379
  %v519 = vunpack.c.l.b16 %v380
  %v520 = vunpack.c.l.b16 %v381
  %v521 = vunpack.c.l.b16 %v382
  %v522 = vunpack.c.l.b16 %v383
  %v523 = vunpack.c.l.b16 %v384
  %v524 = vunpack.c.l.b16 %v385
  %v525 = vunpack.c.l.b16 %v386
  %v526 = vunpack.c.l.b16 %v387
  %v527 = vunpack.c.l.b16 %v388
  %v528 = vunpack.c.l.b16 %v389
  %v529 = vunpack.c.l.b16 %v390
  %v530 = vunpack.c.l.b16 %v391
  %v531 = vunpack.c.l.b16 %v392
  %v532 = vunpack.c.l.b16 %v393
  %v533 = vunpack.c.l.b16 %v394
  %v534 = vunpack.c.l.b16 %v395
  %v535 = vunpack.c.l.b16 %v396
  %v536 = vunpack.c.l.b16 %v397
  %v537 = vunpack.c.l.b16 %v398
  %v538 = vunpack.c.l.b16 %v399
  %v539 = vunpack.c.l.b16 %v400
  %v540 = vunpack.c.l.b16 %v401
  %v541 = vunpack.c.l.b16 %v402
  %v542 = vunpack.c.l.b16 %v403
  %v543 = vunpack.c.l.b16 %v404
  %v544 = vunpack.c.l.b16 %v405
  %v545 = vunpack.c.l.b16 %v406
  %v546 = vunpack.c.l.b16 %v407
  %v547 = vunpack.c.l.b16 %v408
  %v548 = vunpack.c.l.b16 %v409
  %v549 = vunpack.c.l.b16 %v410
  %v550 = vunpack.c.l.b16 %v411
  %v551 = vunpack.c.l.b16 %v412
  %v552 = vunpack.c.l.b16 %v413
  %v553 = vunpack.c.l.b16 %v414
  %v554 = vunpack.c.l.b16 %v415
  %v555 = vunpack.c.l.b16 %v416
  %v556 = vunpack.c.l.b16 %v417
  %v557 = vunpack.c.l.b16 %v418
  %v558 = vunpack.c.l.b16 %v419
  %v559 = vunpack.c.l.b16 %v420
  %v560 = vunpack.c.l.b16 %v421
  %v561 = vunpack.c.l.b16 %v422
  %v562 = vunpack.c.l.b16 %v423
  %v563 = vunpack.c.l.b16 %v424
  %v564 = vunpack.c.l.b16 %v425
  %v565 = vunpack.c.l.b16 %v426
  %v566 = vunpack.c.l.b16 %v427
  %v567 = vunpack.c.l.b16 %v428
  %v568 = vunpack.c.l.b16 %v429
  %v569 = vunpack.c.l.b16 %v430
  %v570 = vunpack.c.l.b16 %v431
  %v571 = vunpack.c.l.b16 %v432
  %v572 = vunpack.c.l.b16 %v433
  %v573 = vunpack.c.l.b16 %v434
  %v574 = vunpack.c.l.b16 %v435
  %v575 = vunpack.c.l.b16 %v436
  %v576 = vunpack.c.l.b16 %v437
  %v577 = vunpack.c.l.b16 %v438
  %v578 = vunpack.c.l.b16 %v439
  %v579 = vunpack.c.l.b16 %v440
  %v580 = vunpack.c.l.b16 %v441
  %v581 = vunpack.c.l.b16 %v442
  %v582 = vpack.c.b16 %v519, %v518
  %v583 = vpack.c.b16 %v521, %v520
  %v584 = vpack.c.b16 %v523, %v522
  %v585 = vpack.c.b16 %v525, %v524
  %v586 = vpack.c.b16 %v527, %v526
  %v587 = vpack.c.b16 %v529, %v528
  %v588 = vpack.c.b16 %v531, %v530
  %v589 = vpack.c.b16 %v533, %v532
  %v590 = vpack.c.b16 %v535, %v534
  %v591 = vpack.c.b16 %v537, %v536
  %v592 = vpack.c.b16 %v539, %v538
  %v593 = vpack.c.b16 %v541, %v540
  %v594 = vpack.c.b16 %v543, %v542
  %v595 = vpack.c.b16 %v545, %v544
  %v596 = vpack.c.b16 %v547, %v546
  %v597 = vpack.c.b16 %v549, %v548
  %v598 = vpack.c.b16 %v551, %v550
  %v599 = vpack.c.b16 %v553, %v552
  %v600 = vpack.c.b16 %v555, %v554
  %v601 = vpack.c.b16 %v557, %v556
  %v602 = vpack.c.b16 %v559, %v558
  %v603 = vpack.c.b16 %v561, %v560
  %v604 = vpack.c.b16 %v563, %v562
  %v605 = vpack.c.b16 %v565, %v564
  %v606 = vpack.c.b16 %v567, %v566
  %v607 = vpack.c.b16 %v569, %v568
  %v608 = vpack.c.b16 %v571, %v570
  %v609 = vpack.c.b16 %v573, %v572
  %v610 = vpack.c.b16 %v575, %v574
  %v611 = vpack.c.b16 %v577, %v576
  %v612 = vpack.c.b16 %v579, %v578
  %v613 = vpack.c.b16 %v581, %v580
  %646 = vmatprep.subr.bf16.mxu0 0
  %647 = vmatpush1.bf16.msra.mxu0 %v582
  %648 = vmatprep.subr.bf16.mxu0 0
  %649 = vmatpush1.bf16.msra.mxu0 %v583
  %650 = vmatprep.subr.bf16.mxu0 0
  %651 = vmatpush1.bf16.msra.mxu0 %v584
  %652 = vmatprep.subr.bf16.mxu0 0
  %653 = vmatpush1.bf16.msra.mxu0 %v585
  %654 = vmatprep.subr.bf16.mxu0 0
  %655 = vmatpush1.bf16.msra.mxu0 %v586
  %656 = vmatprep.subr.bf16.mxu0 0
  %657 = vmatpush1.bf16.msra.mxu0 %v587
  %658 = vmatprep.subr.bf16.mxu0 0
  %659 = vmatpush1.bf16.msra.mxu0 %v588
  %660 = vmatprep.subr.bf16.mxu0 0
  %661 = vmatpush1.bf16.msra.mxu0 %v589
  %662 = vmatprep.subr.bf16.mxu0 0
  %663 = vmatpush1.bf16.msra.mxu0 %v590
  %664 = vmatprep.subr.bf16.mxu0 0
  %665 = vmatpush1.bf16.msra.mxu0 %v591
  %666 = vmatprep.subr.bf16.mxu0 0
  %667 = vmatpush1.bf16.msra.mxu0 %v592
  %668 = vmatprep.subr.bf16.mxu0 0
  %669 = vmatpush1.bf16.msra.mxu0 %v593
  %670 = vmatprep.subr.bf16.mxu0 0
  %671 = vmatpush1.bf16.msra.mxu0 %v594
  %672 = vmatprep.subr.bf16.mxu0 0
  %673 = vmatpush1.bf16.msra.mxu0 %v595
  %674 = vmatprep.subr.bf16.mxu0 0
  %675 = vmatpush1.bf16.msra.mxu0 %v596
  %676 = vmatprep.subr.bf16.mxu0 0
  %677 = vmatpush1.bf16.msra.mxu0 %v597
  %678 = vmatprep.mubr.bf16.mxu0 %v444
  %679 = vmatmul.mubr.bf16.gmra.mrb[0].mxu0 %v443
  %v680 = vpop.f32.mrb[0].mxu0
  %v681 = vadd.f32 %v452, %v680
  %v682 = vpop.f32.mrb[0].mxu0
  %v683 = vpop.f32.mrb[0].mxu0
  %v684 = vpop.f32.mrb[0].mxu0
  %685 = vdwg.mxu0
  %686 = vmatprep.subr.bf16.mxu0 0
  %687 = vmatpush1.bf16.msra.mxu0 %v598
  %688 = vmatprep.subr.bf16.mxu0 0
  %689 = vmatpush1.bf16.msra.mxu0 %v599
  %690 = vmatprep.subr.bf16.mxu0 0
  %691 = vmatpush1.bf16.msra.mxu0 %v600
  %692 = vmatprep.subr.bf16.mxu0 0
  %693 = vmatpush1.bf16.msra.mxu0 %v601
  %694 = vmatprep.subr.bf16.mxu0 0
  %695 = vmatpush1.bf16.msra.mxu0 %v602
  %696 = vmatprep.subr.bf16.mxu0 0
  %697 = vmatpush1.bf16.msra.mxu0 %v603
  %698 = vmatprep.subr.bf16.mxu0 0
  %699 = vmatpush1.bf16.msra.mxu0 %v604
  %700 = vmatprep.subr.bf16.mxu0 0
  %701 = vmatpush1.bf16.msra.mxu0 %v605
  %702 = vmatprep.subr.bf16.mxu0 0
  %703 = vmatpush1.bf16.msra.mxu0 %v606
  %704 = vmatprep.subr.bf16.mxu0 0
  %705 = vmatpush1.bf16.msra.mxu0 %v607
  %706 = vmatprep.subr.bf16.mxu0 0
  %707 = vmatpush1.bf16.msra.mxu0 %v608
  %708 = vmatprep.subr.bf16.mxu0 0
  %709 = vmatpush1.bf16.msra.mxu0 %v609
  %710 = vmatprep.subr.bf16.mxu0 0
  %711 = vmatpush1.bf16.msra.mxu0 %v610
  %712 = vmatprep.subr.bf16.mxu0 0
  %713 = vmatpush1.bf16.msra.mxu0 %v611
  %714 = vmatprep.subr.bf16.mxu0 0
  %715 = vmatpush1.bf16.msra.mxu0 %v612
  %716 = vmatprep.subr.bf16.mxu0 0
  %717 = vmatpush1.bf16.msra.mxu0 %v613
  %718 = vmatprep.mubr.bf16.mxu0 %v446
  %719 = vmatmul.mubr.bf16.gmra.mrb[0].mxu0 %v445
  %v720 = vpop.f32.mrb[0].mxu0
  %v721 = vadd.f32 %v681, %v720
  %v722 = vpop.f32.mrb[0].mxu0
  %v723 = vpop.f32.mrb[0].mxu0
  %v724 = vpop.f32.mrb[0].mxu0
  %725 = vdwg.mxu0
  %v726 = vld [vmem:[%s1] sm:$0x3]
  %v727 = vadd.f32 %v726, %v721
  %728 = vst [vmem:[%s8] sm:$0x3] %v727
  // Predicated region
  $region34: #{forward.37} parent=0 // pred_check
    _
  $region35: #{forward.37} parent=0 // pred_check_branch
    %730 = sbr.rel (0) target = $region37
  $region36: #{forward.37} parent=0 // pred_region
    _
  $region37: #{forward.37} parent=0 // pred_fallthru
    _
  // Predicated region
  $region38: #{forward.37} parent=0 // pred_check
    _
  $region39: #{forward.37} parent=0 // pred_check_branch
    %732 = sbr.rel (0) target = $region41
  $region40: #{forward.37} parent=0 // pred_region
    _
  $region41: #{forward.37} parent=0 // pred_fallthru
    _

// kernel: forward.36
$region0: #{forward.36}
  #allocation0 [shape = 'u32[]', space=smem, size = 0x4, offset = 0x4, fixed_abs, tag = 'smem constant byte address 0x4 - core index']
  #allocation1 [shape = 'u32[144,128]{1,0:T(1,128)}', space=vmem, size = 0x12000, scoped, tag = 'internal scratch']
  #allocation2 [shape = 'f32[1,11,11,48]{3,2,1,0:T(8,128)}', space=vmem, size = 0x16000, scoped, tag = 'scratch operand']
  %s0 = inlined_call_operand.vmem [shape: f32[2,1,1,128], index: 0, kind: input, shape index: {}]
  %s1 = inlined_call_operand.vmem [shape: f32[25,48], index: 1, kind: input, shape index: {}]
  %s2 = inlined_call_operand.vmem [shape: f32[1,48], index: 2, kind: input, shape index: {}]
  %s3 = inlined_call_operand.vmem [shape: f32[2,1,1,128], index: 3, kind: output, shape index: {}]
  %s4 = sld [smem:[#allocation0]]
  $region45: #{forward.36} parent=0
    _
  %s6 = ssub.s32 1, %s4
  %s7 = scalar_select 0, %s6, %s4
  loop: start=0, step=1, limit=4
  $region2: #{forward.36} parent=0 // loop_pre_header
    _
  $region3: #{forward.36} parent=0 // loop_header
    %s9 = sphi 0, %s13
    %p10 = scmp.ge.s32.totalorder %s9, 4
    %s19 = sphi 0, %s21
    %s22 = sphi 0, %s19
    %s23 = sphi 0, %s22
    %s39 = sphi 0, %s23
    %s43 = sphi 0, %s43
    %s45 = sphi 0, %s43
    %s46 = sphi 0, %s45
    %s60 = sphi 0, %s46
    %s64 = sphi 0, %s64
    %s66 = sphi 0, %s64
    %s67 = sphi 0, %s66
    %s81 = sphi 0, %s67
    %s87 = sphi 0, %s89
    %s90 = sphi 0, %s87
    %s91 = sphi 0, %s90
    %s107 = sphi 0, %s91
  $region4: #{forward.36} parent=0 // loop_header_branch
    %12 = sbr.rel (%p10) target = $region8
  $region5: #{forward.36} parent=0 // loop_body
    %s14 = ssub.s32 %s9, 1
    %s15 = ssub.s32 %s9, 2
    %s16 = sadd.s32 %s9, 1
    %s17 = ssub.s32 %s9, %s16
    %p18 = scmp.eq.s32.totalorder %s17, 0
    %s20 = sadd.s32 %s19, 1
    %s21 = scalar_select %p18, %s19, %s20
    %p24 = pneg %p18
    %p25 = scmp.eq.s32.totalorder %s9, 1
    %p26 = por %p24, %p25
    %p27 = scmp.ne.s32.totalorder %s19, %s22
    %p28 = scmp.eq.s32.totalorder %s9, 0
    %p29 = por %p27, %p28
    %p30 = scmp.ne.s32.totalorder %s19, %s22
    %p31 = scmp.eq.s32.totalorder %s14, 1
    %p32 = por %p30, %p31
    %p33 = scmp.ne.s32.totalorder %s22, %s23
    %p34 = scmp.eq.s32.totalorder %s14, 0
    %p35 = por %p33, %p34
    %p36 = scmp.ne.s32.totalorder %s22, %s23
    %p37 = scmp.eq.s32.totalorder %s15, 1
    %p38 = por %p36, %p37
    %p40 = scmp.ne.s32.totalorder %s23, %s39
    %p41 = scmp.eq.s32.totalorder %s15, 0
    %p42 = por %p40, %p41
    %s44 = sadd.s32 %s43, 1
    %p47 = scmp.eq.s32.totalorder %s9, 1
    %p48 = scmp.ne.s32.totalorder %s43, %s45
    %p49 = scmp.eq.s32.totalorder %s9, 0
    %p50 = por %p48, %p49
    %p51 = scmp.ne.s32.totalorder %s43, %s45
    %p52 = scmp.eq.s32.totalorder %s14, 1
    %p53 = por %p51, %p52
    %p54 = scmp.ne.s32.totalorder %s45, %s46
    %p55 = scmp.eq.s32.totalorder %s14, 0
    %p56 = por %p54, %p55
    %p57 = scmp.ne.s32.totalorder %s45, %s46
    %p58 = scmp.eq.s32.totalorder %s15, 1
    %p59 = por %p57, %p58
    %p61 = scmp.ne.s32.totalorder %s46, %s60
    %p62 = scmp.eq.s32.totalorder %s15, 0
    %p63 = por %p61, %p62
    %s65 = sadd.s32 %s64, 1
    %p68 = scmp.eq.s32.totalorder %s9, 1
    %p69 = scmp.ne.s32.totalorder %s64, %s66
    %p70 = scmp.eq.s32.totalorder %s9, 0
    %p71 = por %p69, %p70
    %p72 = scmp.ne.s32.totalorder %s64, %s66
    %p73 = scmp.eq.s32.totalorder %s14, 1
    %p74 = por %p72, %p73
    %p75 = scmp.ne.s32.totalorder %s66, %s67
    %p76 = scmp.eq.s32.totalorder %s14, 0
    %p77 = por %p75, %p76
    %p78 = scmp.ne.s32.totalorder %s66, %s67
    %p79 = scmp.eq.s32.totalorder %s15, 1
    %p80 = por %p78, %p79
    %p82 = scmp.ne.s32.totalorder %s67, %s81
    %p83 = scmp.eq.s32.totalorder %s15, 0
    %p84 = por %p82, %p83
    %s85 = ssub.s32 %s9, %s16
    %p86 = scmp.eq.s32.totalorder %s85, 0
    %s88 = sadd.s32 %s87, 1
    %s89 = scalar_select %p86, %s87, %s88
    %p92 = pneg %p86
    %p93 = scmp.eq.s32.totalorder %s9, 1
    %p94 = por %p92, %p93
    %p95 = scmp.ne.s32.totalorder %s87, %s90
    %p96 = scmp.eq.s32.totalorder %s9, 0
    %p97 = por %p95, %p96
    %p98 = scmp.ne.s32.totalorder %s87, %s90
    %p99 = scmp.eq.s32.totalorder %s14, 1
    %p100 = por %p98, %p99
    %p101 = scmp.ne.s32.totalorder %s90, %s91
    %p102 = scmp.eq.s32.totalorder %s14, 0
    %p103 = por %p101, %p102
    %p104 = scmp.ne.s32.totalorder %s90, %s91
    %p105 = scmp.eq.s32.totalorder %s15, 1
    %p106 = por %p104, %p105
    %p108 = scmp.ne.s32.totalorder %s91, %s107
    %p109 = scmp.eq.s32.totalorder %s15, 0
    %p110 = por %p108, %p109
    %p111 = scmp.le.s32.totalorder 1, %s9
    %p112 = scmp.lt.s32.totalorder %s9, 3
    %p113 = pnand %p111, %p112
    %p114 = pneg %p113
    // Predicated region
    $region9: #{forward.36} parent=5 // pred_check
      _
    $region10: #{forward.36} parent=5 // pred_check_branch
      %116 = sbr.rel (%p113) target = $region12
    $region11: #{forward.36} parent=5 // pred_region
      %s117 = ssub.s32 %s9, 1
      // Predicated region
      $region13: #{forward.36} parent=11 // pred_check
        %p118 = pneg %p56
      $region14: #{forward.36} parent=11 // pred_check_branch
        %120 = sbr.rel (%p118) target = $region16
      $region15: #{forward.36} parent=11 // pred_region
        _
      $region16: #{forward.36} parent=11 // pred_fallthru
        _
      // Predicated region
      $region17: #{forward.36} parent=11 // pred_check
        %p121 = pneg %p77
      $region18: #{forward.36} parent=11 // pred_check_branch
        %123 = sbr.rel (%p121) target = $region20
      $region19: #{forward.36} parent=11 // pred_region
        _
      $region20: #{forward.36} parent=11 // pred_fallthru
        _
    $region12: #{forward.36} parent=5 // pred_fallthru
      _
    %p124 = scmp.lt.s32.totalorder %s9, 2
    // Predicated region
    $region21: #{forward.36} parent=5 // pred_check
      %p125 = pneg %p124
    $region22: #{forward.36} parent=5 // pred_check_branch
      %127 = sbr.rel (%p125) target = $region24
    $region23: #{forward.36} parent=5 // pred_region
      // Predicated region
      $region25: #{forward.36} parent=23 // pred_check
        %p128 = pneg %p29
      $region26: #{forward.36} parent=23 // pred_check_branch
        %130 = sbr.rel (%p128) target = $region28
      $region27: #{forward.36} parent=23 // pred_region
        %p131 = scmp.lt.s32.totalorder %s9, 1
        %s132 = scalar_select %p131, %s9, 1
        %s133 = scalar_lea.vmem %s0, %s132
      $region28: #{forward.36} parent=23 // pred_fallthru
        _
    $region24: #{forward.36} parent=5 // pred_fallthru
      _
    %p134 = scmp.le.s32.totalorder 1, %s9
    %p135 = scmp.lt.s32.totalorder %s9, 3
    %p136 = pnand %p134, %p135
    %p137 = pneg %p136
    // Predicated region
    $region29: #{forward.36} parent=5 // pred_check
      _
    $region30: #{forward.36} parent=5 // pred_check_branch
      %139 = sbr.rel (%p136) target = $region32
    $region31: #{forward.36} parent=5 // pred_region
      %s140 = ssub.s32 %s9, 1
      %p141 = scmp.lt.s32.totalorder %s14, 1
      %s142 = scalar_select %p141, %s14, 1
      %s143 = scalar_lea.vmem %s0, %s142
      %p144 = pneg %p35
      %p145 = pneg %p32
      %p146 = pneg %p56
      %p147 = pneg %p53
      %p148 = pneg %p77
      %p149 = pneg %p74
      %p150 = pneg %p103
      %p151 = pneg %p100
      %p152 = scmp.lt.s32.totalorder %s14, 1
      %s153 = scalar_select %p152, %s14, 1
      %s154 = scalar_lea.vmem %s3, %s153
      %p155 = scmp.lt.s32.totalorder %s14, 1
      %s156 = scalar_select %p155, %s14, 1
      %s157 = scalar_lea.vmem %s0, %s156
      %p158 = scmp.lt.s32.totalorder %s14, 1
      %s159 = scalar_select %p158, %s14, 1
      %s160 = scalar_lea.vmem %s3, %s159
      %v161 = vld [vmem:[%s157] sm:$0x1]
      %vm162 = vcmask 392192
      %163 = vst.msk [vmem:[#allocation2] sm:$0xff] %vm162, 0.0
      %vm164 = vcmask 387072
      %165 = vst.msk [vmem:[#allocation2 + $0x8] sm:$0x7] %vm164, 0.0
      %166 = vst.msk [vmem:[#allocation2 + $0x10] sm:$0xff] %vm162, 0.0
      %167 = vst.msk [vmem:[#allocation2 + $0x18] sm:$0x7] %vm164, 0.0
      %168 = vst.msk [vmem:[#allocation2 + $0x20] sm:$0xff] %vm162, 0.0
      %169 = vst.msk [vmem:[#allocation2 + $0x28] sm:$0x7] %vm164, 0.0
      %170 = vst.msk [vmem:[#allocation2 + $0x30] sm:$0xff] %vm162, 0.0
      %171 = vst.msk [vmem:[#allocation2 + $0x38] sm:$0x7] %vm164, 0.0
      %172 = vst.msk [vmem:[#allocation2 + $0x40] sm:$0xff] %vm162, 0.0
      %173 = vst.msk [vmem:[#allocation2 + $0x48] sm:$0x7] %vm164, 0.0
      %174 = vst.msk [vmem:[#allocation2 + $0x50] sm:$0xff] %vm162, 0.0
      %175 = vst.msk [vmem:[#allocation2 + $0x58] sm:$0x7] %vm164, 0.0
      %176 = vst.msk [vmem:[#allocation2 + $0x60] sm:$0xff] %vm162, 0.0
      %177 = vst.msk [vmem:[#allocation2 + $0x68] sm:$0x7] %vm164, 0.0
      %178 = vst.msk [vmem:[#allocation2 + $0x70] sm:$0xff] %vm162, 0.0
      %179 = vst.msk [vmem:[#allocation2 + $0x78] sm:$0x7] %vm164, 0.0
      %180 = vst.msk [vmem:[#allocation2 + $0x80] sm:$0xff] %vm162, 0.0
      %181 = vst.msk [vmem:[#allocation2 + $0x88] sm:$0x7] %vm164, 0.0
      %182 = vst.msk [vmem:[#allocation2 + $0x90] sm:$0xff] %vm162, 0.0
      %183 = vst.msk [vmem:[#allocation2 + $0x98] sm:$0x7] %vm164, 0.0
      %184 = vst.msk [vmem:[#allocation2 + $0xa0] sm:$0xff] %vm162, 0.0
      %185 = vst.msk [vmem:[#allocation2 + $0xa8] sm:$0x7] %vm164, 0.0
      %v187 = vlaneseq
      %v188 = vshrl.u32 %v187, 7
      %v189 = vsub.s32 0, %v188
      %v190 = vrot.slane %v161, %v189
      %191 = vrot.lane.b32.xlu0 %v190, 48
      %v192 = vpop.permute.xlu0 %191
      %s194 = scalar_lea.vmem [#allocation2], 80
      %vm195 = vcmask 385024
      %196 = vst.msk [vmem:[%s194 + $0x5] sm:$0x1] %vm195, %v192
      %v197 = vld [vmem:[%s1] sm:$0xff]
      %v198 = vld [vmem:[%s1 + $0x8] sm:$0xff]
      %v199 = vld [vmem:[%s1 + $0x10] sm:$0xff]
      %v200 = vld [vmem:[%s1 + $0x18] sm:$0x1]
      %v201 = vld [vmem:[%s2] sm:$0x1]
      %s202 = scalar_lea.vmem [#allocation2], 64
      %v203 = vld [vmem:[%s202 + $0x4] sm:$0x1]
      %v204 = vmul.f32 %v203, %v197
      %v205 = vadd.f32 %v201, %v204
      %v206 = vld [vmem:[%s202 + $0x5] sm:$0x1]
      %v208 = vrot.slane %v197, 1
      %v210 = vmul.f32 %v206, %v208
      %v211 = vadd.f32 %v205, %v210
      %v212 = vld [vmem:[%s202 + $0x6] sm:$0x1]
      %v213 = vrot.slane %v197, 2
      %v215 = vmul.f32 %v212, %v213
      %v216 = vadd.f32 %v211, %v215
      %v217 = vld [vmem:[%s194 + $0x4] sm:$0x1]
      %v218 = vrot.slane %v197, 3
      %v220 = vmul.f32 %v217, %v218
      %v221 = vadd.f32 %v216, %v220
      %v222 = vld [vmem:[%s194 + $0x5] sm:$0x1]
      %v223 = vrot.slane %v197, 4
      %v225 = vmul.f32 %v222, %v223
      %v226 = vadd.f32 %v221, %v225
      %v227 = vld [vmem:[%s194 + $0x6] sm:$0x1]
      %v228 = vrot.slane %v197, 5
      %v230 = vmul.f32 %v227, %v228
      %v231 = vadd.f32 %v226, %v230
      %s232 = scalar_lea.vmem [#allocation2], 96
      %v233 = vld [vmem:[%s232 + $0x4] sm:$0x1]
      %v234 = vrot.slane %v197, 6
      %v236 = vmul.f32 %v233, %v234
      %v237 = vadd.f32 %v231, %v236
      %v238 = vld [vmem:[%s232 + $0x5] sm:$0x1]
      %v239 = vrot.slane %v197, 7
      %v241 = vmul.f32 %v238, %v239
      %v242 = vadd.f32 %v237, %v241
      %v243 = vld [vmem:[%s232 + $0x6] sm:$0x1]
      %v244 = vmul.f32 %v243, %v198
      %v245 = vadd.f32 %v242, %v244
      %v246 = vld [vmem:[%s194] sm:$0x1]
      %v248 = vrot.slane %v198, 1
      %v250 = vmul.f32 %v246, %v248
      %v251 = vadd.f32 %v245, %v250
      %v252 = vld [vmem:[%s194 + $0x1] sm:$0x1]
      %v253 = vrot.slane %v198, 2
      %v255 = vmul.f32 %v252, %v253
      %v256 = vadd.f32 %v251, %v255
      %v257 = vld [vmem:[%s194 + $0x2] sm:$0x1]
      %v258 = vrot.slane %v198, 3
      %v260 = vmul.f32 %v257, %v258
      %v261 = vadd.f32 %v256, %v260
      %v262 = vld [vmem:[%s194 + $0x3] sm:$0x1]
      %v263 = vrot.slane %v198, 4
      %v265 = vmul.f32 %v262, %v263
      %v266 = vadd.f32 %v261, %v265
      %v267 = vld [vmem:[%s194 + $0x7] sm:$0x1]
      %v268 = vrot.slane %v198, 5
      %v270 = vmul.f32 %v267, %v268
      %v271 = vadd.f32 %v266, %v270
      %v272 = vld [vmem:[%s194 + $0x8] sm:$0x1]
      %v273 = vrot.slane %v198, 6
      %v275 = vmul.f32 %v272, %v273
      %v276 = vadd.f32 %v271, %v275
      %v277 = vld [vmem:[%s194 + $0x9] sm:$0x1]
      %v278 = vrot.slane %v198, 7
      %v280 = vmul.f32 %v277, %v278
      %v281 = vadd.f32 %v276, %v280
      %v282 = vld [vmem:[%s194 + $0xa] sm:$0x1]
      %v283 = vmul.f32 %v282, %v199
      %v284 = vadd.f32 %v281, %v283
      %v285 = vld [vmem:[#allocation2 + $0x5] sm:$0x1]
      %v287 = vrot.slane %v199, 1
      %v289 = vmul.f32 %v285, %v287
      %v290 = vadd.f32 %v284, %v289
      %s291 = scalar_lea.vmem [#allocation2], 16
      %v292 = vld [vmem:[%s291 + $0x5] sm:$0x1]
      %v293 = vrot.slane %v199, 2
      %v295 = vmul.f32 %v292, %v293
      %v296 = vadd.f32 %v290, %v295
      %s297 = scalar_lea.vmem [#allocation2], 32
      %v298 = vld [vmem:[%s297 + $0x5] sm:$0x1]
      %v299 = vrot.slane %v199, 3
      %v301 = vmul.f32 %v298, %v299
      %v302 = vadd.f32 %v296, %v301
      %s303 = scalar_lea.vmem [#allocation2], 48
      %v304 = vld [vmem:[%s303 + $0x5] sm:$0x1]
      %v305 = vrot.slane %v199, 4
      %v307 = vmul.f32 %v304, %v305
      %v308 = vadd.f32 %v302, %v307
      %s309 = scalar_lea.vmem [#allocation2], 112
      %v310 = vld [vmem:[%s309 + $0x5] sm:$0x1]
      %v311 = vrot.slane %v199, 5
      %v313 = vmul.f32 %v310, %v311
      %v314 = vadd.f32 %v308, %v313
      %s315 = scalar_lea.vmem [#allocation2], 128
      %v316 = vld [vmem:[%s315 + $0x5] sm:$0x1]
      %v317 = vrot.slane %v199, 6
      %v319 = vmul.f32 %v316, %v317
      %v320 = vadd.f32 %v314, %v319
      %s321 = scalar_lea.vmem [#allocation2], 144
      %v322 = vld [vmem:[%s321 + $0x5] sm:$0x1]
      %v323 = vrot.slane %v199, 7
      %v325 = vmul.f32 %v322, %v323
      %v326 = vadd.f32 %v320, %v325
      %s327 = scalar_lea.vmem [#allocation2], 160
      %v328 = vld [vmem:[%s327 + $0x5] sm:$0x1]
      %v329 = vmul.f32 %v328, %v200
      %v330 = vadd.f32 %v326, %v329
      %v332 = vlaneseq
      %v333 = vshrl.u32 %v332, 7
      %v334 = vsub.s32 0, %v333
      %v335 = vrot.slane %v330, %v334
      %336 = vrot.lane.b32.xlu0 %v335, 80
      %v337 = vpop.permute.xlu0 %336
      %vm339 = vcmask 654336
      %v340 = vsel %vm339, %v161, %v337
      %341 = vst [vmem:[%s160] sm:$0x1] %v340
      %p342 = scmp.lt.s32.totalorder %s14, 1
      %s343 = scalar_select %p342, %s14, 1
      %s344 = scalar_lea.vmem %s3, %s343
      // Predicated region
      $region33: #{forward.36} parent=31 // pred_check
        %p345 = pneg %p100
      $region34: #{forward.36} parent=31 // pred_check_branch
        %347 = sbr.rel (%p345) target = $region36
      $region35: #{forward.36} parent=31 // pred_region
        _
      $region36: #{forward.36} parent=31 // pred_fallthru
        _
    $region32: #{forward.36} parent=5 // pred_fallthru
      _
    %p348 = scmp.le.s32.totalorder 2, %s9
    // Predicated region
    $region37: #{forward.36} parent=5 // pred_check
      %p349 = pneg %p348
    $region38: #{forward.36} parent=5 // pred_check_branch
      %351 = sbr.rel (%p349) target = $region40
    $region39: #{forward.36} parent=5 // pred_region
      %s352 = ssub.s32 %s9, 2
      // Predicated region
      $region41: #{forward.36} parent=39 // pred_check
        %p353 = pneg %p106
      $region42: #{forward.36} parent=39 // pred_check_branch
        %355 = sbr.rel (%p353) target = $region44
      $region43: #{forward.36} parent=39 // pred_region
        %p356 = scmp.lt.s32.totalorder %s15, 1
        %s357 = scalar_select %p356, %s15, 1
        %s358 = scalar_lea.vmem %s3, %s357
      $region44: #{forward.36} parent=39 // pred_fallthru
        _
    $region40: #{forward.36} parent=5 // pred_fallthru
      _
  $region6: #{forward.36} parent=0 // loop_footer
    %s13 = sadd.s32 1, %s9
  $region7: #{forward.36} parent=0 // loop_footer_branch
    %8 = sbr.rel target = $region3
  $region8: #{forward.36} parent=0 // loop_exit
    _

</llo_original>
